<compile_context>
chip_gen: v7x
topology: tpu7x:2x2x1
jax: 0.10.0
libtpu: 0.0.40
codegen_flags: <defaults>
</compile_context>

<pallas_src>
import functools
import math

import jax
import jax.numpy as jnp
from jax import lax
from jax.experimental import pallas as pl
from jax.experimental.pallas import tpu as pltpu


def _rup(n, m):
    return ((n + m - 1) // m) * m


def _row_offsets(D, H):
    """8-row-aligned section offsets inside the packed weight slab."""
    r1 = _rup(D, 8)              # w_hh starts here
    r2 = r1 + _rup(H, 8)         # bias (b_ih + b_hh) row
    r3 = r2 + 8                  # w_fc starts here
    r4 = r3 + _rup(H, 8)         # b_fc row
    rows = r4 + 8
    return r1, r2, r3, r4, rows


def dqn_kernel(x_ref, w_ref, q_ref, *, T, B, D, H):
    """Whole forward pass in one VMEM-resident, gridless kernel.

    x_ref : (B, T, D)     input sequence (module layout, no wrapper copy)
    w_ref : (rows, 4H)    packed weights, f32, 0.5-fold already applied:
                          [0:D]      w_ih^T  (i/f/o columns pre-scaled by 0.5)
                          [r1:r1+H]  w_hh^T  (i/f/o columns pre-scaled by 0.5)
                          [r2]       b_ih+b_hh (i/f/o lanes pre-scaled by 0.5)
                          [r3:r3+H]  w_fc^T  zero-padded from A to 4H lanes
                          [r4]       b_fc    zero-padded from A to 4H lanes
    q_ref : (B, 4H)       lane-dense Q-value output (first A lanes valid)
    """
    G = 4 * H
    r1, r2, r3, r4, _ = _row_offsets(D, H)

    # --- Unpack the single packed weight operand (static 8-row-aligned slices).
    w_ih_b = w_ref[0:D, :].astype(jnp.bfloat16)        # (D, 4H) bf16 MXU operand
    w_hh_b = w_ref[r1:r1 + H, :].astype(jnp.bfloat16)  # (H, 4H) bf16 MXU operand
    b = w_ref[r2:r2 + 1, :]                            # (1, 4H) f32
    w_fc = w_ref[r3:r3 + H, :]                         # (H, 4H) f32 (A-padded)
    b_fc = w_ref[r4:r4 + 1, :]                         # (1, 4H) f32 (A-padded)

    # --- Hoisted input projection: gather x time-major via T strided ref reads
    # (off the h-dependency chain), then ONE matmul for all T timesteps.
    xtb = jnp.concatenate([x_ref[:, t, :] for t in range(T)], axis=0)  # (T*B, D)
    xproj = jnp.dot(xtb.astype(jnp.bfloat16), w_ih_b,
                    preferred_element_type=jnp.float32) + b            # (T*B, 4H)

    # --- Hoisted lane vectors for the fused gate nonlinearity.
    # Weights were pre-scaled so gates already hold 0.5*z on i/f/o lanes, z on
    # g lanes.  sigmoid(z) == 0.5*tanh(0.5*z) + 0.5, tanh(z) == tanh(z), so a
    # single full-width tanh + one FMA recovers all four activations.
    lane = lax.broadcasted_iota(jnp.int32, (B, G), 1)
    is_g = jnp.logical_and(lane >= 2 * H, lane < 3 * H)
    gate_scale = jnp.where(is_g, 1.0, 0.5).astype(jnp.float32)
    gate_shift = jnp.where(is_g, 0.0, 0.5).astype(jnp.float32)

    h = jnp.zeros((B, H), jnp.float32)   # reset_hidden_state semantics
    c = jnp.zeros((B, H), jnp.float32)

    # --- Fully unrolled recurrence (T is a small static trip count).
    # TODO(synk): if T or H grow, switch to lax.fori_loop(..., unroll=k) with
    # xproj held in a VMEM scratch ref to bound live ranges / vreg pressure.
    for t in range(T):
        gates = xproj[t * B:(t + 1) * B, :] + jnp.dot(
            h.astype(jnp.bfloat16), w_hh_b, preferred_element_type=jnp.float32)
        nl = jnp.tanh(gates)                      # one full-width EUP push
        act = nl * gate_scale + gate_shift        # sigmoid fixup on i/f/o lanes
        i_g = act[:, 0 * H:1 * H]
        f_g = act[:, 1 * H:2 * H]
        g_g = act[:, 2 * H:3 * H]
        o_g = act[:, 3 * H:4 * H]
        c = f_g * c + i_g * g_g
        h = o_g * jnp.tanh(c)

    # Final fc kept in f32 (single tiny matmul off the recurrence path); the
    # (B, 4H) store is lane-dense (unmasked vst); consumer slices [:, :A].
    q = jnp.dot(h, w_fc, preferred_element_type=jnp.float32) + b_fc
    q_ref[...] = q.astype(q_ref.dtype)


def init_dqn_params(key, input_size, n_actions, hidden_size):
    """Deterministic PyTorch-style uniform(-1/sqrt(H), 1/sqrt(H)) init."""
    ks = jax.random.split(key, 6)
    k_lstm = 1.0 / math.sqrt(hidden_size)
    k_fc = 1.0 / math.sqrt(hidden_size)
    return {
        "w_ih": jax.random.uniform(ks[0], (4 * hidden_size, input_size),
                                   jnp.float32, -k_lstm, k_lstm),
        "w_hh": jax.random.uniform(ks[1], (4 * hidden_size, hidden_size),
                                   jnp.float32, -k_lstm, k_lstm),
        "b_ih": jax.random.uniform(ks[2], (4 * hidden_size,),
                                   jnp.float32, -k_lstm, k_lstm),
        "b_hh": jax.random.uniform(ks[3], (4 * hidden_size,),
                                   jnp.float32, -k_lstm, k_lstm),
        "w_fc": jax.random.uniform(ks[4], (n_actions, hidden_size),
                                   jnp.float32, -k_fc, k_fc),
        "b_fc": jax.random.uniform(ks[5], (n_actions,),
                                   jnp.float32, -k_fc, k_fc),
    }


def prepare_dqn_params(params, *, input_size, n_actions, hidden_size):
    """One-time parameter prep (NOT per call): transpose, pre-sum biases, fold
    the 0.5 sigmoid pre-scale into i/f/o columns, pad fc to 4H lanes, and pack
    everything into a single lane-dense (rows, 4H) slab."""
    D, A, H = input_size, n_actions, hidden_size
    G = 4 * H
    assert A <= G, "n_actions must fit in the 4H-lane padded fc output"

    lane = jnp.arange(G)
    is_g = (lane >= 2 * H) & (lane < 3 * H)
    fold = jnp.where(is_g, 1.0, 0.5).astype(jnp.float32)   # 0.5 on i/f/o lanes

    w_ih_t = params["w_ih"].T * fold                         # (D, G)
    w_hh_t = params["w_hh"].T * fold                         # (H, G)
    b = ((params["b_ih"] + params["b_hh"]) * fold).reshape(1, G)
    w_fc_pad = jnp.zeros((H, G), jnp.float32).at[:, :A].set(params["w_fc"].T)
    b_fc_pad = jnp.zeros((1, G), jnp.float32).at[:, :A].set(
        params["b_fc"].reshape(1, A))

    r1, r2, r3, r4, rows = _row_offsets(D, H)
    packed = jnp.zeros((rows, G), jnp.float32)
    packed = packed.at[0:D, :].set(w_ih_t)
    packed = packed.at[r1:r1 + H, :].set(w_hh_t)
    packed = packed.at[r2:r2 + 1, :].set(b)
    packed = packed.at[r3:r3 + H, :].set(w_fc_pad)
    packed = packed.at[r4:r4 + 1, :].set(b_fc_pad)
    return packed


def dqn_forward(x, packed_w, *, n_actions, hidden_size):
    """x: (B, T, D) module-layout input; packed_w from prepare_dqn_params."""
    B, T, D = x.shape
    H = hidden_size
    A = n_actions

    vmem = pl.BlockSpec(memory_space=pltpu.MemorySpace.VMEM)
    kernel = functools.partial(dqn_kernel, T=T, B=B, D=D, H=H)
    # All operands (~0.7 MB with B=128) fit comfortably in VMEM on every
    # generation; gridless single-TensorCore call.
    # TODO(synk): if B is scaled past one MXU pass (128 on v5e / 256 on
    # v6e/v7x), add a leading "parallel" grid axis over batch groups (uses both
    # v7x TensorCores) and set vmem_limit_bytes for the tile budget.
    # TODO(synk): for a repeated inference loop with fixed params, keep the
    # packed weight slab resident across calls (cross-call prefetch, P10)
    # instead of re-DMAing it every call.
    q_pad = pl.pallas_call(
        kernel,
        out_shape=jax.ShapeDtypeStruct((B, 4 * H), jnp.float32),
        in_specs=[vmem, vmem],
        out_specs=vmem,
    )(x, packed_w)
    # Lane-dense store inside the kernel; the tiny (B, A) slice lives in the
    # consumer (here) and is fused by XLA with whatever uses the Q-values.
    return q_pad[:, :A]


def dqn_reference(x, params):
    """Pure-JAX f32 reference matching torch.nn.LSTMCell + Linear semantics."""
    B, T, D = x.shape
    H = params["w_hh"].shape[1]
    h = jnp.zeros((B, H), jnp.float32)
    c = jnp.zeros((B, H), jnp.float32)
    b = params["b_ih"] + params["b_hh"]
    for t in range(T):
        gates = x[:, t, :] @ params["w_ih"].T + h @ params["w_hh"].T + b
        i_g = jax.nn.sigmoid(gates[:, 0 * H:1 * H])
        f_g = jax.nn.sigmoid(gates[:, 1 * H:2 * H])
        g_g = jnp.tanh(gates[:, 2 * H:3 * H])
        o_g = jax.nn.sigmoid(gates[:, 3 * H:4 * H])
        c = f_g * c + i_g * g_g
        h = o_g * jnp.tanh(c)
    return h @ params["w_fc"].T + params["b_fc"]


if __name__ == "__main__":
    # B=128 per the perf review: the per-step matmul latency is ~independent of
    # batch up to one MXU pass height, so batching 128 sequences per call is
    # essentially free and amortizes fixed per-call overhead.
    B, T, D, H, A = 128, 8, 16, 32, 4

    key = jax.random.PRNGKey(0)
    k_x, k_p = jax.random.split(key)
    x = jax.random.normal(k_x, (B, T, D), jnp.float32)
    params = init_dqn_params(k_p, input_size=D, n_actions=A, hidden_size=H)
    packed_w = prepare_dqn_params(params, input_size=D, n_actions=A,
                                  hidden_size=H)

    q = dqn_forward(x, packed_w, n_actions=A, hidden_size=H)
    q = jax.block_until_ready(q)

    q_ref = dqn_reference(x, params)
    assert q.shape == (B, A)
    # bf16 MXU operands on the recurrence -> looser tolerance than pure f32;
    # the f32 reference stays the ground truth.
    max_err = jnp.max(jnp.abs(q - q_ref))
    assert jnp.allclose(q, q_ref, atol=2e-2, rtol=2e-2), (max_err, q, q_ref)

    print("KERNEL_OK")
</pallas_src>

<mosaic_0001>
module attributes {stable_mosaic.version = 11 : i64} {
  func.func @dqn_kernel(%arg0: memref<128x8x16xf32, #tpu.memory_space<vmem>>, %arg1: memref<96x128xf32, #tpu.memory_space<vmem>>, %arg2: memref<128x128xf32, #tpu.memory_space<vmem>>) attributes {dimension_semantics = [], scalar_prefetch = 0 : i64, scratch_operands = 0 : i64, tpu.core_type = #tpu.core_type<tc>} {
    %c0 = arith.constant 0 : index
    %c0_0 = arith.constant 0 : index
    %0 = vector.load %arg1[%c0, %c0_0] : memref<96x128xf32, #tpu.memory_space<vmem>>, vector<16x128xf32>
    %1 = arith.truncf %0 : vector<16x128xf32> to vector<16x128xbf16>
    %c16 = arith.constant 16 : index
    %c0_1 = arith.constant 0 : index
    %2 = vector.load %arg1[%c16, %c0_1] : memref<96x128xf32, #tpu.memory_space<vmem>>, vector<32x128xf32>
    %3 = arith.truncf %2 : vector<32x128xf32> to vector<32x128xbf16>
    %c48 = arith.constant 48 : index
    %c0_2 = arith.constant 0 : index
    %4 = vector.load %arg1[%c48, %c0_2] : memref<96x128xf32, #tpu.memory_space<vmem>>, vector<1x128xf32>
    %c56 = arith.constant 56 : index
    %c0_3 = arith.constant 0 : index
    %5 = vector.load %arg1[%c56, %c0_3] : memref<96x128xf32, #tpu.memory_space<vmem>>, vector<32x128xf32>
    %c88 = arith.constant 88 : index
    %c0_4 = arith.constant 0 : index
    %6 = vector.load %arg1[%c88, %c0_4] : memref<96x128xf32, #tpu.memory_space<vmem>>, vector<1x128xf32>
    %c0_5 = arith.constant 0 : index
    %c0_6 = arith.constant 0 : index
    %c0_7 = arith.constant 0 : index
    %7 = vector.load %arg0[%c0_5, %c0_6, %c0_7] : memref<128x8x16xf32, #tpu.memory_space<vmem>>, vector<128x1x16xf32>
    %8 = vector.shape_cast %7 : vector<128x1x16xf32> to vector<128x16xf32>
    %c0_8 = arith.constant 0 : index
    %c1 = arith.constant 1 : index
    %c0_9 = arith.constant 0 : index
    %9 = vector.load %arg0[%c0_8, %c1, %c0_9] : memref<128x8x16xf32, #tpu.memory_space<vmem>>, vector<128x1x16xf32>
    %10 = vector.shape_cast %9 : vector<128x1x16xf32> to vector<128x16xf32>
    %c0_10 = arith.constant 0 : index
    %c2 = arith.constant 2 : index
    %c0_11 = arith.constant 0 : index
    %11 = vector.load %arg0[%c0_10, %c2, %c0_11] : memref<128x8x16xf32, #tpu.memory_space<vmem>>, vector<128x1x16xf32>
    %12 = vector.shape_cast %11 : vector<128x1x16xf32> to vector<128x16xf32>
    %c0_12 = arith.constant 0 : index
    %c3 = arith.constant 3 : index
    %c0_13 = arith.constant 0 : index
    %13 = vector.load %arg0[%c0_12, %c3, %c0_13] : memref<128x8x16xf32, #tpu.memory_space<vmem>>, vector<128x1x16xf32>
    %14 = vector.shape_cast %13 : vector<128x1x16xf32> to vector<128x16xf32>
    %c0_14 = arith.constant 0 : index
    %c4 = arith.constant 4 : index
    %c0_15 = arith.constant 0 : index
    %15 = vector.load %arg0[%c0_14, %c4, %c0_15] : memref<128x8x16xf32, #tpu.memory_space<vmem>>, vector<128x1x16xf32>
    %16 = vector.shape_cast %15 : vector<128x1x16xf32> to vector<128x16xf32>
    %c0_16 = arith.constant 0 : index
    %c5 = arith.constant 5 : index
    %c0_17 = arith.constant 0 : index
    %17 = vector.load %arg0[%c0_16, %c5, %c0_17] : memref<128x8x16xf32, #tpu.memory_space<vmem>>, vector<128x1x16xf32>
    %18 = vector.shape_cast %17 : vector<128x1x16xf32> to vector<128x16xf32>
    %c0_18 = arith.constant 0 : index
    %c6 = arith.constant 6 : index
    %c0_19 = arith.constant 0 : index
    %19 = vector.load %arg0[%c0_18, %c6, %c0_19] : memref<128x8x16xf32, #tpu.memory_space<vmem>>, vector<128x1x16xf32>
    %20 = vector.shape_cast %19 : vector<128x1x16xf32> to vector<128x16xf32>
    %c0_20 = arith.constant 0 : index
    %c7 = arith.constant 7 : index
    %c0_21 = arith.constant 0 : index
    %21 = vector.load %arg0[%c0_20, %c7, %c0_21] : memref<128x8x16xf32, #tpu.memory_space<vmem>>, vector<128x1x16xf32>
    %22 = vector.shape_cast %21 : vector<128x1x16xf32> to vector<128x16xf32>
    %23 = tpu.concatenate %8, %10, %12, %14, %16, %18, %20, %22 in 0 : vector<128x16xf32>, vector<128x16xf32>, vector<128x16xf32>, vector<128x16xf32>, vector<128x16xf32>, vector<128x16xf32>, vector<128x16xf32>, vector<128x16xf32> -> vector<1024x16xf32>
    %24 = arith.truncf %23 : vector<1024x16xf32> to vector<1024x16xbf16>
    %cst = arith.constant dense<0.000000e+00> : vector<1024x128xf32>
    %25 = tpu.matmul %24, %1, %cst {dimension_numbers = #tpu.dot_dimension_numbers<[1], [0], [0], [1], [0, 0, 1, 1], [], []>} : vector<1024x16xbf16>, vector<16x128xbf16>, vector<1024x128xf32> -> vector<1024x128xf32>
    %26 = vector.broadcast %4 : vector<1x128xf32> to vector<1024x128xf32>
    %27 = arith.addf %25, %26 : vector<1024x128xf32>
    %28 = tpu.iota {dimensions = array<i32: 1>} : vector<128x128xi32>
    %c64_i32 = arith.constant 64 : i32
    %29 = vector.broadcast %c64_i32 : i32 to vector<128x128xi32>
    %30 = arith.cmpi sge, %28, %29 : vector<128x128xi32>
    %c96_i32 = arith.constant 96 : i32
    %31 = vector.broadcast %c96_i32 : i32 to vector<128x128xi32>
    %32 = arith.cmpi slt, %28, %31 : vector<128x128xi32>
    %33 = arith.andi %30, %32 : vector<128x128xi1>
    %cst_22 = arith.constant 1.000000e+00 : f32
    %cst_23 = arith.constant 5.000000e-01 : f32
    %34 = vector.broadcast %cst_22 : f32 to vector<128x128xf32>
    %35 = vector.broadcast %cst_23 : f32 to vector<128x128xf32>
    %36 = arith.select %33, %34, %35 : vector<128x128xi1>, vector<128x128xf32>
    %cst_24 = arith.constant 0.000000e+00 : f32
    %cst_25 = arith.constant 5.000000e-01 : f32
    %37 = vector.broadcast %cst_24 : f32 to vector<128x128xf32>
    %38 = vector.broadcast %cst_25 : f32 to vector<128x128xf32>
    %39 = arith.select %33, %37, %38 : vector<128x128xi1>, vector<128x128xf32>
    %cst_26 = arith.constant 0.000000e+00 : f32
    %40 = vector.broadcast %cst_26 : f32 to vector<128x32xf32>
    %cst_27 = arith.constant 0.000000e+00 : f32
    %41 = vector.broadcast %cst_27 : f32 to vector<128x32xf32>
    %42 = vector.extract_strided_slice %27 {offsets = [0, 0], sizes = [128, 128], strides = [1, 1]} : vector<1024x128xf32> to vector<128x128xf32>
    %43 = arith.truncf %40 : vector<128x32xf32> to vector<128x32xbf16>
    %cst_28 = arith.constant dense<0.000000e+00> : vector<128x128xf32>
    %44 = tpu.matmul %43, %3, %cst_28 {dimension_numbers = #tpu.dot_dimension_numbers<[1], [0], [0], [1], [0, 0, 1, 1], [], []>} : vector<128x32xbf16>, vector<32x128xbf16>, vector<128x128xf32> -> vector<128x128xf32>
    %45 = arith.addf %42, %44 : vector<128x128xf32>
    %46 = math.tanh %45 : vector<128x128xf32>
    %47 = arith.mulf %46, %36 : vector<128x128xf32>
    %48 = arith.addf %47, %39 : vector<128x128xf32>
    %49 = vector.extract_strided_slice %48 {offsets = [0, 0], sizes = [128, 32], strides = [1, 1]} : vector<128x128xf32> to vector<128x32xf32>
    %50 = vector.extract_strided_slice %48 {offsets = [0, 32], sizes = [128, 32], strides = [1, 1]} : vector<128x128xf32> to vector<128x32xf32>
    %51 = vector.extract_strided_slice %48 {offsets = [0, 64], sizes = [128, 32], strides = [1, 1]} : vector<128x128xf32> to vector<128x32xf32>
    %52 = vector.extract_strided_slice %48 {offsets = [0, 96], sizes = [128, 32], strides = [1, 1]} : vector<128x128xf32> to vector<128x32xf32>
    %53 = arith.mulf %50, %41 : vector<128x32xf32>
    %54 = arith.mulf %49, %51 : vector<128x32xf32>
    %55 = arith.addf %53, %54 : vector<128x32xf32>
    %56 = math.tanh %55 : vector<128x32xf32>
    %57 = arith.mulf %52, %56 : vector<128x32xf32>
    %58 = vector.extract_strided_slice %27 {offsets = [128, 0], sizes = [128, 128], strides = [1, 1]} : vector<1024x128xf32> to vector<128x128xf32>
    %59 = arith.truncf %57 : vector<128x32xf32> to vector<128x32xbf16>
    %cst_29 = arith.constant dense<0.000000e+00> : vector<128x128xf32>
    %60 = tpu.matmul %59, %3, %cst_29 {dimension_numbers = #tpu.dot_dimension_numbers<[1], [0], [0], [1], [0, 0, 1, 1], [], []>} : vector<128x32xbf16>, vector<32x128xbf16>, vector<128x128xf32> -> vector<128x128xf32>
    %61 = arith.addf %58, %60 : vector<128x128xf32>
    %62 = math.tanh %61 : vector<128x128xf32>
    %63 = arith.mulf %62, %36 : vector<128x128xf32>
    %64 = arith.addf %63, %39 : vector<128x128xf32>
    %65 = vector.extract_strided_slice %64 {offsets = [0, 0], sizes = [128, 32], strides = [1, 1]} : vector<128x128xf32> to vector<128x32xf32>
    %66 = vector.extract_strided_slice %64 {offsets = [0, 32], sizes = [128, 32], strides = [1, 1]} : vector<128x128xf32> to vector<128x32xf32>
    %67 = vector.extract_strided_slice %64 {offsets = [0, 64], sizes = [128, 32], strides = [1, 1]} : vector<128x128xf32> to vector<128x32xf32>
    %68 = vector.extract_strided_slice %64 {offsets = [0, 96], sizes = [128, 32], strides = [1, 1]} : vector<128x128xf32> to vector<128x32xf32>
    %69 = arith.mulf %66, %55 : vector<128x32xf32>
    %70 = arith.mulf %65, %67 : vector<128x32xf32>
    %71 = arith.addf %69, %70 : vector<128x32xf32>
    %72 = math.tanh %71 : vector<128x32xf32>
    %73 = arith.mulf %68, %72 : vector<128x32xf32>
    %74 = vector.extract_strided_slice %27 {offsets = [256, 0], sizes = [128, 128], strides = [1, 1]} : vector<1024x128xf32> to vector<128x128xf32>
    %75 = arith.truncf %73 : vector<128x32xf32> to vector<128x32xbf16>
    %cst_30 = arith.constant dense<0.000000e+00> : vector<128x128xf32>
    %76 = tpu.matmul %75, %3, %cst_30 {dimension_numbers = #tpu.dot_dimension_numbers<[1], [0], [0], [1], [0, 0, 1, 1], [], []>} : vector<128x32xbf16>, vector<32x128xbf16>, vector<128x128xf32> -> vector<128x128xf32>
    %77 = arith.addf %74, %76 : vector<128x128xf32>
    %78 = math.tanh %77 : vector<128x128xf32>
    %79 = arith.mulf %78, %36 : vector<128x128xf32>
    %80 = arith.addf %79, %39 : vector<128x128xf32>
    %81 = vector.extract_strided_slice %80 {offsets = [0, 0], sizes = [128, 32], strides = [1, 1]} : vector<128x128xf32> to vector<128x32xf32>
    %82 = vector.extract_strided_slice %80 {offsets = [0, 32], sizes = [128, 32], strides = [1, 1]} : vector<128x128xf32> to vector<128x32xf32>
    %83 = vector.extract_strided_slice %80 {offsets = [0, 64], sizes = [128, 32], strides = [1, 1]} : vector<128x128xf32> to vector<128x32xf32>
    %84 = vector.extract_strided_slice %80 {offsets = [0, 96], sizes = [128, 32], strides = [1, 1]} : vector<128x128xf32> to vector<128x32xf32>
    %85 = arith.mulf %82, %71 : vector<128x32xf32>
    %86 = arith.mulf %81, %83 : vector<128x32xf32>
    %87 = arith.addf %85, %86 : vector<128x32xf32>
    %88 = math.tanh %87 : vector<128x32xf32>
    %89 = arith.mulf %84, %88 : vector<128x32xf32>
    %90 = vector.extract_strided_slice %27 {offsets = [384, 0], sizes = [128, 128], strides = [1, 1]} : vector<1024x128xf32> to vector<128x128xf32>
    %91 = arith.truncf %89 : vector<128x32xf32> to vector<128x32xbf16>
    %cst_31 = arith.constant dense<0.000000e+00> : vector<128x128xf32>
    %92 = tpu.matmul %91, %3, %cst_31 {dimension_numbers = #tpu.dot_dimension_numbers<[1], [0], [0], [1], [0, 0, 1, 1], [], []>} : vector<128x32xbf16>, vector<32x128xbf16>, vector<128x128xf32> -> vector<128x128xf32>
    %93 = arith.addf %90, %92 : vector<128x128xf32>
    %94 = math.tanh %93 : vector<128x128xf32>
    %95 = arith.mulf %94, %36 : vector<128x128xf32>
    %96 = arith.addf %95, %39 : vector<128x128xf32>
    %97 = vector.extract_strided_slice %96 {offsets = [0, 0], sizes = [128, 32], strides = [1, 1]} : vector<128x128xf32> to vector<128x32xf32>
    %98 = vector.extract_strided_slice %96 {offsets = [0, 32], sizes = [128, 32], strides = [1, 1]} : vector<128x128xf32> to vector<128x32xf32>
    %99 = vector.extract_strided_slice %96 {offsets = [0, 64], sizes = [128, 32], strides = [1, 1]} : vector<128x128xf32> to vector<128x32xf32>
    %100 = vector.extract_strided_slice %96 {offsets = [0, 96], sizes = [128, 32], strides = [1, 1]} : vector<128x128xf32> to vector<128x32xf32>
    %101 = arith.mulf %98, %87 : vector<128x32xf32>
    %102 = arith.mulf %97, %99 : vector<128x32xf32>
    %103 = arith.addf %101, %102 : vector<128x32xf32>
    %104 = math.tanh %103 : vector<128x32xf32>
    %105 = arith.mulf %100, %104 : vector<128x32xf32>
    %106 = vector.extract_strided_slice %27 {offsets = [512, 0], sizes = [128, 128], strides = [1, 1]} : vector<1024x128xf32> to vector<128x128xf32>
    %107 = arith.truncf %105 : vector<128x32xf32> to vector<128x32xbf16>
    %cst_32 = arith.constant dense<0.000000e+00> : vector<128x128xf32>
    %108 = tpu.matmul %107, %3, %cst_32 {dimension_numbers = #tpu.dot_dimension_numbers<[1], [0], [0], [1], [0, 0, 1, 1], [], []>} : vector<128x32xbf16>, vector<32x128xbf16>, vector<128x128xf32> -> vector<128x128xf32>
    %109 = arith.addf %106, %108 : vector<128x128xf32>
    %110 = math.tanh %109 : vector<128x128xf32>
    %111 = arith.mulf %110, %36 : vector<128x128xf32>
    %112 = arith.addf %111, %39 : vector<128x128xf32>
    %113 = vector.extract_strided_slice %112 {offsets = [0, 0], sizes = [128, 32], strides = [1, 1]} : vector<128x128xf32> to vector<128x32xf32>
    %114 = vector.extract_strided_slice %112 {offsets = [0, 32], sizes = [128, 32], strides = [1, 1]} : vector<128x128xf32> to vector<128x32xf32>
    %115 = vector.extract_strided_slice %112 {offsets = [0, 64], sizes = [128, 32], strides = [1, 1]} : vector<128x128xf32> to vector<128x32xf32>
    %116 = vector.extract_strided_slice %112 {offsets = [0, 96], sizes = [128, 32], strides = [1, 1]} : vector<128x128xf32> to vector<128x32xf32>
    %117 = arith.mulf %114, %103 : vector<128x32xf32>
    %118 = arith.mulf %113, %115 : vector<128x32xf32>
    %119 = arith.addf %117, %118 : vector<128x32xf32>
    %120 = math.tanh %119 : vector<128x32xf32>
    %121 = arith.mulf %116, %120 : vector<128x32xf32>
    %122 = vector.extract_strided_slice %27 {offsets = [640, 0], sizes = [128, 128], strides = [1, 1]} : vector<1024x128xf32> to vector<128x128xf32>
    %123 = arith.truncf %121 : vector<128x32xf32> to vector<128x32xbf16>
    %cst_33 = arith.constant dense<0.000000e+00> : vector<128x128xf32>
    %124 = tpu.matmul %123, %3, %cst_33 {dimension_numbers = #tpu.dot_dimension_numbers<[1], [0], [0], [1], [0, 0, 1, 1], [], []>} : vector<128x32xbf16>, vector<32x128xbf16>, vector<128x128xf32> -> vector<128x128xf32>
    %125 = arith.addf %122, %124 : vector<128x128xf32>
    %126 = math.tanh %125 : vector<128x128xf32>
    %127 = arith.mulf %126, %36 : vector<128x128xf32>
    %128 = arith.addf %127, %39 : vector<128x128xf32>
    %129 = vector.extract_strided_slice %128 {offsets = [0, 0], sizes = [128, 32], strides = [1, 1]} : vector<128x128xf32> to vector<128x32xf32>
    %130 = vector.extract_strided_slice %128 {offsets = [0, 32], sizes = [128, 32], strides = [1, 1]} : vector<128x128xf32> to vector<128x32xf32>
    %131 = vector.extract_strided_slice %128 {offsets = [0, 64], sizes = [128, 32], strides = [1, 1]} : vector<128x128xf32> to vector<128x32xf32>
    %132 = vector.extract_strided_slice %128 {offsets = [0, 96], sizes = [128, 32], strides = [1, 1]} : vector<128x128xf32> to vector<128x32xf32>
    %133 = arith.mulf %130, %119 : vector<128x32xf32>
    %134 = arith.mulf %129, %131 : vector<128x32xf32>
    %135 = arith.addf %133, %134 : vector<128x32xf32>
    %136 = math.tanh %135 : vector<128x32xf32>
    %137 = arith.mulf %132, %136 : vector<128x32xf32>
    %138 = vector.extract_strided_slice %27 {offsets = [768, 0], sizes = [128, 128], strides = [1, 1]} : vector<1024x128xf32> to vector<128x128xf32>
    %139 = arith.truncf %137 : vector<128x32xf32> to vector<128x32xbf16>
    %cst_34 = arith.constant dense<0.000000e+00> : vector<128x128xf32>
    %140 = tpu.matmul %139, %3, %cst_34 {dimension_numbers = #tpu.dot_dimension_numbers<[1], [0], [0], [1], [0, 0, 1, 1], [], []>} : vector<128x32xbf16>, vector<32x128xbf16>, vector<128x128xf32> -> vector<128x128xf32>
    %141 = arith.addf %138, %140 : vector<128x128xf32>
    %142 = math.tanh %141 : vector<128x128xf32>
    %143 = arith.mulf %142, %36 : vector<128x128xf32>
    %144 = arith.addf %143, %39 : vector<128x128xf32>
    %145 = vector.extract_strided_slice %144 {offsets = [0, 0], sizes = [128, 32], strides = [1, 1]} : vector<128x128xf32> to vector<128x32xf32>
    %146 = vector.extract_strided_slice %144 {offsets = [0, 32], sizes = [128, 32], strides = [1, 1]} : vector<128x128xf32> to vector<128x32xf32>
    %147 = vector.extract_strided_slice %144 {offsets = [0, 64], sizes = [128, 32], strides = [1, 1]} : vector<128x128xf32> to vector<128x32xf32>
    %148 = vector.extract_strided_slice %144 {offsets = [0, 96], sizes = [128, 32], strides = [1, 1]} : vector<128x128xf32> to vector<128x32xf32>
    %149 = arith.mulf %146, %135 : vector<128x32xf32>
    %150 = arith.mulf %145, %147 : vector<128x32xf32>
    %151 = arith.addf %149, %150 : vector<128x32xf32>
    %152 = math.tanh %151 : vector<128x32xf32>
    %153 = arith.mulf %148, %152 : vector<128x32xf32>
    %154 = vector.extract_strided_slice %27 {offsets = [896, 0], sizes = [128, 128], strides = [1, 1]} : vector<1024x128xf32> to vector<128x128xf32>
    %155 = arith.truncf %153 : vector<128x32xf32> to vector<128x32xbf16>
    %cst_35 = arith.constant dense<0.000000e+00> : vector<128x128xf32>
    %156 = tpu.matmul %155, %3, %cst_35 {dimension_numbers = #tpu.dot_dimension_numbers<[1], [0], [0], [1], [0, 0, 1, 1], [], []>} : vector<128x32xbf16>, vector<32x128xbf16>, vector<128x128xf32> -> vector<128x128xf32>
    %157 = arith.addf %154, %156 : vector<128x128xf32>
    %158 = math.tanh %157 : vector<128x128xf32>
    %159 = arith.mulf %158, %36 : vector<128x128xf32>
    %160 = arith.addf %159, %39 : vector<128x128xf32>
    %161 = vector.extract_strided_slice %160 {offsets = [0, 0], sizes = [128, 32], strides = [1, 1]} : vector<128x128xf32> to vector<128x32xf32>
    %162 = vector.extract_strided_slice %160 {offsets = [0, 32], sizes = [128, 32], strides = [1, 1]} : vector<128x128xf32> to vector<128x32xf32>
    %163 = vector.extract_strided_slice %160 {offsets = [0, 64], sizes = [128, 32], strides = [1, 1]} : vector<128x128xf32> to vector<128x32xf32>
    %164 = vector.extract_strided_slice %160 {offsets = [0, 96], sizes = [128, 32], strides = [1, 1]} : vector<128x128xf32> to vector<128x32xf32>
    %165 = arith.mulf %162, %151 : vector<128x32xf32>
    %166 = arith.mulf %161, %163 : vector<128x32xf32>
    %167 = arith.addf %165, %166 : vector<128x32xf32>
    %168 = math.tanh %167 : vector<128x32xf32>
    %169 = arith.mulf %164, %168 : vector<128x32xf32>
    %cst_36 = arith.constant dense<0.000000e+00> : vector<128x128xf32>
    %170 = tpu.matmul %169, %5, %cst_36 {dimension_numbers = #tpu.dot_dimension_numbers<[1], [0], [0], [1], [0, 0, 1, 1], [], []>} : vector<128x32xf32>, vector<32x128xf32>, vector<128x128xf32> -> vector<128x128xf32>
    %171 = vector.broadcast %6 : vector<1x128xf32> to vector<128x128xf32>
    %172 = arith.addf %170, %171 : vector<128x128xf32>
    %c0_37 = arith.constant 0 : index
    %c0_38 = arith.constant 0 : index
    %173 = vector.load %arg2[%c0_37, %c0_38] : memref<128x128xf32, #tpu.memory_space<vmem>>, vector<128x128xf32>
    tpu.vector_store %arg2[%c0_37, %c0_38], %172 {strides = array<i32>} : memref<128x128xf32, #tpu.memory_space<vmem>>, vector<128x128xf32>,
    return
  }
}

</mosaic_0001>

<llo_original>
// kernel: tpu_custom_call.1
$region0: #{tpu_custom_call.1}
  #allocation0 [shape = 'u32[]', space=smem, size = 0x4, offset = 0x4, fixed_abs, tag = 'smem constant byte address 0x4 - core index']
  #allocation1 [shape = 'u32[144,128]{1,0:T(1,128)}', space=vmem, size = 0x12000, scoped, tag = 'internal scratch']
  %s0 = inlined_call_operand.vmem [shape: f32[128,8,16], index: 0, kind: input, shape index: {}]
  %s1 = inlined_call_operand.vmem [shape: f32[96,128], index: 1, kind: input, shape index: {}]
  %s2 = inlined_call_operand.hbm [shape: f32[128,128], index: 2, kind: output, shape index: {}]
  %s3 = sld [smem:[#allocation0]]
  $region18: #{tpu_custom_call.1} parent=0
    _
  %s5 = ssub.s32 1, %s3
  %s6 = scalar_select 0, %s5, %s3
  $region1: #{tpu_custom_call.1} parent=0
    #allocation2 [shape = 'u8[65536]{0}', space=vmem, size = 0x10000, scoped, tag = 'output window, operand 0, single buffered']
    #allocation3 [shape = 's32[1]{0}', space=sflag, size = 0x4, scoped, tag = 'scoped memory for tpu_custom_call.1']
    %7 = vsyncpa [#allocation3], 0
    // Predicated region
    $region2: #{tpu_custom_call.1} parent=1 // pred_check
      _
    $region3: #{tpu_custom_call.1} parent=1 // pred_check_branch
      %9 = sbr.rel (0) target = $region5
    $region4: #{tpu_custom_call.1} parent=1 // pred_region
      _
    $region5: #{tpu_custom_call.1} parent=1 // pred_fallthru
      _
    // Predicated region
    $region6: #{tpu_custom_call.1} parent=1 // pred_check
      _
    $region7: #{tpu_custom_call.1} parent=1 // pred_check_branch
      %11 = sbr.rel (0) target = $region9
    $region8: #{tpu_custom_call.1} parent=1 // pred_region
      _
    $region9: #{tpu_custom_call.1} parent=1 // pred_fallthru
      _
    %v13 = vld [vmem:[%s1] sm:$0xff]
    %v14 = vld [vmem:[%s1 + $0x8] sm:$0xff]
    %v15 = vpack.c.bf16 %v14, %v13
    %v16 = vld [vmem:[%s1 + $0x10] sm:$0xff]
    %v17 = vld [vmem:[%s1 + $0x18] sm:$0xff]
    %v18 = vld [vmem:[%s1 + $0x20] sm:$0xff]
    %v19 = vld [vmem:[%s1 + $0x28] sm:$0xff]
    %v20 = vpack.c.bf16 %v17, %v16
    %v21 = vpack.c.bf16 %v19, %v18
    %v22 = vld [vmem:[%s1 + $0x30] sm:$0x1]
    %v23 = vld [vmem:[%s1 + $0x38] sm:$0xff]
    %v24 = vld [vmem:[%s1 + $0x40] sm:$0xff]
    %v25 = vld [vmem:[%s1 + $0x48] sm:$0xff]
    %v26 = vld [vmem:[%s1 + $0x50] sm:$0xff]
    %v27 = vld [vmem:[%s1 + $0x58] sm:$0x1]
    %v28 = vld [vmem:[%s0] sm:$0x1]
    %v29 = vld [vmem:[%s0 + $0x8] sm:$0x1]
    %v30 = vld [vmem:[%s0 + $0x10] sm:$0x1]
    %v31 = vld [vmem:[%s0 + $0x18] sm:$0x1]
    %v32 = vld [vmem:[%s0 + $0x20] sm:$0x1]
    %v33 = vld [vmem:[%s0 + $0x28] sm:$0x1]
    %v34 = vld [vmem:[%s0 + $0x30] sm:$0x1]
    %v35 = vld [vmem:[%s0 + $0x38] sm:$0x1]
    %v36 = vld [vmem:[%s0 + $0x40] sm:$0x1]
    %v37 = vld [vmem:[%s0 + $0x48] sm:$0x1]
    %v38 = vld [vmem:[%s0 + $0x50] sm:$0x1]
    %v39 = vld [vmem:[%s0 + $0x58] sm:$0x1]
    %v40 = vld [vmem:[%s0 + $0x60] sm:$0x1]
    %v41 = vld [vmem:[%s0 + $0x68] sm:$0x1]
    %v42 = vld [vmem:[%s0 + $0x70] sm:$0x1]
    %v43 = vld [vmem:[%s0 + $0x78] sm:$0x1]
    %v44 = vld [vmem:[%s0 + $0x80] sm:$0x1]
    %v45 = vld [vmem:[%s0 + $0x88] sm:$0x1]
    %v46 = vld [vmem:[%s0 + $0x90] sm:$0x1]
    %v47 = vld [vmem:[%s0 + $0x98] sm:$0x1]
    %v48 = vld [vmem:[%s0 + $0xa0] sm:$0x1]
    %v49 = vld [vmem:[%s0 + $0xa8] sm:$0x1]
    %v50 = vld [vmem:[%s0 + $0xb0] sm:$0x1]
    %v51 = vld [vmem:[%s0 + $0xb8] sm:$0x1]
    %v52 = vld [vmem:[%s0 + $0xc0] sm:$0x1]
    %v53 = vld [vmem:[%s0 + $0xc8] sm:$0x1]
    %v54 = vld [vmem:[%s0 + $0xd0] sm:$0x1]
    %v55 = vld [vmem:[%s0 + $0xd8] sm:$0x1]
    %v56 = vld [vmem:[%s0 + $0xe0] sm:$0x1]
    %v57 = vld [vmem:[%s0 + $0xe8] sm:$0x1]
    %v58 = vld [vmem:[%s0 + $0xf0] sm:$0x1]
    %v59 = vld [vmem:[%s0 + $0xf8] sm:$0x1]
    %v60 = vld [vmem:[%s0 + $0x100] sm:$0x1]
    %v61 = vld [vmem:[%s0 + $0x108] sm:$0x1]
    %v62 = vld [vmem:[%s0 + $0x110] sm:$0x1]
    %v63 = vld [vmem:[%s0 + $0x118] sm:$0x1]
    %v64 = vld [vmem:[%s0 + $0x120] sm:$0x1]
    %v65 = vld [vmem:[%s0 + $0x128] sm:$0x1]
    %v66 = vld [vmem:[%s0 + $0x130] sm:$0x1]
    %v67 = vld [vmem:[%s0 + $0x138] sm:$0x1]
    %v68 = vld [vmem:[%s0 + $0x140] sm:$0x1]
    %v69 = vld [vmem:[%s0 + $0x148] sm:$0x1]
    %v70 = vld [vmem:[%s0 + $0x150] sm:$0x1]
    %v71 = vld [vmem:[%s0 + $0x158] sm:$0x1]
    %v72 = vld [vmem:[%s0 + $0x160] sm:$0x1]
    %v73 = vld [vmem:[%s0 + $0x168] sm:$0x1]
    %v74 = vld [vmem:[%s0 + $0x170] sm:$0x1]
    %v75 = vld [vmem:[%s0 + $0x178] sm:$0x1]
    %v76 = vld [vmem:[%s0 + $0x180] sm:$0x1]
    %v77 = vld [vmem:[%s0 + $0x188] sm:$0x1]
    %v78 = vld [vmem:[%s0 + $0x190] sm:$0x1]
    %v79 = vld [vmem:[%s0 + $0x198] sm:$0x1]
    %v80 = vld [vmem:[%s0 + $0x1a0] sm:$0x1]
    %v81 = vld [vmem:[%s0 + $0x1a8] sm:$0x1]
    %v82 = vld [vmem:[%s0 + $0x1b0] sm:$0x1]
    %v83 = vld [vmem:[%s0 + $0x1b8] sm:$0x1]
    %v84 = vld [vmem:[%s0 + $0x1c0] sm:$0x1]
    %v85 = vld [vmem:[%s0 + $0x1c8] sm:$0x1]
    %v86 = vld [vmem:[%s0 + $0x1d0] sm:$0x1]
    %v87 = vld [vmem:[%s0 + $0x1d8] sm:$0x1]
    %v88 = vld [vmem:[%s0 + $0x1e0] sm:$0x1]
    %v89 = vld [vmem:[%s0 + $0x1e8] sm:$0x1]
    %v90 = vld [vmem:[%s0 + $0x1f0] sm:$0x1]
    %v91 = vld [vmem:[%s0 + $0x1f8] sm:$0x1]
    %v92 = vld [vmem:[%s0 + $0x200] sm:$0x1]
    %v93 = vld [vmem:[%s0 + $0x208] sm:$0x1]
    %v94 = vld [vmem:[%s0 + $0x210] sm:$0x1]
    %v95 = vld [vmem:[%s0 + $0x218] sm:$0x1]
    %v96 = vld [vmem:[%s0 + $0x220] sm:$0x1]
    %v97 = vld [vmem:[%s0 + $0x228] sm:$0x1]
    %v98 = vld [vmem:[%s0 + $0x230] sm:$0x1]
    %v99 = vld [vmem:[%s0 + $0x238] sm:$0x1]
    %v100 = vld [vmem:[%s0 + $0x240] sm:$0x1]
    %v101 = vld [vmem:[%s0 + $0x248] sm:$0x1]
    %v102 = vld [vmem:[%s0 + $0x250] sm:$0x1]
    %v103 = vld [vmem:[%s0 + $0x258] sm:$0x1]
    %v104 = vld [vmem:[%s0 + $0x260] sm:$0x1]
    %v105 = vld [vmem:[%s0 + $0x268] sm:$0x1]
    %v106 = vld [vmem:[%s0 + $0x270] sm:$0x1]
    %v107 = vld [vmem:[%s0 + $0x278] sm:$0x1]
    %v108 = vld [vmem:[%s0 + $0x280] sm:$0x1]
    %v109 = vld [vmem:[%s0 + $0x288] sm:$0x1]
    %v110 = vld [vmem:[%s0 + $0x290] sm:$0x1]
    %v111 = vld [vmem:[%s0 + $0x298] sm:$0x1]
    %v112 = vld [vmem:[%s0 + $0x2a0] sm:$0x1]
    %v113 = vld [vmem:[%s0 + $0x2a8] sm:$0x1]
    %v114 = vld [vmem:[%s0 + $0x2b0] sm:$0x1]
    %v115 = vld [vmem:[%s0 + $0x2b8] sm:$0x1]
    %v116 = vld [vmem:[%s0 + $0x2c0] sm:$0x1]
    %v117 = vld [vmem:[%s0 + $0x2c8] sm:$0x1]
    %v118 = vld [vmem:[%s0 + $0x2d0] sm:$0x1]
    %v119 = vld [vmem:[%s0 + $0x2d8] sm:$0x1]
    %v120 = vld [vmem:[%s0 + $0x2e0] sm:$0x1]
    %v121 = vld [vmem:[%s0 + $0x2e8] sm:$0x1]
    %v122 = vld [vmem:[%s0 + $0x2f0] sm:$0x1]
    %v123 = vld [vmem:[%s0 + $0x2f8] sm:$0x1]
    %v124 = vld [vmem:[%s0 + $0x300] sm:$0x1]
    %v125 = vld [vmem:[%s0 + $0x308] sm:$0x1]
    %v126 = vld [vmem:[%s0 + $0x310] sm:$0x1]
    %v127 = vld [vmem:[%s0 + $0x318] sm:$0x1]
    %v128 = vld [vmem:[%s0 + $0x320] sm:$0x1]
    %v129 = vld [vmem:[%s0 + $0x328] sm:$0x1]
    %v130 = vld [vmem:[%s0 + $0x330] sm:$0x1]
    %v131 = vld [vmem:[%s0 + $0x338] sm:$0x1]
    %v132 = vld [vmem:[%s0 + $0x340] sm:$0x1]
    %v133 = vld [vmem:[%s0 + $0x348] sm:$0x1]
    %v134 = vld [vmem:[%s0 + $0x350] sm:$0x1]
    %v135 = vld [vmem:[%s0 + $0x358] sm:$0x1]
    %v136 = vld [vmem:[%s0 + $0x360] sm:$0x1]
    %v137 = vld [vmem:[%s0 + $0x368] sm:$0x1]
    %v138 = vld [vmem:[%s0 + $0x370] sm:$0x1]
    %v139 = vld [vmem:[%s0 + $0x378] sm:$0x1]
    %v140 = vld [vmem:[%s0 + $0x380] sm:$0x1]
    %v141 = vld [vmem:[%s0 + $0x388] sm:$0x1]
    %v142 = vld [vmem:[%s0 + $0x390] sm:$0x1]
    %v143 = vld [vmem:[%s0 + $0x398] sm:$0x1]
    %v144 = vld [vmem:[%s0 + $0x3a0] sm:$0x1]
    %v145 = vld [vmem:[%s0 + $0x3a8] sm:$0x1]
    %v146 = vld [vmem:[%s0 + $0x3b0] sm:$0x1]
    %v147 = vld [vmem:[%s0 + $0x3b8] sm:$0x1]
    %v148 = vld [vmem:[%s0 + $0x3c0] sm:$0x1]
    %v149 = vld [vmem:[%s0 + $0x3c8] sm:$0x1]
    %v150 = vld [vmem:[%s0 + $0x3d0] sm:$0x1]
    %v151 = vld [vmem:[%s0 + $0x3d8] sm:$0x1]
    %v152 = vld [vmem:[%s0 + $0x3e0] sm:$0x1]
    %v153 = vld [vmem:[%s0 + $0x3e8] sm:$0x1]
    %v154 = vld [vmem:[%s0 + $0x3f0] sm:$0x1]
    %v155 = vld [vmem:[%s0 + $0x3f8] sm:$0x1]
    %v156 = vld [vmem:[%s0 + $0x1] sm:$0x1]
    %v157 = vld [vmem:[%s0 + $0x9] sm:$0x1]
    %v158 = vld [vmem:[%s0 + $0x11] sm:$0x1]
    %v159 = vld [vmem:[%s0 + $0x19] sm:$0x1]
    %v160 = vld [vmem:[%s0 + $0x21] sm:$0x1]
    %v161 = vld [vmem:[%s0 + $0x29] sm:$0x1]
    %v162 = vld [vmem:[%s0 + $0x31] sm:$0x1]
    %v163 = vld [vmem:[%s0 + $0x39] sm:$0x1]
    %v164 = vld [vmem:[%s0 + $0x41] sm:$0x1]
    %v165 = vld [vmem:[%s0 + $0x49] sm:$0x1]
    %v166 = vld [vmem:[%s0 + $0x51] sm:$0x1]
    %v167 = vld [vmem:[%s0 + $0x59] sm:$0x1]
    %v168 = vld [vmem:[%s0 + $0x61] sm:$0x1]
    %v169 = vld [vmem:[%s0 + $0x69] sm:$0x1]
    %v170 = vld [vmem:[%s0 + $0x71] sm:$0x1]
    %v171 = vld [vmem:[%s0 + $0x79] sm:$0x1]
    %v172 = vld [vmem:[%s0 + $0x81] sm:$0x1]
    %v173 = vld [vmem:[%s0 + $0x89] sm:$0x1]
    %v174 = vld [vmem:[%s0 + $0x91] sm:$0x1]
    %v175 = vld [vmem:[%s0 + $0x99] sm:$0x1]
    %v176 = vld [vmem:[%s0 + $0xa1] sm:$0x1]
    %v177 = vld [vmem:[%s0 + $0xa9] sm:$0x1]
    %v178 = vld [vmem:[%s0 + $0xb1] sm:$0x1]
    %v179 = vld [vmem:[%s0 + $0xb9] sm:$0x1]
    %v180 = vld [vmem:[%s0 + $0xc1] sm:$0x1]
    %v181 = vld [vmem:[%s0 + $0xc9] sm:$0x1]
    %v182 = vld [vmem:[%s0 + $0xd1] sm:$0x1]
    %v183 = vld [vmem:[%s0 + $0xd9] sm:$0x1]
    %v184 = vld [vmem:[%s0 + $0xe1] sm:$0x1]
    %v185 = vld [vmem:[%s0 + $0xe9] sm:$0x1]
    %v186 = vld [vmem:[%s0 + $0xf1] sm:$0x1]
    %v187 = vld [vmem:[%s0 + $0xf9] sm:$0x1]
    %v188 = vld [vmem:[%s0 + $0x101] sm:$0x1]
    %v189 = vld [vmem:[%s0 + $0x109] sm:$0x1]
    %v190 = vld [vmem:[%s0 + $0x111] sm:$0x1]
    %v191 = vld [vmem:[%s0 + $0x119] sm:$0x1]
    %v192 = vld [vmem:[%s0 + $0x121] sm:$0x1]
    %v193 = vld [vmem:[%s0 + $0x129] sm:$0x1]
    %v194 = vld [vmem:[%s0 + $0x131] sm:$0x1]
    %v195 = vld [vmem:[%s0 + $0x139] sm:$0x1]
    %v196 = vld [vmem:[%s0 + $0x141] sm:$0x1]
    %v197 = vld [vmem:[%s0 + $0x149] sm:$0x1]
    %v198 = vld [vmem:[%s0 + $0x151] sm:$0x1]
    %v199 = vld [vmem:[%s0 + $0x159] sm:$0x1]
    %v200 = vld [vmem:[%s0 + $0x161] sm:$0x1]
    %v201 = vld [vmem:[%s0 + $0x169] sm:$0x1]
    %v202 = vld [vmem:[%s0 + $0x171] sm:$0x1]
    %v203 = vld [vmem:[%s0 + $0x179] sm:$0x1]
    %v204 = vld [vmem:[%s0 + $0x181] sm:$0x1]
    %v205 = vld [vmem:[%s0 + $0x189] sm:$0x1]
    %v206 = vld [vmem:[%s0 + $0x191] sm:$0x1]
    %v207 = vld [vmem:[%s0 + $0x199] sm:$0x1]
    %v208 = vld [vmem:[%s0 + $0x1a1] sm:$0x1]
    %v209 = vld [vmem:[%s0 + $0x1a9] sm:$0x1]
    %v210 = vld [vmem:[%s0 + $0x1b1] sm:$0x1]
    %v211 = vld [vmem:[%s0 + $0x1b9] sm:$0x1]
    %v212 = vld [vmem:[%s0 + $0x1c1] sm:$0x1]
    %v213 = vld [vmem:[%s0 + $0x1c9] sm:$0x1]
    %v214 = vld [vmem:[%s0 + $0x1d1] sm:$0x1]
    %v215 = vld [vmem:[%s0 + $0x1d9] sm:$0x1]
    %v216 = vld [vmem:[%s0 + $0x1e1] sm:$0x1]
    %v217 = vld [vmem:[%s0 + $0x1e9] sm:$0x1]
    %v218 = vld [vmem:[%s0 + $0x1f1] sm:$0x1]
    %v219 = vld [vmem:[%s0 + $0x1f9] sm:$0x1]
    %v220 = vld [vmem:[%s0 + $0x201] sm:$0x1]
    %v221 = vld [vmem:[%s0 + $0x209] sm:$0x1]
    %v222 = vld [vmem:[%s0 + $0x211] sm:$0x1]
    %v223 = vld [vmem:[%s0 + $0x219] sm:$0x1]
    %v224 = vld [vmem:[%s0 + $0x221] sm:$0x1]
    %v225 = vld [vmem:[%s0 + $0x229] sm:$0x1]
    %v226 = vld [vmem:[%s0 + $0x231] sm:$0x1]
    %v227 = vld [vmem:[%s0 + $0x239] sm:$0x1]
    %v228 = vld [vmem:[%s0 + $0x241] sm:$0x1]
    %v229 = vld [vmem:[%s0 + $0x249] sm:$0x1]
    %v230 = vld [vmem:[%s0 + $0x251] sm:$0x1]
    %v231 = vld [vmem:[%s0 + $0x259] sm:$0x1]
    %v232 = vld [vmem:[%s0 + $0x261] sm:$0x1]
    %v233 = vld [vmem:[%s0 + $0x269] sm:$0x1]
    %v234 = vld [vmem:[%s0 + $0x271] sm:$0x1]
    %v235 = vld [vmem:[%s0 + $0x279] sm:$0x1]
    %v236 = vld [vmem:[%s0 + $0x281] sm:$0x1]
    %v237 = vld [vmem:[%s0 + $0x289] sm:$0x1]
    %v238 = vld [vmem:[%s0 + $0x291] sm:$0x1]
    %v239 = vld [vmem:[%s0 + $0x299] sm:$0x1]
    %v240 = vld [vmem:[%s0 + $0x2a1] sm:$0x1]
    %v241 = vld [vmem:[%s0 + $0x2a9] sm:$0x1]
    %v242 = vld [vmem:[%s0 + $0x2b1] sm:$0x1]
    %v243 = vld [vmem:[%s0 + $0x2b9] sm:$0x1]
    %v244 = vld [vmem:[%s0 + $0x2c1] sm:$0x1]
    %v245 = vld [vmem:[%s0 + $0x2c9] sm:$0x1]
    %v246 = vld [vmem:[%s0 + $0x2d1] sm:$0x1]
    %v247 = vld [vmem:[%s0 + $0x2d9] sm:$0x1]
    %v248 = vld [vmem:[%s0 + $0x2e1] sm:$0x1]
    %v249 = vld [vmem:[%s0 + $0x2e9] sm:$0x1]
    %v250 = vld [vmem:[%s0 + $0x2f1] sm:$0x1]
    %v251 = vld [vmem:[%s0 + $0x2f9] sm:$0x1]
    %v252 = vld [vmem:[%s0 + $0x301] sm:$0x1]
    %v253 = vld [vmem:[%s0 + $0x309] sm:$0x1]
    %v254 = vld [vmem:[%s0 + $0x311] sm:$0x1]
    %v255 = vld [vmem:[%s0 + $0x319] sm:$0x1]
    %v256 = vld [vmem:[%s0 + $0x321] sm:$0x1]
    %v257 = vld [vmem:[%s0 + $0x329] sm:$0x1]
    %v258 = vld [vmem:[%s0 + $0x331] sm:$0x1]
    %v259 = vld [vmem:[%s0 + $0x339] sm:$0x1]
    %v260 = vld [vmem:[%s0 + $0x341] sm:$0x1]
    %v261 = vld [vmem:[%s0 + $0x349] sm:$0x1]
    %v262 = vld [vmem:[%s0 + $0x351] sm:$0x1]
    %v263 = vld [vmem:[%s0 + $0x359] sm:$0x1]
    %v264 = vld [vmem:[%s0 + $0x361] sm:$0x1]
    %v265 = vld [vmem:[%s0 + $0x369] sm:$0x1]
    %v266 = vld [vmem:[%s0 + $0x371] sm:$0x1]
    %v267 = vld [vmem:[%s0 + $0x379] sm:$0x1]
    %v268 = vld [vmem:[%s0 + $0x381] sm:$0x1]
    %v269 = vld [vmem:[%s0 + $0x389] sm:$0x1]
    %v270 = vld [vmem:[%s0 + $0x391] sm:$0x1]
    %v271 = vld [vmem:[%s0 + $0x399] sm:$0x1]
    %v272 = vld [vmem:[%s0 + $0x3a1] sm:$0x1]
    %v273 = vld [vmem:[%s0 + $0x3a9] sm:$0x1]
    %v274 = vld [vmem:[%s0 + $0x3b1] sm:$0x1]
    %v275 = vld [vmem:[%s0 + $0x3b9] sm:$0x1]
    %v276 = vld [vmem:[%s0 + $0x3c1] sm:$0x1]
    %v277 = vld [vmem:[%s0 + $0x3c9] sm:$0x1]
    %v278 = vld [vmem:[%s0 + $0x3d1] sm:$0x1]
    %v279 = vld [vmem:[%s0 + $0x3d9] sm:$0x1]
    %v280 = vld [vmem:[%s0 + $0x3e1] sm:$0x1]
    %v281 = vld [vmem:[%s0 + $0x3e9] sm:$0x1]
    %v282 = vld [vmem:[%s0 + $0x3f1] sm:$0x1]
    %v283 = vld [vmem:[%s0 + $0x3f9] sm:$0x1]
    %v284 = vld [vmem:[%s0 + $0x2] sm:$0x1]
    %v285 = vld [vmem:[%s0 + $0xa] sm:$0x1]
    %v286 = vld [vmem:[%s0 + $0x12] sm:$0x1]
    %v287 = vld [vmem:[%s0 + $0x1a] sm:$0x1]
    %v288 = vld [vmem:[%s0 + $0x22] sm:$0x1]
    %v289 = vld [vmem:[%s0 + $0x2a] sm:$0x1]
    %v290 = vld [vmem:[%s0 + $0x32] sm:$0x1]
    %v291 = vld [vmem:[%s0 + $0x3a] sm:$0x1]
    %v292 = vld [vmem:[%s0 + $0x42] sm:$0x1]
    %v293 = vld [vmem:[%s0 + $0x4a] sm:$0x1]
    %v294 = vld [vmem:[%s0 + $0x52] sm:$0x1]
    %v295 = vld [vmem:[%s0 + $0x5a] sm:$0x1]
    %v296 = vld [vmem:[%s0 + $0x62] sm:$0x1]
    %v297 = vld [vmem:[%s0 + $0x6a] sm:$0x1]
    %v298 = vld [vmem:[%s0 + $0x72] sm:$0x1]
    %v299 = vld [vmem:[%s0 + $0x7a] sm:$0x1]
    %v300 = vld [vmem:[%s0 + $0x82] sm:$0x1]
    %v301 = vld [vmem:[%s0 + $0x8a] sm:$0x1]
    %v302 = vld [vmem:[%s0 + $0x92] sm:$0x1]
    %v303 = vld [vmem:[%s0 + $0x9a] sm:$0x1]
    %v304 = vld [vmem:[%s0 + $0xa2] sm:$0x1]
    %v305 = vld [vmem:[%s0 + $0xaa] sm:$0x1]
    %v306 = vld [vmem:[%s0 + $0xb2] sm:$0x1]
    %v307 = vld [vmem:[%s0 + $0xba] sm:$0x1]
    %v308 = vld [vmem:[%s0 + $0xc2] sm:$0x1]
    %v309 = vld [vmem:[%s0 + $0xca] sm:$0x1]
    %v310 = vld [vmem:[%s0 + $0xd2] sm:$0x1]
    %v311 = vld [vmem:[%s0 + $0xda] sm:$0x1]
    %v312 = vld [vmem:[%s0 + $0xe2] sm:$0x1]
    %v313 = vld [vmem:[%s0 + $0xea] sm:$0x1]
    %v314 = vld [vmem:[%s0 + $0xf2] sm:$0x1]
    %v315 = vld [vmem:[%s0 + $0xfa] sm:$0x1]
    %v316 = vld [vmem:[%s0 + $0x102] sm:$0x1]
    %v317 = vld [vmem:[%s0 + $0x10a] sm:$0x1]
    %v318 = vld [vmem:[%s0 + $0x112] sm:$0x1]
    %v319 = vld [vmem:[%s0 + $0x11a] sm:$0x1]
    %v320 = vld [vmem:[%s0 + $0x122] sm:$0x1]
    %v321 = vld [vmem:[%s0 + $0x12a] sm:$0x1]
    %v322 = vld [vmem:[%s0 + $0x132] sm:$0x1]
    %v323 = vld [vmem:[%s0 + $0x13a] sm:$0x1]
    %v324 = vld [vmem:[%s0 + $0x142] sm:$0x1]
    %v325 = vld [vmem:[%s0 + $0x14a] sm:$0x1]
    %v326 = vld [vmem:[%s0 + $0x152] sm:$0x1]
    %v327 = vld [vmem:[%s0 + $0x15a] sm:$0x1]
    %v328 = vld [vmem:[%s0 + $0x162] sm:$0x1]
    %v329 = vld [vmem:[%s0 + $0x16a] sm:$0x1]
    %v330 = vld [vmem:[%s0 + $0x172] sm:$0x1]
    %v331 = vld [vmem:[%s0 + $0x17a] sm:$0x1]
    %v332 = vld [vmem:[%s0 + $0x182] sm:$0x1]
    %v333 = vld [vmem:[%s0 + $0x18a] sm:$0x1]
    %v334 = vld [vmem:[%s0 + $0x192] sm:$0x1]
    %v335 = vld [vmem:[%s0 + $0x19a] sm:$0x1]
    %v336 = vld [vmem:[%s0 + $0x1a2] sm:$0x1]
    %v337 = vld [vmem:[%s0 + $0x1aa] sm:$0x1]
    %v338 = vld [vmem:[%s0 + $0x1b2] sm:$0x1]
    %v339 = vld [vmem:[%s0 + $0x1ba] sm:$0x1]
    %v340 = vld [vmem:[%s0 + $0x1c2] sm:$0x1]
    %v341 = vld [vmem:[%s0 + $0x1ca] sm:$0x1]
    %v342 = vld [vmem:[%s0 + $0x1d2] sm:$0x1]
    %v343 = vld [vmem:[%s0 + $0x1da] sm:$0x1]
    %v344 = vld [vmem:[%s0 + $0x1e2] sm:$0x1]
    %v345 = vld [vmem:[%s0 + $0x1ea] sm:$0x1]
    %v346 = vld [vmem:[%s0 + $0x1f2] sm:$0x1]
    %v347 = vld [vmem:[%s0 + $0x1fa] sm:$0x1]
    %v348 = vld [vmem:[%s0 + $0x202] sm:$0x1]
    %v349 = vld [vmem:[%s0 + $0x20a] sm:$0x1]
    %v350 = vld [vmem:[%s0 + $0x212] sm:$0x1]
    %v351 = vld [vmem:[%s0 + $0x21a] sm:$0x1]
    %v352 = vld [vmem:[%s0 + $0x222] sm:$0x1]
    %v353 = vld [vmem:[%s0 + $0x22a] sm:$0x1]
    %v354 = vld [vmem:[%s0 + $0x232] sm:$0x1]
    %v355 = vld [vmem:[%s0 + $0x23a] sm:$0x1]
    %v356 = vld [vmem:[%s0 + $0x242] sm:$0x1]
    %v357 = vld [vmem:[%s0 + $0x24a] sm:$0x1]
    %v358 = vld [vmem:[%s0 + $0x252] sm:$0x1]
    %v359 = vld [vmem:[%s0 + $0x25a] sm:$0x1]
    %v360 = vld [vmem:[%s0 + $0x262] sm:$0x1]
    %v361 = vld [vmem:[%s0 + $0x26a] sm:$0x1]
    %v362 = vld [vmem:[%s0 + $0x272] sm:$0x1]
    %v363 = vld [vmem:[%s0 + $0x27a] sm:$0x1]
    %v364 = vld [vmem:[%s0 + $0x282] sm:$0x1]
    %v365 = vld [vmem:[%s0 + $0x28a] sm:$0x1]
    %v366 = vld [vmem:[%s0 + $0x292] sm:$0x1]
    %v367 = vld [vmem:[%s0 + $0x29a] sm:$0x1]
    %v368 = vld [vmem:[%s0 + $0x2a2] sm:$0x1]
    %v369 = vld [vmem:[%s0 + $0x2aa] sm:$0x1]
    %v370 = vld [vmem:[%s0 + $0x2b2] sm:$0x1]
    %v371 = vld [vmem:[%s0 + $0x2ba] sm:$0x1]
    %v372 = vld [vmem:[%s0 + $0x2c2] sm:$0x1]
    %v373 = vld [vmem:[%s0 + $0x2ca] sm:$0x1]
    %v374 = vld [vmem:[%s0 + $0x2d2] sm:$0x1]
    %v375 = vld [vmem:[%s0 + $0x2da] sm:$0x1]
    %v376 = vld [vmem:[%s0 + $0x2e2] sm:$0x1]
    %v377 = vld [vmem:[%s0 + $0x2ea] sm:$0x1]
    %v378 = vld [vmem:[%s0 + $0x2f2] sm:$0x1]
    %v379 = vld [vmem:[%s0 + $0x2fa] sm:$0x1]
    %v380 = vld [vmem:[%s0 + $0x302] sm:$0x1]
    %v381 = vld [vmem:[%s0 + $0x30a] sm:$0x1]
    %v382 = vld [vmem:[%s0 + $0x312] sm:$0x1]
    %v383 = vld [vmem:[%s0 + $0x31a] sm:$0x1]
    %v384 = vld [vmem:[%s0 + $0x322] sm:$0x1]
    %v385 = vld [vmem:[%s0 + $0x32a] sm:$0x1]
    %v386 = vld [vmem:[%s0 + $0x332] sm:$0x1]
    %v387 = vld [vmem:[%s0 + $0x33a] sm:$0x1]
    %v388 = vld [vmem:[%s0 + $0x342] sm:$0x1]
    %v389 = vld [vmem:[%s0 + $0x34a] sm:$0x1]
    %v390 = vld [vmem:[%s0 + $0x352] sm:$0x1]
    %v391 = vld [vmem:[%s0 + $0x35a] sm:$0x1]
    %v392 = vld [vmem:[%s0 + $0x362] sm:$0x1]
    %v393 = vld [vmem:[%s0 + $0x36a] sm:$0x1]
    %v394 = vld [vmem:[%s0 + $0x372] sm:$0x1]
    %v395 = vld [vmem:[%s0 + $0x37a] sm:$0x1]
    %v396 = vld [vmem:[%s0 + $0x382] sm:$0x1]
    %v397 = vld [vmem:[%s0 + $0x38a] sm:$0x1]
    %v398 = vld [vmem:[%s0 + $0x392] sm:$0x1]
    %v399 = vld [vmem:[%s0 + $0x39a] sm:$0x1]
    %v400 = vld [vmem:[%s0 + $0x3a2] sm:$0x1]
    %v401 = vld [vmem:[%s0 + $0x3aa] sm:$0x1]
    %v402 = vld [vmem:[%s0 + $0x3b2] sm:$0x1]
    %v403 = vld [vmem:[%s0 + $0x3ba] sm:$0x1]
    %v404 = vld [vmem:[%s0 + $0x3c2] sm:$0x1]
    %v405 = vld [vmem:[%s0 + $0x3ca] sm:$0x1]
    %v406 = vld [vmem:[%s0 + $0x3d2] sm:$0x1]
    %v407 = vld [vmem:[%s0 + $0x3da] sm:$0x1]
    %v408 = vld [vmem:[%s0 + $0x3e2] sm:$0x1]
    %v409 = vld [vmem:[%s0 + $0x3ea] sm:$0x1]
    %v410 = vld [vmem:[%s0 + $0x3f2] sm:$0x1]
    %v411 = vld [vmem:[%s0 + $0x3fa] sm:$0x1]
    %v412 = vld [vmem:[%s0 + $0x3] sm:$0x1]
    %v413 = vld [vmem:[%s0 + $0xb] sm:$0x1]
    %v414 = vld [vmem:[%s0 + $0x13] sm:$0x1]
    %v415 = vld [vmem:[%s0 + $0x1b] sm:$0x1]
    %v416 = vld [vmem:[%s0 + $0x23] sm:$0x1]
    %v417 = vld [vmem:[%s0 + $0x2b] sm:$0x1]
    %v418 = vld [vmem:[%s0 + $0x33] sm:$0x1]
    %v419 = vld [vmem:[%s0 + $0x3b] sm:$0x1]
    %v420 = vld [vmem:[%s0 + $0x43] sm:$0x1]
    %v421 = vld [vmem:[%s0 + $0x4b] sm:$0x1]
    %v422 = vld [vmem:[%s0 + $0x53] sm:$0x1]
    %v423 = vld [vmem:[%s0 + $0x5b] sm:$0x1]
    %v424 = vld [vmem:[%s0 + $0x63] sm:$0x1]
    %v425 = vld [vmem:[%s0 + $0x6b] sm:$0x1]
    %v426 = vld [vmem:[%s0 + $0x73] sm:$0x1]
    %v427 = vld [vmem:[%s0 + $0x7b] sm:$0x1]
    %v428 = vld [vmem:[%s0 + $0x83] sm:$0x1]
    %v429 = vld [vmem:[%s0 + $0x8b] sm:$0x1]
    %v430 = vld [vmem:[%s0 + $0x93] sm:$0x1]
    %v431 = vld [vmem:[%s0 + $0x9b] sm:$0x1]
    %v432 = vld [vmem:[%s0 + $0xa3] sm:$0x1]
    %v433 = vld [vmem:[%s0 + $0xab] sm:$0x1]
    %v434 = vld [vmem:[%s0 + $0xb3] sm:$0x1]
    %v435 = vld [vmem:[%s0 + $0xbb] sm:$0x1]
    %v436 = vld [vmem:[%s0 + $0xc3] sm:$0x1]
    %v437 = vld [vmem:[%s0 + $0xcb] sm:$0x1]
    %v438 = vld [vmem:[%s0 + $0xd3] sm:$0x1]
    %v439 = vld [vmem:[%s0 + $0xdb] sm:$0x1]
    %v440 = vld [vmem:[%s0 + $0xe3] sm:$0x1]
    %v441 = vld [vmem:[%s0 + $0xeb] sm:$0x1]
    %v442 = vld [vmem:[%s0 + $0xf3] sm:$0x1]
    %v443 = vld [vmem:[%s0 + $0xfb] sm:$0x1]
    %v444 = vld [vmem:[%s0 + $0x103] sm:$0x1]
    %v445 = vld [vmem:[%s0 + $0x10b] sm:$0x1]
    %v446 = vld [vmem:[%s0 + $0x113] sm:$0x1]
    %v447 = vld [vmem:[%s0 + $0x11b] sm:$0x1]
    %v448 = vld [vmem:[%s0 + $0x123] sm:$0x1]
    %v449 = vld [vmem:[%s0 + $0x12b] sm:$0x1]
    %v450 = vld [vmem:[%s0 + $0x133] sm:$0x1]
    %v451 = vld [vmem:[%s0 + $0x13b] sm:$0x1]
    %v452 = vld [vmem:[%s0 + $0x143] sm:$0x1]
    %v453 = vld [vmem:[%s0 + $0x14b] sm:$0x1]
    %v454 = vld [vmem:[%s0 + $0x153] sm:$0x1]
    %v455 = vld [vmem:[%s0 + $0x15b] sm:$0x1]
    %v456 = vld [vmem:[%s0 + $0x163] sm:$0x1]
    %v457 = vld [vmem:[%s0 + $0x16b] sm:$0x1]
    %v458 = vld [vmem:[%s0 + $0x173] sm:$0x1]
    %v459 = vld [vmem:[%s0 + $0x17b] sm:$0x1]
    %v460 = vld [vmem:[%s0 + $0x183] sm:$0x1]
    %v461 = vld [vmem:[%s0 + $0x18b] sm:$0x1]
    %v462 = vld [vmem:[%s0 + $0x193] sm:$0x1]
    %v463 = vld [vmem:[%s0 + $0x19b] sm:$0x1]
    %v464 = vld [vmem:[%s0 + $0x1a3] sm:$0x1]
    %v465 = vld [vmem:[%s0 + $0x1ab] sm:$0x1]
    %v466 = vld [vmem:[%s0 + $0x1b3] sm:$0x1]
    %v467 = vld [vmem:[%s0 + $0x1bb] sm:$0x1]
    %v468 = vld [vmem:[%s0 + $0x1c3] sm:$0x1]
    %v469 = vld [vmem:[%s0 + $0x1cb] sm:$0x1]
    %v470 = vld [vmem:[%s0 + $0x1d3] sm:$0x1]
    %v471 = vld [vmem:[%s0 + $0x1db] sm:$0x1]
    %v472 = vld [vmem:[%s0 + $0x1e3] sm:$0x1]
    %v473 = vld [vmem:[%s0 + $0x1eb] sm:$0x1]
    %v474 = vld [vmem:[%s0 + $0x1f3] sm:$0x1]
    %v475 = vld [vmem:[%s0 + $0x1fb] sm:$0x1]
    %v476 = vld [vmem:[%s0 + $0x203] sm:$0x1]
    %v477 = vld [vmem:[%s0 + $0x20b] sm:$0x1]
    %v478 = vld [vmem:[%s0 + $0x213] sm:$0x1]
    %v479 = vld [vmem:[%s0 + $0x21b] sm:$0x1]
    %v480 = vld [vmem:[%s0 + $0x223] sm:$0x1]
    %v481 = vld [vmem:[%s0 + $0x22b] sm:$0x1]
    %v482 = vld [vmem:[%s0 + $0x233] sm:$0x1]
    %v483 = vld [vmem:[%s0 + $0x23b] sm:$0x1]
    %v484 = vld [vmem:[%s0 + $0x243] sm:$0x1]
    %v485 = vld [vmem:[%s0 + $0x24b] sm:$0x1]
    %v486 = vld [vmem:[%s0 + $0x253] sm:$0x1]
    %v487 = vld [vmem:[%s0 + $0x25b] sm:$0x1]
    %v488 = vld [vmem:[%s0 + $0x263] sm:$0x1]
    %v489 = vld [vmem:[%s0 + $0x26b] sm:$0x1]
    %v490 = vld [vmem:[%s0 + $0x273] sm:$0x1]
    %v491 = vld [vmem:[%s0 + $0x27b] sm:$0x1]
    %v492 = vld [vmem:[%s0 + $0x283] sm:$0x1]
    %v493 = vld [vmem:[%s0 + $0x28b] sm:$0x1]
    %v494 = vld [vmem:[%s0 + $0x293] sm:$0x1]
    %v495 = vld [vmem:[%s0 + $0x29b] sm:$0x1]
    %v496 = vld [vmem:[%s0 + $0x2a3] sm:$0x1]
    %v497 = vld [vmem:[%s0 + $0x2ab] sm:$0x1]
    %v498 = vld [vmem:[%s0 + $0x2b3] sm:$0x1]
    %v499 = vld [vmem:[%s0 + $0x2bb] sm:$0x1]
    %v500 = vld [vmem:[%s0 + $0x2c3] sm:$0x1]
    %v501 = vld [vmem:[%s0 + $0x2cb] sm:$0x1]
    %v502 = vld [vmem:[%s0 + $0x2d3] sm:$0x1]
    %v503 = vld [vmem:[%s0 + $0x2db] sm:$0x1]
    %v504 = vld [vmem:[%s0 + $0x2e3] sm:$0x1]
    %v505 = vld [vmem:[%s0 + $0x2eb] sm:$0x1]
    %v506 = vld [vmem:[%s0 + $0x2f3] sm:$0x1]
    %v507 = vld [vmem:[%s0 + $0x2fb] sm:$0x1]
    %v508 = vld [vmem:[%s0 + $0x303] sm:$0x1]
    %v509 = vld [vmem:[%s0 + $0x30b] sm:$0x1]
    %v510 = vld [vmem:[%s0 + $0x313] sm:$0x1]
    %v511 = vld [vmem:[%s0 + $0x31b] sm:$0x1]
    %v512 = vld [vmem:[%s0 + $0x323] sm:$0x1]
    %v513 = vld [vmem:[%s0 + $0x32b] sm:$0x1]
    %v514 = vld [vmem:[%s0 + $0x333] sm:$0x1]
    %v515 = vld [vmem:[%s0 + $0x33b] sm:$0x1]
    %v516 = vld [vmem:[%s0 + $0x343] sm:$0x1]
    %v517 = vld [vmem:[%s0 + $0x34b] sm:$0x1]
    %v518 = vld [vmem:[%s0 + $0x353] sm:$0x1]
    %v519 = vld [vmem:[%s0 + $0x35b] sm:$0x1]
    %v520 = vld [vmem:[%s0 + $0x363] sm:$0x1]
    %v521 = vld [vmem:[%s0 + $0x36b] sm:$0x1]
    %v522 = vld [vmem:[%s0 + $0x373] sm:$0x1]
    %v523 = vld [vmem:[%s0 + $0x37b] sm:$0x1]
    %v524 = vld [vmem:[%s0 + $0x383] sm:$0x1]
    %v525 = vld [vmem:[%s0 + $0x38b] sm:$0x1]
    %v526 = vld [vmem:[%s0 + $0x393] sm:$0x1]
    %v527 = vld [vmem:[%s0 + $0x39b] sm:$0x1]
    %v528 = vld [vmem:[%s0 + $0x3a3] sm:$0x1]
    %v529 = vld [vmem:[%s0 + $0x3ab] sm:$0x1]
    %v530 = vld [vmem:[%s0 + $0x3b3] sm:$0x1]
    %v531 = vld [vmem:[%s0 + $0x3bb] sm:$0x1]
    %v532 = vld [vmem:[%s0 + $0x3c3] sm:$0x1]
    %v533 = vld [vmem:[%s0 + $0x3cb] sm:$0x1]
    %v534 = vld [vmem:[%s0 + $0x3d3] sm:$0x1]
    %v535 = vld [vmem:[%s0 + $0x3db] sm:$0x1]
    %v536 = vld [vmem:[%s0 + $0x3e3] sm:$0x1]
    %v537 = vld [vmem:[%s0 + $0x3eb] sm:$0x1]
    %v538 = vld [vmem:[%s0 + $0x3f3] sm:$0x1]
    %v539 = vld [vmem:[%s0 + $0x3fb] sm:$0x1]
    %v540 = vld [vmem:[%s0 + $0x4] sm:$0x1]
    %v541 = vld [vmem:[%s0 + $0xc] sm:$0x1]
    %v542 = vld [vmem:[%s0 + $0x14] sm:$0x1]
    %v543 = vld [vmem:[%s0 + $0x1c] sm:$0x1]
    %v544 = vld [vmem:[%s0 + $0x24] sm:$0x1]
    %v545 = vld [vmem:[%s0 + $0x2c] sm:$0x1]
    %v546 = vld [vmem:[%s0 + $0x34] sm:$0x1]
    %v547 = vld [vmem:[%s0 + $0x3c] sm:$0x1]
    %v548 = vld [vmem:[%s0 + $0x44] sm:$0x1]
    %v549 = vld [vmem:[%s0 + $0x4c] sm:$0x1]
    %v550 = vld [vmem:[%s0 + $0x54] sm:$0x1]
    %v551 = vld [vmem:[%s0 + $0x5c] sm:$0x1]
    %v552 = vld [vmem:[%s0 + $0x64] sm:$0x1]
    %v553 = vld [vmem:[%s0 + $0x6c] sm:$0x1]
    %v554 = vld [vmem:[%s0 + $0x74] sm:$0x1]
    %v555 = vld [vmem:[%s0 + $0x7c] sm:$0x1]
    %v556 = vld [vmem:[%s0 + $0x84] sm:$0x1]
    %v557 = vld [vmem:[%s0 + $0x8c] sm:$0x1]
    %v558 = vld [vmem:[%s0 + $0x94] sm:$0x1]
    %v559 = vld [vmem:[%s0 + $0x9c] sm:$0x1]
    %v560 = vld [vmem:[%s0 + $0xa4] sm:$0x1]
    %v561 = vld [vmem:[%s0 + $0xac] sm:$0x1]
    %v562 = vld [vmem:[%s0 + $0xb4] sm:$0x1]
    %v563 = vld [vmem:[%s0 + $0xbc] sm:$0x1]
    %v564 = vld [vmem:[%s0 + $0xc4] sm:$0x1]
    %v565 = vld [vmem:[%s0 + $0xcc] sm:$0x1]
    %v566 = vld [vmem:[%s0 + $0xd4] sm:$0x1]
    %v567 = vld [vmem:[%s0 + $0xdc] sm:$0x1]
    %v568 = vld [vmem:[%s0 + $0xe4] sm:$0x1]
    %v569 = vld [vmem:[%s0 + $0xec] sm:$0x1]
    %v570 = vld [vmem:[%s0 + $0xf4] sm:$0x1]
    %v571 = vld [vmem:[%s0 + $0xfc] sm:$0x1]
    %v572 = vld [vmem:[%s0 + $0x104] sm:$0x1]
    %v573 = vld [vmem:[%s0 + $0x10c] sm:$0x1]
    %v574 = vld [vmem:[%s0 + $0x114] sm:$0x1]
    %v575 = vld [vmem:[%s0 + $0x11c] sm:$0x1]
    %v576 = vld [vmem:[%s0 + $0x124] sm:$0x1]
    %v577 = vld [vmem:[%s0 + $0x12c] sm:$0x1]
    %v578 = vld [vmem:[%s0 + $0x134] sm:$0x1]
    %v579 = vld [vmem:[%s0 + $0x13c] sm:$0x1]
    %v580 = vld [vmem:[%s0 + $0x144] sm:$0x1]
    %v581 = vld [vmem:[%s0 + $0x14c] sm:$0x1]
    %v582 = vld [vmem:[%s0 + $0x154] sm:$0x1]
    %v583 = vld [vmem:[%s0 + $0x15c] sm:$0x1]
    %v584 = vld [vmem:[%s0 + $0x164] sm:$0x1]
    %v585 = vld [vmem:[%s0 + $0x16c] sm:$0x1]
    %v586 = vld [vmem:[%s0 + $0x174] sm:$0x1]
    %v587 = vld [vmem:[%s0 + $0x17c] sm:$0x1]
    %v588 = vld [vmem:[%s0 + $0x184] sm:$0x1]
    %v589 = vld [vmem:[%s0 + $0x18c] sm:$0x1]
    %v590 = vld [vmem:[%s0 + $0x194] sm:$0x1]
    %v591 = vld [vmem:[%s0 + $0x19c] sm:$0x1]
    %v592 = vld [vmem:[%s0 + $0x1a4] sm:$0x1]
    %v593 = vld [vmem:[%s0 + $0x1ac] sm:$0x1]
    %v594 = vld [vmem:[%s0 + $0x1b4] sm:$0x1]
    %v595 = vld [vmem:[%s0 + $0x1bc] sm:$0x1]
    %v596 = vld [vmem:[%s0 + $0x1c4] sm:$0x1]
    %v597 = vld [vmem:[%s0 + $0x1cc] sm:$0x1]
    %v598 = vld [vmem:[%s0 + $0x1d4] sm:$0x1]
    %v599 = vld [vmem:[%s0 + $0x1dc] sm:$0x1]
    %v600 = vld [vmem:[%s0 + $0x1e4] sm:$0x1]
    %v601 = vld [vmem:[%s0 + $0x1ec] sm:$0x1]
    %v602 = vld [vmem:[%s0 + $0x1f4] sm:$0x1]
    %v603 = vld [vmem:[%s0 + $0x1fc] sm:$0x1]
    %v604 = vld [vmem:[%s0 + $0x204] sm:$0x1]
    %v605 = vld [vmem:[%s0 + $0x20c] sm:$0x1]
    %v606 = vld [vmem:[%s0 + $0x214] sm:$0x1]
    %v607 = vld [vmem:[%s0 + $0x21c] sm:$0x1]
    %v608 = vld [vmem:[%s0 + $0x224] sm:$0x1]
    %v609 = vld [vmem:[%s0 + $0x22c] sm:$0x1]
    %v610 = vld [vmem:[%s0 + $0x234] sm:$0x1]
    %v611 = vld [vmem:[%s0 + $0x23c] sm:$0x1]
    %v612 = vld [vmem:[%s0 + $0x244] sm:$0x1]
    %v613 = vld [vmem:[%s0 + $0x24c] sm:$0x1]
    %v614 = vld [vmem:[%s0 + $0x254] sm:$0x1]
    %v615 = vld [vmem:[%s0 + $0x25c] sm:$0x1]
    %v616 = vld [vmem:[%s0 + $0x264] sm:$0x1]
    %v617 = vld [vmem:[%s0 + $0x26c] sm:$0x1]
    %v618 = vld [vmem:[%s0 + $0x274] sm:$0x1]
    %v619 = vld [vmem:[%s0 + $0x27c] sm:$0x1]
    %v620 = vld [vmem:[%s0 + $0x284] sm:$0x1]
    %v621 = vld [vmem:[%s0 + $0x28c] sm:$0x1]
    %v622 = vld [vmem:[%s0 + $0x294] sm:$0x1]
    %v623 = vld [vmem:[%s0 + $0x29c] sm:$0x1]
    %v624 = vld [vmem:[%s0 + $0x2a4] sm:$0x1]
    %v625 = vld [vmem:[%s0 + $0x2ac] sm:$0x1]
    %v626 = vld [vmem:[%s0 + $0x2b4] sm:$0x1]
    %v627 = vld [vmem:[%s0 + $0x2bc] sm:$0x1]
    %v628 = vld [vmem:[%s0 + $0x2c4] sm:$0x1]
    %v629 = vld [vmem:[%s0 + $0x2cc] sm:$0x1]
    %v630 = vld [vmem:[%s0 + $0x2d4] sm:$0x1]
    %v631 = vld [vmem:[%s0 + $0x2dc] sm:$0x1]
    %v632 = vld [vmem:[%s0 + $0x2e4] sm:$0x1]
    %v633 = vld [vmem:[%s0 + $0x2ec] sm:$0x1]
    %v634 = vld [vmem:[%s0 + $0x2f4] sm:$0x1]
    %v635 = vld [vmem:[%s0 + $0x2fc] sm:$0x1]
    %v636 = vld [vmem:[%s0 + $0x304] sm:$0x1]
    %v637 = vld [vmem:[%s0 + $0x30c] sm:$0x1]
    %v638 = vld [vmem:[%s0 + $0x314] sm:$0x1]
    %v639 = vld [vmem:[%s0 + $0x31c] sm:$0x1]
    %v640 = vld [vmem:[%s0 + $0x324] sm:$0x1]
    %v641 = vld [vmem:[%s0 + $0x32c] sm:$0x1]
    %v642 = vld [vmem:[%s0 + $0x334] sm:$0x1]
    %v643 = vld [vmem:[%s0 + $0x33c] sm:$0x1]
    %v644 = vld [vmem:[%s0 + $0x344] sm:$0x1]
    %v645 = vld [vmem:[%s0 + $0x34c] sm:$0x1]
    %v646 = vld [vmem:[%s0 + $0x354] sm:$0x1]
    %v647 = vld [vmem:[%s0 + $0x35c] sm:$0x1]
    %v648 = vld [vmem:[%s0 + $0x364] sm:$0x1]
    %v649 = vld [vmem:[%s0 + $0x36c] sm:$0x1]
    %v650 = vld [vmem:[%s0 + $0x374] sm:$0x1]
    %v651 = vld [vmem:[%s0 + $0x37c] sm:$0x1]
    %v652 = vld [vmem:[%s0 + $0x384] sm:$0x1]
    %v653 = vld [vmem:[%s0 + $0x38c] sm:$0x1]
    %v654 = vld [vmem:[%s0 + $0x394] sm:$0x1]
    %v655 = vld [vmem:[%s0 + $0x39c] sm:$0x1]
    %v656 = vld [vmem:[%s0 + $0x3a4] sm:$0x1]
    %v657 = vld [vmem:[%s0 + $0x3ac] sm:$0x1]
    %v658 = vld [vmem:[%s0 + $0x3b4] sm:$0x1]
    %v659 = vld [vmem:[%s0 + $0x3bc] sm:$0x1]
    %v660 = vld [vmem:[%s0 + $0x3c4] sm:$0x1]
    %v661 = vld [vmem:[%s0 + $0x3cc] sm:$0x1]
    %v662 = vld [vmem:[%s0 + $0x3d4] sm:$0x1]
    %v663 = vld [vmem:[%s0 + $0x3dc] sm:$0x1]
    %v664 = vld [vmem:[%s0 + $0x3e4] sm:$0x1]
    %v665 = vld [vmem:[%s0 + $0x3ec] sm:$0x1]
    %v666 = vld [vmem:[%s0 + $0x3f4] sm:$0x1]
    %v667 = vld [vmem:[%s0 + $0x3fc] sm:$0x1]
    %v668 = vld [vmem:[%s0 + $0x5] sm:$0x1]
    %v669 = vld [vmem:[%s0 + $0xd] sm:$0x1]
    %v670 = vld [vmem:[%s0 + $0x15] sm:$0x1]
    %v671 = vld [vmem:[%s0 + $0x1d] sm:$0x1]
    %v672 = vld [vmem:[%s0 + $0x25] sm:$0x1]
    %v673 = vld [vmem:[%s0 + $0x2d] sm:$0x1]
    %v674 = vld [vmem:[%s0 + $0x35] sm:$0x1]
    %v675 = vld [vmem:[%s0 + $0x3d] sm:$0x1]
    %v676 = vld [vmem:[%s0 + $0x45] sm:$0x1]
    %v677 = vld [vmem:[%s0 + $0x4d] sm:$0x1]
    %v678 = vld [vmem:[%s0 + $0x55] sm:$0x1]
    %v679 = vld [vmem:[%s0 + $0x5d] sm:$0x1]
    %v680 = vld [vmem:[%s0 + $0x65] sm:$0x1]
    %v681 = vld [vmem:[%s0 + $0x6d] sm:$0x1]
    %v682 = vld [vmem:[%s0 + $0x75] sm:$0x1]
    %v683 = vld [vmem:[%s0 + $0x7d] sm:$0x1]
    %v684 = vld [vmem:[%s0 + $0x85] sm:$0x1]
    %v685 = vld [vmem:[%s0 + $0x8d] sm:$0x1]
    %v686 = vld [vmem:[%s0 + $0x95] sm:$0x1]
    %v687 = vld [vmem:[%s0 + $0x9d] sm:$0x1]
    %v688 = vld [vmem:[%s0 + $0xa5] sm:$0x1]
    %v689 = vld [vmem:[%s0 + $0xad] sm:$0x1]
    %v690 = vld [vmem:[%s0 + $0xb5] sm:$0x1]
    %v691 = vld [vmem:[%s0 + $0xbd] sm:$0x1]
    %v692 = vld [vmem:[%s0 + $0xc5] sm:$0x1]
    %v693 = vld [vmem:[%s0 + $0xcd] sm:$0x1]
    %v694 = vld [vmem:[%s0 + $0xd5] sm:$0x1]
    %v695 = vld [vmem:[%s0 + $0xdd] sm:$0x1]
    %v696 = vld [vmem:[%s0 + $0xe5] sm:$0x1]
    %v697 = vld [vmem:[%s0 + $0xed] sm:$0x1]
    %v698 = vld [vmem:[%s0 + $0xf5] sm:$0x1]
    %v699 = vld [vmem:[%s0 + $0xfd] sm:$0x1]
    %v700 = vld [vmem:[%s0 + $0x105] sm:$0x1]
    %v701 = vld [vmem:[%s0 + $0x10d] sm:$0x1]
    %v702 = vld [vmem:[%s0 + $0x115] sm:$0x1]
    %v703 = vld [vmem:[%s0 + $0x11d] sm:$0x1]
    %v704 = vld [vmem:[%s0 + $0x125] sm:$0x1]
    %v705 = vld [vmem:[%s0 + $0x12d] sm:$0x1]
    %v706 = vld [vmem:[%s0 + $0x135] sm:$0x1]
    %v707 = vld [vmem:[%s0 + $0x13d] sm:$0x1]
    %v708 = vld [vmem:[%s0 + $0x145] sm:$0x1]
    %v709 = vld [vmem:[%s0 + $0x14d] sm:$0x1]
    %v710 = vld [vmem:[%s0 + $0x155] sm:$0x1]
    %v711 = vld [vmem:[%s0 + $0x15d] sm:$0x1]
    %v712 = vld [vmem:[%s0 + $0x165] sm:$0x1]
    %v713 = vld [vmem:[%s0 + $0x16d] sm:$0x1]
    %v714 = vld [vmem:[%s0 + $0x175] sm:$0x1]
    %v715 = vld [vmem:[%s0 + $0x17d] sm:$0x1]
    %v716 = vld [vmem:[%s0 + $0x185] sm:$0x1]
    %v717 = vld [vmem:[%s0 + $0x18d] sm:$0x1]
    %v718 = vld [vmem:[%s0 + $0x195] sm:$0x1]
    %v719 = vld [vmem:[%s0 + $0x19d] sm:$0x1]
    %v720 = vld [vmem:[%s0 + $0x1a5] sm:$0x1]
    %v721 = vld [vmem:[%s0 + $0x1ad] sm:$0x1]
    %v722 = vld [vmem:[%s0 + $0x1b5] sm:$0x1]
    %v723 = vld [vmem:[%s0 + $0x1bd] sm:$0x1]
    %v724 = vld [vmem:[%s0 + $0x1c5] sm:$0x1]
    %v725 = vld [vmem:[%s0 + $0x1cd] sm:$0x1]
    %v726 = vld [vmem:[%s0 + $0x1d5] sm:$0x1]
    %v727 = vld [vmem:[%s0 + $0x1dd] sm:$0x1]
    %v728 = vld [vmem:[%s0 + $0x1e5] sm:$0x1]
    %v729 = vld [vmem:[%s0 + $0x1ed] sm:$0x1]
    %v730 = vld [vmem:[%s0 + $0x1f5] sm:$0x1]
    %v731 = vld [vmem:[%s0 + $0x1fd] sm:$0x1]
    %v732 = vld [vmem:[%s0 + $0x205] sm:$0x1]
    %v733 = vld [vmem:[%s0 + $0x20d] sm:$0x1]
    %v734 = vld [vmem:[%s0 + $0x215] sm:$0x1]
    %v735 = vld [vmem:[%s0 + $0x21d] sm:$0x1]
    %v736 = vld [vmem:[%s0 + $0x225] sm:$0x1]
    %v737 = vld [vmem:[%s0 + $0x22d] sm:$0x1]
    %v738 = vld [vmem:[%s0 + $0x235] sm:$0x1]
    %v739 = vld [vmem:[%s0 + $0x23d] sm:$0x1]
    %v740 = vld [vmem:[%s0 + $0x245] sm:$0x1]
    %v741 = vld [vmem:[%s0 + $0x24d] sm:$0x1]
    %v742 = vld [vmem:[%s0 + $0x255] sm:$0x1]
    %v743 = vld [vmem:[%s0 + $0x25d] sm:$0x1]
    %v744 = vld [vmem:[%s0 + $0x265] sm:$0x1]
    %v745 = vld [vmem:[%s0 + $0x26d] sm:$0x1]
    %v746 = vld [vmem:[%s0 + $0x275] sm:$0x1]
    %v747 = vld [vmem:[%s0 + $0x27d] sm:$0x1]
    %v748 = vld [vmem:[%s0 + $0x285] sm:$0x1]
    %v749 = vld [vmem:[%s0 + $0x28d] sm:$0x1]
    %v750 = vld [vmem:[%s0 + $0x295] sm:$0x1]
    %v751 = vld [vmem:[%s0 + $0x29d] sm:$0x1]
    %v752 = vld [vmem:[%s0 + $0x2a5] sm:$0x1]
    %v753 = vld [vmem:[%s0 + $0x2ad] sm:$0x1]
    %v754 = vld [vmem:[%s0 + $0x2b5] sm:$0x1]
    %v755 = vld [vmem:[%s0 + $0x2bd] sm:$0x1]
    %v756 = vld [vmem:[%s0 + $0x2c5] sm:$0x1]
    %v757 = vld [vmem:[%s0 + $0x2cd] sm:$0x1]
    %v758 = vld [vmem:[%s0 + $0x2d5] sm:$0x1]
    %v759 = vld [vmem:[%s0 + $0x2dd] sm:$0x1]
    %v760 = vld [vmem:[%s0 + $0x2e5] sm:$0x1]
    %v761 = vld [vmem:[%s0 + $0x2ed] sm:$0x1]
    %v762 = vld [vmem:[%s0 + $0x2f5] sm:$0x1]
    %v763 = vld [vmem:[%s0 + $0x2fd] sm:$0x1]
    %v764 = vld [vmem:[%s0 + $0x305] sm:$0x1]
    %v765 = vld [vmem:[%s0 + $0x30d] sm:$0x1]
    %v766 = vld [vmem:[%s0 + $0x315] sm:$0x1]
    %v767 = vld [vmem:[%s0 + $0x31d] sm:$0x1]
    %v768 = vld [vmem:[%s0 + $0x325] sm:$0x1]
    %v769 = vld [vmem:[%s0 + $0x32d] sm:$0x1]
    %v770 = vld [vmem:[%s0 + $0x335] sm:$0x1]
    %v771 = vld [vmem:[%s0 + $0x33d] sm:$0x1]
    %v772 = vld [vmem:[%s0 + $0x345] sm:$0x1]
    %v773 = vld [vmem:[%s0 + $0x34d] sm:$0x1]
    %v774 = vld [vmem:[%s0 + $0x355] sm:$0x1]
    %v775 = vld [vmem:[%s0 + $0x35d] sm:$0x1]
    %v776 = vld [vmem:[%s0 + $0x365] sm:$0x1]
    %v777 = vld [vmem:[%s0 + $0x36d] sm:$0x1]
    %v778 = vld [vmem:[%s0 + $0x375] sm:$0x1]
    %v779 = vld [vmem:[%s0 + $0x37d] sm:$0x1]
    %v780 = vld [vmem:[%s0 + $0x385] sm:$0x1]
    %v781 = vld [vmem:[%s0 + $0x38d] sm:$0x1]
    %v782 = vld [vmem:[%s0 + $0x395] sm:$0x1]
    %v783 = vld [vmem:[%s0 + $0x39d] sm:$0x1]
    %v784 = vld [vmem:[%s0 + $0x3a5] sm:$0x1]
    %v785 = vld [vmem:[%s0 + $0x3ad] sm:$0x1]
    %v786 = vld [vmem:[%s0 + $0x3b5] sm:$0x1]
    %v787 = vld [vmem:[%s0 + $0x3bd] sm:$0x1]
    %v788 = vld [vmem:[%s0 + $0x3c5] sm:$0x1]
    %v789 = vld [vmem:[%s0 + $0x3cd] sm:$0x1]
    %v790 = vld [vmem:[%s0 + $0x3d5] sm:$0x1]
    %v791 = vld [vmem:[%s0 + $0x3dd] sm:$0x1]
    %v792 = vld [vmem:[%s0 + $0x3e5] sm:$0x1]
    %v793 = vld [vmem:[%s0 + $0x3ed] sm:$0x1]
    %v794 = vld [vmem:[%s0 + $0x3f5] sm:$0x1]
    %v795 = vld [vmem:[%s0 + $0x3fd] sm:$0x1]
    %v796 = vld [vmem:[%s0 + $0x6] sm:$0x1]
    %v797 = vld [vmem:[%s0 + $0xe] sm:$0x1]
    %v798 = vld [vmem:[%s0 + $0x16] sm:$0x1]
    %v799 = vld [vmem:[%s0 + $0x1e] sm:$0x1]
    %v800 = vld [vmem:[%s0 + $0x26] sm:$0x1]
    %v801 = vld [vmem:[%s0 + $0x2e] sm:$0x1]
    %v802 = vld [vmem:[%s0 + $0x36] sm:$0x1]
    %v803 = vld [vmem:[%s0 + $0x3e] sm:$0x1]
    %v804 = vld [vmem:[%s0 + $0x46] sm:$0x1]
    %v805 = vld [vmem:[%s0 + $0x4e] sm:$0x1]
    %v806 = vld [vmem:[%s0 + $0x56] sm:$0x1]
    %v807 = vld [vmem:[%s0 + $0x5e] sm:$0x1]
    %v808 = vld [vmem:[%s0 + $0x66] sm:$0x1]
    %v809 = vld [vmem:[%s0 + $0x6e] sm:$0x1]
    %v810 = vld [vmem:[%s0 + $0x76] sm:$0x1]
    %v811 = vld [vmem:[%s0 + $0x7e] sm:$0x1]
    %v812 = vld [vmem:[%s0 + $0x86] sm:$0x1]
    %v813 = vld [vmem:[%s0 + $0x8e] sm:$0x1]
    %v814 = vld [vmem:[%s0 + $0x96] sm:$0x1]
    %v815 = vld [vmem:[%s0 + $0x9e] sm:$0x1]
    %v816 = vld [vmem:[%s0 + $0xa6] sm:$0x1]
    %v817 = vld [vmem:[%s0 + $0xae] sm:$0x1]
    %v818 = vld [vmem:[%s0 + $0xb6] sm:$0x1]
    %v819 = vld [vmem:[%s0 + $0xbe] sm:$0x1]
    %v820 = vld [vmem:[%s0 + $0xc6] sm:$0x1]
    %v821 = vld [vmem:[%s0 + $0xce] sm:$0x1]
    %v822 = vld [vmem:[%s0 + $0xd6] sm:$0x1]
    %v823 = vld [vmem:[%s0 + $0xde] sm:$0x1]
    %v824 = vld [vmem:[%s0 + $0xe6] sm:$0x1]
    %v825 = vld [vmem:[%s0 + $0xee] sm:$0x1]
    %v826 = vld [vmem:[%s0 + $0xf6] sm:$0x1]
    %v827 = vld [vmem:[%s0 + $0xfe] sm:$0x1]
    %v828 = vld [vmem:[%s0 + $0x106] sm:$0x1]
    %v829 = vld [vmem:[%s0 + $0x10e] sm:$0x1]
    %v830 = vld [vmem:[%s0 + $0x116] sm:$0x1]
    %v831 = vld [vmem:[%s0 + $0x11e] sm:$0x1]
    %v832 = vld [vmem:[%s0 + $0x126] sm:$0x1]
    %v833 = vld [vmem:[%s0 + $0x12e] sm:$0x1]
    %v834 = vld [vmem:[%s0 + $0x136] sm:$0x1]
    %v835 = vld [vmem:[%s0 + $0x13e] sm:$0x1]
    %v836 = vld [vmem:[%s0 + $0x146] sm:$0x1]
    %v837 = vld [vmem:[%s0 + $0x14e] sm:$0x1]
    %v838 = vld [vmem:[%s0 + $0x156] sm:$0x1]
    %v839 = vld [vmem:[%s0 + $0x15e] sm:$0x1]
    %v840 = vld [vmem:[%s0 + $0x166] sm:$0x1]
    %v841 = vld [vmem:[%s0 + $0x16e] sm:$0x1]
    %v842 = vld [vmem:[%s0 + $0x176] sm:$0x1]
    %v843 = vld [vmem:[%s0 + $0x17e] sm:$0x1]
    %v844 = vld [vmem:[%s0 + $0x186] sm:$0x1]
    %v845 = vld [vmem:[%s0 + $0x18e] sm:$0x1]
    %v846 = vld [vmem:[%s0 + $0x196] sm:$0x1]
    %v847 = vld [vmem:[%s0 + $0x19e] sm:$0x1]
    %v848 = vld [vmem:[%s0 + $0x1a6] sm:$0x1]
    %v849 = vld [vmem:[%s0 + $0x1ae] sm:$0x1]
    %v850 = vld [vmem:[%s0 + $0x1b6] sm:$0x1]
    %v851 = vld [vmem:[%s0 + $0x1be] sm:$0x1]
    %v852 = vld [vmem:[%s0 + $0x1c6] sm:$0x1]
    %v853 = vld [vmem:[%s0 + $0x1ce] sm:$0x1]
    %v854 = vld [vmem:[%s0 + $0x1d6] sm:$0x1]
    %v855 = vld [vmem:[%s0 + $0x1de] sm:$0x1]
    %v856 = vld [vmem:[%s0 + $0x1e6] sm:$0x1]
    %v857 = vld [vmem:[%s0 + $0x1ee] sm:$0x1]
    %v858 = vld [vmem:[%s0 + $0x1f6] sm:$0x1]
    %v859 = vld [vmem:[%s0 + $0x1fe] sm:$0x1]
    %v860 = vld [vmem:[%s0 + $0x206] sm:$0x1]
    %v861 = vld [vmem:[%s0 + $0x20e] sm:$0x1]
    %v862 = vld [vmem:[%s0 + $0x216] sm:$0x1]
    %v863 = vld [vmem:[%s0 + $0x21e] sm:$0x1]
    %v864 = vld [vmem:[%s0 + $0x226] sm:$0x1]
    %v865 = vld [vmem:[%s0 + $0x22e] sm:$0x1]
    %v866 = vld [vmem:[%s0 + $0x236] sm:$0x1]
    %v867 = vld [vmem:[%s0 + $0x23e] sm:$0x1]
    %v868 = vld [vmem:[%s0 + $0x246] sm:$0x1]
    %v869 = vld [vmem:[%s0 + $0x24e] sm:$0x1]
    %v870 = vld [vmem:[%s0 + $0x256] sm:$0x1]
    %v871 = vld [vmem:[%s0 + $0x25e] sm:$0x1]
    %v872 = vld [vmem:[%s0 + $0x266] sm:$0x1]
    %v873 = vld [vmem:[%s0 + $0x26e] sm:$0x1]
    %v874 = vld [vmem:[%s0 + $0x276] sm:$0x1]
    %v875 = vld [vmem:[%s0 + $0x27e] sm:$0x1]
    %v876 = vld [vmem:[%s0 + $0x286] sm:$0x1]
    %v877 = vld [vmem:[%s0 + $0x28e] sm:$0x1]
    %v878 = vld [vmem:[%s0 + $0x296] sm:$0x1]
    %v879 = vld [vmem:[%s0 + $0x29e] sm:$0x1]
    %v880 = vld [vmem:[%s0 + $0x2a6] sm:$0x1]
    %v881 = vld [vmem:[%s0 + $0x2ae] sm:$0x1]
    %v882 = vld [vmem:[%s0 + $0x2b6] sm:$0x1]
    %v883 = vld [vmem:[%s0 + $0x2be] sm:$0x1]
    %v884 = vld [vmem:[%s0 + $0x2c6] sm:$0x1]
    %v885 = vld [vmem:[%s0 + $0x2ce] sm:$0x1]
    %v886 = vld [vmem:[%s0 + $0x2d6] sm:$0x1]
    %v887 = vld [vmem:[%s0 + $0x2de] sm:$0x1]
    %v888 = vld [vmem:[%s0 + $0x2e6] sm:$0x1]
    %v889 = vld [vmem:[%s0 + $0x2ee] sm:$0x1]
    %v890 = vld [vmem:[%s0 + $0x2f6] sm:$0x1]
    %v891 = vld [vmem:[%s0 + $0x2fe] sm:$0x1]
    %v892 = vld [vmem:[%s0 + $0x306] sm:$0x1]
    %v893 = vld [vmem:[%s0 + $0x30e] sm:$0x1]
    %v894 = vld [vmem:[%s0 + $0x316] sm:$0x1]
    %v895 = vld [vmem:[%s0 + $0x31e] sm:$0x1]
    %v896 = vld [vmem:[%s0 + $0x326] sm:$0x1]
    %v897 = vld [vmem:[%s0 + $0x32e] sm:$0x1]
    %v898 = vld [vmem:[%s0 + $0x336] sm:$0x1]
    %v899 = vld [vmem:[%s0 + $0x33e] sm:$0x1]
    %v900 = vld [vmem:[%s0 + $0x346] sm:$0x1]
    %v901 = vld [vmem:[%s0 + $0x34e] sm:$0x1]
    %v902 = vld [vmem:[%s0 + $0x356] sm:$0x1]
    %v903 = vld [vmem:[%s0 + $0x35e] sm:$0x1]
    %v904 = vld [vmem:[%s0 + $0x366] sm:$0x1]
    %v905 = vld [vmem:[%s0 + $0x36e] sm:$0x1]
    %v906 = vld [vmem:[%s0 + $0x376] sm:$0x1]
    %v907 = vld [vmem:[%s0 + $0x37e] sm:$0x1]
    %v908 = vld [vmem:[%s0 + $0x386] sm:$0x1]
    %v909 = vld [vmem:[%s0 + $0x38e] sm:$0x1]
    %v910 = vld [vmem:[%s0 + $0x396] sm:$0x1]
    %v911 = vld [vmem:[%s0 + $0x39e] sm:$0x1]
    %v912 = vld [vmem:[%s0 + $0x3a6] sm:$0x1]
    %v913 = vld [vmem:[%s0 + $0x3ae] sm:$0x1]
    %v914 = vld [vmem:[%s0 + $0x3b6] sm:$0x1]
    %v915 = vld [vmem:[%s0 + $0x3be] sm:$0x1]
    %v916 = vld [vmem:[%s0 + $0x3c6] sm:$0x1]
    %v917 = vld [vmem:[%s0 + $0x3ce] sm:$0x1]
    %v918 = vld [vmem:[%s0 + $0x3d6] sm:$0x1]
    %v919 = vld [vmem:[%s0 + $0x3de] sm:$0x1]
    %v920 = vld [vmem:[%s0 + $0x3e6] sm:$0x1]
    %v921 = vld [vmem:[%s0 + $0x3ee] sm:$0x1]
    %v922 = vld [vmem:[%s0 + $0x3f6] sm:$0x1]
    %v923 = vld [vmem:[%s0 + $0x3fe] sm:$0x1]
    %v924 = vld [vmem:[%s0 + $0x7] sm:$0x1]
    %v925 = vld [vmem:[%s0 + $0xf] sm:$0x1]
    %v926 = vld [vmem:[%s0 + $0x17] sm:$0x1]
    %v927 = vld [vmem:[%s0 + $0x1f] sm:$0x1]
    %v928 = vld [vmem:[%s0 + $0x27] sm:$0x1]
    %v929 = vld [vmem:[%s0 + $0x2f] sm:$0x1]
    %v930 = vld [vmem:[%s0 + $0x37] sm:$0x1]
    %v931 = vld [vmem:[%s0 + $0x3f] sm:$0x1]
    %v932 = vld [vmem:[%s0 + $0x47] sm:$0x1]
    %v933 = vld [vmem:[%s0 + $0x4f] sm:$0x1]
    %v934 = vld [vmem:[%s0 + $0x57] sm:$0x1]
    %v935 = vld [vmem:[%s0 + $0x5f] sm:$0x1]
    %v936 = vld [vmem:[%s0 + $0x67] sm:$0x1]
    %v937 = vld [vmem:[%s0 + $0x6f] sm:$0x1]
    %v938 = vld [vmem:[%s0 + $0x77] sm:$0x1]
    %v939 = vld [vmem:[%s0 + $0x7f] sm:$0x1]
    %v940 = vld [vmem:[%s0 + $0x87] sm:$0x1]
    %v941 = vld [vmem:[%s0 + $0x8f] sm:$0x1]
    %v942 = vld [vmem:[%s0 + $0x97] sm:$0x1]
    %v943 = vld [vmem:[%s0 + $0x9f] sm:$0x1]
    %v944 = vld [vmem:[%s0 + $0xa7] sm:$0x1]
    %v945 = vld [vmem:[%s0 + $0xaf] sm:$0x1]
    %v946 = vld [vmem:[%s0 + $0xb7] sm:$0x1]
    %v947 = vld [vmem:[%s0 + $0xbf] sm:$0x1]
    %v948 = vld [vmem:[%s0 + $0xc7] sm:$0x1]
    %v949 = vld [vmem:[%s0 + $0xcf] sm:$0x1]
    %v950 = vld [vmem:[%s0 + $0xd7] sm:$0x1]
    %v951 = vld [vmem:[%s0 + $0xdf] sm:$0x1]
    %v952 = vld [vmem:[%s0 + $0xe7] sm:$0x1]
    %v953 = vld [vmem:[%s0 + $0xef] sm:$0x1]
    %v954 = vld [vmem:[%s0 + $0xf7] sm:$0x1]
    %v955 = vld [vmem:[%s0 + $0xff] sm:$0x1]
    %v956 = vld [vmem:[%s0 + $0x107] sm:$0x1]
    %v957 = vld [vmem:[%s0 + $0x10f] sm:$0x1]
    %v958 = vld [vmem:[%s0 + $0x117] sm:$0x1]
    %v959 = vld [vmem:[%s0 + $0x11f] sm:$0x1]
    %v960 = vld [vmem:[%s0 + $0x127] sm:$0x1]
    %v961 = vld [vmem:[%s0 + $0x12f] sm:$0x1]
    %v962 = vld [vmem:[%s0 + $0x137] sm:$0x1]
    %v963 = vld [vmem:[%s0 + $0x13f] sm:$0x1]
    %v964 = vld [vmem:[%s0 + $0x147] sm:$0x1]
    %v965 = vld [vmem:[%s0 + $0x14f] sm:$0x1]
    %v966 = vld [vmem:[%s0 + $0x157] sm:$0x1]
    %v967 = vld [vmem:[%s0 + $0x15f] sm:$0x1]
    %v968 = vld [vmem:[%s0 + $0x167] sm:$0x1]
    %v969 = vld [vmem:[%s0 + $0x16f] sm:$0x1]
    %v970 = vld [vmem:[%s0 + $0x177] sm:$0x1]
    %v971 = vld [vmem:[%s0 + $0x17f] sm:$0x1]
    %v972 = vld [vmem:[%s0 + $0x187] sm:$0x1]
    %v973 = vld [vmem:[%s0 + $0x18f] sm:$0x1]
    %v974 = vld [vmem:[%s0 + $0x197] sm:$0x1]
    %v975 = vld [vmem:[%s0 + $0x19f] sm:$0x1]
    %v976 = vld [vmem:[%s0 + $0x1a7] sm:$0x1]
    %v977 = vld [vmem:[%s0 + $0x1af] sm:$0x1]
    %v978 = vld [vmem:[%s0 + $0x1b7] sm:$0x1]
    %v979 = vld [vmem:[%s0 + $0x1bf] sm:$0x1]
    %v980 = vld [vmem:[%s0 + $0x1c7] sm:$0x1]
    %v981 = vld [vmem:[%s0 + $0x1cf] sm:$0x1]
    %v982 = vld [vmem:[%s0 + $0x1d7] sm:$0x1]
    %v983 = vld [vmem:[%s0 + $0x1df] sm:$0x1]
    %v984 = vld [vmem:[%s0 + $0x1e7] sm:$0x1]
    %v985 = vld [vmem:[%s0 + $0x1ef] sm:$0x1]
    %v986 = vld [vmem:[%s0 + $0x1f7] sm:$0x1]
    %v987 = vld [vmem:[%s0 + $0x1ff] sm:$0x1]
    %v988 = vld [vmem:[%s0 + $0x207] sm:$0x1]
    %v989 = vld [vmem:[%s0 + $0x20f] sm:$0x1]
    %v990 = vld [vmem:[%s0 + $0x217] sm:$0x1]
    %v991 = vld [vmem:[%s0 + $0x21f] sm:$0x1]
    %v992 = vld [vmem:[%s0 + $0x227] sm:$0x1]
    %v993 = vld [vmem:[%s0 + $0x22f] sm:$0x1]
    %v994 = vld [vmem:[%s0 + $0x237] sm:$0x1]
    %v995 = vld [vmem:[%s0 + $0x23f] sm:$0x1]
    %v996 = vld [vmem:[%s0 + $0x247] sm:$0x1]
    %v997 = vld [vmem:[%s0 + $0x24f] sm:$0x1]
    %v998 = vld [vmem:[%s0 + $0x257] sm:$0x1]
    %v999 = vld [vmem:[%s0 + $0x25f] sm:$0x1]
    %v1000 = vld [vmem:[%s0 + $0x267] sm:$0x1]
    %v1001 = vld [vmem:[%s0 + $0x26f] sm:$0x1]
    %v1002 = vld [vmem:[%s0 + $0x277] sm:$0x1]
    %v1003 = vld [vmem:[%s0 + $0x27f] sm:$0x1]
    %v1004 = vld [vmem:[%s0 + $0x287] sm:$0x1]
    %v1005 = vld [vmem:[%s0 + $0x28f] sm:$0x1]
    %v1006 = vld [vmem:[%s0 + $0x297] sm:$0x1]
    %v1007 = vld [vmem:[%s0 + $0x29f] sm:$0x1]
    %v1008 = vld [vmem:[%s0 + $0x2a7] sm:$0x1]
    %v1009 = vld [vmem:[%s0 + $0x2af] sm:$0x1]
    %v1010 = vld [vmem:[%s0 + $0x2b7] sm:$0x1]
    %v1011 = vld [vmem:[%s0 + $0x2bf] sm:$0x1]
    %v1012 = vld [vmem:[%s0 + $0x2c7] sm:$0x1]
    %v1013 = vld [vmem:[%s0 + $0x2cf] sm:$0x1]
    %v1014 = vld [vmem:[%s0 + $0x2d7] sm:$0x1]
    %v1015 = vld [vmem:[%s0 + $0x2df] sm:$0x1]
    %v1016 = vld [vmem:[%s0 + $0x2e7] sm:$0x1]
    %v1017 = vld [vmem:[%s0 + $0x2ef] sm:$0x1]
    %v1018 = vld [vmem:[%s0 + $0x2f7] sm:$0x1]
    %v1019 = vld [vmem:[%s0 + $0x2ff] sm:$0x1]
    %v1020 = vld [vmem:[%s0 + $0x307] sm:$0x1]
    %v1021 = vld [vmem:[%s0 + $0x30f] sm:$0x1]
    %v1022 = vld [vmem:[%s0 + $0x317] sm:$0x1]
    %v1023 = vld [vmem:[%s0 + $0x31f] sm:$0x1]
    %v1024 = vld [vmem:[%s0 + $0x327] sm:$0x1]
    %v1025 = vld [vmem:[%s0 + $0x32f] sm:$0x1]
    %v1026 = vld [vmem:[%s0 + $0x337] sm:$0x1]
    %v1027 = vld [vmem:[%s0 + $0x33f] sm:$0x1]
    %v1028 = vld [vmem:[%s0 + $0x347] sm:$0x1]
    %v1029 = vld [vmem:[%s0 + $0x34f] sm:$0x1]
    %v1030 = vld [vmem:[%s0 + $0x357] sm:$0x1]
    %v1031 = vld [vmem:[%s0 + $0x35f] sm:$0x1]
    %v1032 = vld [vmem:[%s0 + $0x367] sm:$0x1]
    %v1033 = vld [vmem:[%s0 + $0x36f] sm:$0x1]
    %v1034 = vld [vmem:[%s0 + $0x377] sm:$0x1]
    %v1035 = vld [vmem:[%s0 + $0x37f] sm:$0x1]
    %v1036 = vld [vmem:[%s0 + $0x387] sm:$0x1]
    %v1037 = vld [vmem:[%s0 + $0x38f] sm:$0x1]
    %v1038 = vld [vmem:[%s0 + $0x397] sm:$0x1]
    %v1039 = vld [vmem:[%s0 + $0x39f] sm:$0x1]
    %v1040 = vld [vmem:[%s0 + $0x3a7] sm:$0x1]
    %v1041 = vld [vmem:[%s0 + $0x3af] sm:$0x1]
    %v1042 = vld [vmem:[%s0 + $0x3b7] sm:$0x1]
    %v1043 = vld [vmem:[%s0 + $0x3bf] sm:$0x1]
    %v1044 = vld [vmem:[%s0 + $0x3c7] sm:$0x1]
    %v1045 = vld [vmem:[%s0 + $0x3cf] sm:$0x1]
    %v1046 = vld [vmem:[%s0 + $0x3d7] sm:$0x1]
    %v1047 = vld [vmem:[%s0 + $0x3df] sm:$0x1]
    %v1048 = vld [vmem:[%s0 + $0x3e7] sm:$0x1]
    %v1049 = vld [vmem:[%s0 + $0x3ef] sm:$0x1]
    %v1050 = vld [vmem:[%s0 + $0x3f7] sm:$0x1]
    %v1051 = vld [vmem:[%s0 + $0x3ff] sm:$0x1]
    %v1180 = vrot.slane %v29, 7
    %vm1181 = vcmask 1041409
    %v1182 = vsel %vm1181, %v1180, %v28
    %v1183 = vrot.slane %v30, 6
    %vm1184 = vcmask 1042434
    %v1185 = vsel %vm1184, %v1183, %v1182
    %v1186 = vrot.slane %v31, 5
    %vm1187 = vcmask 1043459
    %v1188 = vsel %vm1187, %v1186, %v1185
    %v1189 = vrot.slane %v32, 4
    %vm1190 = vcmask 1044484
    %v1191 = vsel %vm1190, %v1189, %v1188
    %v1192 = vrot.slane %v33, 3
    %vm1193 = vcmask 1045509
    %v1194 = vsel %vm1193, %v1192, %v1191
    %v1195 = vrot.slane %v34, 2
    %vm1196 = vcmask 1046534
    %v1197 = vsel %vm1196, %v1195, %v1194
    %v1198 = vrot.slane %v35, 1
    %vm1199 = vcmask 1047559
    %v1200 = vsel %vm1199, %v1198, %v1197
    %v1201 = vrot.slane %v37, 7
    %v1202 = vsel %vm1181, %v1201, %v36
    %v1203 = vrot.slane %v38, 6
    %v1204 = vsel %vm1184, %v1203, %v1202
    %v1205 = vrot.slane %v39, 5
    %v1206 = vsel %vm1187, %v1205, %v1204
    %v1207 = vrot.slane %v40, 4
    %v1208 = vsel %vm1190, %v1207, %v1206
    %v1209 = vrot.slane %v41, 3
    %v1210 = vsel %vm1193, %v1209, %v1208
    %v1211 = vrot.slane %v42, 2
    %v1212 = vsel %vm1196, %v1211, %v1210
    %v1213 = vrot.slane %v43, 1
    %v1214 = vsel %vm1199, %v1213, %v1212
    %v1215 = vrot.slane %v45, 7
    %v1216 = vsel %vm1181, %v1215, %v44
    %v1217 = vrot.slane %v46, 6
    %v1218 = vsel %vm1184, %v1217, %v1216
    %v1219 = vrot.slane %v47, 5
    %v1220 = vsel %vm1187, %v1219, %v1218
    %v1221 = vrot.slane %v48, 4
    %v1222 = vsel %vm1190, %v1221, %v1220
    %v1223 = vrot.slane %v49, 3
    %v1224 = vsel %vm1193, %v1223, %v1222
    %v1225 = vrot.slane %v50, 2
    %v1226 = vsel %vm1196, %v1225, %v1224
    %v1227 = vrot.slane %v51, 1
    %v1228 = vsel %vm1199, %v1227, %v1226
    %v1229 = vrot.slane %v53, 7
    %v1230 = vsel %vm1181, %v1229, %v52
    %v1231 = vrot.slane %v54, 6
    %v1232 = vsel %vm1184, %v1231, %v1230
    %v1233 = vrot.slane %v55, 5
    %v1234 = vsel %vm1187, %v1233, %v1232
    %v1235 = vrot.slane %v56, 4
    %v1236 = vsel %vm1190, %v1235, %v1234
    %v1237 = vrot.slane %v57, 3
    %v1238 = vsel %vm1193, %v1237, %v1236
    %v1239 = vrot.slane %v58, 2
    %v1240 = vsel %vm1196, %v1239, %v1238
    %v1241 = vrot.slane %v59, 1
    %v1242 = vsel %vm1199, %v1241, %v1240
    %v1243 = vrot.slane %v61, 7
    %v1244 = vsel %vm1181, %v1243, %v60
    %v1245 = vrot.slane %v62, 6
    %v1246 = vsel %vm1184, %v1245, %v1244
    %v1247 = vrot.slane %v63, 5
    %v1248 = vsel %vm1187, %v1247, %v1246
    %v1249 = vrot.slane %v64, 4
    %v1250 = vsel %vm1190, %v1249, %v1248
    %v1251 = vrot.slane %v65, 3
    %v1252 = vsel %vm1193, %v1251, %v1250
    %v1253 = vrot.slane %v66, 2
    %v1254 = vsel %vm1196, %v1253, %v1252
    %v1255 = vrot.slane %v67, 1
    %v1256 = vsel %vm1199, %v1255, %v1254
    %v1257 = vrot.slane %v69, 7
    %v1258 = vsel %vm1181, %v1257, %v68
    %v1259 = vrot.slane %v70, 6
    %v1260 = vsel %vm1184, %v1259, %v1258
    %v1261 = vrot.slane %v71, 5
    %v1262 = vsel %vm1187, %v1261, %v1260
    %v1263 = vrot.slane %v72, 4
    %v1264 = vsel %vm1190, %v1263, %v1262
    %v1265 = vrot.slane %v73, 3
    %v1266 = vsel %vm1193, %v1265, %v1264
    %v1267 = vrot.slane %v74, 2
    %v1268 = vsel %vm1196, %v1267, %v1266
    %v1269 = vrot.slane %v75, 1
    %v1270 = vsel %vm1199, %v1269, %v1268
    %v1271 = vrot.slane %v77, 7
    %v1272 = vsel %vm1181, %v1271, %v76
    %v1273 = vrot.slane %v78, 6
    %v1274 = vsel %vm1184, %v1273, %v1272
    %v1275 = vrot.slane %v79, 5
    %v1276 = vsel %vm1187, %v1275, %v1274
    %v1277 = vrot.slane %v80, 4
    %v1278 = vsel %vm1190, %v1277, %v1276
    %v1279 = vrot.slane %v81, 3
    %v1280 = vsel %vm1193, %v1279, %v1278
    %v1281 = vrot.slane %v82, 2
    %v1282 = vsel %vm1196, %v1281, %v1280
    %v1283 = vrot.slane %v83, 1
    %v1284 = vsel %vm1199, %v1283, %v1282
    %v1285 = vrot.slane %v85, 7
    %v1286 = vsel %vm1181, %v1285, %v84
    %v1287 = vrot.slane %v86, 6
    %v1288 = vsel %vm1184, %v1287, %v1286
    %v1289 = vrot.slane %v87, 5
    %v1290 = vsel %vm1187, %v1289, %v1288
    %v1291 = vrot.slane %v88, 4
    %v1292 = vsel %vm1190, %v1291, %v1290
    %v1293 = vrot.slane %v89, 3
    %v1294 = vsel %vm1193, %v1293, %v1292
    %v1295 = vrot.slane %v90, 2
    %v1296 = vsel %vm1196, %v1295, %v1294
    %v1297 = vrot.slane %v91, 1
    %v1298 = vsel %vm1199, %v1297, %v1296
    %v1299 = vrot.slane %v93, 7
    %v1300 = vsel %vm1181, %v1299, %v92
    %v1301 = vrot.slane %v94, 6
    %v1302 = vsel %vm1184, %v1301, %v1300
    %v1303 = vrot.slane %v95, 5
    %v1304 = vsel %vm1187, %v1303, %v1302
    %v1305 = vrot.slane %v96, 4
    %v1306 = vsel %vm1190, %v1305, %v1304
    %v1307 = vrot.slane %v97, 3
    %v1308 = vsel %vm1193, %v1307, %v1306
    %v1309 = vrot.slane %v98, 2
    %v1310 = vsel %vm1196, %v1309, %v1308
    %v1311 = vrot.slane %v99, 1
    %v1312 = vsel %vm1199, %v1311, %v1310
    %v1313 = vrot.slane %v101, 7
    %v1314 = vsel %vm1181, %v1313, %v100
    %v1315 = vrot.slane %v102, 6
    %v1316 = vsel %vm1184, %v1315, %v1314
    %v1317 = vrot.slane %v103, 5
    %v1318 = vsel %vm1187, %v1317, %v1316
    %v1319 = vrot.slane %v104, 4
    %v1320 = vsel %vm1190, %v1319, %v1318
    %v1321 = vrot.slane %v105, 3
    %v1322 = vsel %vm1193, %v1321, %v1320
    %v1323 = vrot.slane %v106, 2
    %v1324 = vsel %vm1196, %v1323, %v1322
    %v1325 = vrot.slane %v107, 1
    %v1326 = vsel %vm1199, %v1325, %v1324
    %v1327 = vrot.slane %v109, 7
    %v1328 = vsel %vm1181, %v1327, %v108
    %v1329 = vrot.slane %v110, 6
    %v1330 = vsel %vm1184, %v1329, %v1328
    %v1331 = vrot.slane %v111, 5
    %v1332 = vsel %vm1187, %v1331, %v1330
    %v1333 = vrot.slane %v112, 4
    %v1334 = vsel %vm1190, %v1333, %v1332
    %v1335 = vrot.slane %v113, 3
    %v1336 = vsel %vm1193, %v1335, %v1334
    %v1337 = vrot.slane %v114, 2
    %v1338 = vsel %vm1196, %v1337, %v1336
    %v1339 = vrot.slane %v115, 1
    %v1340 = vsel %vm1199, %v1339, %v1338
    %v1341 = vrot.slane %v117, 7
    %v1342 = vsel %vm1181, %v1341, %v116
    %v1343 = vrot.slane %v118, 6
    %v1344 = vsel %vm1184, %v1343, %v1342
    %v1345 = vrot.slane %v119, 5
    %v1346 = vsel %vm1187, %v1345, %v1344
    %v1347 = vrot.slane %v120, 4
    %v1348 = vsel %vm1190, %v1347, %v1346
    %v1349 = vrot.slane %v121, 3
    %v1350 = vsel %vm1193, %v1349, %v1348
    %v1351 = vrot.slane %v122, 2
    %v1352 = vsel %vm1196, %v1351, %v1350
    %v1353 = vrot.slane %v123, 1
    %v1354 = vsel %vm1199, %v1353, %v1352
    %v1355 = vrot.slane %v125, 7
    %v1356 = vsel %vm1181, %v1355, %v124
    %v1357 = vrot.slane %v126, 6
    %v1358 = vsel %vm1184, %v1357, %v1356
    %v1359 = vrot.slane %v127, 5
    %v1360 = vsel %vm1187, %v1359, %v1358
    %v1361 = vrot.slane %v128, 4
    %v1362 = vsel %vm1190, %v1361, %v1360
    %v1363 = vrot.slane %v129, 3
    %v1364 = vsel %vm1193, %v1363, %v1362
    %v1365 = vrot.slane %v130, 2
    %v1366 = vsel %vm1196, %v1365, %v1364
    %v1367 = vrot.slane %v131, 1
    %v1368 = vsel %vm1199, %v1367, %v1366
    %v1369 = vrot.slane %v133, 7
    %v1370 = vsel %vm1181, %v1369, %v132
    %v1371 = vrot.slane %v134, 6
    %v1372 = vsel %vm1184, %v1371, %v1370
    %v1373 = vrot.slane %v135, 5
    %v1374 = vsel %vm1187, %v1373, %v1372
    %v1375 = vrot.slane %v136, 4
    %v1376 = vsel %vm1190, %v1375, %v1374
    %v1377 = vrot.slane %v137, 3
    %v1378 = vsel %vm1193, %v1377, %v1376
    %v1379 = vrot.slane %v138, 2
    %v1380 = vsel %vm1196, %v1379, %v1378
    %v1381 = vrot.slane %v139, 1
    %v1382 = vsel %vm1199, %v1381, %v1380
    %v1383 = vrot.slane %v141, 7
    %v1384 = vsel %vm1181, %v1383, %v140
    %v1385 = vrot.slane %v142, 6
    %v1386 = vsel %vm1184, %v1385, %v1384
    %v1387 = vrot.slane %v143, 5
    %v1388 = vsel %vm1187, %v1387, %v1386
    %v1389 = vrot.slane %v144, 4
    %v1390 = vsel %vm1190, %v1389, %v1388
    %v1391 = vrot.slane %v145, 3
    %v1392 = vsel %vm1193, %v1391, %v1390
    %v1393 = vrot.slane %v146, 2
    %v1394 = vsel %vm1196, %v1393, %v1392
    %v1395 = vrot.slane %v147, 1
    %v1396 = vsel %vm1199, %v1395, %v1394
    %v1397 = vrot.slane %v149, 7
    %v1398 = vsel %vm1181, %v1397, %v148
    %v1399 = vrot.slane %v150, 6
    %v1400 = vsel %vm1184, %v1399, %v1398
    %v1401 = vrot.slane %v151, 5
    %v1402 = vsel %vm1187, %v1401, %v1400
    %v1403 = vrot.slane %v152, 4
    %v1404 = vsel %vm1190, %v1403, %v1402
    %v1405 = vrot.slane %v153, 3
    %v1406 = vsel %vm1193, %v1405, %v1404
    %v1407 = vrot.slane %v154, 2
    %v1408 = vsel %vm1196, %v1407, %v1406
    %v1409 = vrot.slane %v155, 1
    %v1410 = vsel %vm1199, %v1409, %v1408
    %v1555 = vrot.slane %v157, 7
    %v1556 = vsel %vm1181, %v1555, %v156
    %v1557 = vrot.slane %v158, 6
    %v1558 = vsel %vm1184, %v1557, %v1556
    %v1559 = vrot.slane %v159, 5
    %v1560 = vsel %vm1187, %v1559, %v1558
    %v1561 = vrot.slane %v160, 4
    %v1562 = vsel %vm1190, %v1561, %v1560
    %v1563 = vrot.slane %v161, 3
    %v1564 = vsel %vm1193, %v1563, %v1562
    %v1565 = vrot.slane %v162, 2
    %v1566 = vsel %vm1196, %v1565, %v1564
    %v1567 = vrot.slane %v163, 1
    %v1568 = vsel %vm1199, %v1567, %v1566
    %v1569 = vrot.slane %v165, 7
    %v1570 = vsel %vm1181, %v1569, %v164
    %v1571 = vrot.slane %v166, 6
    %v1572 = vsel %vm1184, %v1571, %v1570
    %v1573 = vrot.slane %v167, 5
    %v1574 = vsel %vm1187, %v1573, %v1572
    %v1575 = vrot.slane %v168, 4
    %v1576 = vsel %vm1190, %v1575, %v1574
    %v1577 = vrot.slane %v169, 3
    %v1578 = vsel %vm1193, %v1577, %v1576
    %v1579 = vrot.slane %v170, 2
    %v1580 = vsel %vm1196, %v1579, %v1578
    %v1581 = vrot.slane %v171, 1
    %v1582 = vsel %vm1199, %v1581, %v1580
    %v1583 = vrot.slane %v173, 7
    %v1584 = vsel %vm1181, %v1583, %v172
    %v1585 = vrot.slane %v174, 6
    %v1586 = vsel %vm1184, %v1585, %v1584
    %v1587 = vrot.slane %v175, 5
    %v1588 = vsel %vm1187, %v1587, %v1586
    %v1589 = vrot.slane %v176, 4
    %v1590 = vsel %vm1190, %v1589, %v1588
    %v1591 = vrot.slane %v177, 3
    %v1592 = vsel %vm1193, %v1591, %v1590
    %v1593 = vrot.slane %v178, 2
    %v1594 = vsel %vm1196, %v1593, %v1592
    %v1595 = vrot.slane %v179, 1
    %v1596 = vsel %vm1199, %v1595, %v1594
    %v1597 = vrot.slane %v181, 7
    %v1598 = vsel %vm1181, %v1597, %v180
    %v1599 = vrot.slane %v182, 6
    %v1600 = vsel %vm1184, %v1599, %v1598
    %v1601 = vrot.slane %v183, 5
    %v1602 = vsel %vm1187, %v1601, %v1600
    %v1603 = vrot.slane %v184, 4
    %v1604 = vsel %vm1190, %v1603, %v1602
    %v1605 = vrot.slane %v185, 3
    %v1606 = vsel %vm1193, %v1605, %v1604
    %v1607 = vrot.slane %v186, 2
    %v1608 = vsel %vm1196, %v1607, %v1606
    %v1609 = vrot.slane %v187, 1
    %v1610 = vsel %vm1199, %v1609, %v1608
    %v1611 = vrot.slane %v189, 7
    %v1612 = vsel %vm1181, %v1611, %v188
    %v1613 = vrot.slane %v190, 6
    %v1614 = vsel %vm1184, %v1613, %v1612
    %v1615 = vrot.slane %v191, 5
    %v1616 = vsel %vm1187, %v1615, %v1614
    %v1617 = vrot.slane %v192, 4
    %v1618 = vsel %vm1190, %v1617, %v1616
    %v1619 = vrot.slane %v193, 3
    %v1620 = vsel %vm1193, %v1619, %v1618
    %v1621 = vrot.slane %v194, 2
    %v1622 = vsel %vm1196, %v1621, %v1620
    %v1623 = vrot.slane %v195, 1
    %v1624 = vsel %vm1199, %v1623, %v1622
    %v1625 = vrot.slane %v197, 7
    %v1626 = vsel %vm1181, %v1625, %v196
    %v1627 = vrot.slane %v198, 6
    %v1628 = vsel %vm1184, %v1627, %v1626
    %v1629 = vrot.slane %v199, 5
    %v1630 = vsel %vm1187, %v1629, %v1628
    %v1631 = vrot.slane %v200, 4
    %v1632 = vsel %vm1190, %v1631, %v1630
    %v1633 = vrot.slane %v201, 3
    %v1634 = vsel %vm1193, %v1633, %v1632
    %v1635 = vrot.slane %v202, 2
    %v1636 = vsel %vm1196, %v1635, %v1634
    %v1637 = vrot.slane %v203, 1
    %v1638 = vsel %vm1199, %v1637, %v1636
    %v1639 = vrot.slane %v205, 7
    %v1640 = vsel %vm1181, %v1639, %v204
    %v1641 = vrot.slane %v206, 6
    %v1642 = vsel %vm1184, %v1641, %v1640
    %v1643 = vrot.slane %v207, 5
    %v1644 = vsel %vm1187, %v1643, %v1642
    %v1645 = vrot.slane %v208, 4
    %v1646 = vsel %vm1190, %v1645, %v1644
    %v1647 = vrot.slane %v209, 3
    %v1648 = vsel %vm1193, %v1647, %v1646
    %v1649 = vrot.slane %v210, 2
    %v1650 = vsel %vm1196, %v1649, %v1648
    %v1651 = vrot.slane %v211, 1
    %v1652 = vsel %vm1199, %v1651, %v1650
    %v1653 = vrot.slane %v213, 7
    %v1654 = vsel %vm1181, %v1653, %v212
    %v1655 = vrot.slane %v214, 6
    %v1656 = vsel %vm1184, %v1655, %v1654
    %v1657 = vrot.slane %v215, 5
    %v1658 = vsel %vm1187, %v1657, %v1656
    %v1659 = vrot.slane %v216, 4
    %v1660 = vsel %vm1190, %v1659, %v1658
    %v1661 = vrot.slane %v217, 3
    %v1662 = vsel %vm1193, %v1661, %v1660
    %v1663 = vrot.slane %v218, 2
    %v1664 = vsel %vm1196, %v1663, %v1662
    %v1665 = vrot.slane %v219, 1
    %v1666 = vsel %vm1199, %v1665, %v1664
    %v1667 = vrot.slane %v221, 7
    %v1668 = vsel %vm1181, %v1667, %v220
    %v1669 = vrot.slane %v222, 6
    %v1670 = vsel %vm1184, %v1669, %v1668
    %v1671 = vrot.slane %v223, 5
    %v1672 = vsel %vm1187, %v1671, %v1670
    %v1673 = vrot.slane %v224, 4
    %v1674 = vsel %vm1190, %v1673, %v1672
    %v1675 = vrot.slane %v225, 3
    %v1676 = vsel %vm1193, %v1675, %v1674
    %v1677 = vrot.slane %v226, 2
    %v1678 = vsel %vm1196, %v1677, %v1676
    %v1679 = vrot.slane %v227, 1
    %v1680 = vsel %vm1199, %v1679, %v1678
    %v1681 = vrot.slane %v229, 7
    %v1682 = vsel %vm1181, %v1681, %v228
    %v1683 = vrot.slane %v230, 6
    %v1684 = vsel %vm1184, %v1683, %v1682
    %v1685 = vrot.slane %v231, 5
    %v1686 = vsel %vm1187, %v1685, %v1684
    %v1687 = vrot.slane %v232, 4
    %v1688 = vsel %vm1190, %v1687, %v1686
    %v1689 = vrot.slane %v233, 3
    %v1690 = vsel %vm1193, %v1689, %v1688
    %v1691 = vrot.slane %v234, 2
    %v1692 = vsel %vm1196, %v1691, %v1690
    %v1693 = vrot.slane %v235, 1
    %v1694 = vsel %vm1199, %v1693, %v1692
    %v1695 = vrot.slane %v237, 7
    %v1696 = vsel %vm1181, %v1695, %v236
    %v1697 = vrot.slane %v238, 6
    %v1698 = vsel %vm1184, %v1697, %v1696
    %v1699 = vrot.slane %v239, 5
    %v1700 = vsel %vm1187, %v1699, %v1698
    %v1701 = vrot.slane %v240, 4
    %v1702 = vsel %vm1190, %v1701, %v1700
    %v1703 = vrot.slane %v241, 3
    %v1704 = vsel %vm1193, %v1703, %v1702
    %v1705 = vrot.slane %v242, 2
    %v1706 = vsel %vm1196, %v1705, %v1704
    %v1707 = vrot.slane %v243, 1
    %v1708 = vsel %vm1199, %v1707, %v1706
    %v1709 = vrot.slane %v245, 7
    %v1710 = vsel %vm1181, %v1709, %v244
    %v1711 = vrot.slane %v246, 6
    %v1712 = vsel %vm1184, %v1711, %v1710
    %v1713 = vrot.slane %v247, 5
    %v1714 = vsel %vm1187, %v1713, %v1712
    %v1715 = vrot.slane %v248, 4
    %v1716 = vsel %vm1190, %v1715, %v1714
    %v1717 = vrot.slane %v249, 3
    %v1718 = vsel %vm1193, %v1717, %v1716
    %v1719 = vrot.slane %v250, 2
    %v1720 = vsel %vm1196, %v1719, %v1718
    %v1721 = vrot.slane %v251, 1
    %v1722 = vsel %vm1199, %v1721, %v1720
    %v1723 = vrot.slane %v253, 7
    %v1724 = vsel %vm1181, %v1723, %v252
    %v1725 = vrot.slane %v254, 6
    %v1726 = vsel %vm1184, %v1725, %v1724
    %v1727 = vrot.slane %v255, 5
    %v1728 = vsel %vm1187, %v1727, %v1726
    %v1729 = vrot.slane %v256, 4
    %v1730 = vsel %vm1190, %v1729, %v1728
    %v1731 = vrot.slane %v257, 3
    %v1732 = vsel %vm1193, %v1731, %v1730
    %v1733 = vrot.slane %v258, 2
    %v1734 = vsel %vm1196, %v1733, %v1732
    %v1735 = vrot.slane %v259, 1
    %v1736 = vsel %vm1199, %v1735, %v1734
    %v1737 = vrot.slane %v261, 7
    %v1738 = vsel %vm1181, %v1737, %v260
    %v1739 = vrot.slane %v262, 6
    %v1740 = vsel %vm1184, %v1739, %v1738
    %v1741 = vrot.slane %v263, 5
    %v1742 = vsel %vm1187, %v1741, %v1740
    %v1743 = vrot.slane %v264, 4
    %v1744 = vsel %vm1190, %v1743, %v1742
    %v1745 = vrot.slane %v265, 3
    %v1746 = vsel %vm1193, %v1745, %v1744
    %v1747 = vrot.slane %v266, 2
    %v1748 = vsel %vm1196, %v1747, %v1746
    %v1749 = vrot.slane %v267, 1
    %v1750 = vsel %vm1199, %v1749, %v1748
    %v1751 = vrot.slane %v269, 7
    %v1752 = vsel %vm1181, %v1751, %v268
    %v1753 = vrot.slane %v270, 6
    %v1754 = vsel %vm1184, %v1753, %v1752
    %v1755 = vrot.slane %v271, 5
    %v1756 = vsel %vm1187, %v1755, %v1754
    %v1757 = vrot.slane %v272, 4
    %v1758 = vsel %vm1190, %v1757, %v1756
    %v1759 = vrot.slane %v273, 3
    %v1760 = vsel %vm1193, %v1759, %v1758
    %v1761 = vrot.slane %v274, 2
    %v1762 = vsel %vm1196, %v1761, %v1760
    %v1763 = vrot.slane %v275, 1
    %v1764 = vsel %vm1199, %v1763, %v1762
    %v1765 = vrot.slane %v277, 7
    %v1766 = vsel %vm1181, %v1765, %v276
    %v1767 = vrot.slane %v278, 6
    %v1768 = vsel %vm1184, %v1767, %v1766
    %v1769 = vrot.slane %v279, 5
    %v1770 = vsel %vm1187, %v1769, %v1768
    %v1771 = vrot.slane %v280, 4
    %v1772 = vsel %vm1190, %v1771, %v1770
    %v1773 = vrot.slane %v281, 3
    %v1774 = vsel %vm1193, %v1773, %v1772
    %v1775 = vrot.slane %v282, 2
    %v1776 = vsel %vm1196, %v1775, %v1774
    %v1777 = vrot.slane %v283, 1
    %v1778 = vsel %vm1199, %v1777, %v1776
    %v1923 = vrot.slane %v285, 7
    %v1924 = vsel %vm1181, %v1923, %v284
    %v1925 = vrot.slane %v286, 6
    %v1926 = vsel %vm1184, %v1925, %v1924
    %v1927 = vrot.slane %v287, 5
    %v1928 = vsel %vm1187, %v1927, %v1926
    %v1929 = vrot.slane %v288, 4
    %v1930 = vsel %vm1190, %v1929, %v1928
    %v1931 = vrot.slane %v289, 3
    %v1932 = vsel %vm1193, %v1931, %v1930
    %v1933 = vrot.slane %v290, 2
    %v1934 = vsel %vm1196, %v1933, %v1932
    %v1935 = vrot.slane %v291, 1
    %v1936 = vsel %vm1199, %v1935, %v1934
    %v1937 = vrot.slane %v293, 7
    %v1938 = vsel %vm1181, %v1937, %v292
    %v1939 = vrot.slane %v294, 6
    %v1940 = vsel %vm1184, %v1939, %v1938
    %v1941 = vrot.slane %v295, 5
    %v1942 = vsel %vm1187, %v1941, %v1940
    %v1943 = vrot.slane %v296, 4
    %v1944 = vsel %vm1190, %v1943, %v1942
    %v1945 = vrot.slane %v297, 3
    %v1946 = vsel %vm1193, %v1945, %v1944
    %v1947 = vrot.slane %v298, 2
    %v1948 = vsel %vm1196, %v1947, %v1946
    %v1949 = vrot.slane %v299, 1
    %v1950 = vsel %vm1199, %v1949, %v1948
    %v1951 = vrot.slane %v301, 7
    %v1952 = vsel %vm1181, %v1951, %v300
    %v1953 = vrot.slane %v302, 6
    %v1954 = vsel %vm1184, %v1953, %v1952
    %v1955 = vrot.slane %v303, 5
    %v1956 = vsel %vm1187, %v1955, %v1954
    %v1957 = vrot.slane %v304, 4
    %v1958 = vsel %vm1190, %v1957, %v1956
    %v1959 = vrot.slane %v305, 3
    %v1960 = vsel %vm1193, %v1959, %v1958
    %v1961 = vrot.slane %v306, 2
    %v1962 = vsel %vm1196, %v1961, %v1960
    %v1963 = vrot.slane %v307, 1
    %v1964 = vsel %vm1199, %v1963, %v1962
    %v1965 = vrot.slane %v309, 7
    %v1966 = vsel %vm1181, %v1965, %v308
    %v1967 = vrot.slane %v310, 6
    %v1968 = vsel %vm1184, %v1967, %v1966
    %v1969 = vrot.slane %v311, 5
    %v1970 = vsel %vm1187, %v1969, %v1968
    %v1971 = vrot.slane %v312, 4
    %v1972 = vsel %vm1190, %v1971, %v1970
    %v1973 = vrot.slane %v313, 3
    %v1974 = vsel %vm1193, %v1973, %v1972
    %v1975 = vrot.slane %v314, 2
    %v1976 = vsel %vm1196, %v1975, %v1974
    %v1977 = vrot.slane %v315, 1
    %v1978 = vsel %vm1199, %v1977, %v1976
    %v1979 = vrot.slane %v317, 7
    %v1980 = vsel %vm1181, %v1979, %v316
    %v1981 = vrot.slane %v318, 6
    %v1982 = vsel %vm1184, %v1981, %v1980
    %v1983 = vrot.slane %v319, 5
    %v1984 = vsel %vm1187, %v1983, %v1982
    %v1985 = vrot.slane %v320, 4
    %v1986 = vsel %vm1190, %v1985, %v1984
    %v1987 = vrot.slane %v321, 3
    %v1988 = vsel %vm1193, %v1987, %v1986
    %v1989 = vrot.slane %v322, 2
    %v1990 = vsel %vm1196, %v1989, %v1988
    %v1991 = vrot.slane %v323, 1
    %v1992 = vsel %vm1199, %v1991, %v1990
    %v1993 = vrot.slane %v325, 7
    %v1994 = vsel %vm1181, %v1993, %v324
    %v1995 = vrot.slane %v326, 6
    %v1996 = vsel %vm1184, %v1995, %v1994
    %v1997 = vrot.slane %v327, 5
    %v1998 = vsel %vm1187, %v1997, %v1996
    %v1999 = vrot.slane %v328, 4
    %v2000 = vsel %vm1190, %v1999, %v1998
    %v2001 = vrot.slane %v329, 3
    %v2002 = vsel %vm1193, %v2001, %v2000
    %v2003 = vrot.slane %v330, 2
    %v2004 = vsel %vm1196, %v2003, %v2002
    %v2005 = vrot.slane %v331, 1
    %v2006 = vsel %vm1199, %v2005, %v2004
    %v2007 = vrot.slane %v333, 7
    %v2008 = vsel %vm1181, %v2007, %v332
    %v2009 = vrot.slane %v334, 6
    %v2010 = vsel %vm1184, %v2009, %v2008
    %v2011 = vrot.slane %v335, 5
    %v2012 = vsel %vm1187, %v2011, %v2010
    %v2013 = vrot.slane %v336, 4
    %v2014 = vsel %vm1190, %v2013, %v2012
    %v2015 = vrot.slane %v337, 3
    %v2016 = vsel %vm1193, %v2015, %v2014
    %v2017 = vrot.slane %v338, 2
    %v2018 = vsel %vm1196, %v2017, %v2016
    %v2019 = vrot.slane %v339, 1
    %v2020 = vsel %vm1199, %v2019, %v2018
    %v2021 = vrot.slane %v341, 7
    %v2022 = vsel %vm1181, %v2021, %v340
    %v2023 = vrot.slane %v342, 6
    %v2024 = vsel %vm1184, %v2023, %v2022
    %v2025 = vrot.slane %v343, 5
    %v2026 = vsel %vm1187, %v2025, %v2024
    %v2027 = vrot.slane %v344, 4
    %v2028 = vsel %vm1190, %v2027, %v2026
    %v2029 = vrot.slane %v345, 3
    %v2030 = vsel %vm1193, %v2029, %v2028
    %v2031 = vrot.slane %v346, 2
    %v2032 = vsel %vm1196, %v2031, %v2030
    %v2033 = vrot.slane %v347, 1
    %v2034 = vsel %vm1199, %v2033, %v2032
    %v2035 = vrot.slane %v349, 7
    %v2036 = vsel %vm1181, %v2035, %v348
    %v2037 = vrot.slane %v350, 6
    %v2038 = vsel %vm1184, %v2037, %v2036
    %v2039 = vrot.slane %v351, 5
    %v2040 = vsel %vm1187, %v2039, %v2038
    %v2041 = vrot.slane %v352, 4
    %v2042 = vsel %vm1190, %v2041, %v2040
    %v2043 = vrot.slane %v353, 3
    %v2044 = vsel %vm1193, %v2043, %v2042
    %v2045 = vrot.slane %v354, 2
    %v2046 = vsel %vm1196, %v2045, %v2044
    %v2047 = vrot.slane %v355, 1
    %v2048 = vsel %vm1199, %v2047, %v2046
    %v2049 = vrot.slane %v357, 7
    %v2050 = vsel %vm1181, %v2049, %v356
    %v2051 = vrot.slane %v358, 6
    %v2052 = vsel %vm1184, %v2051, %v2050
    %v2053 = vrot.slane %v359, 5
    %v2054 = vsel %vm1187, %v2053, %v2052
    %v2055 = vrot.slane %v360, 4
    %v2056 = vsel %vm1190, %v2055, %v2054
    %v2057 = vrot.slane %v361, 3
    %v2058 = vsel %vm1193, %v2057, %v2056
    %v2059 = vrot.slane %v362, 2
    %v2060 = vsel %vm1196, %v2059, %v2058
    %v2061 = vrot.slane %v363, 1
    %v2062 = vsel %vm1199, %v2061, %v2060
    %v2063 = vrot.slane %v365, 7
    %v2064 = vsel %vm1181, %v2063, %v364
    %v2065 = vrot.slane %v366, 6
    %v2066 = vsel %vm1184, %v2065, %v2064
    %v2067 = vrot.slane %v367, 5
    %v2068 = vsel %vm1187, %v2067, %v2066
    %v2069 = vrot.slane %v368, 4
    %v2070 = vsel %vm1190, %v2069, %v2068
    %v2071 = vrot.slane %v369, 3
    %v2072 = vsel %vm1193, %v2071, %v2070
    %v2073 = vrot.slane %v370, 2
    %v2074 = vsel %vm1196, %v2073, %v2072
    %v2075 = vrot.slane %v371, 1
    %v2076 = vsel %vm1199, %v2075, %v2074
    %v2077 = vrot.slane %v373, 7
    %v2078 = vsel %vm1181, %v2077, %v372
    %v2079 = vrot.slane %v374, 6
    %v2080 = vsel %vm1184, %v2079, %v2078
    %v2081 = vrot.slane %v375, 5
    %v2082 = vsel %vm1187, %v2081, %v2080
    %v2083 = vrot.slane %v376, 4
    %v2084 = vsel %vm1190, %v2083, %v2082
    %v2085 = vrot.slane %v377, 3
    %v2086 = vsel %vm1193, %v2085, %v2084
    %v2087 = vrot.slane %v378, 2
    %v2088 = vsel %vm1196, %v2087, %v2086
    %v2089 = vrot.slane %v379, 1
    %v2090 = vsel %vm1199, %v2089, %v2088
    %v2091 = vrot.slane %v381, 7
    %v2092 = vsel %vm1181, %v2091, %v380
    %v2093 = vrot.slane %v382, 6
    %v2094 = vsel %vm1184, %v2093, %v2092
    %v2095 = vrot.slane %v383, 5
    %v2096 = vsel %vm1187, %v2095, %v2094
    %v2097 = vrot.slane %v384, 4
    %v2098 = vsel %vm1190, %v2097, %v2096
    %v2099 = vrot.slane %v385, 3
    %v2100 = vsel %vm1193, %v2099, %v2098
    %v2101 = vrot.slane %v386, 2
    %v2102 = vsel %vm1196, %v2101, %v2100
    %v2103 = vrot.slane %v387, 1
    %v2104 = vsel %vm1199, %v2103, %v2102
    %v2105 = vrot.slane %v389, 7
    %v2106 = vsel %vm1181, %v2105, %v388
    %v2107 = vrot.slane %v390, 6
    %v2108 = vsel %vm1184, %v2107, %v2106
    %v2109 = vrot.slane %v391, 5
    %v2110 = vsel %vm1187, %v2109, %v2108
    %v2111 = vrot.slane %v392, 4
    %v2112 = vsel %vm1190, %v2111, %v2110
    %v2113 = vrot.slane %v393, 3
    %v2114 = vsel %vm1193, %v2113, %v2112
    %v2115 = vrot.slane %v394, 2
    %v2116 = vsel %vm1196, %v2115, %v2114
    %v2117 = vrot.slane %v395, 1
    %v2118 = vsel %vm1199, %v2117, %v2116
    %v2119 = vrot.slane %v397, 7
    %v2120 = vsel %vm1181, %v2119, %v396
    %v2121 = vrot.slane %v398, 6
    %v2122 = vsel %vm1184, %v2121, %v2120
    %v2123 = vrot.slane %v399, 5
    %v2124 = vsel %vm1187, %v2123, %v2122
    %v2125 = vrot.slane %v400, 4
    %v2126 = vsel %vm1190, %v2125, %v2124
    %v2127 = vrot.slane %v401, 3
    %v2128 = vsel %vm1193, %v2127, %v2126
    %v2129 = vrot.slane %v402, 2
    %v2130 = vsel %vm1196, %v2129, %v2128
    %v2131 = vrot.slane %v403, 1
    %v2132 = vsel %vm1199, %v2131, %v2130
    %v2133 = vrot.slane %v405, 7
    %v2134 = vsel %vm1181, %v2133, %v404
    %v2135 = vrot.slane %v406, 6
    %v2136 = vsel %vm1184, %v2135, %v2134
    %v2137 = vrot.slane %v407, 5
    %v2138 = vsel %vm1187, %v2137, %v2136
    %v2139 = vrot.slane %v408, 4
    %v2140 = vsel %vm1190, %v2139, %v2138
    %v2141 = vrot.slane %v409, 3
    %v2142 = vsel %vm1193, %v2141, %v2140
    %v2143 = vrot.slane %v410, 2
    %v2144 = vsel %vm1196, %v2143, %v2142
    %v2145 = vrot.slane %v411, 1
    %v2146 = vsel %vm1199, %v2145, %v2144
    %v2291 = vrot.slane %v413, 7
    %v2292 = vsel %vm1181, %v2291, %v412
    %v2293 = vrot.slane %v414, 6
    %v2294 = vsel %vm1184, %v2293, %v2292
    %v2295 = vrot.slane %v415, 5
    %v2296 = vsel %vm1187, %v2295, %v2294
    %v2297 = vrot.slane %v416, 4
    %v2298 = vsel %vm1190, %v2297, %v2296
    %v2299 = vrot.slane %v417, 3
    %v2300 = vsel %vm1193, %v2299, %v2298
    %v2301 = vrot.slane %v418, 2
    %v2302 = vsel %vm1196, %v2301, %v2300
    %v2303 = vrot.slane %v419, 1
    %v2304 = vsel %vm1199, %v2303, %v2302
    %v2305 = vrot.slane %v421, 7
    %v2306 = vsel %vm1181, %v2305, %v420
    %v2307 = vrot.slane %v422, 6
    %v2308 = vsel %vm1184, %v2307, %v2306
    %v2309 = vrot.slane %v423, 5
    %v2310 = vsel %vm1187, %v2309, %v2308
    %v2311 = vrot.slane %v424, 4
    %v2312 = vsel %vm1190, %v2311, %v2310
    %v2313 = vrot.slane %v425, 3
    %v2314 = vsel %vm1193, %v2313, %v2312
    %v2315 = vrot.slane %v426, 2
    %v2316 = vsel %vm1196, %v2315, %v2314
    %v2317 = vrot.slane %v427, 1
    %v2318 = vsel %vm1199, %v2317, %v2316
    %v2319 = vrot.slane %v429, 7
    %v2320 = vsel %vm1181, %v2319, %v428
    %v2321 = vrot.slane %v430, 6
    %v2322 = vsel %vm1184, %v2321, %v2320
    %v2323 = vrot.slane %v431, 5
    %v2324 = vsel %vm1187, %v2323, %v2322
    %v2325 = vrot.slane %v432, 4
    %v2326 = vsel %vm1190, %v2325, %v2324
    %v2327 = vrot.slane %v433, 3
    %v2328 = vsel %vm1193, %v2327, %v2326
    %v2329 = vrot.slane %v434, 2
    %v2330 = vsel %vm1196, %v2329, %v2328
    %v2331 = vrot.slane %v435, 1
    %v2332 = vsel %vm1199, %v2331, %v2330
    %v2333 = vrot.slane %v437, 7
    %v2334 = vsel %vm1181, %v2333, %v436
    %v2335 = vrot.slane %v438, 6
    %v2336 = vsel %vm1184, %v2335, %v2334
    %v2337 = vrot.slane %v439, 5
    %v2338 = vsel %vm1187, %v2337, %v2336
    %v2339 = vrot.slane %v440, 4
    %v2340 = vsel %vm1190, %v2339, %v2338
    %v2341 = vrot.slane %v441, 3
    %v2342 = vsel %vm1193, %v2341, %v2340
    %v2343 = vrot.slane %v442, 2
    %v2344 = vsel %vm1196, %v2343, %v2342
    %v2345 = vrot.slane %v443, 1
    %v2346 = vsel %vm1199, %v2345, %v2344
    %v2347 = vrot.slane %v445, 7
    %v2348 = vsel %vm1181, %v2347, %v444
    %v2349 = vrot.slane %v446, 6
    %v2350 = vsel %vm1184, %v2349, %v2348
    %v2351 = vrot.slane %v447, 5
    %v2352 = vsel %vm1187, %v2351, %v2350
    %v2353 = vrot.slane %v448, 4
    %v2354 = vsel %vm1190, %v2353, %v2352
    %v2355 = vrot.slane %v449, 3
    %v2356 = vsel %vm1193, %v2355, %v2354
    %v2357 = vrot.slane %v450, 2
    %v2358 = vsel %vm1196, %v2357, %v2356
    %v2359 = vrot.slane %v451, 1
    %v2360 = vsel %vm1199, %v2359, %v2358
    %v2361 = vrot.slane %v453, 7
    %v2362 = vsel %vm1181, %v2361, %v452
    %v2363 = vrot.slane %v454, 6
    %v2364 = vsel %vm1184, %v2363, %v2362
    %v2365 = vrot.slane %v455, 5
    %v2366 = vsel %vm1187, %v2365, %v2364
    %v2367 = vrot.slane %v456, 4
    %v2368 = vsel %vm1190, %v2367, %v2366
    %v2369 = vrot.slane %v457, 3
    %v2370 = vsel %vm1193, %v2369, %v2368
    %v2371 = vrot.slane %v458, 2
    %v2372 = vsel %vm1196, %v2371, %v2370
    %v2373 = vrot.slane %v459, 1
    %v2374 = vsel %vm1199, %v2373, %v2372
    %v2375 = vrot.slane %v461, 7
    %v2376 = vsel %vm1181, %v2375, %v460
    %v2377 = vrot.slane %v462, 6
    %v2378 = vsel %vm1184, %v2377, %v2376
    %v2379 = vrot.slane %v463, 5
    %v2380 = vsel %vm1187, %v2379, %v2378
    %v2381 = vrot.slane %v464, 4
    %v2382 = vsel %vm1190, %v2381, %v2380
    %v2383 = vrot.slane %v465, 3
    %v2384 = vsel %vm1193, %v2383, %v2382
    %v2385 = vrot.slane %v466, 2
    %v2386 = vsel %vm1196, %v2385, %v2384
    %v2387 = vrot.slane %v467, 1
    %v2388 = vsel %vm1199, %v2387, %v2386
    %v2389 = vrot.slane %v469, 7
    %v2390 = vsel %vm1181, %v2389, %v468
    %v2391 = vrot.slane %v470, 6
    %v2392 = vsel %vm1184, %v2391, %v2390
    %v2393 = vrot.slane %v471, 5
    %v2394 = vsel %vm1187, %v2393, %v2392
    %v2395 = vrot.slane %v472, 4
    %v2396 = vsel %vm1190, %v2395, %v2394
    %v2397 = vrot.slane %v473, 3
    %v2398 = vsel %vm1193, %v2397, %v2396
    %v2399 = vrot.slane %v474, 2
    %v2400 = vsel %vm1196, %v2399, %v2398
    %v2401 = vrot.slane %v475, 1
    %v2402 = vsel %vm1199, %v2401, %v2400
    %v2403 = vrot.slane %v477, 7
    %v2404 = vsel %vm1181, %v2403, %v476
    %v2405 = vrot.slane %v478, 6
    %v2406 = vsel %vm1184, %v2405, %v2404
    %v2407 = vrot.slane %v479, 5
    %v2408 = vsel %vm1187, %v2407, %v2406
    %v2409 = vrot.slane %v480, 4
    %v2410 = vsel %vm1190, %v2409, %v2408
    %v2411 = vrot.slane %v481, 3
    %v2412 = vsel %vm1193, %v2411, %v2410
    %v2413 = vrot.slane %v482, 2
    %v2414 = vsel %vm1196, %v2413, %v2412
    %v2415 = vrot.slane %v483, 1
    %v2416 = vsel %vm1199, %v2415, %v2414
    %v2417 = vrot.slane %v485, 7
    %v2418 = vsel %vm1181, %v2417, %v484
    %v2419 = vrot.slane %v486, 6
    %v2420 = vsel %vm1184, %v2419, %v2418
    %v2421 = vrot.slane %v487, 5
    %v2422 = vsel %vm1187, %v2421, %v2420
    %v2423 = vrot.slane %v488, 4
    %v2424 = vsel %vm1190, %v2423, %v2422
    %v2425 = vrot.slane %v489, 3
    %v2426 = vsel %vm1193, %v2425, %v2424
    %v2427 = vrot.slane %v490, 2
    %v2428 = vsel %vm1196, %v2427, %v2426
    %v2429 = vrot.slane %v491, 1
    %v2430 = vsel %vm1199, %v2429, %v2428
    %v2431 = vrot.slane %v493, 7
    %v2432 = vsel %vm1181, %v2431, %v492
    %v2433 = vrot.slane %v494, 6
    %v2434 = vsel %vm1184, %v2433, %v2432
    %v2435 = vrot.slane %v495, 5
    %v2436 = vsel %vm1187, %v2435, %v2434
    %v2437 = vrot.slane %v496, 4
    %v2438 = vsel %vm1190, %v2437, %v2436
    %v2439 = vrot.slane %v497, 3
    %v2440 = vsel %vm1193, %v2439, %v2438
    %v2441 = vrot.slane %v498, 2
    %v2442 = vsel %vm1196, %v2441, %v2440
    %v2443 = vrot.slane %v499, 1
    %v2444 = vsel %vm1199, %v2443, %v2442
    %v2445 = vrot.slane %v501, 7
    %v2446 = vsel %vm1181, %v2445, %v500
    %v2447 = vrot.slane %v502, 6
    %v2448 = vsel %vm1184, %v2447, %v2446
    %v2449 = vrot.slane %v503, 5
    %v2450 = vsel %vm1187, %v2449, %v2448
    %v2451 = vrot.slane %v504, 4
    %v2452 = vsel %vm1190, %v2451, %v2450
    %v2453 = vrot.slane %v505, 3
    %v2454 = vsel %vm1193, %v2453, %v2452
    %v2455 = vrot.slane %v506, 2
    %v2456 = vsel %vm1196, %v2455, %v2454
    %v2457 = vrot.slane %v507, 1
    %v2458 = vsel %vm1199, %v2457, %v2456
    %v2459 = vrot.slane %v509, 7
    %v2460 = vsel %vm1181, %v2459, %v508
    %v2461 = vrot.slane %v510, 6
    %v2462 = vsel %vm1184, %v2461, %v2460
    %v2463 = vrot.slane %v511, 5
    %v2464 = vsel %vm1187, %v2463, %v2462
    %v2465 = vrot.slane %v512, 4
    %v2466 = vsel %vm1190, %v2465, %v2464
    %v2467 = vrot.slane %v513, 3
    %v2468 = vsel %vm1193, %v2467, %v2466
    %v2469 = vrot.slane %v514, 2
    %v2470 = vsel %vm1196, %v2469, %v2468
    %v2471 = vrot.slane %v515, 1
    %v2472 = vsel %vm1199, %v2471, %v2470
    %v2473 = vrot.slane %v517, 7
    %v2474 = vsel %vm1181, %v2473, %v516
    %v2475 = vrot.slane %v518, 6
    %v2476 = vsel %vm1184, %v2475, %v2474
    %v2477 = vrot.slane %v519, 5
    %v2478 = vsel %vm1187, %v2477, %v2476
    %v2479 = vrot.slane %v520, 4
    %v2480 = vsel %vm1190, %v2479, %v2478
    %v2481 = vrot.slane %v521, 3
    %v2482 = vsel %vm1193, %v2481, %v2480
    %v2483 = vrot.slane %v522, 2
    %v2484 = vsel %vm1196, %v2483, %v2482
    %v2485 = vrot.slane %v523, 1
    %v2486 = vsel %vm1199, %v2485, %v2484
    %v2487 = vrot.slane %v525, 7
    %v2488 = vsel %vm1181, %v2487, %v524
    %v2489 = vrot.slane %v526, 6
    %v2490 = vsel %vm1184, %v2489, %v2488
    %v2491 = vrot.slane %v527, 5
    %v2492 = vsel %vm1187, %v2491, %v2490
    %v2493 = vrot.slane %v528, 4
    %v2494 = vsel %vm1190, %v2493, %v2492
    %v2495 = vrot.slane %v529, 3
    %v2496 = vsel %vm1193, %v2495, %v2494
    %v2497 = vrot.slane %v530, 2
    %v2498 = vsel %vm1196, %v2497, %v2496
    %v2499 = vrot.slane %v531, 1
    %v2500 = vsel %vm1199, %v2499, %v2498
    %v2501 = vrot.slane %v533, 7
    %v2502 = vsel %vm1181, %v2501, %v532
    %v2503 = vrot.slane %v534, 6
    %v2504 = vsel %vm1184, %v2503, %v2502
    %v2505 = vrot.slane %v535, 5
    %v2506 = vsel %vm1187, %v2505, %v2504
    %v2507 = vrot.slane %v536, 4
    %v2508 = vsel %vm1190, %v2507, %v2506
    %v2509 = vrot.slane %v537, 3
    %v2510 = vsel %vm1193, %v2509, %v2508
    %v2511 = vrot.slane %v538, 2
    %v2512 = vsel %vm1196, %v2511, %v2510
    %v2513 = vrot.slane %v539, 1
    %v2514 = vsel %vm1199, %v2513, %v2512
    %v2659 = vrot.slane %v541, 7
    %v2660 = vsel %vm1181, %v2659, %v540
    %v2661 = vrot.slane %v542, 6
    %v2662 = vsel %vm1184, %v2661, %v2660
    %v2663 = vrot.slane %v543, 5
    %v2664 = vsel %vm1187, %v2663, %v2662
    %v2665 = vrot.slane %v544, 4
    %v2666 = vsel %vm1190, %v2665, %v2664
    %v2667 = vrot.slane %v545, 3
    %v2668 = vsel %vm1193, %v2667, %v2666
    %v2669 = vrot.slane %v546, 2
    %v2670 = vsel %vm1196, %v2669, %v2668
    %v2671 = vrot.slane %v547, 1
    %v2672 = vsel %vm1199, %v2671, %v2670
    %v2673 = vrot.slane %v549, 7
    %v2674 = vsel %vm1181, %v2673, %v548
    %v2675 = vrot.slane %v550, 6
    %v2676 = vsel %vm1184, %v2675, %v2674
    %v2677 = vrot.slane %v551, 5
    %v2678 = vsel %vm1187, %v2677, %v2676
    %v2679 = vrot.slane %v552, 4
    %v2680 = vsel %vm1190, %v2679, %v2678
    %v2681 = vrot.slane %v553, 3
    %v2682 = vsel %vm1193, %v2681, %v2680
    %v2683 = vrot.slane %v554, 2
    %v2684 = vsel %vm1196, %v2683, %v2682
    %v2685 = vrot.slane %v555, 1
    %v2686 = vsel %vm1199, %v2685, %v2684
    %v2687 = vrot.slane %v557, 7
    %v2688 = vsel %vm1181, %v2687, %v556
    %v2689 = vrot.slane %v558, 6
    %v2690 = vsel %vm1184, %v2689, %v2688
    %v2691 = vrot.slane %v559, 5
    %v2692 = vsel %vm1187, %v2691, %v2690
    %v2693 = vrot.slane %v560, 4
    %v2694 = vsel %vm1190, %v2693, %v2692
    %v2695 = vrot.slane %v561, 3
    %v2696 = vsel %vm1193, %v2695, %v2694
    %v2697 = vrot.slane %v562, 2
    %v2698 = vsel %vm1196, %v2697, %v2696
    %v2699 = vrot.slane %v563, 1
    %v2700 = vsel %vm1199, %v2699, %v2698
    %v2701 = vrot.slane %v565, 7
    %v2702 = vsel %vm1181, %v2701, %v564
    %v2703 = vrot.slane %v566, 6
    %v2704 = vsel %vm1184, %v2703, %v2702
    %v2705 = vrot.slane %v567, 5
    %v2706 = vsel %vm1187, %v2705, %v2704
    %v2707 = vrot.slane %v568, 4
    %v2708 = vsel %vm1190, %v2707, %v2706
    %v2709 = vrot.slane %v569, 3
    %v2710 = vsel %vm1193, %v2709, %v2708
    %v2711 = vrot.slane %v570, 2
    %v2712 = vsel %vm1196, %v2711, %v2710
    %v2713 = vrot.slane %v571, 1
    %v2714 = vsel %vm1199, %v2713, %v2712
    %v2715 = vrot.slane %v573, 7
    %v2716 = vsel %vm1181, %v2715, %v572
    %v2717 = vrot.slane %v574, 6
    %v2718 = vsel %vm1184, %v2717, %v2716
    %v2719 = vrot.slane %v575, 5
    %v2720 = vsel %vm1187, %v2719, %v2718
    %v2721 = vrot.slane %v576, 4
    %v2722 = vsel %vm1190, %v2721, %v2720
    %v2723 = vrot.slane %v577, 3
    %v2724 = vsel %vm1193, %v2723, %v2722
    %v2725 = vrot.slane %v578, 2
    %v2726 = vsel %vm1196, %v2725, %v2724
    %v2727 = vrot.slane %v579, 1
    %v2728 = vsel %vm1199, %v2727, %v2726
    %v2729 = vrot.slane %v581, 7
    %v2730 = vsel %vm1181, %v2729, %v580
    %v2731 = vrot.slane %v582, 6
    %v2732 = vsel %vm1184, %v2731, %v2730
    %v2733 = vrot.slane %v583, 5
    %v2734 = vsel %vm1187, %v2733, %v2732
    %v2735 = vrot.slane %v584, 4
    %v2736 = vsel %vm1190, %v2735, %v2734
    %v2737 = vrot.slane %v585, 3
    %v2738 = vsel %vm1193, %v2737, %v2736
    %v2739 = vrot.slane %v586, 2
    %v2740 = vsel %vm1196, %v2739, %v2738
    %v2741 = vrot.slane %v587, 1
    %v2742 = vsel %vm1199, %v2741, %v2740
    %v2743 = vrot.slane %v589, 7
    %v2744 = vsel %vm1181, %v2743, %v588
    %v2745 = vrot.slane %v590, 6
    %v2746 = vsel %vm1184, %v2745, %v2744
    %v2747 = vrot.slane %v591, 5
    %v2748 = vsel %vm1187, %v2747, %v2746
    %v2749 = vrot.slane %v592, 4
    %v2750 = vsel %vm1190, %v2749, %v2748
    %v2751 = vrot.slane %v593, 3
    %v2752 = vsel %vm1193, %v2751, %v2750
    %v2753 = vrot.slane %v594, 2
    %v2754 = vsel %vm1196, %v2753, %v2752
    %v2755 = vrot.slane %v595, 1
    %v2756 = vsel %vm1199, %v2755, %v2754
    %v2757 = vrot.slane %v597, 7
    %v2758 = vsel %vm1181, %v2757, %v596
    %v2759 = vrot.slane %v598, 6
    %v2760 = vsel %vm1184, %v2759, %v2758
    %v2761 = vrot.slane %v599, 5
    %v2762 = vsel %vm1187, %v2761, %v2760
    %v2763 = vrot.slane %v600, 4
    %v2764 = vsel %vm1190, %v2763, %v2762
    %v2765 = vrot.slane %v601, 3
    %v2766 = vsel %vm1193, %v2765, %v2764
    %v2767 = vrot.slane %v602, 2
    %v2768 = vsel %vm1196, %v2767, %v2766
    %v2769 = vrot.slane %v603, 1
    %v2770 = vsel %vm1199, %v2769, %v2768
    %v2771 = vrot.slane %v605, 7
    %v2772 = vsel %vm1181, %v2771, %v604
    %v2773 = vrot.slane %v606, 6
    %v2774 = vsel %vm1184, %v2773, %v2772
    %v2775 = vrot.slane %v607, 5
    %v2776 = vsel %vm1187, %v2775, %v2774
    %v2777 = vrot.slane %v608, 4
    %v2778 = vsel %vm1190, %v2777, %v2776
    %v2779 = vrot.slane %v609, 3
    %v2780 = vsel %vm1193, %v2779, %v2778
    %v2781 = vrot.slane %v610, 2
    %v2782 = vsel %vm1196, %v2781, %v2780
    %v2783 = vrot.slane %v611, 1
    %v2784 = vsel %vm1199, %v2783, %v2782
    %v2785 = vrot.slane %v613, 7
    %v2786 = vsel %vm1181, %v2785, %v612
    %v2787 = vrot.slane %v614, 6
    %v2788 = vsel %vm1184, %v2787, %v2786
    %v2789 = vrot.slane %v615, 5
    %v2790 = vsel %vm1187, %v2789, %v2788
    %v2791 = vrot.slane %v616, 4
    %v2792 = vsel %vm1190, %v2791, %v2790
    %v2793 = vrot.slane %v617, 3
    %v2794 = vsel %vm1193, %v2793, %v2792
    %v2795 = vrot.slane %v618, 2
    %v2796 = vsel %vm1196, %v2795, %v2794
    %v2797 = vrot.slane %v619, 1
    %v2798 = vsel %vm1199, %v2797, %v2796
    %v2799 = vrot.slane %v621, 7
    %v2800 = vsel %vm1181, %v2799, %v620
    %v2801 = vrot.slane %v622, 6
    %v2802 = vsel %vm1184, %v2801, %v2800
    %v2803 = vrot.slane %v623, 5
    %v2804 = vsel %vm1187, %v2803, %v2802
    %v2805 = vrot.slane %v624, 4
    %v2806 = vsel %vm1190, %v2805, %v2804
    %v2807 = vrot.slane %v625, 3
    %v2808 = vsel %vm1193, %v2807, %v2806
    %v2809 = vrot.slane %v626, 2
    %v2810 = vsel %vm1196, %v2809, %v2808
    %v2811 = vrot.slane %v627, 1
    %v2812 = vsel %vm1199, %v2811, %v2810
    %v2813 = vrot.slane %v629, 7
    %v2814 = vsel %vm1181, %v2813, %v628
    %v2815 = vrot.slane %v630, 6
    %v2816 = vsel %vm1184, %v2815, %v2814
    %v2817 = vrot.slane %v631, 5
    %v2818 = vsel %vm1187, %v2817, %v2816
    %v2819 = vrot.slane %v632, 4
    %v2820 = vsel %vm1190, %v2819, %v2818
    %v2821 = vrot.slane %v633, 3
    %v2822 = vsel %vm1193, %v2821, %v2820
    %v2823 = vrot.slane %v634, 2
    %v2824 = vsel %vm1196, %v2823, %v2822
    %v2825 = vrot.slane %v635, 1
    %v2826 = vsel %vm1199, %v2825, %v2824
    %v2827 = vrot.slane %v637, 7
    %v2828 = vsel %vm1181, %v2827, %v636
    %v2829 = vrot.slane %v638, 6
    %v2830 = vsel %vm1184, %v2829, %v2828
    %v2831 = vrot.slane %v639, 5
    %v2832 = vsel %vm1187, %v2831, %v2830
    %v2833 = vrot.slane %v640, 4
    %v2834 = vsel %vm1190, %v2833, %v2832
    %v2835 = vrot.slane %v641, 3
    %v2836 = vsel %vm1193, %v2835, %v2834
    %v2837 = vrot.slane %v642, 2
    %v2838 = vsel %vm1196, %v2837, %v2836
    %v2839 = vrot.slane %v643, 1
    %v2840 = vsel %vm1199, %v2839, %v2838
    %v2841 = vrot.slane %v645, 7
    %v2842 = vsel %vm1181, %v2841, %v644
    %v2843 = vrot.slane %v646, 6
    %v2844 = vsel %vm1184, %v2843, %v2842
    %v2845 = vrot.slane %v647, 5
    %v2846 = vsel %vm1187, %v2845, %v2844
    %v2847 = vrot.slane %v648, 4
    %v2848 = vsel %vm1190, %v2847, %v2846
    %v2849 = vrot.slane %v649, 3
    %v2850 = vsel %vm1193, %v2849, %v2848
    %v2851 = vrot.slane %v650, 2
    %v2852 = vsel %vm1196, %v2851, %v2850
    %v2853 = vrot.slane %v651, 1
    %v2854 = vsel %vm1199, %v2853, %v2852
    %v2855 = vrot.slane %v653, 7
    %v2856 = vsel %vm1181, %v2855, %v652
    %v2857 = vrot.slane %v654, 6
    %v2858 = vsel %vm1184, %v2857, %v2856
    %v2859 = vrot.slane %v655, 5
    %v2860 = vsel %vm1187, %v2859, %v2858
    %v2861 = vrot.slane %v656, 4
    %v2862 = vsel %vm1190, %v2861, %v2860
    %v2863 = vrot.slane %v657, 3
    %v2864 = vsel %vm1193, %v2863, %v2862
    %v2865 = vrot.slane %v658, 2
    %v2866 = vsel %vm1196, %v2865, %v2864
    %v2867 = vrot.slane %v659, 1
    %v2868 = vsel %vm1199, %v2867, %v2866
    %v2869 = vrot.slane %v661, 7
    %v2870 = vsel %vm1181, %v2869, %v660
    %v2871 = vrot.slane %v662, 6
    %v2872 = vsel %vm1184, %v2871, %v2870
    %v2873 = vrot.slane %v663, 5
    %v2874 = vsel %vm1187, %v2873, %v2872
    %v2875 = vrot.slane %v664, 4
    %v2876 = vsel %vm1190, %v2875, %v2874
    %v2877 = vrot.slane %v665, 3
    %v2878 = vsel %vm1193, %v2877, %v2876
    %v2879 = vrot.slane %v666, 2
    %v2880 = vsel %vm1196, %v2879, %v2878
    %v2881 = vrot.slane %v667, 1
    %v2882 = vsel %vm1199, %v2881, %v2880
    %v3027 = vrot.slane %v669, 7
    %v3028 = vsel %vm1181, %v3027, %v668
    %v3029 = vrot.slane %v670, 6
    %v3030 = vsel %vm1184, %v3029, %v3028
    %v3031 = vrot.slane %v671, 5
    %v3032 = vsel %vm1187, %v3031, %v3030
    %v3033 = vrot.slane %v672, 4
    %v3034 = vsel %vm1190, %v3033, %v3032
    %v3035 = vrot.slane %v673, 3
    %v3036 = vsel %vm1193, %v3035, %v3034
    %v3037 = vrot.slane %v674, 2
    %v3038 = vsel %vm1196, %v3037, %v3036
    %v3039 = vrot.slane %v675, 1
    %v3040 = vsel %vm1199, %v3039, %v3038
    %v3041 = vrot.slane %v677, 7
    %v3042 = vsel %vm1181, %v3041, %v676
    %v3043 = vrot.slane %v678, 6
    %v3044 = vsel %vm1184, %v3043, %v3042
    %v3045 = vrot.slane %v679, 5
    %v3046 = vsel %vm1187, %v3045, %v3044
    %v3047 = vrot.slane %v680, 4
    %v3048 = vsel %vm1190, %v3047, %v3046
    %v3049 = vrot.slane %v681, 3
    %v3050 = vsel %vm1193, %v3049, %v3048
    %v3051 = vrot.slane %v682, 2
    %v3052 = vsel %vm1196, %v3051, %v3050
    %v3053 = vrot.slane %v683, 1
    %v3054 = vsel %vm1199, %v3053, %v3052
    %v3055 = vrot.slane %v685, 7
    %v3056 = vsel %vm1181, %v3055, %v684
    %v3057 = vrot.slane %v686, 6
    %v3058 = vsel %vm1184, %v3057, %v3056
    %v3059 = vrot.slane %v687, 5
    %v3060 = vsel %vm1187, %v3059, %v3058
    %v3061 = vrot.slane %v688, 4
    %v3062 = vsel %vm1190, %v3061, %v3060
    %v3063 = vrot.slane %v689, 3
    %v3064 = vsel %vm1193, %v3063, %v3062
    %v3065 = vrot.slane %v690, 2
    %v3066 = vsel %vm1196, %v3065, %v3064
    %v3067 = vrot.slane %v691, 1
    %v3068 = vsel %vm1199, %v3067, %v3066
    %v3069 = vrot.slane %v693, 7
    %v3070 = vsel %vm1181, %v3069, %v692
    %v3071 = vrot.slane %v694, 6
    %v3072 = vsel %vm1184, %v3071, %v3070
    %v3073 = vrot.slane %v695, 5
    %v3074 = vsel %vm1187, %v3073, %v3072
    %v3075 = vrot.slane %v696, 4
    %v3076 = vsel %vm1190, %v3075, %v3074
    %v3077 = vrot.slane %v697, 3
    %v3078 = vsel %vm1193, %v3077, %v3076
    %v3079 = vrot.slane %v698, 2
    %v3080 = vsel %vm1196, %v3079, %v3078
    %v3081 = vrot.slane %v699, 1
    %v3082 = vsel %vm1199, %v3081, %v3080
    %v3083 = vrot.slane %v701, 7
    %v3084 = vsel %vm1181, %v3083, %v700
    %v3085 = vrot.slane %v702, 6
    %v3086 = vsel %vm1184, %v3085, %v3084
    %v3087 = vrot.slane %v703, 5
    %v3088 = vsel %vm1187, %v3087, %v3086
    %v3089 = vrot.slane %v704, 4
    %v3090 = vsel %vm1190, %v3089, %v3088
    %v3091 = vrot.slane %v705, 3
    %v3092 = vsel %vm1193, %v3091, %v3090
    %v3093 = vrot.slane %v706, 2
    %v3094 = vsel %vm1196, %v3093, %v3092
    %v3095 = vrot.slane %v707, 1
    %v3096 = vsel %vm1199, %v3095, %v3094
    %v3097 = vrot.slane %v709, 7
    %v3098 = vsel %vm1181, %v3097, %v708
    %v3099 = vrot.slane %v710, 6
    %v3100 = vsel %vm1184, %v3099, %v3098
    %v3101 = vrot.slane %v711, 5
    %v3102 = vsel %vm1187, %v3101, %v3100
    %v3103 = vrot.slane %v712, 4
    %v3104 = vsel %vm1190, %v3103, %v3102
    %v3105 = vrot.slane %v713, 3
    %v3106 = vsel %vm1193, %v3105, %v3104
    %v3107 = vrot.slane %v714, 2
    %v3108 = vsel %vm1196, %v3107, %v3106
    %v3109 = vrot.slane %v715, 1
    %v3110 = vsel %vm1199, %v3109, %v3108
    %v3111 = vrot.slane %v717, 7
    %v3112 = vsel %vm1181, %v3111, %v716
    %v3113 = vrot.slane %v718, 6
    %v3114 = vsel %vm1184, %v3113, %v3112
    %v3115 = vrot.slane %v719, 5
    %v3116 = vsel %vm1187, %v3115, %v3114
    %v3117 = vrot.slane %v720, 4
    %v3118 = vsel %vm1190, %v3117, %v3116
    %v3119 = vrot.slane %v721, 3
    %v3120 = vsel %vm1193, %v3119, %v3118
    %v3121 = vrot.slane %v722, 2
    %v3122 = vsel %vm1196, %v3121, %v3120
    %v3123 = vrot.slane %v723, 1
    %v3124 = vsel %vm1199, %v3123, %v3122
    %v3125 = vrot.slane %v725, 7
    %v3126 = vsel %vm1181, %v3125, %v724
    %v3127 = vrot.slane %v726, 6
    %v3128 = vsel %vm1184, %v3127, %v3126
    %v3129 = vrot.slane %v727, 5
    %v3130 = vsel %vm1187, %v3129, %v3128
    %v3131 = vrot.slane %v728, 4
    %v3132 = vsel %vm1190, %v3131, %v3130
    %v3133 = vrot.slane %v729, 3
    %v3134 = vsel %vm1193, %v3133, %v3132
    %v3135 = vrot.slane %v730, 2
    %v3136 = vsel %vm1196, %v3135, %v3134
    %v3137 = vrot.slane %v731, 1
    %v3138 = vsel %vm1199, %v3137, %v3136
    %v3139 = vrot.slane %v733, 7
    %v3140 = vsel %vm1181, %v3139, %v732
    %v3141 = vrot.slane %v734, 6
    %v3142 = vsel %vm1184, %v3141, %v3140
    %v3143 = vrot.slane %v735, 5
    %v3144 = vsel %vm1187, %v3143, %v3142
    %v3145 = vrot.slane %v736, 4
    %v3146 = vsel %vm1190, %v3145, %v3144
    %v3147 = vrot.slane %v737, 3
    %v3148 = vsel %vm1193, %v3147, %v3146
    %v3149 = vrot.slane %v738, 2
    %v3150 = vsel %vm1196, %v3149, %v3148
    %v3151 = vrot.slane %v739, 1
    %v3152 = vsel %vm1199, %v3151, %v3150
    %v3153 = vrot.slane %v741, 7
    %v3154 = vsel %vm1181, %v3153, %v740
    %v3155 = vrot.slane %v742, 6
    %v3156 = vsel %vm1184, %v3155, %v3154
    %v3157 = vrot.slane %v743, 5
    %v3158 = vsel %vm1187, %v3157, %v3156
    %v3159 = vrot.slane %v744, 4
    %v3160 = vsel %vm1190, %v3159, %v3158
    %v3161 = vrot.slane %v745, 3
    %v3162 = vsel %vm1193, %v3161, %v3160
    %v3163 = vrot.slane %v746, 2
    %v3164 = vsel %vm1196, %v3163, %v3162
    %v3165 = vrot.slane %v747, 1
    %v3166 = vsel %vm1199, %v3165, %v3164
    %v3167 = vrot.slane %v749, 7
    %v3168 = vsel %vm1181, %v3167, %v748
    %v3169 = vrot.slane %v750, 6
    %v3170 = vsel %vm1184, %v3169, %v3168
    %v3171 = vrot.slane %v751, 5
    %v3172 = vsel %vm1187, %v3171, %v3170
    %v3173 = vrot.slane %v752, 4
    %v3174 = vsel %vm1190, %v3173, %v3172
    %v3175 = vrot.slane %v753, 3
    %v3176 = vsel %vm1193, %v3175, %v3174
    %v3177 = vrot.slane %v754, 2
    %v3178 = vsel %vm1196, %v3177, %v3176
    %v3179 = vrot.slane %v755, 1
    %v3180 = vsel %vm1199, %v3179, %v3178
    %v3181 = vrot.slane %v757, 7
    %v3182 = vsel %vm1181, %v3181, %v756
    %v3183 = vrot.slane %v758, 6
    %v3184 = vsel %vm1184, %v3183, %v3182
    %v3185 = vrot.slane %v759, 5
    %v3186 = vsel %vm1187, %v3185, %v3184
    %v3187 = vrot.slane %v760, 4
    %v3188 = vsel %vm1190, %v3187, %v3186
    %v3189 = vrot.slane %v761, 3
    %v3190 = vsel %vm1193, %v3189, %v3188
    %v3191 = vrot.slane %v762, 2
    %v3192 = vsel %vm1196, %v3191, %v3190
    %v3193 = vrot.slane %v763, 1
    %v3194 = vsel %vm1199, %v3193, %v3192
    %v3195 = vrot.slane %v765, 7
    %v3196 = vsel %vm1181, %v3195, %v764
    %v3197 = vrot.slane %v766, 6
    %v3198 = vsel %vm1184, %v3197, %v3196
    %v3199 = vrot.slane %v767, 5
    %v3200 = vsel %vm1187, %v3199, %v3198
    %v3201 = vrot.slane %v768, 4
    %v3202 = vsel %vm1190, %v3201, %v3200
    %v3203 = vrot.slane %v769, 3
    %v3204 = vsel %vm1193, %v3203, %v3202
    %v3205 = vrot.slane %v770, 2
    %v3206 = vsel %vm1196, %v3205, %v3204
    %v3207 = vrot.slane %v771, 1
    %v3208 = vsel %vm1199, %v3207, %v3206
    %v3209 = vrot.slane %v773, 7
    %v3210 = vsel %vm1181, %v3209, %v772
    %v3211 = vrot.slane %v774, 6
    %v3212 = vsel %vm1184, %v3211, %v3210
    %v3213 = vrot.slane %v775, 5
    %v3214 = vsel %vm1187, %v3213, %v3212
    %v3215 = vrot.slane %v776, 4
    %v3216 = vsel %vm1190, %v3215, %v3214
    %v3217 = vrot.slane %v777, 3
    %v3218 = vsel %vm1193, %v3217, %v3216
    %v3219 = vrot.slane %v778, 2
    %v3220 = vsel %vm1196, %v3219, %v3218
    %v3221 = vrot.slane %v779, 1
    %v3222 = vsel %vm1199, %v3221, %v3220
    %v3223 = vrot.slane %v781, 7
    %v3224 = vsel %vm1181, %v3223, %v780
    %v3225 = vrot.slane %v782, 6
    %v3226 = vsel %vm1184, %v3225, %v3224
    %v3227 = vrot.slane %v783, 5
    %v3228 = vsel %vm1187, %v3227, %v3226
    %v3229 = vrot.slane %v784, 4
    %v3230 = vsel %vm1190, %v3229, %v3228
    %v3231 = vrot.slane %v785, 3
    %v3232 = vsel %vm1193, %v3231, %v3230
    %v3233 = vrot.slane %v786, 2
    %v3234 = vsel %vm1196, %v3233, %v3232
    %v3235 = vrot.slane %v787, 1
    %v3236 = vsel %vm1199, %v3235, %v3234
    %v3237 = vrot.slane %v789, 7
    %v3238 = vsel %vm1181, %v3237, %v788
    %v3239 = vrot.slane %v790, 6
    %v3240 = vsel %vm1184, %v3239, %v3238
    %v3241 = vrot.slane %v791, 5
    %v3242 = vsel %vm1187, %v3241, %v3240
    %v3243 = vrot.slane %v792, 4
    %v3244 = vsel %vm1190, %v3243, %v3242
    %v3245 = vrot.slane %v793, 3
    %v3246 = vsel %vm1193, %v3245, %v3244
    %v3247 = vrot.slane %v794, 2
    %v3248 = vsel %vm1196, %v3247, %v3246
    %v3249 = vrot.slane %v795, 1
    %v3250 = vsel %vm1199, %v3249, %v3248
    %v3395 = vrot.slane %v797, 7
    %v3396 = vsel %vm1181, %v3395, %v796
    %v3397 = vrot.slane %v798, 6
    %v3398 = vsel %vm1184, %v3397, %v3396
    %v3399 = vrot.slane %v799, 5
    %v3400 = vsel %vm1187, %v3399, %v3398
    %v3401 = vrot.slane %v800, 4
    %v3402 = vsel %vm1190, %v3401, %v3400
    %v3403 = vrot.slane %v801, 3
    %v3404 = vsel %vm1193, %v3403, %v3402
    %v3405 = vrot.slane %v802, 2
    %v3406 = vsel %vm1196, %v3405, %v3404
    %v3407 = vrot.slane %v803, 1
    %v3408 = vsel %vm1199, %v3407, %v3406
    %v3409 = vrot.slane %v805, 7
    %v3410 = vsel %vm1181, %v3409, %v804
    %v3411 = vrot.slane %v806, 6
    %v3412 = vsel %vm1184, %v3411, %v3410
    %v3413 = vrot.slane %v807, 5
    %v3414 = vsel %vm1187, %v3413, %v3412
    %v3415 = vrot.slane %v808, 4
    %v3416 = vsel %vm1190, %v3415, %v3414
    %v3417 = vrot.slane %v809, 3
    %v3418 = vsel %vm1193, %v3417, %v3416
    %v3419 = vrot.slane %v810, 2
    %v3420 = vsel %vm1196, %v3419, %v3418
    %v3421 = vrot.slane %v811, 1
    %v3422 = vsel %vm1199, %v3421, %v3420
    %v3423 = vrot.slane %v813, 7
    %v3424 = vsel %vm1181, %v3423, %v812
    %v3425 = vrot.slane %v814, 6
    %v3426 = vsel %vm1184, %v3425, %v3424
    %v3427 = vrot.slane %v815, 5
    %v3428 = vsel %vm1187, %v3427, %v3426
    %v3429 = vrot.slane %v816, 4
    %v3430 = vsel %vm1190, %v3429, %v3428
    %v3431 = vrot.slane %v817, 3
    %v3432 = vsel %vm1193, %v3431, %v3430
    %v3433 = vrot.slane %v818, 2
    %v3434 = vsel %vm1196, %v3433, %v3432
    %v3435 = vrot.slane %v819, 1
    %v3436 = vsel %vm1199, %v3435, %v3434
    %v3437 = vrot.slane %v821, 7
    %v3438 = vsel %vm1181, %v3437, %v820
    %v3439 = vrot.slane %v822, 6
    %v3440 = vsel %vm1184, %v3439, %v3438
    %v3441 = vrot.slane %v823, 5
    %v3442 = vsel %vm1187, %v3441, %v3440
    %v3443 = vrot.slane %v824, 4
    %v3444 = vsel %vm1190, %v3443, %v3442
    %v3445 = vrot.slane %v825, 3
    %v3446 = vsel %vm1193, %v3445, %v3444
    %v3447 = vrot.slane %v826, 2
    %v3448 = vsel %vm1196, %v3447, %v3446
    %v3449 = vrot.slane %v827, 1
    %v3450 = vsel %vm1199, %v3449, %v3448
    %v3451 = vrot.slane %v829, 7
    %v3452 = vsel %vm1181, %v3451, %v828
    %v3453 = vrot.slane %v830, 6
    %v3454 = vsel %vm1184, %v3453, %v3452
    %v3455 = vrot.slane %v831, 5
    %v3456 = vsel %vm1187, %v3455, %v3454
    %v3457 = vrot.slane %v832, 4
    %v3458 = vsel %vm1190, %v3457, %v3456
    %v3459 = vrot.slane %v833, 3
    %v3460 = vsel %vm1193, %v3459, %v3458
    %v3461 = vrot.slane %v834, 2
    %v3462 = vsel %vm1196, %v3461, %v3460
    %v3463 = vrot.slane %v835, 1
    %v3464 = vsel %vm1199, %v3463, %v3462
    %v3465 = vrot.slane %v837, 7
    %v3466 = vsel %vm1181, %v3465, %v836
    %v3467 = vrot.slane %v838, 6
    %v3468 = vsel %vm1184, %v3467, %v3466
    %v3469 = vrot.slane %v839, 5
    %v3470 = vsel %vm1187, %v3469, %v3468
    %v3471 = vrot.slane %v840, 4
    %v3472 = vsel %vm1190, %v3471, %v3470
    %v3473 = vrot.slane %v841, 3
    %v3474 = vsel %vm1193, %v3473, %v3472
    %v3475 = vrot.slane %v842, 2
    %v3476 = vsel %vm1196, %v3475, %v3474
    %v3477 = vrot.slane %v843, 1
    %v3478 = vsel %vm1199, %v3477, %v3476
    %v3479 = vrot.slane %v845, 7
    %v3480 = vsel %vm1181, %v3479, %v844
    %v3481 = vrot.slane %v846, 6
    %v3482 = vsel %vm1184, %v3481, %v3480
    %v3483 = vrot.slane %v847, 5
    %v3484 = vsel %vm1187, %v3483, %v3482
    %v3485 = vrot.slane %v848, 4
    %v3486 = vsel %vm1190, %v3485, %v3484
    %v3487 = vrot.slane %v849, 3
    %v3488 = vsel %vm1193, %v3487, %v3486
    %v3489 = vrot.slane %v850, 2
    %v3490 = vsel %vm1196, %v3489, %v3488
    %v3491 = vrot.slane %v851, 1
    %v3492 = vsel %vm1199, %v3491, %v3490
    %v3493 = vrot.slane %v853, 7
    %v3494 = vsel %vm1181, %v3493, %v852
    %v3495 = vrot.slane %v854, 6
    %v3496 = vsel %vm1184, %v3495, %v3494
    %v3497 = vrot.slane %v855, 5
    %v3498 = vsel %vm1187, %v3497, %v3496
    %v3499 = vrot.slane %v856, 4
    %v3500 = vsel %vm1190, %v3499, %v3498
    %v3501 = vrot.slane %v857, 3
    %v3502 = vsel %vm1193, %v3501, %v3500
    %v3503 = vrot.slane %v858, 2
    %v3504 = vsel %vm1196, %v3503, %v3502
    %v3505 = vrot.slane %v859, 1
    %v3506 = vsel %vm1199, %v3505, %v3504
    %v3507 = vrot.slane %v861, 7
    %v3508 = vsel %vm1181, %v3507, %v860
    %v3509 = vrot.slane %v862, 6
    %v3510 = vsel %vm1184, %v3509, %v3508
    %v3511 = vrot.slane %v863, 5
    %v3512 = vsel %vm1187, %v3511, %v3510
    %v3513 = vrot.slane %v864, 4
    %v3514 = vsel %vm1190, %v3513, %v3512
    %v3515 = vrot.slane %v865, 3
    %v3516 = vsel %vm1193, %v3515, %v3514
    %v3517 = vrot.slane %v866, 2
    %v3518 = vsel %vm1196, %v3517, %v3516
    %v3519 = vrot.slane %v867, 1
    %v3520 = vsel %vm1199, %v3519, %v3518
    %v3521 = vrot.slane %v869, 7
    %v3522 = vsel %vm1181, %v3521, %v868
    %v3523 = vrot.slane %v870, 6
    %v3524 = vsel %vm1184, %v3523, %v3522
    %v3525 = vrot.slane %v871, 5
    %v3526 = vsel %vm1187, %v3525, %v3524
    %v3527 = vrot.slane %v872, 4
    %v3528 = vsel %vm1190, %v3527, %v3526
    %v3529 = vrot.slane %v873, 3
    %v3530 = vsel %vm1193, %v3529, %v3528
    %v3531 = vrot.slane %v874, 2
    %v3532 = vsel %vm1196, %v3531, %v3530
    %v3533 = vrot.slane %v875, 1
    %v3534 = vsel %vm1199, %v3533, %v3532
    %v3535 = vrot.slane %v877, 7
    %v3536 = vsel %vm1181, %v3535, %v876
    %v3537 = vrot.slane %v878, 6
    %v3538 = vsel %vm1184, %v3537, %v3536
    %v3539 = vrot.slane %v879, 5
    %v3540 = vsel %vm1187, %v3539, %v3538
    %v3541 = vrot.slane %v880, 4
    %v3542 = vsel %vm1190, %v3541, %v3540
    %v3543 = vrot.slane %v881, 3
    %v3544 = vsel %vm1193, %v3543, %v3542
    %v3545 = vrot.slane %v882, 2
    %v3546 = vsel %vm1196, %v3545, %v3544
    %v3547 = vrot.slane %v883, 1
    %v3548 = vsel %vm1199, %v3547, %v3546
    %v3549 = vrot.slane %v885, 7
    %v3550 = vsel %vm1181, %v3549, %v884
    %v3551 = vrot.slane %v886, 6
    %v3552 = vsel %vm1184, %v3551, %v3550
    %v3553 = vrot.slane %v887, 5
    %v3554 = vsel %vm1187, %v3553, %v3552
    %v3555 = vrot.slane %v888, 4
    %v3556 = vsel %vm1190, %v3555, %v3554
    %v3557 = vrot.slane %v889, 3
    %v3558 = vsel %vm1193, %v3557, %v3556
    %v3559 = vrot.slane %v890, 2
    %v3560 = vsel %vm1196, %v3559, %v3558
    %v3561 = vrot.slane %v891, 1
    %v3562 = vsel %vm1199, %v3561, %v3560
    %v3563 = vrot.slane %v893, 7
    %v3564 = vsel %vm1181, %v3563, %v892
    %v3565 = vrot.slane %v894, 6
    %v3566 = vsel %vm1184, %v3565, %v3564
    %v3567 = vrot.slane %v895, 5
    %v3568 = vsel %vm1187, %v3567, %v3566
    %v3569 = vrot.slane %v896, 4
    %v3570 = vsel %vm1190, %v3569, %v3568
    %v3571 = vrot.slane %v897, 3
    %v3572 = vsel %vm1193, %v3571, %v3570
    %v3573 = vrot.slane %v898, 2
    %v3574 = vsel %vm1196, %v3573, %v3572
    %v3575 = vrot.slane %v899, 1
    %v3576 = vsel %vm1199, %v3575, %v3574
    %v3577 = vrot.slane %v901, 7
    %v3578 = vsel %vm1181, %v3577, %v900
    %v3579 = vrot.slane %v902, 6
    %v3580 = vsel %vm1184, %v3579, %v3578
    %v3581 = vrot.slane %v903, 5
    %v3582 = vsel %vm1187, %v3581, %v3580
    %v3583 = vrot.slane %v904, 4
    %v3584 = vsel %vm1190, %v3583, %v3582
    %v3585 = vrot.slane %v905, 3
    %v3586 = vsel %vm1193, %v3585, %v3584
    %v3587 = vrot.slane %v906, 2
    %v3588 = vsel %vm1196, %v3587, %v3586
    %v3589 = vrot.slane %v907, 1
    %v3590 = vsel %vm1199, %v3589, %v3588
    %v3591 = vrot.slane %v909, 7
    %v3592 = vsel %vm1181, %v3591, %v908
    %v3593 = vrot.slane %v910, 6
    %v3594 = vsel %vm1184, %v3593, %v3592
    %v3595 = vrot.slane %v911, 5
    %v3596 = vsel %vm1187, %v3595, %v3594
    %v3597 = vrot.slane %v912, 4
    %v3598 = vsel %vm1190, %v3597, %v3596
    %v3599 = vrot.slane %v913, 3
    %v3600 = vsel %vm1193, %v3599, %v3598
    %v3601 = vrot.slane %v914, 2
    %v3602 = vsel %vm1196, %v3601, %v3600
    %v3603 = vrot.slane %v915, 1
    %v3604 = vsel %vm1199, %v3603, %v3602
    %v3605 = vrot.slane %v917, 7
    %v3606 = vsel %vm1181, %v3605, %v916
    %v3607 = vrot.slane %v918, 6
    %v3608 = vsel %vm1184, %v3607, %v3606
    %v3609 = vrot.slane %v919, 5
    %v3610 = vsel %vm1187, %v3609, %v3608
    %v3611 = vrot.slane %v920, 4
    %v3612 = vsel %vm1190, %v3611, %v3610
    %v3613 = vrot.slane %v921, 3
    %v3614 = vsel %vm1193, %v3613, %v3612
    %v3615 = vrot.slane %v922, 2
    %v3616 = vsel %vm1196, %v3615, %v3614
    %v3617 = vrot.slane %v923, 1
    %v3618 = vsel %vm1199, %v3617, %v3616
    %v3763 = vrot.slane %v925, 7
    %v3764 = vsel %vm1181, %v3763, %v924
    %v3765 = vrot.slane %v926, 6
    %v3766 = vsel %vm1184, %v3765, %v3764
    %v3767 = vrot.slane %v927, 5
    %v3768 = vsel %vm1187, %v3767, %v3766
    %v3769 = vrot.slane %v928, 4
    %v3770 = vsel %vm1190, %v3769, %v3768
    %v3771 = vrot.slane %v929, 3
    %v3772 = vsel %vm1193, %v3771, %v3770
    %v3773 = vrot.slane %v930, 2
    %v3774 = vsel %vm1196, %v3773, %v3772
    %v3775 = vrot.slane %v931, 1
    %v3776 = vsel %vm1199, %v3775, %v3774
    %v3777 = vrot.slane %v933, 7
    %v3778 = vsel %vm1181, %v3777, %v932
    %v3779 = vrot.slane %v934, 6
    %v3780 = vsel %vm1184, %v3779, %v3778
    %v3781 = vrot.slane %v935, 5
    %v3782 = vsel %vm1187, %v3781, %v3780
    %v3783 = vrot.slane %v936, 4
    %v3784 = vsel %vm1190, %v3783, %v3782
    %v3785 = vrot.slane %v937, 3
    %v3786 = vsel %vm1193, %v3785, %v3784
    %v3787 = vrot.slane %v938, 2
    %v3788 = vsel %vm1196, %v3787, %v3786
    %v3789 = vrot.slane %v939, 1
    %v3790 = vsel %vm1199, %v3789, %v3788
    %v3791 = vrot.slane %v941, 7
    %v3792 = vsel %vm1181, %v3791, %v940
    %v3793 = vrot.slane %v942, 6
    %v3794 = vsel %vm1184, %v3793, %v3792
    %v3795 = vrot.slane %v943, 5
    %v3796 = vsel %vm1187, %v3795, %v3794
    %v3797 = vrot.slane %v944, 4
    %v3798 = vsel %vm1190, %v3797, %v3796
    %v3799 = vrot.slane %v945, 3
    %v3800 = vsel %vm1193, %v3799, %v3798
    %v3801 = vrot.slane %v946, 2
    %v3802 = vsel %vm1196, %v3801, %v3800
    %v3803 = vrot.slane %v947, 1
    %v3804 = vsel %vm1199, %v3803, %v3802
    %v3805 = vrot.slane %v949, 7
    %v3806 = vsel %vm1181, %v3805, %v948
    %v3807 = vrot.slane %v950, 6
    %v3808 = vsel %vm1184, %v3807, %v3806
    %v3809 = vrot.slane %v951, 5
    %v3810 = vsel %vm1187, %v3809, %v3808
    %v3811 = vrot.slane %v952, 4
    %v3812 = vsel %vm1190, %v3811, %v3810
    %v3813 = vrot.slane %v953, 3
    %v3814 = vsel %vm1193, %v3813, %v3812
    %v3815 = vrot.slane %v954, 2
    %v3816 = vsel %vm1196, %v3815, %v3814
    %v3817 = vrot.slane %v955, 1
    %v3818 = vsel %vm1199, %v3817, %v3816
    %v3819 = vrot.slane %v957, 7
    %v3820 = vsel %vm1181, %v3819, %v956
    %v3821 = vrot.slane %v958, 6
    %v3822 = vsel %vm1184, %v3821, %v3820
    %v3823 = vrot.slane %v959, 5
    %v3824 = vsel %vm1187, %v3823, %v3822
    %v3825 = vrot.slane %v960, 4
    %v3826 = vsel %vm1190, %v3825, %v3824
    %v3827 = vrot.slane %v961, 3
    %v3828 = vsel %vm1193, %v3827, %v3826
    %v3829 = vrot.slane %v962, 2
    %v3830 = vsel %vm1196, %v3829, %v3828
    %v3831 = vrot.slane %v963, 1
    %v3832 = vsel %vm1199, %v3831, %v3830
    %v3833 = vrot.slane %v965, 7
    %v3834 = vsel %vm1181, %v3833, %v964
    %v3835 = vrot.slane %v966, 6
    %v3836 = vsel %vm1184, %v3835, %v3834
    %v3837 = vrot.slane %v967, 5
    %v3838 = vsel %vm1187, %v3837, %v3836
    %v3839 = vrot.slane %v968, 4
    %v3840 = vsel %vm1190, %v3839, %v3838
    %v3841 = vrot.slane %v969, 3
    %v3842 = vsel %vm1193, %v3841, %v3840
    %v3843 = vrot.slane %v970, 2
    %v3844 = vsel %vm1196, %v3843, %v3842
    %v3845 = vrot.slane %v971, 1
    %v3846 = vsel %vm1199, %v3845, %v3844
    %v3847 = vrot.slane %v973, 7
    %v3848 = vsel %vm1181, %v3847, %v972
    %v3849 = vrot.slane %v974, 6
    %v3850 = vsel %vm1184, %v3849, %v3848
    %v3851 = vrot.slane %v975, 5
    %v3852 = vsel %vm1187, %v3851, %v3850
    %v3853 = vrot.slane %v976, 4
    %v3854 = vsel %vm1190, %v3853, %v3852
    %v3855 = vrot.slane %v977, 3
    %v3856 = vsel %vm1193, %v3855, %v3854
    %v3857 = vrot.slane %v978, 2
    %v3858 = vsel %vm1196, %v3857, %v3856
    %v3859 = vrot.slane %v979, 1
    %v3860 = vsel %vm1199, %v3859, %v3858
    %v3861 = vrot.slane %v981, 7
    %v3862 = vsel %vm1181, %v3861, %v980
    %v3863 = vrot.slane %v982, 6
    %v3864 = vsel %vm1184, %v3863, %v3862
    %v3865 = vrot.slane %v983, 5
    %v3866 = vsel %vm1187, %v3865, %v3864
    %v3867 = vrot.slane %v984, 4
    %v3868 = vsel %vm1190, %v3867, %v3866
    %v3869 = vrot.slane %v985, 3
    %v3870 = vsel %vm1193, %v3869, %v3868
    %v3871 = vrot.slane %v986, 2
    %v3872 = vsel %vm1196, %v3871, %v3870
    %v3873 = vrot.slane %v987, 1
    %v3874 = vsel %vm1199, %v3873, %v3872
    %v3875 = vrot.slane %v989, 7
    %v3876 = vsel %vm1181, %v3875, %v988
    %v3877 = vrot.slane %v990, 6
    %v3878 = vsel %vm1184, %v3877, %v3876
    %v3879 = vrot.slane %v991, 5
    %v3880 = vsel %vm1187, %v3879, %v3878
    %v3881 = vrot.slane %v992, 4
    %v3882 = vsel %vm1190, %v3881, %v3880
    %v3883 = vrot.slane %v993, 3
    %v3884 = vsel %vm1193, %v3883, %v3882
    %v3885 = vrot.slane %v994, 2
    %v3886 = vsel %vm1196, %v3885, %v3884
    %v3887 = vrot.slane %v995, 1
    %v3888 = vsel %vm1199, %v3887, %v3886
    %v3889 = vrot.slane %v997, 7
    %v3890 = vsel %vm1181, %v3889, %v996
    %v3891 = vrot.slane %v998, 6
    %v3892 = vsel %vm1184, %v3891, %v3890
    %v3893 = vrot.slane %v999, 5
    %v3894 = vsel %vm1187, %v3893, %v3892
    %v3895 = vrot.slane %v1000, 4
    %v3896 = vsel %vm1190, %v3895, %v3894
    %v3897 = vrot.slane %v1001, 3
    %v3898 = vsel %vm1193, %v3897, %v3896
    %v3899 = vrot.slane %v1002, 2
    %v3900 = vsel %vm1196, %v3899, %v3898
    %v3901 = vrot.slane %v1003, 1
    %v3902 = vsel %vm1199, %v3901, %v3900
    %v3903 = vrot.slane %v1005, 7
    %v3904 = vsel %vm1181, %v3903, %v1004
    %v3905 = vrot.slane %v1006, 6
    %v3906 = vsel %vm1184, %v3905, %v3904
    %v3907 = vrot.slane %v1007, 5
    %v3908 = vsel %vm1187, %v3907, %v3906
    %v3909 = vrot.slane %v1008, 4
    %v3910 = vsel %vm1190, %v3909, %v3908
    %v3911 = vrot.slane %v1009, 3
    %v3912 = vsel %vm1193, %v3911, %v3910
    %v3913 = vrot.slane %v1010, 2
    %v3914 = vsel %vm1196, %v3913, %v3912
    %v3915 = vrot.slane %v1011, 1
    %v3916 = vsel %vm1199, %v3915, %v3914
    %v3917 = vrot.slane %v1013, 7
    %v3918 = vsel %vm1181, %v3917, %v1012
    %v3919 = vrot.slane %v1014, 6
    %v3920 = vsel %vm1184, %v3919, %v3918
    %v3921 = vrot.slane %v1015, 5
    %v3922 = vsel %vm1187, %v3921, %v3920
    %v3923 = vrot.slane %v1016, 4
    %v3924 = vsel %vm1190, %v3923, %v3922
    %v3925 = vrot.slane %v1017, 3
    %v3926 = vsel %vm1193, %v3925, %v3924
    %v3927 = vrot.slane %v1018, 2
    %v3928 = vsel %vm1196, %v3927, %v3926
    %v3929 = vrot.slane %v1019, 1
    %v3930 = vsel %vm1199, %v3929, %v3928
    %v3931 = vrot.slane %v1021, 7
    %v3932 = vsel %vm1181, %v3931, %v1020
    %v3933 = vrot.slane %v1022, 6
    %v3934 = vsel %vm1184, %v3933, %v3932
    %v3935 = vrot.slane %v1023, 5
    %v3936 = vsel %vm1187, %v3935, %v3934
    %v3937 = vrot.slane %v1024, 4
    %v3938 = vsel %vm1190, %v3937, %v3936
    %v3939 = vrot.slane %v1025, 3
    %v3940 = vsel %vm1193, %v3939, %v3938
    %v3941 = vrot.slane %v1026, 2
    %v3942 = vsel %vm1196, %v3941, %v3940
    %v3943 = vrot.slane %v1027, 1
    %v3944 = vsel %vm1199, %v3943, %v3942
    %v3945 = vrot.slane %v1029, 7
    %v3946 = vsel %vm1181, %v3945, %v1028
    %v3947 = vrot.slane %v1030, 6
    %v3948 = vsel %vm1184, %v3947, %v3946
    %v3949 = vrot.slane %v1031, 5
    %v3950 = vsel %vm1187, %v3949, %v3948
    %v3951 = vrot.slane %v1032, 4
    %v3952 = vsel %vm1190, %v3951, %v3950
    %v3953 = vrot.slane %v1033, 3
    %v3954 = vsel %vm1193, %v3953, %v3952
    %v3955 = vrot.slane %v1034, 2
    %v3956 = vsel %vm1196, %v3955, %v3954
    %v3957 = vrot.slane %v1035, 1
    %v3958 = vsel %vm1199, %v3957, %v3956
    %v3959 = vrot.slane %v1037, 7
    %v3960 = vsel %vm1181, %v3959, %v1036
    %v3961 = vrot.slane %v1038, 6
    %v3962 = vsel %vm1184, %v3961, %v3960
    %v3963 = vrot.slane %v1039, 5
    %v3964 = vsel %vm1187, %v3963, %v3962
    %v3965 = vrot.slane %v1040, 4
    %v3966 = vsel %vm1190, %v3965, %v3964
    %v3967 = vrot.slane %v1041, 3
    %v3968 = vsel %vm1193, %v3967, %v3966
    %v3969 = vrot.slane %v1042, 2
    %v3970 = vsel %vm1196, %v3969, %v3968
    %v3971 = vrot.slane %v1043, 1
    %v3972 = vsel %vm1199, %v3971, %v3970
    %v3973 = vrot.slane %v1045, 7
    %v3974 = vsel %vm1181, %v3973, %v1044
    %v3975 = vrot.slane %v1046, 6
    %v3976 = vsel %vm1184, %v3975, %v3974
    %v3977 = vrot.slane %v1047, 5
    %v3978 = vsel %vm1187, %v3977, %v3976
    %v3979 = vrot.slane %v1048, 4
    %v3980 = vsel %vm1190, %v3979, %v3978
    %v3981 = vrot.slane %v1049, 3
    %v3982 = vsel %vm1193, %v3981, %v3980
    %v3983 = vrot.slane %v1050, 2
    %v3984 = vsel %vm1196, %v3983, %v3982
    %v3985 = vrot.slane %v1051, 1
    %v3986 = vsel %vm1199, %v3985, %v3984
    %v4003 = vpack.c.bf16 %v1214, %v1200
    %v4004 = vpack.c.bf16 %v1242, %v1228
    %v4005 = vpack.c.bf16 %v1270, %v1256
    %v4006 = vpack.c.bf16 %v1298, %v1284
    %v4007 = vpack.c.bf16 %v1326, %v1312
    %v4008 = vpack.c.bf16 %v1354, %v1340
    %v4009 = vpack.c.bf16 %v1382, %v1368
    %v4010 = vpack.c.bf16 %v1410, %v1396
    %v4011 = vpack.c.bf16 %v1582, %v1568
    %v4012 = vpack.c.bf16 %v1610, %v1596
    %v4013 = vpack.c.bf16 %v1638, %v1624
    %v4014 = vpack.c.bf16 %v1666, %v1652
    %v4015 = vpack.c.bf16 %v1694, %v1680
    %v4016 = vpack.c.bf16 %v1722, %v1708
    %v4017 = vpack.c.bf16 %v1750, %v1736
    %v4018 = vpack.c.bf16 %v1778, %v1764
    %v4019 = vpack.c.bf16 %v1950, %v1936
    %v4020 = vpack.c.bf16 %v1978, %v1964
    %v4021 = vpack.c.bf16 %v2006, %v1992
    %v4022 = vpack.c.bf16 %v2034, %v2020
    %v4023 = vpack.c.bf16 %v2062, %v2048
    %v4024 = vpack.c.bf16 %v2090, %v2076
    %v4025 = vpack.c.bf16 %v2118, %v2104
    %v4026 = vpack.c.bf16 %v2146, %v2132
    %v4027 = vpack.c.bf16 %v2318, %v2304
    %v4028 = vpack.c.bf16 %v2346, %v2332
    %v4029 = vpack.c.bf16 %v2374, %v2360
    %v4030 = vpack.c.bf16 %v2402, %v2388
    %v4031 = vpack.c.bf16 %v2430, %v2416
    %v4032 = vpack.c.bf16 %v2458, %v2444
    %v4033 = vpack.c.bf16 %v2486, %v2472
    %v4034 = vpack.c.bf16 %v2514, %v2500
    %v4035 = vpack.c.bf16 %v2686, %v2672
    %v4036 = vpack.c.bf16 %v2714, %v2700
    %v4037 = vpack.c.bf16 %v2742, %v2728
    %v4038 = vpack.c.bf16 %v2770, %v2756
    %v4039 = vpack.c.bf16 %v2798, %v2784
    %v4040 = vpack.c.bf16 %v2826, %v2812
    %v4041 = vpack.c.bf16 %v2854, %v2840
    %v4042 = vpack.c.bf16 %v2882, %v2868
    %v4043 = vpack.c.bf16 %v3054, %v3040
    %v4044 = vpack.c.bf16 %v3082, %v3068
    %v4045 = vpack.c.bf16 %v3110, %v3096
    %v4046 = vpack.c.bf16 %v3138, %v3124
    %v4047 = vpack.c.bf16 %v3166, %v3152
    %v4048 = vpack.c.bf16 %v3194, %v3180
    %v4049 = vpack.c.bf16 %v3222, %v3208
    %v4050 = vpack.c.bf16 %v3250, %v3236
    %v4051 = vpack.c.bf16 %v3422, %v3408
    %v4052 = vpack.c.bf16 %v3450, %v3436
    %v4053 = vpack.c.bf16 %v3478, %v3464
    %v4054 = vpack.c.bf16 %v3506, %v3492
    %v4055 = vpack.c.bf16 %v3534, %v3520
    %v4056 = vpack.c.bf16 %v3562, %v3548
    %v4057 = vpack.c.bf16 %v3590, %v3576
    %v4058 = vpack.c.bf16 %v3618, %v3604
    %v4059 = vpack.c.bf16 %v3790, %v3776
    %v4060 = vpack.c.bf16 %v3818, %v3804
    %v4061 = vpack.c.bf16 %v3846, %v3832
    %v4062 = vpack.c.bf16 %v3874, %v3860
    %v4063 = vpack.c.bf16 %v3902, %v3888
    %v4064 = vpack.c.bf16 %v3930, %v3916
    %v4065 = vpack.c.bf16 %v3958, %v3944
    %v4066 = vpack.c.bf16 %v3986, %v3972
    %v4067 = vlaneseq
    %v4068 = vshrl.u32 %v4067, 7
    %v4069 = vsub.s32 0, %v4068
    %v4070 = vrot.slane %v22, %v4069
    %vm4071 = vcmask 130048
    %v4073 = vsel %vm4071, %v4003, 0
    %v4076 = vsel %vm4071, %v4004, 0
    %v4079 = vsel %vm4071, %v4005, 0
    %v4082 = vsel %vm4071, %v4006, 0
    %v4085 = vsel %vm4071, %v4007, 0
    %v4088 = vsel %vm4071, %v4008, 0
    %v4091 = vsel %vm4071, %v4009, 0
    %v4094 = vsel %vm4071, %v4010, 0
    %v4097 = vsel %vm4071, %v4011, 0
    %v4100 = vsel %vm4071, %v4012, 0
    %v4103 = vsel %vm4071, %v4013, 0
    %v4106 = vsel %vm4071, %v4014, 0
    %v4109 = vsel %vm4071, %v4015, 0
    %v4112 = vsel %vm4071, %v4016, 0
    %v4115 = vsel %vm4071, %v4017, 0
    %v4118 = vsel %vm4071, %v4018, 0
    %v4121 = vsel %vm4071, %v4019, 0
    %v4124 = vsel %vm4071, %v4020, 0
    %v4127 = vsel %vm4071, %v4021, 0
    %v4130 = vsel %vm4071, %v4022, 0
    %v4133 = vsel %vm4071, %v4023, 0
    %v4136 = vsel %vm4071, %v4024, 0
    %v4139 = vsel %vm4071, %v4025, 0
    %v4142 = vsel %vm4071, %v4026, 0
    %v4145 = vsel %vm4071, %v4027, 0
    %v4148 = vsel %vm4071, %v4028, 0
    %v4151 = vsel %vm4071, %v4029, 0
    %v4154 = vsel %vm4071, %v4030, 0
    %v4157 = vsel %vm4071, %v4031, 0
    %v4160 = vsel %vm4071, %v4032, 0
    %v4163 = vsel %vm4071, %v4033, 0
    %v4166 = vsel %vm4071, %v4034, 0
    %v4169 = vsel %vm4071, %v4035, 0
    %v4172 = vsel %vm4071, %v4036, 0
    %v4175 = vsel %vm4071, %v4037, 0
    %v4178 = vsel %vm4071, %v4038, 0
    %v4181 = vsel %vm4071, %v4039, 0
    %v4184 = vsel %vm4071, %v4040, 0
    %v4187 = vsel %vm4071, %v4041, 0
    %v4190 = vsel %vm4071, %v4042, 0
    %v4193 = vsel %vm4071, %v4043, 0
    %v4196 = vsel %vm4071, %v4044, 0
    %v4199 = vsel %vm4071, %v4045, 0
    %v4202 = vsel %vm4071, %v4046, 0
    %v4205 = vsel %vm4071, %v4047, 0
    %v4208 = vsel %vm4071, %v4048, 0
    %v4211 = vsel %vm4071, %v4049, 0
    %v4214 = vsel %vm4071, %v4050, 0
    %v4217 = vsel %vm4071, %v4051, 0
    %v4220 = vsel %vm4071, %v4052, 0
    %v4223 = vsel %vm4071, %v4053, 0
    %v4226 = vsel %vm4071, %v4054, 0
    %v4229 = vsel %vm4071, %v4055, 0
    %v4232 = vsel %vm4071, %v4056, 0
    %v4235 = vsel %vm4071, %v4057, 0
    %v4238 = vsel %vm4071, %v4058, 0
    %v4241 = vsel %vm4071, %v4059, 0
    %v4244 = vsel %vm4071, %v4060, 0
    %v4247 = vsel %vm4071, %v4061, 0
    %v4250 = vsel %vm4071, %v4062, 0
    %v4253 = vsel %vm4071, %v4063, 0
    %v4256 = vsel %vm4071, %v4064, 0
    %v4259 = vsel %vm4071, %v4065, 0
    %v4262 = vsel %vm4071, %v4066, 0
    %4264 = vmatprep.subr.bf16.mxu0 0
    %4265 = vmatpush1.bf16.msra.mxu0 %v15
    %4266 = vmatprep.subr.bf16.mxu0 0
    %4267 = vmatpush1.bf16.msra.mxu0 0
    %4268 = vmatprep.subr.bf16.mxu0 0
    %4269 = vmatpush1.bf16.msra.mxu0 0
    %4270 = vmatprep.subr.bf16.mxu0 0
    %4271 = vmatpush1.bf16.msra.mxu0 0
    %4272 = vmatprep.subr.bf16.mxu0 0
    %4273 = vmatpush1.bf16.msra.mxu0 0
    %4274 = vmatprep.subr.bf16.mxu0 0
    %4275 = vmatpush1.bf16.msra.mxu0 0
    %4276 = vmatprep.subr.bf16.mxu0 0
    %4277 = vmatpush1.bf16.msra.mxu0 0
    %4278 = vmatprep.subr.bf16.mxu0 0
    %4279 = vmatpush1.bf16.msra.mxu0 0
    %4280 = vmatprep.subr.bf16.mxu0 0
    %4281 = vmatpush1.bf16.msra.mxu0 0
    %4282 = vmatprep.subr.bf16.mxu0 0
    %4283 = vmatpush1.bf16.msra.mxu0 0
    %4284 = vmatprep.subr.bf16.mxu0 0
    %4285 = vmatpush1.bf16.msra.mxu0 0
    %4286 = vmatprep.subr.bf16.mxu0 0
    %4287 = vmatpush1.bf16.msra.mxu0 0
    %4288 = vmatprep.subr.bf16.mxu0 0
    %4289 = vmatpush1.bf16.msra.mxu0 0
    %4290 = vmatprep.subr.bf16.mxu0 0
    %4291 = vmatpush1.bf16.msra.mxu0 0
    %4292 = vmatprep.subr.bf16.mxu0 0
    %4293 = vmatpush1.bf16.msra.mxu0 0
    %4294 = vmatprep.subr.bf16.mxu0 0
    %4295 = vmatpush1.bf16.msra.mxu0 0
    %4296 = vmatprep.mubr.bf16.mxu0 0
    %4297 = vmatmul.mubr.bf16.gmra.mrb[0].mxu0 %v4073
    %v4298 = vpop.f32.mrb[0].mxu0
    %v4299 = vadd.f32 %v4070, %v4298
    %v4300 = vpop.f32.mrb[0].mxu0
    %v4301 = vpop.f32.mrb[0].mxu0
    %v4302 = vadd.f32 %v4070, %v4301
    %v4303 = vpop.f32.mrb[0].mxu0
    %4304 = vmatprep.mubr.bf16.mxu0 0
    %4305 = vmatmul.mubr.bf16.gmra.mrb[0].mxu0 %v4076
    %v4306 = vpop.f32.mrb[0].mxu0
    %v4307 = vadd.f32 %v4070, %v4306
    %v4308 = vpop.f32.mrb[0].mxu0
    %v4309 = vpop.f32.mrb[0].mxu0
    %v4310 = vadd.f32 %v4070, %v4309
    %v4311 = vpop.f32.mrb[0].mxu0
    %4312 = vmatprep.mubr.bf16.mxu0 0
    %4313 = vmatmul.mubr.bf16.gmra.mrb[0].mxu0 %v4079
    %v4314 = vpop.f32.mrb[0].mxu0
    %v4315 = vadd.f32 %v4070, %v4314
    %v4316 = vpop.f32.mrb[0].mxu0
    %v4317 = vpop.f32.mrb[0].mxu0
    %v4318 = vadd.f32 %v4070, %v4317
    %v4319 = vpop.f32.mrb[0].mxu0
    %4320 = vmatprep.mubr.bf16.mxu0 0
    %4321 = vmatmul.mubr.bf16.gmra.mrb[0].mxu0 %v4082
    %v4322 = vpop.f32.mrb[0].mxu0
    %v4323 = vadd.f32 %v4070, %v4322
    %v4324 = vpop.f32.mrb[0].mxu0
    %v4325 = vpop.f32.mrb[0].mxu0
    %v4326 = vadd.f32 %v4070, %v4325
    %v4327 = vpop.f32.mrb[0].mxu0
    %4328 = vmatprep.mubr.bf16.mxu0 0
    %4329 = vmatmul.mubr.bf16.gmra.mrb[0].mxu0 %v4085
    %v4330 = vpop.f32.mrb[0].mxu0
    %v4331 = vadd.f32 %v4070, %v4330
    %v4332 = vpop.f32.mrb[0].mxu0
    %v4333 = vpop.f32.mrb[0].mxu0
    %v4334 = vadd.f32 %v4070, %v4333
    %v4335 = vpop.f32.mrb[0].mxu0
    %4336 = vmatprep.mubr.bf16.mxu0 0
    %4337 = vmatmul.mubr.bf16.gmra.mrb[0].mxu0 %v4088
    %v4338 = vpop.f32.mrb[0].mxu0
    %v4339 = vadd.f32 %v4070, %v4338
    %v4340 = vpop.f32.mrb[0].mxu0
    %v4341 = vpop.f32.mrb[0].mxu0
    %v4342 = vadd.f32 %v4070, %v4341
    %v4343 = vpop.f32.mrb[0].mxu0
    %4344 = vmatprep.mubr.bf16.mxu0 0
    %4345 = vmatmul.mubr.bf16.gmra.mrb[0].mxu0 %v4091
    %v4346 = vpop.f32.mrb[0].mxu0
    %v4347 = vadd.f32 %v4070, %v4346
    %v4348 = vpop.f32.mrb[0].mxu0
    %v4349 = vpop.f32.mrb[0].mxu0
    %v4350 = vadd.f32 %v4070, %v4349
    %v4351 = vpop.f32.mrb[0].mxu0
    %4352 = vmatprep.mubr.bf16.mxu0 0
    %4353 = vmatmul.mubr.bf16.gmra.mrb[0].mxu0 %v4094
    %v4354 = vpop.f32.mrb[0].mxu0
    %v4355 = vadd.f32 %v4070, %v4354
    %v4356 = vpop.f32.mrb[0].mxu0
    %v4357 = vpop.f32.mrb[0].mxu0
    %v4358 = vadd.f32 %v4070, %v4357
    %v4359 = vpop.f32.mrb[0].mxu0
    %4360 = vmatprep.mubr.bf16.mxu0 0
    %4361 = vmatmul.mubr.bf16.gmra.mrb[0].mxu0 %v4097
    %v4362 = vpop.f32.mrb[0].mxu0
    %v4363 = vadd.f32 %v4070, %v4362
    %v4364 = vpop.f32.mrb[0].mxu0
    %v4365 = vpop.f32.mrb[0].mxu0
    %v4366 = vadd.f32 %v4070, %v4365
    %v4367 = vpop.f32.mrb[0].mxu0
    %4368 = vmatprep.mubr.bf16.mxu0 0
    %4369 = vmatmul.mubr.bf16.gmra.mrb[0].mxu0 %v4100
    %v4370 = vpop.f32.mrb[0].mxu0
    %v4371 = vadd.f32 %v4070, %v4370
    %v4372 = vpop.f32.mrb[0].mxu0
    %v4373 = vpop.f32.mrb[0].mxu0
    %v4374 = vadd.f32 %v4070, %v4373
    %v4375 = vpop.f32.mrb[0].mxu0
    %4376 = vmatprep.mubr.bf16.mxu0 0
    %4377 = vmatmul.mubr.bf16.gmra.mrb[0].mxu0 %v4103
    %v4378 = vpop.f32.mrb[0].mxu0
    %v4379 = vadd.f32 %v4070, %v4378
    %v4380 = vpop.f32.mrb[0].mxu0
    %v4381 = vpop.f32.mrb[0].mxu0
    %v4382 = vadd.f32 %v4070, %v4381
    %v4383 = vpop.f32.mrb[0].mxu0
    %4384 = vmatprep.mubr.bf16.mxu0 0
    %4385 = vmatmul.mubr.bf16.gmra.mrb[0].mxu0 %v4106
    %v4386 = vpop.f32.mrb[0].mxu0
    %v4387 = vadd.f32 %v4070, %v4386
    %v4388 = vpop.f32.mrb[0].mxu0
    %v4389 = vpop.f32.mrb[0].mxu0
    %v4390 = vadd.f32 %v4070, %v4389
    %v4391 = vpop.f32.mrb[0].mxu0
    %4392 = vmatprep.mubr.bf16.mxu0 0
    %4393 = vmatmul.mubr.bf16.gmra.mrb[0].mxu0 %v4109
    %v4394 = vpop.f32.mrb[0].mxu0
    %v4395 = vadd.f32 %v4070, %v4394
    %v4396 = vpop.f32.mrb[0].mxu0
    %v4397 = vpop.f32.mrb[0].mxu0
    %v4398 = vadd.f32 %v4070, %v4397
    %v4399 = vpop.f32.mrb[0].mxu0
    %4400 = vmatprep.mubr.bf16.mxu0 0
    %4401 = vmatmul.mubr.bf16.gmra.mrb[0].mxu0 %v4112
    %v4402 = vpop.f32.mrb[0].mxu0
    %v4403 = vadd.f32 %v4070, %v4402
    %v4404 = vpop.f32.mrb[0].mxu0
    %v4405 = vpop.f32.mrb[0].mxu0
    %v4406 = vadd.f32 %v4070, %v4405
    %v4407 = vpop.f32.mrb[0].mxu0
    %4408 = vmatprep.mubr.bf16.mxu0 0
    %4409 = vmatmul.mubr.bf16.gmra.mrb[0].mxu0 %v4115
    %v4410 = vpop.f32.mrb[0].mxu0
    %v4411 = vadd.f32 %v4070, %v4410
    %v4412 = vpop.f32.mrb[0].mxu0
    %v4413 = vpop.f32.mrb[0].mxu0
    %v4414 = vadd.f32 %v4070, %v4413
    %v4415 = vpop.f32.mrb[0].mxu0
    %4416 = vmatprep.mubr.bf16.mxu0 0
    %4417 = vmatmul.mubr.bf16.gmra.mrb[0].mxu0 %v4118
    %v4418 = vpop.f32.mrb[0].mxu0
    %v4419 = vadd.f32 %v4070, %v4418
    %v4420 = vpop.f32.mrb[0].mxu0
    %v4421 = vpop.f32.mrb[0].mxu0
    %v4422 = vadd.f32 %v4070, %v4421
    %v4423 = vpop.f32.mrb[0].mxu0
    %4424 = vmatprep.mubr.bf16.mxu0 0
    %4425 = vmatmul.mubr.bf16.gmra.mrb[0].mxu0 %v4121
    %v4426 = vpop.f32.mrb[0].mxu0
    %v4427 = vadd.f32 %v4070, %v4426
    %v4428 = vpop.f32.mrb[0].mxu0
    %v4429 = vpop.f32.mrb[0].mxu0
    %v4430 = vadd.f32 %v4070, %v4429
    %v4431 = vpop.f32.mrb[0].mxu0
    %4432 = vmatprep.mubr.bf16.mxu0 0
    %4433 = vmatmul.mubr.bf16.gmra.mrb[0].mxu0 %v4124
    %v4434 = vpop.f32.mrb[0].mxu0
    %v4435 = vadd.f32 %v4070, %v4434
    %v4436 = vpop.f32.mrb[0].mxu0
    %v4437 = vpop.f32.mrb[0].mxu0
    %v4438 = vadd.f32 %v4070, %v4437
    %v4439 = vpop.f32.mrb[0].mxu0
    %4440 = vmatprep.mubr.bf16.mxu0 0
    %4441 = vmatmul.mubr.bf16.gmra.mrb[0].mxu0 %v4127
    %v4442 = vpop.f32.mrb[0].mxu0
    %v4443 = vadd.f32 %v4070, %v4442
    %v4444 = vpop.f32.mrb[0].mxu0
    %v4445 = vpop.f32.mrb[0].mxu0
    %v4446 = vadd.f32 %v4070, %v4445
    %v4447 = vpop.f32.mrb[0].mxu0
    %4448 = vmatprep.mubr.bf16.mxu0 0
    %4449 = vmatmul.mubr.bf16.gmra.mrb[0].mxu0 %v4130
    %v4450 = vpop.f32.mrb[0].mxu0
    %v4451 = vadd.f32 %v4070, %v4450
    %v4452 = vpop.f32.mrb[0].mxu0
    %v4453 = vpop.f32.mrb[0].mxu0
    %v4454 = vadd.f32 %v4070, %v4453
    %v4455 = vpop.f32.mrb[0].mxu0
    %4456 = vmatprep.mubr.bf16.mxu0 0
    %4457 = vmatmul.mubr.bf16.gmra.mrb[0].mxu0 %v4133
    %v4458 = vpop.f32.mrb[0].mxu0
    %v4459 = vadd.f32 %v4070, %v4458
    %v4460 = vpop.f32.mrb[0].mxu0
    %v4461 = vpop.f32.mrb[0].mxu0
    %v4462 = vadd.f32 %v4070, %v4461
    %v4463 = vpop.f32.mrb[0].mxu0
    %4464 = vmatprep.mubr.bf16.mxu0 0
    %4465 = vmatmul.mubr.bf16.gmra.mrb[0].mxu0 %v4136
    %v4466 = vpop.f32.mrb[0].mxu0
    %v4467 = vadd.f32 %v4070, %v4466
    %v4468 = vpop.f32.mrb[0].mxu0
    %v4469 = vpop.f32.mrb[0].mxu0
    %v4470 = vadd.f32 %v4070, %v4469
    %v4471 = vpop.f32.mrb[0].mxu0
    %4472 = vmatprep.mubr.bf16.mxu0 0
    %4473 = vmatmul.mubr.bf16.gmra.mrb[0].mxu0 %v4139
    %v4474 = vpop.f32.mrb[0].mxu0
    %v4475 = vadd.f32 %v4070, %v4474
    %v4476 = vpop.f32.mrb[0].mxu0
    %v4477 = vpop.f32.mrb[0].mxu0
    %v4478 = vadd.f32 %v4070, %v4477
    %v4479 = vpop.f32.mrb[0].mxu0
    %4480 = vmatprep.mubr.bf16.mxu0 0
    %4481 = vmatmul.mubr.bf16.gmra.mrb[0].mxu0 %v4142
    %v4482 = vpop.f32.mrb[0].mxu0
    %v4483 = vadd.f32 %v4070, %v4482
    %v4484 = vpop.f32.mrb[0].mxu0
    %v4485 = vpop.f32.mrb[0].mxu0
    %v4486 = vadd.f32 %v4070, %v4485
    %v4487 = vpop.f32.mrb[0].mxu0
    %4488 = vmatprep.mubr.bf16.mxu0 0
    %4489 = vmatmul.mubr.bf16.gmra.mrb[0].mxu0 %v4145
    %v4490 = vpop.f32.mrb[0].mxu0
    %v4491 = vadd.f32 %v4070, %v4490
    %v4492 = vpop.f32.mrb[0].mxu0
    %v4493 = vpop.f32.mrb[0].mxu0
    %v4494 = vadd.f32 %v4070, %v4493
    %v4495 = vpop.f32.mrb[0].mxu0
    %4496 = vmatprep.mubr.bf16.mxu0 0
    %4497 = vmatmul.mubr.bf16.gmra.mrb[0].mxu0 %v4148
    %v4498 = vpop.f32.mrb[0].mxu0
    %v4499 = vadd.f32 %v4070, %v4498
    %v4500 = vpop.f32.mrb[0].mxu0
    %v4501 = vpop.f32.mrb[0].mxu0
    %v4502 = vadd.f32 %v4070, %v4501
    %v4503 = vpop.f32.mrb[0].mxu0
    %4504 = vmatprep.mubr.bf16.mxu0 0
    %4505 = vmatmul.mubr.bf16.gmra.mrb[0].mxu0 %v4151
    %v4506 = vpop.f32.mrb[0].mxu0
    %v4507 = vadd.f32 %v4070, %v4506
    %v4508 = vpop.f32.mrb[0].mxu0
    %v4509 = vpop.f32.mrb[0].mxu0
    %v4510 = vadd.f32 %v4070, %v4509
    %v4511 = vpop.f32.mrb[0].mxu0
    %4512 = vmatprep.mubr.bf16.mxu0 0
    %4513 = vmatmul.mubr.bf16.gmra.mrb[0].mxu0 %v4154
    %v4514 = vpop.f32.mrb[0].mxu0
    %v4515 = vadd.f32 %v4070, %v4514
    %v4516 = vpop.f32.mrb[0].mxu0
    %v4517 = vpop.f32.mrb[0].mxu0
    %v4518 = vadd.f32 %v4070, %v4517
    %v4519 = vpop.f32.mrb[0].mxu0
    %4520 = vmatprep.mubr.bf16.mxu0 0
    %4521 = vmatmul.mubr.bf16.gmra.mrb[0].mxu0 %v4157
    %v4522 = vpop.f32.mrb[0].mxu0
    %v4523 = vadd.f32 %v4070, %v4522
    %v4524 = vpop.f32.mrb[0].mxu0
    %v4525 = vpop.f32.mrb[0].mxu0
    %v4526 = vadd.f32 %v4070, %v4525
    %v4527 = vpop.f32.mrb[0].mxu0
    %4528 = vmatprep.mubr.bf16.mxu0 0
    %4529 = vmatmul.mubr.bf16.gmra.mrb[0].mxu0 %v4160
    %v4530 = vpop.f32.mrb[0].mxu0
    %v4531 = vadd.f32 %v4070, %v4530
    %v4532 = vpop.f32.mrb[0].mxu0
    %v4533 = vpop.f32.mrb[0].mxu0
    %v4534 = vadd.f32 %v4070, %v4533
    %v4535 = vpop.f32.mrb[0].mxu0
    %4536 = vmatprep.mubr.bf16.mxu0 0
    %4537 = vmatmul.mubr.bf16.gmra.mrb[0].mxu0 %v4163
    %v4538 = vpop.f32.mrb[0].mxu0
    %v4539 = vadd.f32 %v4070, %v4538
    %v4540 = vpop.f32.mrb[0].mxu0
    %v4541 = vpop.f32.mrb[0].mxu0
    %v4542 = vadd.f32 %v4070, %v4541
    %v4543 = vpop.f32.mrb[0].mxu0
    %4544 = vmatprep.mubr.bf16.mxu0 0
    %4545 = vmatmul.mubr.bf16.gmra.mrb[0].mxu0 %v4166
    %v4546 = vpop.f32.mrb[0].mxu0
    %v4547 = vadd.f32 %v4070, %v4546
    %v4548 = vpop.f32.mrb[0].mxu0
    %v4549 = vpop.f32.mrb[0].mxu0
    %v4550 = vadd.f32 %v4070, %v4549
    %v4551 = vpop.f32.mrb[0].mxu0
    %4552 = vmatprep.mubr.bf16.mxu0 0
    %4553 = vmatmul.mubr.bf16.gmra.mrb[0].mxu0 %v4169
    %v4554 = vpop.f32.mrb[0].mxu0
    %v4555 = vadd.f32 %v4070, %v4554
    %v4556 = vpop.f32.mrb[0].mxu0
    %v4557 = vpop.f32.mrb[0].mxu0
    %v4558 = vadd.f32 %v4070, %v4557
    %v4559 = vpop.f32.mrb[0].mxu0
    %4560 = vmatprep.mubr.bf16.mxu0 0
    %4561 = vmatmul.mubr.bf16.gmra.mrb[0].mxu0 %v4172
    %v4562 = vpop.f32.mrb[0].mxu0
    %v4563 = vadd.f32 %v4070, %v4562
    %v4564 = vpop.f32.mrb[0].mxu0
    %v4565 = vpop.f32.mrb[0].mxu0
    %v4566 = vadd.f32 %v4070, %v4565
    %v4567 = vpop.f32.mrb[0].mxu0
    %4568 = vmatprep.mubr.bf16.mxu0 0
    %4569 = vmatmul.mubr.bf16.gmra.mrb[0].mxu0 %v4175
    %v4570 = vpop.f32.mrb[0].mxu0
    %v4571 = vadd.f32 %v4070, %v4570
    %v4572 = vpop.f32.mrb[0].mxu0
    %v4573 = vpop.f32.mrb[0].mxu0
    %v4574 = vadd.f32 %v4070, %v4573
    %v4575 = vpop.f32.mrb[0].mxu0
    %4576 = vmatprep.mubr.bf16.mxu0 0
    %4577 = vmatmul.mubr.bf16.gmra.mrb[0].mxu0 %v4178
    %v4578 = vpop.f32.mrb[0].mxu0
    %v4579 = vadd.f32 %v4070, %v4578
    %v4580 = vpop.f32.mrb[0].mxu0
    %v4581 = vpop.f32.mrb[0].mxu0
    %v4582 = vadd.f32 %v4070, %v4581
    %v4583 = vpop.f32.mrb[0].mxu0
    %4584 = vmatprep.mubr.bf16.mxu0 0
    %4585 = vmatmul.mubr.bf16.gmra.mrb[0].mxu0 %v4181
    %v4586 = vpop.f32.mrb[0].mxu0
    %v4587 = vadd.f32 %v4070, %v4586
    %v4588 = vpop.f32.mrb[0].mxu0
    %v4589 = vpop.f32.mrb[0].mxu0
    %v4590 = vadd.f32 %v4070, %v4589
    %v4591 = vpop.f32.mrb[0].mxu0
    %4592 = vmatprep.mubr.bf16.mxu0 0
    %4593 = vmatmul.mubr.bf16.gmra.mrb[0].mxu0 %v4184
    %v4594 = vpop.f32.mrb[0].mxu0
    %v4595 = vadd.f32 %v4070, %v4594
    %v4596 = vpop.f32.mrb[0].mxu0
    %v4597 = vpop.f32.mrb[0].mxu0
    %v4598 = vadd.f32 %v4070, %v4597
    %v4599 = vpop.f32.mrb[0].mxu0
    %4600 = vmatprep.mubr.bf16.mxu0 0
    %4601 = vmatmul.mubr.bf16.gmra.mrb[0].mxu0 %v4187
    %v4602 = vpop.f32.mrb[0].mxu0
    %v4603 = vadd.f32 %v4070, %v4602
    %v4604 = vpop.f32.mrb[0].mxu0
    %v4605 = vpop.f32.mrb[0].mxu0
    %v4606 = vadd.f32 %v4070, %v4605
    %v4607 = vpop.f32.mrb[0].mxu0
    %4608 = vmatprep.mubr.bf16.mxu0 0
    %4609 = vmatmul.mubr.bf16.gmra.mrb[0].mxu0 %v4190
    %v4610 = vpop.f32.mrb[0].mxu0
    %v4611 = vadd.f32 %v4070, %v4610
    %v4612 = vpop.f32.mrb[0].mxu0
    %v4613 = vpop.f32.mrb[0].mxu0
    %v4614 = vadd.f32 %v4070, %v4613
    %v4615 = vpop.f32.mrb[0].mxu0
    %4616 = vmatprep.mubr.bf16.mxu0 0
    %4617 = vmatmul.mubr.bf16.gmra.mrb[0].mxu0 %v4193
    %v4618 = vpop.f32.mrb[0].mxu0
    %v4619 = vadd.f32 %v4070, %v4618
    %v4620 = vpop.f32.mrb[0].mxu0
    %v4621 = vpop.f32.mrb[0].mxu0
    %v4622 = vadd.f32 %v4070, %v4621
    %v4623 = vpop.f32.mrb[0].mxu0
    %4624 = vmatprep.mubr.bf16.mxu0 0
    %4625 = vmatmul.mubr.bf16.gmra.mrb[0].mxu0 %v4196
    %v4626 = vpop.f32.mrb[0].mxu0
    %v4627 = vadd.f32 %v4070, %v4626
    %v4628 = vpop.f32.mrb[0].mxu0
    %v4629 = vpop.f32.mrb[0].mxu0
    %v4630 = vadd.f32 %v4070, %v4629
    %v4631 = vpop.f32.mrb[0].mxu0
    %4632 = vmatprep.mubr.bf16.mxu0 0
    %4633 = vmatmul.mubr.bf16.gmra.mrb[0].mxu0 %v4199
    %v4634 = vpop.f32.mrb[0].mxu0
    %v4635 = vadd.f32 %v4070, %v4634
    %v4636 = vpop.f32.mrb[0].mxu0
    %v4637 = vpop.f32.mrb[0].mxu0
    %v4638 = vadd.f32 %v4070, %v4637
    %v4639 = vpop.f32.mrb[0].mxu0
    %4640 = vmatprep.mubr.bf16.mxu0 0
    %4641 = vmatmul.mubr.bf16.gmra.mrb[0].mxu0 %v4202
    %v4642 = vpop.f32.mrb[0].mxu0
    %v4643 = vadd.f32 %v4070, %v4642
    %v4644 = vpop.f32.mrb[0].mxu0
    %v4645 = vpop.f32.mrb[0].mxu0
    %v4646 = vadd.f32 %v4070, %v4645
    %v4647 = vpop.f32.mrb[0].mxu0
    %4648 = vmatprep.mubr.bf16.mxu0 0
    %4649 = vmatmul.mubr.bf16.gmra.mrb[0].mxu0 %v4205
    %v4650 = vpop.f32.mrb[0].mxu0
    %v4651 = vadd.f32 %v4070, %v4650
    %v4652 = vpop.f32.mrb[0].mxu0
    %v4653 = vpop.f32.mrb[0].mxu0
    %v4654 = vadd.f32 %v4070, %v4653
    %v4655 = vpop.f32.mrb[0].mxu0
    %4656 = vmatprep.mubr.bf16.mxu0 0
    %4657 = vmatmul.mubr.bf16.gmra.mrb[0].mxu0 %v4208
    %v4658 = vpop.f32.mrb[0].mxu0
    %v4659 = vadd.f32 %v4070, %v4658
    %v4660 = vpop.f32.mrb[0].mxu0
    %v4661 = vpop.f32.mrb[0].mxu0
    %v4662 = vadd.f32 %v4070, %v4661
    %v4663 = vpop.f32.mrb[0].mxu0
    %4664 = vmatprep.mubr.bf16.mxu0 0
    %4665 = vmatmul.mubr.bf16.gmra.mrb[0].mxu0 %v4211
    %v4666 = vpop.f32.mrb[0].mxu0
    %v4667 = vadd.f32 %v4070, %v4666
    %v4668 = vpop.f32.mrb[0].mxu0
    %v4669 = vpop.f32.mrb[0].mxu0
    %v4670 = vadd.f32 %v4070, %v4669
    %v4671 = vpop.f32.mrb[0].mxu0
    %4672 = vmatprep.mubr.bf16.mxu0 0
    %4673 = vmatmul.mubr.bf16.gmra.mrb[0].mxu0 %v4214
    %v4674 = vpop.f32.mrb[0].mxu0
    %v4675 = vadd.f32 %v4070, %v4674
    %v4676 = vpop.f32.mrb[0].mxu0
    %v4677 = vpop.f32.mrb[0].mxu0
    %v4678 = vadd.f32 %v4070, %v4677
    %v4679 = vpop.f32.mrb[0].mxu0
    %4680 = vmatprep.mubr.bf16.mxu0 0
    %4681 = vmatmul.mubr.bf16.gmra.mrb[0].mxu0 %v4217
    %v4682 = vpop.f32.mrb[0].mxu0
    %v4683 = vadd.f32 %v4070, %v4682
    %v4684 = vpop.f32.mrb[0].mxu0
    %v4685 = vpop.f32.mrb[0].mxu0
    %v4686 = vadd.f32 %v4070, %v4685
    %v4687 = vpop.f32.mrb[0].mxu0
    %4688 = vmatprep.mubr.bf16.mxu0 0
    %4689 = vmatmul.mubr.bf16.gmra.mrb[0].mxu0 %v4220
    %v4690 = vpop.f32.mrb[0].mxu0
    %v4691 = vadd.f32 %v4070, %v4690
    %v4692 = vpop.f32.mrb[0].mxu0
    %v4693 = vpop.f32.mrb[0].mxu0
    %v4694 = vadd.f32 %v4070, %v4693
    %v4695 = vpop.f32.mrb[0].mxu0
    %4696 = vmatprep.mubr.bf16.mxu0 0
    %4697 = vmatmul.mubr.bf16.gmra.mrb[0].mxu0 %v4223
    %v4698 = vpop.f32.mrb[0].mxu0
    %v4699 = vadd.f32 %v4070, %v4698
    %v4700 = vpop.f32.mrb[0].mxu0
    %v4701 = vpop.f32.mrb[0].mxu0
    %v4702 = vadd.f32 %v4070, %v4701
    %v4703 = vpop.f32.mrb[0].mxu0
    %4704 = vmatprep.mubr.bf16.mxu0 0
    %4705 = vmatmul.mubr.bf16.gmra.mrb[0].mxu0 %v4226
    %v4706 = vpop.f32.mrb[0].mxu0
    %v4707 = vadd.f32 %v4070, %v4706
    %v4708 = vpop.f32.mrb[0].mxu0
    %v4709 = vpop.f32.mrb[0].mxu0
    %v4710 = vadd.f32 %v4070, %v4709
    %v4711 = vpop.f32.mrb[0].mxu0
    %4712 = vmatprep.mubr.bf16.mxu0 0
    %4713 = vmatmul.mubr.bf16.gmra.mrb[0].mxu0 %v4229
    %v4714 = vpop.f32.mrb[0].mxu0
    %v4715 = vadd.f32 %v4070, %v4714
    %v4716 = vpop.f32.mrb[0].mxu0
    %v4717 = vpop.f32.mrb[0].mxu0
    %v4718 = vadd.f32 %v4070, %v4717
    %v4719 = vpop.f32.mrb[0].mxu0
    %4720 = vmatprep.mubr.bf16.mxu0 0
    %4721 = vmatmul.mubr.bf16.gmra.mrb[0].mxu0 %v4232
    %v4722 = vpop.f32.mrb[0].mxu0
    %v4723 = vadd.f32 %v4070, %v4722
    %v4724 = vpop.f32.mrb[0].mxu0
    %v4725 = vpop.f32.mrb[0].mxu0
    %v4726 = vadd.f32 %v4070, %v4725
    %v4727 = vpop.f32.mrb[0].mxu0
    %4728 = vmatprep.mubr.bf16.mxu0 0
    %4729 = vmatmul.mubr.bf16.gmra.mrb[0].mxu0 %v4235
    %v4730 = vpop.f32.mrb[0].mxu0
    %v4731 = vadd.f32 %v4070, %v4730
    %v4732 = vpop.f32.mrb[0].mxu0
    %v4733 = vpop.f32.mrb[0].mxu0
    %v4734 = vadd.f32 %v4070, %v4733
    %v4735 = vpop.f32.mrb[0].mxu0
    %4736 = vmatprep.mubr.bf16.mxu0 0
    %4737 = vmatmul.mubr.bf16.gmra.mrb[0].mxu0 %v4238
    %v4738 = vpop.f32.mrb[0].mxu0
    %v4739 = vadd.f32 %v4070, %v4738
    %v4740 = vpop.f32.mrb[0].mxu0
    %v4741 = vpop.f32.mrb[0].mxu0
    %v4742 = vadd.f32 %v4070, %v4741
    %v4743 = vpop.f32.mrb[0].mxu0
    %4744 = vmatprep.mubr.bf16.mxu0 0
    %4745 = vmatmul.mubr.bf16.gmra.mrb[0].mxu0 %v4241
    %v4746 = vpop.f32.mrb[0].mxu0
    %v4747 = vadd.f32 %v4070, %v4746
    %v4748 = vpop.f32.mrb[0].mxu0
    %v4749 = vpop.f32.mrb[0].mxu0
    %v4750 = vadd.f32 %v4070, %v4749
    %v4751 = vpop.f32.mrb[0].mxu0
    %4752 = vmatprep.mubr.bf16.mxu0 0
    %4753 = vmatmul.mubr.bf16.gmra.mrb[0].mxu0 %v4244
    %v4754 = vpop.f32.mrb[0].mxu0
    %v4755 = vadd.f32 %v4070, %v4754
    %v4756 = vpop.f32.mrb[0].mxu0
    %v4757 = vpop.f32.mrb[0].mxu0
    %v4758 = vadd.f32 %v4070, %v4757
    %v4759 = vpop.f32.mrb[0].mxu0
    %4760 = vmatprep.mubr.bf16.mxu0 0
    %4761 = vmatmul.mubr.bf16.gmra.mrb[0].mxu0 %v4247
    %v4762 = vpop.f32.mrb[0].mxu0
    %v4763 = vadd.f32 %v4070, %v4762
    %v4764 = vpop.f32.mrb[0].mxu0
    %v4765 = vpop.f32.mrb[0].mxu0
    %v4766 = vadd.f32 %v4070, %v4765
    %v4767 = vpop.f32.mrb[0].mxu0
    %4768 = vmatprep.mubr.bf16.mxu0 0
    %4769 = vmatmul.mubr.bf16.gmra.mrb[0].mxu0 %v4250
    %v4770 = vpop.f32.mrb[0].mxu0
    %v4771 = vadd.f32 %v4070, %v4770
    %v4772 = vpop.f32.mrb[0].mxu0
    %v4773 = vpop.f32.mrb[0].mxu0
    %v4774 = vadd.f32 %v4070, %v4773
    %v4775 = vpop.f32.mrb[0].mxu0
    %4776 = vmatprep.mubr.bf16.mxu0 0
    %4777 = vmatmul.mubr.bf16.gmra.mrb[0].mxu0 %v4253
    %v4778 = vpop.f32.mrb[0].mxu0
    %v4779 = vadd.f32 %v4070, %v4778
    %v4780 = vpop.f32.mrb[0].mxu0
    %v4781 = vpop.f32.mrb[0].mxu0
    %v4782 = vadd.f32 %v4070, %v4781
    %v4783 = vpop.f32.mrb[0].mxu0
    %4784 = vmatprep.mubr.bf16.mxu0 0
    %4785 = vmatmul.mubr.bf16.gmra.mrb[0].mxu0 %v4256
    %v4786 = vpop.f32.mrb[0].mxu0
    %v4787 = vadd.f32 %v4070, %v4786
    %v4788 = vpop.f32.mrb[0].mxu0
    %v4789 = vpop.f32.mrb[0].mxu0
    %v4790 = vadd.f32 %v4070, %v4789
    %v4791 = vpop.f32.mrb[0].mxu0
    %4792 = vmatprep.mubr.bf16.mxu0 0
    %4793 = vmatmul.mubr.bf16.gmra.mrb[0].mxu0 %v4259
    %v4794 = vpop.f32.mrb[0].mxu0
    %v4795 = vadd.f32 %v4070, %v4794
    %v4796 = vpop.f32.mrb[0].mxu0
    %v4797 = vpop.f32.mrb[0].mxu0
    %v4798 = vadd.f32 %v4070, %v4797
    %v4799 = vpop.f32.mrb[0].mxu0
    %4800 = vmatprep.mubr.bf16.mxu0 0
    %4801 = vmatmul.mubr.bf16.gmra.mrb[0].mxu0 %v4262
    %v4802 = vpop.f32.mrb[0].mxu0
    %v4803 = vadd.f32 %v4070, %v4802
    %v4804 = vpop.f32.mrb[0].mxu0
    %v4805 = vpop.f32.mrb[0].mxu0
    %v4806 = vadd.f32 %v4070, %v4805
    %v4807 = vpop.f32.mrb[0].mxu0
    %4808 = vdwg.mxu0
    %v4809 = vlaneseq
    %v4810 = vand.u32 %v4809, 127
    %vm4811 = vcmp.ge.s32.totalorder %v4810, 64
    %vm4812 = vcmp.lt.s32.totalorder %v4810, 96
    %vm4813 = vmand %vm4811, %vm4812
    %v4814 = vsel %vm4813, 1.0, 0.5
    %v4815 = vsel %vm4813, 0.0, 0.5
    %vm4816 = vcmask 261120
    %v4818 = vsel %vm4816, 0, 0
    %4820 = vmatprep.subr.bf16.mxu0 0
    %4821 = vmatpush1.bf16.msra.mxu0 %v20
    %4822 = vmatprep.subr.bf16.mxu0 0
    %4823 = vmatpush1.bf16.msra.mxu0 %v21
    %4824 = vmatprep.subr.bf16.mxu0 0
    %4825 = vmatpush1.bf16.msra.mxu0 0
    %4826 = vmatprep.subr.bf16.mxu0 0
    %4827 = vmatpush1.bf16.msra.mxu0 0
    %4828 = vmatprep.subr.bf16.mxu0 0
    %4829 = vmatpush1.bf16.msra.mxu0 0
    %4830 = vmatprep.subr.bf16.mxu0 0
    %4831 = vmatpush1.bf16.msra.mxu0 0
    %4832 = vmatprep.subr.bf16.mxu0 0
    %4833 = vmatpush1.bf16.msra.mxu0 0
    %4834 = vmatprep.subr.bf16.mxu0 0
    %4835 = vmatpush1.bf16.msra.mxu0 0
    %4836 = vmatprep.subr.bf16.mxu0 0
    %4837 = vmatpush1.bf16.msra.mxu0 0
    %4838 = vmatprep.subr.bf16.mxu0 0
    %4839 = vmatpush1.bf16.msra.mxu0 0
    %4840 = vmatprep.subr.bf16.mxu0 0
    %4841 = vmatpush1.bf16.msra.mxu0 0
    %4842 = vmatprep.subr.bf16.mxu0 0
    %4843 = vmatpush1.bf16.msra.mxu0 0
    %4844 = vmatprep.subr.bf16.mxu0 0
    %4845 = vmatpush1.bf16.msra.mxu0 0
    %4846 = vmatprep.subr.bf16.mxu0 0
    %4847 = vmatpush1.bf16.msra.mxu0 0
    %4848 = vmatprep.subr.bf16.mxu0 0
    %4849 = vmatpush1.bf16.msra.mxu0 0
    %4850 = vmatprep.subr.bf16.mxu0 0
    %4851 = vmatpush1.bf16.msra.mxu0 0
    %4852 = vmatprep.mubr.bf16.mxu0 0
    %4853 = vmatmul.mubr.bf16.gmra.mrb[0].mxu0 %v4818
    %v4854 = vpop.f32.mrb[0].mxu0
    %v4855 = vadd.f32 0.0, %v4854
    %v4856 = vpop.f32.mrb[0].mxu0
    %v4857 = vpop.f32.mrb[0].mxu0
    %v4858 = vadd.f32 0.0, %v4857
    %v4859 = vpop.f32.mrb[0].mxu0
    %4860 = vmatprep.mubr.bf16.mxu0 0
    %4861 = vmatmul.mubr.bf16.gmra.mrb[0].mxu0 %v4818
    %v4862 = vpop.f32.mrb[0].mxu0
    %v4863 = vadd.f32 0.0, %v4862
    %v4864 = vpop.f32.mrb[0].mxu0
    %v4865 = vpop.f32.mrb[0].mxu0
    %v4866 = vadd.f32 0.0, %v4865
    %v4867 = vpop.f32.mrb[0].mxu0
    %4868 = vmatprep.mubr.bf16.mxu0 0
    %4869 = vmatmul.mubr.bf16.gmra.mrb[0].mxu0 %v4818
    %v4870 = vpop.f32.mrb[0].mxu0
    %v4871 = vadd.f32 0.0, %v4870
    %v4872 = vpop.f32.mrb[0].mxu0
    %v4873 = vpop.f32.mrb[0].mxu0
    %v4874 = vadd.f32 0.0, %v4873
    %v4875 = vpop.f32.mrb[0].mxu0
    %4876 = vmatprep.mubr.bf16.mxu0 0
    %4877 = vmatmul.mubr.bf16.gmra.mrb[0].mxu0 %v4818
    %v4878 = vpop.f32.mrb[0].mxu0
    %v4879 = vadd.f32 0.0, %v4878
    %v4880 = vpop.f32.mrb[0].mxu0
    %v4881 = vpop.f32.mrb[0].mxu0
    %v4882 = vadd.f32 0.0, %v4881
    %v4883 = vpop.f32.mrb[0].mxu0
    %4884 = vmatprep.mubr.bf16.mxu0 0
    %4885 = vmatmul.mubr.bf16.gmra.mrb[0].mxu0 %v4818
    %v4886 = vpop.f32.mrb[0].mxu0
    %v4887 = vadd.f32 0.0, %v4886
    %v4888 = vpop.f32.mrb[0].mxu0
    %v4889 = vpop.f32.mrb[0].mxu0
    %v4890 = vadd.f32 0.0, %v4889
    %v4891 = vpop.f32.mrb[0].mxu0
    %4892 = vmatprep.mubr.bf16.mxu0 0
    %4893 = vmatmul.mubr.bf16.gmra.mrb[0].mxu0 %v4818
    %v4894 = vpop.f32.mrb[0].mxu0
    %v4895 = vadd.f32 0.0, %v4894
    %v4896 = vpop.f32.mrb[0].mxu0
    %v4897 = vpop.f32.mrb[0].mxu0
    %v4898 = vadd.f32 0.0, %v4897
    %v4899 = vpop.f32.mrb[0].mxu0
    %4900 = vmatprep.mubr.bf16.mxu0 0
    %4901 = vmatmul.mubr.bf16.gmra.mrb[0].mxu0 %v4818
    %v4902 = vpop.f32.mrb[0].mxu0
    %v4903 = vadd.f32 0.0, %v4902
    %v4904 = vpop.f32.mrb[0].mxu0
    %v4905 = vpop.f32.mrb[0].mxu0
    %v4906 = vadd.f32 0.0, %v4905
    %v4907 = vpop.f32.mrb[0].mxu0
    %4908 = vmatprep.mubr.bf16.mxu0 0
    %4909 = vmatmul.mubr.bf16.gmra.mrb[0].mxu0 %v4818
    %v4910 = vpop.f32.mrb[0].mxu0
    %v4911 = vadd.f32 0.0, %v4910
    %v4912 = vpop.f32.mrb[0].mxu0
    %v4913 = vpop.f32.mrb[0].mxu0
    %v4914 = vadd.f32 0.0, %v4913
    %v4915 = vpop.f32.mrb[0].mxu0
    %4916 = vdwg.mxu0
    %v4917 = vadd.f32 %v4299, %v4855
    %v4918 = vadd.f32 %v4302, %v4858
    %v4919 = vadd.f32 %v4307, %v4863
    %v4920 = vadd.f32 %v4310, %v4866
    %v4921 = vadd.f32 %v4315, %v4871
    %v4922 = vadd.f32 %v4318, %v4874
    %v4923 = vadd.f32 %v4323, %v4879
    %v4924 = vadd.f32 %v4326, %v4882
    %v4925 = vadd.f32 %v4331, %v4887
    %v4926 = vadd.f32 %v4334, %v4890
    %v4927 = vadd.f32 %v4339, %v4895
    %v4928 = vadd.f32 %v4342, %v4898
    %v4929 = vadd.f32 %v4347, %v4903
    %v4930 = vadd.f32 %v4350, %v4906
    %v4931 = vadd.f32 %v4355, %v4911
    %v4932 = vadd.f32 %v4358, %v4914
    %v4933 = vtanh.pop %v4917
    %v4934 = vtanh.pop %v4918
    %v4935 = vtanh.pop %v4919
    %v4936 = vtanh.pop %v4920
    %v4937 = vtanh.pop %v4921
    %v4938 = vtanh.pop %v4922
    %v4939 = vtanh.pop %v4923
    %v4940 = vtanh.pop %v4924
    %v4941 = vtanh.pop %v4925
    %v4942 = vtanh.pop %v4926
    %v4943 = vtanh.pop %v4927
    %v4944 = vtanh.pop %v4928
    %v4945 = vtanh.pop %v4929
    %v4946 = vtanh.pop %v4930
    %v4947 = vtanh.pop %v4931
    %v4948 = vtanh.pop %v4932
    %v4949 = vmul.f32 %v4933, %v4814
    %v4950 = vmul.f32 %v4934, %v4814
    %v4951 = vmul.f32 %v4935, %v4814
    %v4952 = vmul.f32 %v4936, %v4814
    %v4953 = vmul.f32 %v4937, %v4814
    %v4954 = vmul.f32 %v4938, %v4814
    %v4955 = vmul.f32 %v4939, %v4814
    %v4956 = vmul.f32 %v4940, %v4814
    %v4957 = vmul.f32 %v4941, %v4814
    %v4958 = vmul.f32 %v4942, %v4814
    %v4959 = vmul.f32 %v4943, %v4814
    %v4960 = vmul.f32 %v4944, %v4814
    %v4961 = vmul.f32 %v4945, %v4814
    %v4962 = vmul.f32 %v4946, %v4814
    %v4963 = vmul.f32 %v4947, %v4814
    %v4964 = vmul.f32 %v4948, %v4814
    %v4965 = vadd.f32 %v4949, %v4815
    %v4966 = vadd.f32 %v4950, %v4815
    %v4967 = vadd.f32 %v4951, %v4815
    %v4968 = vadd.f32 %v4952, %v4815
    %v4969 = vadd.f32 %v4953, %v4815
    %v4970 = vadd.f32 %v4954, %v4815
    %v4971 = vadd.f32 %v4955, %v4815
    %v4972 = vadd.f32 %v4956, %v4815
    %v4973 = vadd.f32 %v4957, %v4815
    %v4974 = vadd.f32 %v4958, %v4815
    %v4975 = vadd.f32 %v4959, %v4815
    %v4976 = vadd.f32 %v4960, %v4815
    %v4977 = vadd.f32 %v4961, %v4815
    %v4978 = vadd.f32 %v4962, %v4815
    %v4979 = vadd.f32 %v4963, %v4815
    %v4980 = vadd.f32 %v4964, %v4815
    %v4981 = vmul.f32 %v4965, 0.0
    %v4982 = vmul.f32 %v4966, 0.0
    %v4983 = vmul.f32 %v4967, 0.0
    %v4984 = vmul.f32 %v4968, 0.0
    %v4985 = vmul.f32 %v4969, 0.0
    %v4986 = vmul.f32 %v4970, 0.0
    %v4987 = vmul.f32 %v4971, 0.0
    %v4988 = vmul.f32 %v4972, 0.0
    %v4989 = vmul.f32 %v4973, 0.0
    %v4990 = vmul.f32 %v4974, 0.0
    %v4991 = vmul.f32 %v4975, 0.0
    %v4992 = vmul.f32 %v4976, 0.0
    %v4993 = vmul.f32 %v4977, 0.0
    %v4994 = vmul.f32 %v4978, 0.0
    %v4995 = vmul.f32 %v4979, 0.0
    %v4996 = vmul.f32 %v4980, 0.0
    %5013 = vrot.lane.b32.xlu0 %v4965, 64
    %v5014 = vpop.permute.xlu0 %5013
    %5015 = vrot.lane.b32.xlu0 %v4966, 64
    %v5016 = vpop.permute.xlu0 %5015
    %5017 = vrot.lane.b32.xlu0 %v4967, 64
    %v5018 = vpop.permute.xlu0 %5017
    %5019 = vrot.lane.b32.xlu0 %v4968, 64
    %v5020 = vpop.permute.xlu0 %5019
    %5021 = vrot.lane.b32.xlu0 %v4969, 64
    %v5022 = vpop.permute.xlu0 %5021
    %5023 = vrot.lane.b32.xlu0 %v4970, 64
    %v5024 = vpop.permute.xlu0 %5023
    %5025 = vrot.lane.b32.xlu0 %v4971, 64
    %v5026 = vpop.permute.xlu0 %5025
    %5027 = vrot.lane.b32.xlu0 %v4972, 64
    %v5028 = vpop.permute.xlu0 %5027
    %5029 = vrot.lane.b32.xlu0 %v4973, 64
    %v5030 = vpop.permute.xlu0 %5029
    %5031 = vrot.lane.b32.xlu0 %v4974, 64
    %v5032 = vpop.permute.xlu0 %5031
    %5033 = vrot.lane.b32.xlu0 %v4975, 64
    %v5034 = vpop.permute.xlu0 %5033
    %5035 = vrot.lane.b32.xlu0 %v4976, 64
    %v5036 = vpop.permute.xlu0 %5035
    %5037 = vrot.lane.b32.xlu0 %v4977, 64
    %v5038 = vpop.permute.xlu0 %5037
    %5039 = vrot.lane.b32.xlu0 %v4978, 64
    %v5040 = vpop.permute.xlu0 %5039
    %5041 = vrot.lane.b32.xlu0 %v4979, 64
    %v5042 = vpop.permute.xlu0 %5041
    %5043 = vrot.lane.b32.xlu0 %v4980, 64
    %v5044 = vpop.permute.xlu0 %5043
    %v5061 = vmul.f32 %v4965, %v5014
    %v5062 = vmul.f32 %v4966, %v5016
    %v5063 = vmul.f32 %v4967, %v5018
    %v5064 = vmul.f32 %v4968, %v5020
    %v5065 = vmul.f32 %v4969, %v5022
    %v5066 = vmul.f32 %v4970, %v5024
    %v5067 = vmul.f32 %v4971, %v5026
    %v5068 = vmul.f32 %v4972, %v5028
    %v5069 = vmul.f32 %v4973, %v5030
    %v5070 = vmul.f32 %v4974, %v5032
    %v5071 = vmul.f32 %v4975, %v5034
    %v5072 = vmul.f32 %v4976, %v5036
    %v5073 = vmul.f32 %v4977, %v5038
    %v5074 = vmul.f32 %v4978, %v5040
    %v5075 = vmul.f32 %v4979, %v5042
    %v5076 = vmul.f32 %v4980, %v5044
    %5093 = vrot.lane.b32.xlu0 %v5061, 32
    %v5094 = vpop.permute.xlu0 %5093
    %5095 = vrot.lane.b32.xlu0 %v5062, 32
    %v5096 = vpop.permute.xlu0 %5095
    %5097 = vrot.lane.b32.xlu0 %v5063, 32
    %v5098 = vpop.permute.xlu0 %5097
    %5099 = vrot.lane.b32.xlu0 %v5064, 32
    %v5100 = vpop.permute.xlu0 %5099
    %5101 = vrot.lane.b32.xlu0 %v5065, 32
    %v5102 = vpop.permute.xlu0 %5101
    %5103 = vrot.lane.b32.xlu0 %v5066, 32
    %v5104 = vpop.permute.xlu0 %5103
    %5105 = vrot.lane.b32.xlu0 %v5067, 32
    %v5106 = vpop.permute.xlu0 %5105
    %5107 = vrot.lane.b32.xlu0 %v5068, 32
    %v5108 = vpop.permute.xlu0 %5107
    %5109 = vrot.lane.b32.xlu0 %v5069, 32
    %v5110 = vpop.permute.xlu0 %5109
    %5111 = vrot.lane.b32.xlu0 %v5070, 32
    %v5112 = vpop.permute.xlu0 %5111
    %5113 = vrot.lane.b32.xlu0 %v5071, 32
    %v5114 = vpop.permute.xlu0 %5113
    %5115 = vrot.lane.b32.xlu0 %v5072, 32
    %v5116 = vpop.permute.xlu0 %5115
    %5117 = vrot.lane.b32.xlu0 %v5073, 32
    %v5118 = vpop.permute.xlu0 %5117
    %5119 = vrot.lane.b32.xlu0 %v5074, 32
    %v5120 = vpop.permute.xlu0 %5119
    %5121 = vrot.lane.b32.xlu0 %v5075, 32
    %v5122 = vpop.permute.xlu0 %5121
    %5123 = vrot.lane.b32.xlu0 %v5076, 32
    %v5124 = vpop.permute.xlu0 %5123
    %v5141 = vadd.f32 %v4981, %v5094
    %v5142 = vadd.f32 %v4982, %v5096
    %v5143 = vadd.f32 %v4983, %v5098
    %v5144 = vadd.f32 %v4984, %v5100
    %v5145 = vadd.f32 %v4985, %v5102
    %v5146 = vadd.f32 %v4986, %v5104
    %v5147 = vadd.f32 %v4987, %v5106
    %v5148 = vadd.f32 %v4988, %v5108
    %v5149 = vadd.f32 %v4989, %v5110
    %v5150 = vadd.f32 %v4990, %v5112
    %v5151 = vadd.f32 %v4991, %v5114
    %v5152 = vadd.f32 %v4992, %v5116
    %v5153 = vadd.f32 %v4993, %v5118
    %v5154 = vadd.f32 %v4994, %v5120
    %v5155 = vadd.f32 %v4995, %v5122
    %v5156 = vadd.f32 %v4996, %v5124
    %v5157 = vtanh.pop %v5141
    %v5158 = vtanh.pop %v5142
    %v5159 = vtanh.pop %v5143
    %v5160 = vtanh.pop %v5144
    %v5161 = vtanh.pop %v5145
    %v5162 = vtanh.pop %v5146
    %v5163 = vtanh.pop %v5147
    %v5164 = vtanh.pop %v5148
    %v5165 = vtanh.pop %v5149
    %v5166 = vtanh.pop %v5150
    %v5167 = vtanh.pop %v5151
    %v5168 = vtanh.pop %v5152
    %v5169 = vtanh.pop %v5153
    %v5170 = vtanh.pop %v5154
    %v5171 = vtanh.pop %v5155
    %v5172 = vtanh.pop %v5156
    %5189 = vrot.lane.b32.xlu0 %v5157, 64
    %v5190 = vpop.permute.xlu0 %5189
    %5191 = vrot.lane.b32.xlu0 %v5158, 64
    %v5192 = vpop.permute.xlu0 %5191
    %5193 = vrot.lane.b32.xlu0 %v5159, 64
    %v5194 = vpop.permute.xlu0 %5193
    %5195 = vrot.lane.b32.xlu0 %v5160, 64
    %v5196 = vpop.permute.xlu0 %5195
    %5197 = vrot.lane.b32.xlu0 %v5161, 64
    %v5198 = vpop.permute.xlu0 %5197
    %5199 = vrot.lane.b32.xlu0 %v5162, 64
    %v5200 = vpop.permute.xlu0 %5199
    %5201 = vrot.lane.b32.xlu0 %v5163, 64
    %v5202 = vpop.permute.xlu0 %5201
    %5203 = vrot.lane.b32.xlu0 %v5164, 64
    %v5204 = vpop.permute.xlu0 %5203
    %5205 = vrot.lane.b32.xlu0 %v5165, 64
    %v5206 = vpop.permute.xlu0 %5205
    %5207 = vrot.lane.b32.xlu0 %v5166, 64
    %v5208 = vpop.permute.xlu0 %5207
    %5209 = vrot.lane.b32.xlu0 %v5167, 64
    %v5210 = vpop.permute.xlu0 %5209
    %5211 = vrot.lane.b32.xlu0 %v5168, 64
    %v5212 = vpop.permute.xlu0 %5211
    %5213 = vrot.lane.b32.xlu0 %v5169, 64
    %v5214 = vpop.permute.xlu0 %5213
    %5215 = vrot.lane.b32.xlu0 %v5170, 64
    %v5216 = vpop.permute.xlu0 %5215
    %5217 = vrot.lane.b32.xlu0 %v5171, 64
    %v5218 = vpop.permute.xlu0 %5217
    %5219 = vrot.lane.b32.xlu0 %v5172, 64
    %v5220 = vpop.permute.xlu0 %5219
    %v5237 = vmul.f32 %v4965, %v5190
    %v5238 = vmul.f32 %v4966, %v5192
    %v5239 = vmul.f32 %v4967, %v5194
    %v5240 = vmul.f32 %v4968, %v5196
    %v5241 = vmul.f32 %v4969, %v5198
    %v5242 = vmul.f32 %v4970, %v5200
    %v5243 = vmul.f32 %v4971, %v5202
    %v5244 = vmul.f32 %v4972, %v5204
    %v5245 = vmul.f32 %v4973, %v5206
    %v5246 = vmul.f32 %v4974, %v5208
    %v5247 = vmul.f32 %v4975, %v5210
    %v5248 = vmul.f32 %v4976, %v5212
    %v5249 = vmul.f32 %v4977, %v5214
    %v5250 = vmul.f32 %v4978, %v5216
    %v5251 = vmul.f32 %v4979, %v5218
    %v5252 = vmul.f32 %v4980, %v5220
    %v5253 = vpack.c.bf16 %v5238, %v5237
    %v5254 = vpack.c.bf16 %v5240, %v5239
    %v5255 = vpack.c.bf16 %v5242, %v5241
    %v5256 = vpack.c.bf16 %v5244, %v5243
    %v5257 = vpack.c.bf16 %v5246, %v5245
    %v5258 = vpack.c.bf16 %v5248, %v5247
    %v5259 = vpack.c.bf16 %v5250, %v5249
    %v5260 = vpack.c.bf16 %v5252, %v5251
    %5269 = vrot.lane.b32.xlu0 %v5253, 32
    %v5270 = vpop.permute.xlu0 %5269
    %5271 = vrot.lane.b32.xlu0 %v5254, 32
    %v5272 = vpop.permute.xlu0 %5271
    %5273 = vrot.lane.b32.xlu0 %v5255, 32
    %v5274 = vpop.permute.xlu0 %5273
    %5275 = vrot.lane.b32.xlu0 %v5256, 32
    %v5276 = vpop.permute.xlu0 %5275
    %5277 = vrot.lane.b32.xlu0 %v5257, 32
    %v5278 = vpop.permute.xlu0 %5277
    %5279 = vrot.lane.b32.xlu0 %v5258, 32
    %v5280 = vpop.permute.xlu0 %5279
    %5281 = vrot.lane.b32.xlu0 %v5259, 32
    %v5282 = vpop.permute.xlu0 %5281
    %5283 = vrot.lane.b32.xlu0 %v5260, 32
    %v5284 = vpop.permute.xlu0 %5283
    %v5286 = vsel %vm4816, %v5270, 0
    %v5289 = vsel %vm4816, %v5272, 0
    %v5292 = vsel %vm4816, %v5274, 0
    %v5295 = vsel %vm4816, %v5276, 0
    %v5298 = vsel %vm4816, %v5278, 0
    %v5301 = vsel %vm4816, %v5280, 0
    %v5304 = vsel %vm4816, %v5282, 0
    %v5307 = vsel %vm4816, %v5284, 0
    %5309 = vmatprep.subr.bf16.mxu0 0
    %5310 = vmatpush1.bf16.msra.mxu0 %v20
    %5311 = vmatprep.subr.bf16.mxu0 0
    %5312 = vmatpush1.bf16.msra.mxu0 %v21
    %5313 = vmatprep.subr.bf16.mxu0 0
    %5314 = vmatpush1.bf16.msra.mxu0 0
    %5315 = vmatprep.subr.bf16.mxu0 0
    %5316 = vmatpush1.bf16.msra.mxu0 0
    %5317 = vmatprep.subr.bf16.mxu0 0
    %5318 = vmatpush1.bf16.msra.mxu0 0
    %5319 = vmatprep.subr.bf16.mxu0 0
    %5320 = vmatpush1.bf16.msra.mxu0 0
    %5321 = vmatprep.subr.bf16.mxu0 0
    %5322 = vmatpush1.bf16.msra.mxu0 0
    %5323 = vmatprep.subr.bf16.mxu0 0
    %5324 = vmatpush1.bf16.msra.mxu0 0
    %5325 = vmatprep.subr.bf16.mxu0 0
    %5326 = vmatpush1.bf16.msra.mxu0 0
    %5327 = vmatprep.subr.bf16.mxu0 0
    %5328 = vmatpush1.bf16.msra.mxu0 0
    %5329 = vmatprep.subr.bf16.mxu0 0
    %5330 = vmatpush1.bf16.msra.mxu0 0
    %5331 = vmatprep.subr.bf16.mxu0 0
    %5332 = vmatpush1.bf16.msra.mxu0 0
    %5333 = vmatprep.subr.bf16.mxu0 0
    %5334 = vmatpush1.bf16.msra.mxu0 0
    %5335 = vmatprep.subr.bf16.mxu0 0
    %5336 = vmatpush1.bf16.msra.mxu0 0
    %5337 = vmatprep.subr.bf16.mxu0 0
    %5338 = vmatpush1.bf16.msra.mxu0 0
    %5339 = vmatprep.subr.bf16.mxu0 0
    %5340 = vmatpush1.bf16.msra.mxu0 0
    %5341 = vmatprep.mubr.bf16.mxu0 0
    %5342 = vmatmul.mubr.bf16.gmra.mrb[0].mxu0 %v5286
    %v5343 = vpop.f32.mrb[0].mxu0
    %v5344 = vadd.f32 0.0, %v5343
    %v5345 = vpop.f32.mrb[0].mxu0
    %v5346 = vpop.f32.mrb[0].mxu0
    %v5347 = vadd.f32 0.0, %v5346
    %v5348 = vpop.f32.mrb[0].mxu0
    %5349 = vmatprep.mubr.bf16.mxu0 0
    %5350 = vmatmul.mubr.bf16.gmra.mrb[0].mxu0 %v5289
    %v5351 = vpop.f32.mrb[0].mxu0
    %v5352 = vadd.f32 0.0, %v5351
    %v5353 = vpop.f32.mrb[0].mxu0
    %v5354 = vpop.f32.mrb[0].mxu0
    %v5355 = vadd.f32 0.0, %v5354
    %v5356 = vpop.f32.mrb[0].mxu0
    %5357 = vmatprep.mubr.bf16.mxu0 0
    %5358 = vmatmul.mubr.bf16.gmra.mrb[0].mxu0 %v5292
    %v5359 = vpop.f32.mrb[0].mxu0
    %v5360 = vadd.f32 0.0, %v5359
    %v5361 = vpop.f32.mrb[0].mxu0
    %v5362 = vpop.f32.mrb[0].mxu0
    %v5363 = vadd.f32 0.0, %v5362
    %v5364 = vpop.f32.mrb[0].mxu0
    %5365 = vmatprep.mubr.bf16.mxu0 0
    %5366 = vmatmul.mubr.bf16.gmra.mrb[0].mxu0 %v5295
    %v5367 = vpop.f32.mrb[0].mxu0
    %v5368 = vadd.f32 0.0, %v5367
    %v5369 = vpop.f32.mrb[0].mxu0
    %v5370 = vpop.f32.mrb[0].mxu0
    %v5371 = vadd.f32 0.0, %v5370
    %v5372 = vpop.f32.mrb[0].mxu0
    %5373 = vmatprep.mubr.bf16.mxu0 0
    %5374 = vmatmul.mubr.bf16.gmra.mrb[0].mxu0 %v5298
    %v5375 = vpop.f32.mrb[0].mxu0
    %v5376 = vadd.f32 0.0, %v5375
    %v5377 = vpop.f32.mrb[0].mxu0
    %v5378 = vpop.f32.mrb[0].mxu0
    %v5379 = vadd.f32 0.0, %v5378
    %v5380 = vpop.f32.mrb[0].mxu0
    %5381 = vmatprep.mubr.bf16.mxu0 0
    %5382 = vmatmul.mubr.bf16.gmra.mrb[0].mxu0 %v5301
    %v5383 = vpop.f32.mrb[0].mxu0
    %v5384 = vadd.f32 0.0, %v5383
    %v5385 = vpop.f32.mrb[0].mxu0
    %v5386 = vpop.f32.mrb[0].mxu0
    %v5387 = vadd.f32 0.0, %v5386
    %v5388 = vpop.f32.mrb[0].mxu0
    %5389 = vmatprep.mubr.bf16.mxu0 0
    %5390 = vmatmul.mubr.bf16.gmra.mrb[0].mxu0 %v5304
    %v5391 = vpop.f32.mrb[0].mxu0
    %v5392 = vadd.f32 0.0, %v5391
    %v5393 = vpop.f32.mrb[0].mxu0
    %v5394 = vpop.f32.mrb[0].mxu0
    %v5395 = vadd.f32 0.0, %v5394
    %v5396 = vpop.f32.mrb[0].mxu0
    %5397 = vmatprep.mubr.bf16.mxu0 0
    %5398 = vmatmul.mubr.bf16.gmra.mrb[0].mxu0 %v5307
    %v5399 = vpop.f32.mrb[0].mxu0
    %v5400 = vadd.f32 0.0, %v5399
    %v5401 = vpop.f32.mrb[0].mxu0
    %v5402 = vpop.f32.mrb[0].mxu0
    %v5403 = vadd.f32 0.0, %v5402
    %v5404 = vpop.f32.mrb[0].mxu0
    %5405 = vdwg.mxu0
    %v5406 = vadd.f32 %v4363, %v5344
    %v5407 = vadd.f32 %v4366, %v5347
    %v5408 = vadd.f32 %v4371, %v5352
    %v5409 = vadd.f32 %v4374, %v5355
    %v5410 = vadd.f32 %v4379, %v5360
    %v5411 = vadd.f32 %v4382, %v5363
    %v5412 = vadd.f32 %v4387, %v5368
    %v5413 = vadd.f32 %v4390, %v5371
    %v5414 = vadd.f32 %v4395, %v5376
    %v5415 = vadd.f32 %v4398, %v5379
    %v5416 = vadd.f32 %v4403, %v5384
    %v5417 = vadd.f32 %v4406, %v5387
    %v5418 = vadd.f32 %v4411, %v5392
    %v5419 = vadd.f32 %v4414, %v5395
    %v5420 = vadd.f32 %v4419, %v5400
    %v5421 = vadd.f32 %v4422, %v5403
    %v5422 = vtanh.pop %v5406
    %v5423 = vtanh.pop %v5407
    %v5424 = vtanh.pop %v5408
    %v5425 = vtanh.pop %v5409
    %v5426 = vtanh.pop %v5410
    %v5427 = vtanh.pop %v5411
    %v5428 = vtanh.pop %v5412
    %v5429 = vtanh.pop %v5413
    %v5430 = vtanh.pop %v5414
    %v5431 = vtanh.pop %v5415
    %v5432 = vtanh.pop %v5416
    %v5433 = vtanh.pop %v5417
    %v5434 = vtanh.pop %v5418
    %v5435 = vtanh.pop %v5419
    %v5436 = vtanh.pop %v5420
    %v5437 = vtanh.pop %v5421
    %v5438 = vmul.f32 %v5422, %v4814
    %v5439 = vmul.f32 %v5423, %v4814
    %v5440 = vmul.f32 %v5424, %v4814
    %v5441 = vmul.f32 %v5425, %v4814
    %v5442 = vmul.f32 %v5426, %v4814
    %v5443 = vmul.f32 %v5427, %v4814
    %v5444 = vmul.f32 %v5428, %v4814
    %v5445 = vmul.f32 %v5429, %v4814
    %v5446 = vmul.f32 %v5430, %v4814
    %v5447 = vmul.f32 %v5431, %v4814
    %v5448 = vmul.f32 %v5432, %v4814
    %v5449 = vmul.f32 %v5433, %v4814
    %v5450 = vmul.f32 %v5434, %v4814
    %v5451 = vmul.f32 %v5435, %v4814
    %v5452 = vmul.f32 %v5436, %v4814
    %v5453 = vmul.f32 %v5437, %v4814
    %v5454 = vadd.f32 %v5438, %v4815
    %v5455 = vadd.f32 %v5439, %v4815
    %v5456 = vadd.f32 %v5440, %v4815
    %v5457 = vadd.f32 %v5441, %v4815
    %v5458 = vadd.f32 %v5442, %v4815
    %v5459 = vadd.f32 %v5443, %v4815
    %v5460 = vadd.f32 %v5444, %v4815
    %v5461 = vadd.f32 %v5445, %v4815
    %v5462 = vadd.f32 %v5446, %v4815
    %v5463 = vadd.f32 %v5447, %v4815
    %v5464 = vadd.f32 %v5448, %v4815
    %v5465 = vadd.f32 %v5449, %v4815
    %v5466 = vadd.f32 %v5450, %v4815
    %v5467 = vadd.f32 %v5451, %v4815
    %v5468 = vadd.f32 %v5452, %v4815
    %v5469 = vadd.f32 %v5453, %v4815
    %v5470 = vmul.f32 %v5454, %v5141
    %v5471 = vmul.f32 %v5455, %v5142
    %v5472 = vmul.f32 %v5456, %v5143
    %v5473 = vmul.f32 %v5457, %v5144
    %v5474 = vmul.f32 %v5458, %v5145
    %v5475 = vmul.f32 %v5459, %v5146
    %v5476 = vmul.f32 %v5460, %v5147
    %v5477 = vmul.f32 %v5461, %v5148
    %v5478 = vmul.f32 %v5462, %v5149
    %v5479 = vmul.f32 %v5463, %v5150
    %v5480 = vmul.f32 %v5464, %v5151
    %v5481 = vmul.f32 %v5465, %v5152
    %v5482 = vmul.f32 %v5466, %v5153
    %v5483 = vmul.f32 %v5467, %v5154
    %v5484 = vmul.f32 %v5468, %v5155
    %v5485 = vmul.f32 %v5469, %v5156
    %5502 = vrot.lane.b32.xlu0 %v5454, 64
    %v5503 = vpop.permute.xlu0 %5502
    %5504 = vrot.lane.b32.xlu0 %v5455, 64
    %v5505 = vpop.permute.xlu0 %5504
    %5506 = vrot.lane.b32.xlu0 %v5456, 64
    %v5507 = vpop.permute.xlu0 %5506
    %5508 = vrot.lane.b32.xlu0 %v5457, 64
    %v5509 = vpop.permute.xlu0 %5508
    %5510 = vrot.lane.b32.xlu0 %v5458, 64
    %v5511 = vpop.permute.xlu0 %5510
    %5512 = vrot.lane.b32.xlu0 %v5459, 64
    %v5513 = vpop.permute.xlu0 %5512
    %5514 = vrot.lane.b32.xlu0 %v5460, 64
    %v5515 = vpop.permute.xlu0 %5514
    %5516 = vrot.lane.b32.xlu0 %v5461, 64
    %v5517 = vpop.permute.xlu0 %5516
    %5518 = vrot.lane.b32.xlu0 %v5462, 64
    %v5519 = vpop.permute.xlu0 %5518
    %5520 = vrot.lane.b32.xlu0 %v5463, 64
    %v5521 = vpop.permute.xlu0 %5520
    %5522 = vrot.lane.b32.xlu0 %v5464, 64
    %v5523 = vpop.permute.xlu0 %5522
    %5524 = vrot.lane.b32.xlu0 %v5465, 64
    %v5525 = vpop.permute.xlu0 %5524
    %5526 = vrot.lane.b32.xlu0 %v5466, 64
    %v5527 = vpop.permute.xlu0 %5526
    %5528 = vrot.lane.b32.xlu0 %v5467, 64
    %v5529 = vpop.permute.xlu0 %5528
    %5530 = vrot.lane.b32.xlu0 %v5468, 64
    %v5531 = vpop.permute.xlu0 %5530
    %5532 = vrot.lane.b32.xlu0 %v5469, 64
    %v5533 = vpop.permute.xlu0 %5532
    %v5550 = vmul.f32 %v5454, %v5503
    %v5551 = vmul.f32 %v5455, %v5505
    %v5552 = vmul.f32 %v5456, %v5507
    %v5553 = vmul.f32 %v5457, %v5509
    %v5554 = vmul.f32 %v5458, %v5511
    %v5555 = vmul.f32 %v5459, %v5513
    %v5556 = vmul.f32 %v5460, %v5515
    %v5557 = vmul.f32 %v5461, %v5517
    %v5558 = vmul.f32 %v5462, %v5519
    %v5559 = vmul.f32 %v5463, %v5521
    %v5560 = vmul.f32 %v5464, %v5523
    %v5561 = vmul.f32 %v5465, %v5525
    %v5562 = vmul.f32 %v5466, %v5527
    %v5563 = vmul.f32 %v5467, %v5529
    %v5564 = vmul.f32 %v5468, %v5531
    %v5565 = vmul.f32 %v5469, %v5533
    %5582 = vrot.lane.b32.xlu0 %v5550, 32
    %v5583 = vpop.permute.xlu0 %5582
    %5584 = vrot.lane.b32.xlu0 %v5551, 32
    %v5585 = vpop.permute.xlu0 %5584
    %5586 = vrot.lane.b32.xlu0 %v5552, 32
    %v5587 = vpop.permute.xlu0 %5586
    %5588 = vrot.lane.b32.xlu0 %v5553, 32
    %v5589 = vpop.permute.xlu0 %5588
    %5590 = vrot.lane.b32.xlu0 %v5554, 32
    %v5591 = vpop.permute.xlu0 %5590
    %5592 = vrot.lane.b32.xlu0 %v5555, 32
    %v5593 = vpop.permute.xlu0 %5592
    %5594 = vrot.lane.b32.xlu0 %v5556, 32
    %v5595 = vpop.permute.xlu0 %5594
    %5596 = vrot.lane.b32.xlu0 %v5557, 32
    %v5597 = vpop.permute.xlu0 %5596
    %5598 = vrot.lane.b32.xlu0 %v5558, 32
    %v5599 = vpop.permute.xlu0 %5598
    %5600 = vrot.lane.b32.xlu0 %v5559, 32
    %v5601 = vpop.permute.xlu0 %5600
    %5602 = vrot.lane.b32.xlu0 %v5560, 32
    %v5603 = vpop.permute.xlu0 %5602
    %5604 = vrot.lane.b32.xlu0 %v5561, 32
    %v5605 = vpop.permute.xlu0 %5604
    %5606 = vrot.lane.b32.xlu0 %v5562, 32
    %v5607 = vpop.permute.xlu0 %5606
    %5608 = vrot.lane.b32.xlu0 %v5563, 32
    %v5609 = vpop.permute.xlu0 %5608
    %5610 = vrot.lane.b32.xlu0 %v5564, 32
    %v5611 = vpop.permute.xlu0 %5610
    %5612 = vrot.lane.b32.xlu0 %v5565, 32
    %v5613 = vpop.permute.xlu0 %5612
    %v5630 = vadd.f32 %v5470, %v5583
    %v5631 = vadd.f32 %v5471, %v5585
    %v5632 = vadd.f32 %v5472, %v5587
    %v5633 = vadd.f32 %v5473, %v5589
    %v5634 = vadd.f32 %v5474, %v5591
    %v5635 = vadd.f32 %v5475, %v5593
    %v5636 = vadd.f32 %v5476, %v5595
    %v5637 = vadd.f32 %v5477, %v5597
    %v5638 = vadd.f32 %v5478, %v5599
    %v5639 = vadd.f32 %v5479, %v5601
    %v5640 = vadd.f32 %v5480, %v5603
    %v5641 = vadd.f32 %v5481, %v5605
    %v5642 = vadd.f32 %v5482, %v5607
    %v5643 = vadd.f32 %v5483, %v5609
    %v5644 = vadd.f32 %v5484, %v5611
    %v5645 = vadd.f32 %v5485, %v5613
    %v5646 = vtanh.pop %v5630
    %v5647 = vtanh.pop %v5631
    %v5648 = vtanh.pop %v5632
    %v5649 = vtanh.pop %v5633
    %v5650 = vtanh.pop %v5634
    %v5651 = vtanh.pop %v5635
    %v5652 = vtanh.pop %v5636
    %v5653 = vtanh.pop %v5637
    %v5654 = vtanh.pop %v5638
    %v5655 = vtanh.pop %v5639
    %v5656 = vtanh.pop %v5640
    %v5657 = vtanh.pop %v5641
    %v5658 = vtanh.pop %v5642
    %v5659 = vtanh.pop %v5643
    %v5660 = vtanh.pop %v5644
    %v5661 = vtanh.pop %v5645
    %5678 = vrot.lane.b32.xlu0 %v5646, 64
    %v5679 = vpop.permute.xlu0 %5678
    %5680 = vrot.lane.b32.xlu0 %v5647, 64
    %v5681 = vpop.permute.xlu0 %5680
    %5682 = vrot.lane.b32.xlu0 %v5648, 64
    %v5683 = vpop.permute.xlu0 %5682
    %5684 = vrot.lane.b32.xlu0 %v5649, 64
    %v5685 = vpop.permute.xlu0 %5684
    %5686 = vrot.lane.b32.xlu0 %v5650, 64
    %v5687 = vpop.permute.xlu0 %5686
    %5688 = vrot.lane.b32.xlu0 %v5651, 64
    %v5689 = vpop.permute.xlu0 %5688
    %5690 = vrot.lane.b32.xlu0 %v5652, 64
    %v5691 = vpop.permute.xlu0 %5690
    %5692 = vrot.lane.b32.xlu0 %v5653, 64
    %v5693 = vpop.permute.xlu0 %5692
    %5694 = vrot.lane.b32.xlu0 %v5654, 64
    %v5695 = vpop.permute.xlu0 %5694
    %5696 = vrot.lane.b32.xlu0 %v5655, 64
    %v5697 = vpop.permute.xlu0 %5696
    %5698 = vrot.lane.b32.xlu0 %v5656, 64
    %v5699 = vpop.permute.xlu0 %5698
    %5700 = vrot.lane.b32.xlu0 %v5657, 64
    %v5701 = vpop.permute.xlu0 %5700
    %5702 = vrot.lane.b32.xlu0 %v5658, 64
    %v5703 = vpop.permute.xlu0 %5702
    %5704 = vrot.lane.b32.xlu0 %v5659, 64
    %v5705 = vpop.permute.xlu0 %5704
    %5706 = vrot.lane.b32.xlu0 %v5660, 64
    %v5707 = vpop.permute.xlu0 %5706
    %5708 = vrot.lane.b32.xlu0 %v5661, 64
    %v5709 = vpop.permute.xlu0 %5708
    %v5726 = vmul.f32 %v5454, %v5679
    %v5727 = vmul.f32 %v5455, %v5681
    %v5728 = vmul.f32 %v5456, %v5683
    %v5729 = vmul.f32 %v5457, %v5685
    %v5730 = vmul.f32 %v5458, %v5687
    %v5731 = vmul.f32 %v5459, %v5689
    %v5732 = vmul.f32 %v5460, %v5691
    %v5733 = vmul.f32 %v5461, %v5693
    %v5734 = vmul.f32 %v5462, %v5695
    %v5735 = vmul.f32 %v5463, %v5697
    %v5736 = vmul.f32 %v5464, %v5699
    %v5737 = vmul.f32 %v5465, %v5701
    %v5738 = vmul.f32 %v5466, %v5703
    %v5739 = vmul.f32 %v5467, %v5705
    %v5740 = vmul.f32 %v5468, %v5707
    %v5741 = vmul.f32 %v5469, %v5709
    %v5742 = vpack.c.bf16 %v5727, %v5726
    %v5743 = vpack.c.bf16 %v5729, %v5728
    %v5744 = vpack.c.bf16 %v5731, %v5730
    %v5745 = vpack.c.bf16 %v5733, %v5732
    %v5746 = vpack.c.bf16 %v5735, %v5734
    %v5747 = vpack.c.bf16 %v5737, %v5736
    %v5748 = vpack.c.bf16 %v5739, %v5738
    %v5749 = vpack.c.bf16 %v5741, %v5740
    %5758 = vrot.lane.b32.xlu0 %v5742, 32
    %v5759 = vpop.permute.xlu0 %5758
    %5760 = vrot.lane.b32.xlu0 %v5743, 32
    %v5761 = vpop.permute.xlu0 %5760
    %5762 = vrot.lane.b32.xlu0 %v5744, 32
    %v5763 = vpop.permute.xlu0 %5762
    %5764 = vrot.lane.b32.xlu0 %v5745, 32
    %v5765 = vpop.permute.xlu0 %5764
    %5766 = vrot.lane.b32.xlu0 %v5746, 32
    %v5767 = vpop.permute.xlu0 %5766
    %5768 = vrot.lane.b32.xlu0 %v5747, 32
    %v5769 = vpop.permute.xlu0 %5768
    %5770 = vrot.lane.b32.xlu0 %v5748, 32
    %v5771 = vpop.permute.xlu0 %5770
    %5772 = vrot.lane.b32.xlu0 %v5749, 32
    %v5773 = vpop.permute.xlu0 %5772
    %v5775 = vsel %vm4816, %v5759, 0
    %v5778 = vsel %vm4816, %v5761, 0
    %v5781 = vsel %vm4816, %v5763, 0
    %v5784 = vsel %vm4816, %v5765, 0
    %v5787 = vsel %vm4816, %v5767, 0
    %v5790 = vsel %vm4816, %v5769, 0
    %v5793 = vsel %vm4816, %v5771, 0
    %v5796 = vsel %vm4816, %v5773, 0
    %5798 = vmatprep.subr.bf16.mxu0 0
    %5799 = vmatpush1.bf16.msra.mxu0 %v20
    %5800 = vmatprep.subr.bf16.mxu0 0
    %5801 = vmatpush1.bf16.msra.mxu0 %v21
    %5802 = vmatprep.subr.bf16.mxu0 0
    %5803 = vmatpush1.bf16.msra.mxu0 0
    %5804 = vmatprep.subr.bf16.mxu0 0
    %5805 = vmatpush1.bf16.msra.mxu0 0
    %5806 = vmatprep.subr.bf16.mxu0 0
    %5807 = vmatpush1.bf16.msra.mxu0 0
    %5808 = vmatprep.subr.bf16.mxu0 0
    %5809 = vmatpush1.bf16.msra.mxu0 0
    %5810 = vmatprep.subr.bf16.mxu0 0
    %5811 = vmatpush1.bf16.msra.mxu0 0
    %5812 = vmatprep.subr.bf16.mxu0 0
    %5813 = vmatpush1.bf16.msra.mxu0 0
    %5814 = vmatprep.subr.bf16.mxu0 0
    %5815 = vmatpush1.bf16.msra.mxu0 0
    %5816 = vmatprep.subr.bf16.mxu0 0
    %5817 = vmatpush1.bf16.msra.mxu0 0
    %5818 = vmatprep.subr.bf16.mxu0 0
    %5819 = vmatpush1.bf16.msra.mxu0 0
    %5820 = vmatprep.subr.bf16.mxu0 0
    %5821 = vmatpush1.bf16.msra.mxu0 0
    %5822 = vmatprep.subr.bf16.mxu0 0
    %5823 = vmatpush1.bf16.msra.mxu0 0
    %5824 = vmatprep.subr.bf16.mxu0 0
    %5825 = vmatpush1.bf16.msra.mxu0 0
    %5826 = vmatprep.subr.bf16.mxu0 0
    %5827 = vmatpush1.bf16.msra.mxu0 0
    %5828 = vmatprep.subr.bf16.mxu0 0
    %5829 = vmatpush1.bf16.msra.mxu0 0
    %5830 = vmatprep.mubr.bf16.mxu0 0
    %5831 = vmatmul.mubr.bf16.gmra.mrb[0].mxu0 %v5775
    %v5832 = vpop.f32.mrb[0].mxu0
    %v5833 = vadd.f32 0.0, %v5832
    %v5834 = vpop.f32.mrb[0].mxu0
    %v5835 = vpop.f32.mrb[0].mxu0
    %v5836 = vadd.f32 0.0, %v5835
    %v5837 = vpop.f32.mrb[0].mxu0
    %5838 = vmatprep.mubr.bf16.mxu0 0
    %5839 = vmatmul.mubr.bf16.gmra.mrb[0].mxu0 %v5778
    %v5840 = vpop.f32.mrb[0].mxu0
    %v5841 = vadd.f32 0.0, %v5840
    %v5842 = vpop.f32.mrb[0].mxu0
    %v5843 = vpop.f32.mrb[0].mxu0
    %v5844 = vadd.f32 0.0, %v5843
    %v5845 = vpop.f32.mrb[0].mxu0
    %5846 = vmatprep.mubr.bf16.mxu0 0
    %5847 = vmatmul.mubr.bf16.gmra.mrb[0].mxu0 %v5781
    %v5848 = vpop.f32.mrb[0].mxu0
    %v5849 = vadd.f32 0.0, %v5848
    %v5850 = vpop.f32.mrb[0].mxu0
    %v5851 = vpop.f32.mrb[0].mxu0
    %v5852 = vadd.f32 0.0, %v5851
    %v5853 = vpop.f32.mrb[0].mxu0
    %5854 = vmatprep.mubr.bf16.mxu0 0
    %5855 = vmatmul.mubr.bf16.gmra.mrb[0].mxu0 %v5784
    %v5856 = vpop.f32.mrb[0].mxu0
    %v5857 = vadd.f32 0.0, %v5856
    %v5858 = vpop.f32.mrb[0].mxu0
    %v5859 = vpop.f32.mrb[0].mxu0
    %v5860 = vadd.f32 0.0, %v5859
    %v5861 = vpop.f32.mrb[0].mxu0
    %5862 = vmatprep.mubr.bf16.mxu0 0
    %5863 = vmatmul.mubr.bf16.gmra.mrb[0].mxu0 %v5787
    %v5864 = vpop.f32.mrb[0].mxu0
    %v5865 = vadd.f32 0.0, %v5864
    %v5866 = vpop.f32.mrb[0].mxu0
    %v5867 = vpop.f32.mrb[0].mxu0
    %v5868 = vadd.f32 0.0, %v5867
    %v5869 = vpop.f32.mrb[0].mxu0
    %5870 = vmatprep.mubr.bf16.mxu0 0
    %5871 = vmatmul.mubr.bf16.gmra.mrb[0].mxu0 %v5790
    %v5872 = vpop.f32.mrb[0].mxu0
    %v5873 = vadd.f32 0.0, %v5872
    %v5874 = vpop.f32.mrb[0].mxu0
    %v5875 = vpop.f32.mrb[0].mxu0
    %v5876 = vadd.f32 0.0, %v5875
    %v5877 = vpop.f32.mrb[0].mxu0
    %5878 = vmatprep.mubr.bf16.mxu0 0
    %5879 = vmatmul.mubr.bf16.gmra.mrb[0].mxu0 %v5793
    %v5880 = vpop.f32.mrb[0].mxu0
    %v5881 = vadd.f32 0.0, %v5880
    %v5882 = vpop.f32.mrb[0].mxu0
    %v5883 = vpop.f32.mrb[0].mxu0
    %v5884 = vadd.f32 0.0, %v5883
    %v5885 = vpop.f32.mrb[0].mxu0
    %5886 = vmatprep.mubr.bf16.mxu0 0
    %5887 = vmatmul.mubr.bf16.gmra.mrb[0].mxu0 %v5796
    %v5888 = vpop.f32.mrb[0].mxu0
    %v5889 = vadd.f32 0.0, %v5888
    %v5890 = vpop.f32.mrb[0].mxu0
    %v5891 = vpop.f32.mrb[0].mxu0
    %v5892 = vadd.f32 0.0, %v5891
    %v5893 = vpop.f32.mrb[0].mxu0
    %5894 = vdwg.mxu0
    %v5895 = vadd.f32 %v4427, %v5833
    %v5896 = vadd.f32 %v4430, %v5836
    %v5897 = vadd.f32 %v4435, %v5841
    %v5898 = vadd.f32 %v4438, %v5844
    %v5899 = vadd.f32 %v4443, %v5849
    %v5900 = vadd.f32 %v4446, %v5852
    %v5901 = vadd.f32 %v4451, %v5857
    %v5902 = vadd.f32 %v4454, %v5860
    %v5903 = vadd.f32 %v4459, %v5865
    %v5904 = vadd.f32 %v4462, %v5868
    %v5905 = vadd.f32 %v4467, %v5873
    %v5906 = vadd.f32 %v4470, %v5876
    %v5907 = vadd.f32 %v4475, %v5881
    %v5908 = vadd.f32 %v4478, %v5884
    %v5909 = vadd.f32 %v4483, %v5889
    %v5910 = vadd.f32 %v4486, %v5892
    %v5911 = vtanh.pop %v5895
    %v5912 = vtanh.pop %v5896
    %v5913 = vtanh.pop %v5897
    %v5914 = vtanh.pop %v5898
    %v5915 = vtanh.pop %v5899
    %v5916 = vtanh.pop %v5900
    %v5917 = vtanh.pop %v5901
    %v5918 = vtanh.pop %v5902
    %v5919 = vtanh.pop %v5903
    %v5920 = vtanh.pop %v5904
    %v5921 = vtanh.pop %v5905
    %v5922 = vtanh.pop %v5906
    %v5923 = vtanh.pop %v5907
    %v5924 = vtanh.pop %v5908
    %v5925 = vtanh.pop %v5909
    %v5926 = vtanh.pop %v5910
    %v5927 = vmul.f32 %v5911, %v4814
    %v5928 = vmul.f32 %v5912, %v4814
    %v5929 = vmul.f32 %v5913, %v4814
    %v5930 = vmul.f32 %v5914, %v4814
    %v5931 = vmul.f32 %v5915, %v4814
    %v5932 = vmul.f32 %v5916, %v4814
    %v5933 = vmul.f32 %v5917, %v4814
    %v5934 = vmul.f32 %v5918, %v4814
    %v5935 = vmul.f32 %v5919, %v4814
    %v5936 = vmul.f32 %v5920, %v4814
    %v5937 = vmul.f32 %v5921, %v4814
    %v5938 = vmul.f32 %v5922, %v4814
    %v5939 = vmul.f32 %v5923, %v4814
    %v5940 = vmul.f32 %v5924, %v4814
    %v5941 = vmul.f32 %v5925, %v4814
    %v5942 = vmul.f32 %v5926, %v4814
    %v5943 = vadd.f32 %v5927, %v4815
    %v5944 = vadd.f32 %v5928, %v4815
    %v5945 = vadd.f32 %v5929, %v4815
    %v5946 = vadd.f32 %v5930, %v4815
    %v5947 = vadd.f32 %v5931, %v4815
    %v5948 = vadd.f32 %v5932, %v4815
    %v5949 = vadd.f32 %v5933, %v4815
    %v5950 = vadd.f32 %v5934, %v4815
    %v5951 = vadd.f32 %v5935, %v4815
    %v5952 = vadd.f32 %v5936, %v4815
    %v5953 = vadd.f32 %v5937, %v4815
    %v5954 = vadd.f32 %v5938, %v4815
    %v5955 = vadd.f32 %v5939, %v4815
    %v5956 = vadd.f32 %v5940, %v4815
    %v5957 = vadd.f32 %v5941, %v4815
    %v5958 = vadd.f32 %v5942, %v4815
    %v5959 = vmul.f32 %v5943, %v5630
    %v5960 = vmul.f32 %v5944, %v5631
    %v5961 = vmul.f32 %v5945, %v5632
    %v5962 = vmul.f32 %v5946, %v5633
    %v5963 = vmul.f32 %v5947, %v5634
    %v5964 = vmul.f32 %v5948, %v5635
    %v5965 = vmul.f32 %v5949, %v5636
    %v5966 = vmul.f32 %v5950, %v5637
    %v5967 = vmul.f32 %v5951, %v5638
    %v5968 = vmul.f32 %v5952, %v5639
    %v5969 = vmul.f32 %v5953, %v5640
    %v5970 = vmul.f32 %v5954, %v5641
    %v5971 = vmul.f32 %v5955, %v5642
    %v5972 = vmul.f32 %v5956, %v5643
    %v5973 = vmul.f32 %v5957, %v5644
    %v5974 = vmul.f32 %v5958, %v5645
    %5991 = vrot.lane.b32.xlu0 %v5943, 64
    %v5992 = vpop.permute.xlu0 %5991
    %5993 = vrot.lane.b32.xlu0 %v5944, 64
    %v5994 = vpop.permute.xlu0 %5993
    %5995 = vrot.lane.b32.xlu0 %v5945, 64
    %v5996 = vpop.permute.xlu0 %5995
    %5997 = vrot.lane.b32.xlu0 %v5946, 64
    %v5998 = vpop.permute.xlu0 %5997
    %5999 = vrot.lane.b32.xlu0 %v5947, 64
    %v6000 = vpop.permute.xlu0 %5999
    %6001 = vrot.lane.b32.xlu0 %v5948, 64
    %v6002 = vpop.permute.xlu0 %6001
    %6003 = vrot.lane.b32.xlu0 %v5949, 64
    %v6004 = vpop.permute.xlu0 %6003
    %6005 = vrot.lane.b32.xlu0 %v5950, 64
    %v6006 = vpop.permute.xlu0 %6005
    %6007 = vrot.lane.b32.xlu0 %v5951, 64
    %v6008 = vpop.permute.xlu0 %6007
    %6009 = vrot.lane.b32.xlu0 %v5952, 64
    %v6010 = vpop.permute.xlu0 %6009
    %6011 = vrot.lane.b32.xlu0 %v5953, 64
    %v6012 = vpop.permute.xlu0 %6011
    %6013 = vrot.lane.b32.xlu0 %v5954, 64
    %v6014 = vpop.permute.xlu0 %6013
    %6015 = vrot.lane.b32.xlu0 %v5955, 64
    %v6016 = vpop.permute.xlu0 %6015
    %6017 = vrot.lane.b32.xlu0 %v5956, 64
    %v6018 = vpop.permute.xlu0 %6017
    %6019 = vrot.lane.b32.xlu0 %v5957, 64
    %v6020 = vpop.permute.xlu0 %6019
    %6021 = vrot.lane.b32.xlu0 %v5958, 64
    %v6022 = vpop.permute.xlu0 %6021
    %v6039 = vmul.f32 %v5943, %v5992
    %v6040 = vmul.f32 %v5944, %v5994
    %v6041 = vmul.f32 %v5945, %v5996
    %v6042 = vmul.f32 %v5946, %v5998
    %v6043 = vmul.f32 %v5947, %v6000
    %v6044 = vmul.f32 %v5948, %v6002
    %v6045 = vmul.f32 %v5949, %v6004
    %v6046 = vmul.f32 %v5950, %v6006
    %v6047 = vmul.f32 %v5951, %v6008
    %v6048 = vmul.f32 %v5952, %v6010
    %v6049 = vmul.f32 %v5953, %v6012
    %v6050 = vmul.f32 %v5954, %v6014
    %v6051 = vmul.f32 %v5955, %v6016
    %v6052 = vmul.f32 %v5956, %v6018
    %v6053 = vmul.f32 %v5957, %v6020
    %v6054 = vmul.f32 %v5958, %v6022
    %6071 = vrot.lane.b32.xlu0 %v6039, 32
    %v6072 = vpop.permute.xlu0 %6071
    %6073 = vrot.lane.b32.xlu0 %v6040, 32
    %v6074 = vpop.permute.xlu0 %6073
    %6075 = vrot.lane.b32.xlu0 %v6041, 32
    %v6076 = vpop.permute.xlu0 %6075
    %6077 = vrot.lane.b32.xlu0 %v6042, 32
    %v6078 = vpop.permute.xlu0 %6077
    %6079 = vrot.lane.b32.xlu0 %v6043, 32
    %v6080 = vpop.permute.xlu0 %6079
    %6081 = vrot.lane.b32.xlu0 %v6044, 32
    %v6082 = vpop.permute.xlu0 %6081
    %6083 = vrot.lane.b32.xlu0 %v6045, 32
    %v6084 = vpop.permute.xlu0 %6083
    %6085 = vrot.lane.b32.xlu0 %v6046, 32
    %v6086 = vpop.permute.xlu0 %6085
    %6087 = vrot.lane.b32.xlu0 %v6047, 32
    %v6088 = vpop.permute.xlu0 %6087
    %6089 = vrot.lane.b32.xlu0 %v6048, 32
    %v6090 = vpop.permute.xlu0 %6089
    %6091 = vrot.lane.b32.xlu0 %v6049, 32
    %v6092 = vpop.permute.xlu0 %6091
    %6093 = vrot.lane.b32.xlu0 %v6050, 32
    %v6094 = vpop.permute.xlu0 %6093
    %6095 = vrot.lane.b32.xlu0 %v6051, 32
    %v6096 = vpop.permute.xlu0 %6095
    %6097 = vrot.lane.b32.xlu0 %v6052, 32
    %v6098 = vpop.permute.xlu0 %6097
    %6099 = vrot.lane.b32.xlu0 %v6053, 32
    %v6100 = vpop.permute.xlu0 %6099
    %6101 = vrot.lane.b32.xlu0 %v6054, 32
    %v6102 = vpop.permute.xlu0 %6101
    %v6119 = vadd.f32 %v5959, %v6072
    %v6120 = vadd.f32 %v5960, %v6074
    %v6121 = vadd.f32 %v5961, %v6076
    %v6122 = vadd.f32 %v5962, %v6078
    %v6123 = vadd.f32 %v5963, %v6080
    %v6124 = vadd.f32 %v5964, %v6082
    %v6125 = vadd.f32 %v5965, %v6084
    %v6126 = vadd.f32 %v5966, %v6086
    %v6127 = vadd.f32 %v5967, %v6088
    %v6128 = vadd.f32 %v5968, %v6090
    %v6129 = vadd.f32 %v5969, %v6092
    %v6130 = vadd.f32 %v5970, %v6094
    %v6131 = vadd.f32 %v5971, %v6096
    %v6132 = vadd.f32 %v5972, %v6098
    %v6133 = vadd.f32 %v5973, %v6100
    %v6134 = vadd.f32 %v5974, %v6102
    %v6135 = vtanh.pop %v6119
    %v6136 = vtanh.pop %v6120
    %v6137 = vtanh.pop %v6121
    %v6138 = vtanh.pop %v6122
    %v6139 = vtanh.pop %v6123
    %v6140 = vtanh.pop %v6124
    %v6141 = vtanh.pop %v6125
    %v6142 = vtanh.pop %v6126
    %v6143 = vtanh.pop %v6127
    %v6144 = vtanh.pop %v6128
    %v6145 = vtanh.pop %v6129
    %v6146 = vtanh.pop %v6130
    %v6147 = vtanh.pop %v6131
    %v6148 = vtanh.pop %v6132
    %v6149 = vtanh.pop %v6133
    %v6150 = vtanh.pop %v6134
    %6167 = vrot.lane.b32.xlu0 %v6135, 64
    %v6168 = vpop.permute.xlu0 %6167
    %6169 = vrot.lane.b32.xlu0 %v6136, 64
    %v6170 = vpop.permute.xlu0 %6169
    %6171 = vrot.lane.b32.xlu0 %v6137, 64
    %v6172 = vpop.permute.xlu0 %6171
    %6173 = vrot.lane.b32.xlu0 %v6138, 64
    %v6174 = vpop.permute.xlu0 %6173
    %6175 = vrot.lane.b32.xlu0 %v6139, 64
    %v6176 = vpop.permute.xlu0 %6175
    %6177 = vrot.lane.b32.xlu0 %v6140, 64
    %v6178 = vpop.permute.xlu0 %6177
    %6179 = vrot.lane.b32.xlu0 %v6141, 64
    %v6180 = vpop.permute.xlu0 %6179
    %6181 = vrot.lane.b32.xlu0 %v6142, 64
    %v6182 = vpop.permute.xlu0 %6181
    %6183 = vrot.lane.b32.xlu0 %v6143, 64
    %v6184 = vpop.permute.xlu0 %6183
    %6185 = vrot.lane.b32.xlu0 %v6144, 64
    %v6186 = vpop.permute.xlu0 %6185
    %6187 = vrot.lane.b32.xlu0 %v6145, 64
    %v6188 = vpop.permute.xlu0 %6187
    %6189 = vrot.lane.b32.xlu0 %v6146, 64
    %v6190 = vpop.permute.xlu0 %6189
    %6191 = vrot.lane.b32.xlu0 %v6147, 64
    %v6192 = vpop.permute.xlu0 %6191
    %6193 = vrot.lane.b32.xlu0 %v6148, 64
    %v6194 = vpop.permute.xlu0 %6193
    %6195 = vrot.lane.b32.xlu0 %v6149, 64
    %v6196 = vpop.permute.xlu0 %6195
    %6197 = vrot.lane.b32.xlu0 %v6150, 64
    %v6198 = vpop.permute.xlu0 %6197
    %v6215 = vmul.f32 %v5943, %v6168
    %v6216 = vmul.f32 %v5944, %v6170
    %v6217 = vmul.f32 %v5945, %v6172
    %v6218 = vmul.f32 %v5946, %v6174
    %v6219 = vmul.f32 %v5947, %v6176
    %v6220 = vmul.f32 %v5948, %v6178
    %v6221 = vmul.f32 %v5949, %v6180
    %v6222 = vmul.f32 %v5950, %v6182
    %v6223 = vmul.f32 %v5951, %v6184
    %v6224 = vmul.f32 %v5952, %v6186
    %v6225 = vmul.f32 %v5953, %v6188
    %v6226 = vmul.f32 %v5954, %v6190
    %v6227 = vmul.f32 %v5955, %v6192
    %v6228 = vmul.f32 %v5956, %v6194
    %v6229 = vmul.f32 %v5957, %v6196
    %v6230 = vmul.f32 %v5958, %v6198
    %v6231 = vpack.c.bf16 %v6216, %v6215
    %v6232 = vpack.c.bf16 %v6218, %v6217
    %v6233 = vpack.c.bf16 %v6220, %v6219
    %v6234 = vpack.c.bf16 %v6222, %v6221
    %v6235 = vpack.c.bf16 %v6224, %v6223
    %v6236 = vpack.c.bf16 %v6226, %v6225
    %v6237 = vpack.c.bf16 %v6228, %v6227
    %v6238 = vpack.c.bf16 %v6230, %v6229
    %6247 = vrot.lane.b32.xlu0 %v6231, 32
    %v6248 = vpop.permute.xlu0 %6247
    %6249 = vrot.lane.b32.xlu0 %v6232, 32
    %v6250 = vpop.permute.xlu0 %6249
    %6251 = vrot.lane.b32.xlu0 %v6233, 32
    %v6252 = vpop.permute.xlu0 %6251
    %6253 = vrot.lane.b32.xlu0 %v6234, 32
    %v6254 = vpop.permute.xlu0 %6253
    %6255 = vrot.lane.b32.xlu0 %v6235, 32
    %v6256 = vpop.permute.xlu0 %6255
    %6257 = vrot.lane.b32.xlu0 %v6236, 32
    %v6258 = vpop.permute.xlu0 %6257
    %6259 = vrot.lane.b32.xlu0 %v6237, 32
    %v6260 = vpop.permute.xlu0 %6259
    %6261 = vrot.lane.b32.xlu0 %v6238, 32
    %v6262 = vpop.permute.xlu0 %6261
    %v6264 = vsel %vm4816, %v6248, 0
    %v6267 = vsel %vm4816, %v6250, 0
    %v6270 = vsel %vm4816, %v6252, 0
    %v6273 = vsel %vm4816, %v6254, 0
    %v6276 = vsel %vm4816, %v6256, 0
    %v6279 = vsel %vm4816, %v6258, 0
    %v6282 = vsel %vm4816, %v6260, 0
    %v6285 = vsel %vm4816, %v6262, 0
    %6287 = vmatprep.subr.bf16.mxu0 0
    %6288 = vmatpush1.bf16.msra.mxu0 %v20
    %6289 = vmatprep.subr.bf16.mxu0 0
    %6290 = vmatpush1.bf16.msra.mxu0 %v21
    %6291 = vmatprep.subr.bf16.mxu0 0
    %6292 = vmatpush1.bf16.msra.mxu0 0
    %6293 = vmatprep.subr.bf16.mxu0 0
    %6294 = vmatpush1.bf16.msra.mxu0 0
    %6295 = vmatprep.subr.bf16.mxu0 0
    %6296 = vmatpush1.bf16.msra.mxu0 0
    %6297 = vmatprep.subr.bf16.mxu0 0
    %6298 = vmatpush1.bf16.msra.mxu0 0
    %6299 = vmatprep.subr.bf16.mxu0 0
    %6300 = vmatpush1.bf16.msra.mxu0 0
    %6301 = vmatprep.subr.bf16.mxu0 0
    %6302 = vmatpush1.bf16.msra.mxu0 0
    %6303 = vmatprep.subr.bf16.mxu0 0
    %6304 = vmatpush1.bf16.msra.mxu0 0
    %6305 = vmatprep.subr.bf16.mxu0 0
    %6306 = vmatpush1.bf16.msra.mxu0 0
    %6307 = vmatprep.subr.bf16.mxu0 0
    %6308 = vmatpush1.bf16.msra.mxu0 0
    %6309 = vmatprep.subr.bf16.mxu0 0
    %6310 = vmatpush1.bf16.msra.mxu0 0
    %6311 = vmatprep.subr.bf16.mxu0 0
    %6312 = vmatpush1.bf16.msra.mxu0 0
    %6313 = vmatprep.subr.bf16.mxu0 0
    %6314 = vmatpush1.bf16.msra.mxu0 0
    %6315 = vmatprep.subr.bf16.mxu0 0
    %6316 = vmatpush1.bf16.msra.mxu0 0
    %6317 = vmatprep.subr.bf16.mxu0 0
    %6318 = vmatpush1.bf16.msra.mxu0 0
    %6319 = vmatprep.mubr.bf16.mxu0 0
    %6320 = vmatmul.mubr.bf16.gmra.mrb[0].mxu0 %v6264
    %v6321 = vpop.f32.mrb[0].mxu0
    %v6322 = vadd.f32 0.0, %v6321
    %v6323 = vpop.f32.mrb[0].mxu0
    %v6324 = vpop.f32.mrb[0].mxu0
    %v6325 = vadd.f32 0.0, %v6324
    %v6326 = vpop.f32.mrb[0].mxu0
    %6327 = vmatprep.mubr.bf16.mxu0 0
    %6328 = vmatmul.mubr.bf16.gmra.mrb[0].mxu0 %v6267
    %v6329 = vpop.f32.mrb[0].mxu0
    %v6330 = vadd.f32 0.0, %v6329
    %v6331 = vpop.f32.mrb[0].mxu0
    %v6332 = vpop.f32.mrb[0].mxu0
    %v6333 = vadd.f32 0.0, %v6332
    %v6334 = vpop.f32.mrb[0].mxu0
    %6335 = vmatprep.mubr.bf16.mxu0 0
    %6336 = vmatmul.mubr.bf16.gmra.mrb[0].mxu0 %v6270
    %v6337 = vpop.f32.mrb[0].mxu0
    %v6338 = vadd.f32 0.0, %v6337
    %v6339 = vpop.f32.mrb[0].mxu0
    %v6340 = vpop.f32.mrb[0].mxu0
    %v6341 = vadd.f32 0.0, %v6340
    %v6342 = vpop.f32.mrb[0].mxu0
    %6343 = vmatprep.mubr.bf16.mxu0 0
    %6344 = vmatmul.mubr.bf16.gmra.mrb[0].mxu0 %v6273
    %v6345 = vpop.f32.mrb[0].mxu0
    %v6346 = vadd.f32 0.0, %v6345
    %v6347 = vpop.f32.mrb[0].mxu0
    %v6348 = vpop.f32.mrb[0].mxu0
    %v6349 = vadd.f32 0.0, %v6348
    %v6350 = vpop.f32.mrb[0].mxu0
    %6351 = vmatprep.mubr.bf16.mxu0 0
    %6352 = vmatmul.mubr.bf16.gmra.mrb[0].mxu0 %v6276
    %v6353 = vpop.f32.mrb[0].mxu0
    %v6354 = vadd.f32 0.0, %v6353
    %v6355 = vpop.f32.mrb[0].mxu0
    %v6356 = vpop.f32.mrb[0].mxu0
    %v6357 = vadd.f32 0.0, %v6356
    %v6358 = vpop.f32.mrb[0].mxu0
    %6359 = vmatprep.mubr.bf16.mxu0 0
    %6360 = vmatmul.mubr.bf16.gmra.mrb[0].mxu0 %v6279
    %v6361 = vpop.f32.mrb[0].mxu0
    %v6362 = vadd.f32 0.0, %v6361
    %v6363 = vpop.f32.mrb[0].mxu0
    %v6364 = vpop.f32.mrb[0].mxu0
    %v6365 = vadd.f32 0.0, %v6364
    %v6366 = vpop.f32.mrb[0].mxu0
    %6367 = vmatprep.mubr.bf16.mxu0 0
    %6368 = vmatmul.mubr.bf16.gmra.mrb[0].mxu0 %v6282
    %v6369 = vpop.f32.mrb[0].mxu0
    %v6370 = vadd.f32 0.0, %v6369
    %v6371 = vpop.f32.mrb[0].mxu0
    %v6372 = vpop.f32.mrb[0].mxu0
    %v6373 = vadd.f32 0.0, %v6372
    %v6374 = vpop.f32.mrb[0].mxu0
    %6375 = vmatprep.mubr.bf16.mxu0 0
    %6376 = vmatmul.mubr.bf16.gmra.mrb[0].mxu0 %v6285
    %v6377 = vpop.f32.mrb[0].mxu0
    %v6378 = vadd.f32 0.0, %v6377
    %v6379 = vpop.f32.mrb[0].mxu0
    %v6380 = vpop.f32.mrb[0].mxu0
    %v6381 = vadd.f32 0.0, %v6380
    %v6382 = vpop.f32.mrb[0].mxu0
    %6383 = vdwg.mxu0
    %v6384 = vadd.f32 %v4491, %v6322
    %v6385 = vadd.f32 %v4494, %v6325
    %v6386 = vadd.f32 %v4499, %v6330
    %v6387 = vadd.f32 %v4502, %v6333
    %v6388 = vadd.f32 %v4507, %v6338
    %v6389 = vadd.f32 %v4510, %v6341
    %v6390 = vadd.f32 %v4515, %v6346
    %v6391 = vadd.f32 %v4518, %v6349
    %v6392 = vadd.f32 %v4523, %v6354
    %v6393 = vadd.f32 %v4526, %v6357
    %v6394 = vadd.f32 %v4531, %v6362
    %v6395 = vadd.f32 %v4534, %v6365
    %v6396 = vadd.f32 %v4539, %v6370
    %v6397 = vadd.f32 %v4542, %v6373
    %v6398 = vadd.f32 %v4547, %v6378
    %v6399 = vadd.f32 %v4550, %v6381
    %v6400 = vtanh.pop %v6384
    %v6401 = vtanh.pop %v6385
    %v6402 = vtanh.pop %v6386
    %v6403 = vtanh.pop %v6387
    %v6404 = vtanh.pop %v6388
    %v6405 = vtanh.pop %v6389
    %v6406 = vtanh.pop %v6390
    %v6407 = vtanh.pop %v6391
    %v6408 = vtanh.pop %v6392
    %v6409 = vtanh.pop %v6393
    %v6410 = vtanh.pop %v6394
    %v6411 = vtanh.pop %v6395
    %v6412 = vtanh.pop %v6396
    %v6413 = vtanh.pop %v6397
    %v6414 = vtanh.pop %v6398
    %v6415 = vtanh.pop %v6399
    %v6416 = vmul.f32 %v6400, %v4814
    %v6417 = vmul.f32 %v6401, %v4814
    %v6418 = vmul.f32 %v6402, %v4814
    %v6419 = vmul.f32 %v6403, %v4814
    %v6420 = vmul.f32 %v6404, %v4814
    %v6421 = vmul.f32 %v6405, %v4814
    %v6422 = vmul.f32 %v6406, %v4814
    %v6423 = vmul.f32 %v6407, %v4814
    %v6424 = vmul.f32 %v6408, %v4814
    %v6425 = vmul.f32 %v6409, %v4814
    %v6426 = vmul.f32 %v6410, %v4814
    %v6427 = vmul.f32 %v6411, %v4814
    %v6428 = vmul.f32 %v6412, %v4814
    %v6429 = vmul.f32 %v6413, %v4814
    %v6430 = vmul.f32 %v6414, %v4814
    %v6431 = vmul.f32 %v6415, %v4814
    %v6432 = vadd.f32 %v6416, %v4815
    %v6433 = vadd.f32 %v6417, %v4815
    %v6434 = vadd.f32 %v6418, %v4815
    %v6435 = vadd.f32 %v6419, %v4815
    %v6436 = vadd.f32 %v6420, %v4815
    %v6437 = vadd.f32 %v6421, %v4815
    %v6438 = vadd.f32 %v6422, %v4815
    %v6439 = vadd.f32 %v6423, %v4815
    %v6440 = vadd.f32 %v6424, %v4815
    %v6441 = vadd.f32 %v6425, %v4815
    %v6442 = vadd.f32 %v6426, %v4815
    %v6443 = vadd.f32 %v6427, %v4815
    %v6444 = vadd.f32 %v6428, %v4815
    %v6445 = vadd.f32 %v6429, %v4815
    %v6446 = vadd.f32 %v6430, %v4815
    %v6447 = vadd.f32 %v6431, %v4815
    %v6448 = vmul.f32 %v6432, %v6119
    %v6449 = vmul.f32 %v6433, %v6120
    %v6450 = vmul.f32 %v6434, %v6121
    %v6451 = vmul.f32 %v6435, %v6122
    %v6452 = vmul.f32 %v6436, %v6123
    %v6453 = vmul.f32 %v6437, %v6124
    %v6454 = vmul.f32 %v6438, %v6125
    %v6455 = vmul.f32 %v6439, %v6126
    %v6456 = vmul.f32 %v6440, %v6127
    %v6457 = vmul.f32 %v6441, %v6128
    %v6458 = vmul.f32 %v6442, %v6129
    %v6459 = vmul.f32 %v6443, %v6130
    %v6460 = vmul.f32 %v6444, %v6131
    %v6461 = vmul.f32 %v6445, %v6132
    %v6462 = vmul.f32 %v6446, %v6133
    %v6463 = vmul.f32 %v6447, %v6134
    %6480 = vrot.lane.b32.xlu0 %v6432, 64
    %v6481 = vpop.permute.xlu0 %6480
    %6482 = vrot.lane.b32.xlu0 %v6433, 64
    %v6483 = vpop.permute.xlu0 %6482
    %6484 = vrot.lane.b32.xlu0 %v6434, 64
    %v6485 = vpop.permute.xlu0 %6484
    %6486 = vrot.lane.b32.xlu0 %v6435, 64
    %v6487 = vpop.permute.xlu0 %6486
    %6488 = vrot.lane.b32.xlu0 %v6436, 64
    %v6489 = vpop.permute.xlu0 %6488
    %6490 = vrot.lane.b32.xlu0 %v6437, 64
    %v6491 = vpop.permute.xlu0 %6490
    %6492 = vrot.lane.b32.xlu0 %v6438, 64
    %v6493 = vpop.permute.xlu0 %6492
    %6494 = vrot.lane.b32.xlu0 %v6439, 64
    %v6495 = vpop.permute.xlu0 %6494
    %6496 = vrot.lane.b32.xlu0 %v6440, 64
    %v6497 = vpop.permute.xlu0 %6496
    %6498 = vrot.lane.b32.xlu0 %v6441, 64
    %v6499 = vpop.permute.xlu0 %6498
    %6500 = vrot.lane.b32.xlu0 %v6442, 64
    %v6501 = vpop.permute.xlu0 %6500
    %6502 = vrot.lane.b32.xlu0 %v6443, 64
    %v6503 = vpop.permute.xlu0 %6502
    %6504 = vrot.lane.b32.xlu0 %v6444, 64
    %v6505 = vpop.permute.xlu0 %6504
    %6506 = vrot.lane.b32.xlu0 %v6445, 64
    %v6507 = vpop.permute.xlu0 %6506
    %6508 = vrot.lane.b32.xlu0 %v6446, 64
    %v6509 = vpop.permute.xlu0 %6508
    %6510 = vrot.lane.b32.xlu0 %v6447, 64
    %v6511 = vpop.permute.xlu0 %6510
    %v6528 = vmul.f32 %v6432, %v6481
    %v6529 = vmul.f32 %v6433, %v6483
    %v6530 = vmul.f32 %v6434, %v6485
    %v6531 = vmul.f32 %v6435, %v6487
    %v6532 = vmul.f32 %v6436, %v6489
    %v6533 = vmul.f32 %v6437, %v6491
    %v6534 = vmul.f32 %v6438, %v6493
    %v6535 = vmul.f32 %v6439, %v6495
    %v6536 = vmul.f32 %v6440, %v6497
    %v6537 = vmul.f32 %v6441, %v6499
    %v6538 = vmul.f32 %v6442, %v6501
    %v6539 = vmul.f32 %v6443, %v6503
    %v6540 = vmul.f32 %v6444, %v6505
    %v6541 = vmul.f32 %v6445, %v6507
    %v6542 = vmul.f32 %v6446, %v6509
    %v6543 = vmul.f32 %v6447, %v6511
    %6560 = vrot.lane.b32.xlu0 %v6528, 32
    %v6561 = vpop.permute.xlu0 %6560
    %6562 = vrot.lane.b32.xlu0 %v6529, 32
    %v6563 = vpop.permute.xlu0 %6562
    %6564 = vrot.lane.b32.xlu0 %v6530, 32
    %v6565 = vpop.permute.xlu0 %6564
    %6566 = vrot.lane.b32.xlu0 %v6531, 32
    %v6567 = vpop.permute.xlu0 %6566
    %6568 = vrot.lane.b32.xlu0 %v6532, 32
    %v6569 = vpop.permute.xlu0 %6568
    %6570 = vrot.lane.b32.xlu0 %v6533, 32
    %v6571 = vpop.permute.xlu0 %6570
    %6572 = vrot.lane.b32.xlu0 %v6534, 32
    %v6573 = vpop.permute.xlu0 %6572
    %6574 = vrot.lane.b32.xlu0 %v6535, 32
    %v6575 = vpop.permute.xlu0 %6574
    %6576 = vrot.lane.b32.xlu0 %v6536, 32
    %v6577 = vpop.permute.xlu0 %6576
    %6578 = vrot.lane.b32.xlu0 %v6537, 32
    %v6579 = vpop.permute.xlu0 %6578
    %6580 = vrot.lane.b32.xlu0 %v6538, 32
    %v6581 = vpop.permute.xlu0 %6580
    %6582 = vrot.lane.b32.xlu0 %v6539, 32
    %v6583 = vpop.permute.xlu0 %6582
    %6584 = vrot.lane.b32.xlu0 %v6540, 32
    %v6585 = vpop.permute.xlu0 %6584
    %6586 = vrot.lane.b32.xlu0 %v6541, 32
    %v6587 = vpop.permute.xlu0 %6586
    %6588 = vrot.lane.b32.xlu0 %v6542, 32
    %v6589 = vpop.permute.xlu0 %6588
    %6590 = vrot.lane.b32.xlu0 %v6543, 32
    %v6591 = vpop.permute.xlu0 %6590
    %v6608 = vadd.f32 %v6448, %v6561
    %v6609 = vadd.f32 %v6449, %v6563
    %v6610 = vadd.f32 %v6450, %v6565
    %v6611 = vadd.f32 %v6451, %v6567
    %v6612 = vadd.f32 %v6452, %v6569
    %v6613 = vadd.f32 %v6453, %v6571
    %v6614 = vadd.f32 %v6454, %v6573
    %v6615 = vadd.f32 %v6455, %v6575
    %v6616 = vadd.f32 %v6456, %v6577
    %v6617 = vadd.f32 %v6457, %v6579
    %v6618 = vadd.f32 %v6458, %v6581
    %v6619 = vadd.f32 %v6459, %v6583
    %v6620 = vadd.f32 %v6460, %v6585
    %v6621 = vadd.f32 %v6461, %v6587
    %v6622 = vadd.f32 %v6462, %v6589
    %v6623 = vadd.f32 %v6463, %v6591
    %v6624 = vtanh.pop %v6608
    %v6625 = vtanh.pop %v6609
    %v6626 = vtanh.pop %v6610
    %v6627 = vtanh.pop %v6611
    %v6628 = vtanh.pop %v6612
    %v6629 = vtanh.pop %v6613
    %v6630 = vtanh.pop %v6614
    %v6631 = vtanh.pop %v6615
    %v6632 = vtanh.pop %v6616
    %v6633 = vtanh.pop %v6617
    %v6634 = vtanh.pop %v6618
    %v6635 = vtanh.pop %v6619
    %v6636 = vtanh.pop %v6620
    %v6637 = vtanh.pop %v6621
    %v6638 = vtanh.pop %v6622
    %v6639 = vtanh.pop %v6623
    %6656 = vrot.lane.b32.xlu0 %v6624, 64
    %v6657 = vpop.permute.xlu0 %6656
    %6658 = vrot.lane.b32.xlu0 %v6625, 64
    %v6659 = vpop.permute.xlu0 %6658
    %6660 = vrot.lane.b32.xlu0 %v6626, 64
    %v6661 = vpop.permute.xlu0 %6660
    %6662 = vrot.lane.b32.xlu0 %v6627, 64
    %v6663 = vpop.permute.xlu0 %6662
    %6664 = vrot.lane.b32.xlu0 %v6628, 64
    %v6665 = vpop.permute.xlu0 %6664
    %6666 = vrot.lane.b32.xlu0 %v6629, 64
    %v6667 = vpop.permute.xlu0 %6666
    %6668 = vrot.lane.b32.xlu0 %v6630, 64
    %v6669 = vpop.permute.xlu0 %6668
    %6670 = vrot.lane.b32.xlu0 %v6631, 64
    %v6671 = vpop.permute.xlu0 %6670
    %6672 = vrot.lane.b32.xlu0 %v6632, 64
    %v6673 = vpop.permute.xlu0 %6672
    %6674 = vrot.lane.b32.xlu0 %v6633, 64
    %v6675 = vpop.permute.xlu0 %6674
    %6676 = vrot.lane.b32.xlu0 %v6634, 64
    %v6677 = vpop.permute.xlu0 %6676
    %6678 = vrot.lane.b32.xlu0 %v6635, 64
    %v6679 = vpop.permute.xlu0 %6678
    %6680 = vrot.lane.b32.xlu0 %v6636, 64
    %v6681 = vpop.permute.xlu0 %6680
    %6682 = vrot.lane.b32.xlu0 %v6637, 64
    %v6683 = vpop.permute.xlu0 %6682
    %6684 = vrot.lane.b32.xlu0 %v6638, 64
    %v6685 = vpop.permute.xlu0 %6684
    %6686 = vrot.lane.b32.xlu0 %v6639, 64
    %v6687 = vpop.permute.xlu0 %6686
    %v6704 = vmul.f32 %v6432, %v6657
    %v6705 = vmul.f32 %v6433, %v6659
    %v6706 = vmul.f32 %v6434, %v6661
    %v6707 = vmul.f32 %v6435, %v6663
    %v6708 = vmul.f32 %v6436, %v6665
    %v6709 = vmul.f32 %v6437, %v6667
    %v6710 = vmul.f32 %v6438, %v6669
    %v6711 = vmul.f32 %v6439, %v6671
    %v6712 = vmul.f32 %v6440, %v6673
    %v6713 = vmul.f32 %v6441, %v6675
    %v6714 = vmul.f32 %v6442, %v6677
    %v6715 = vmul.f32 %v6443, %v6679
    %v6716 = vmul.f32 %v6444, %v6681
    %v6717 = vmul.f32 %v6445, %v6683
    %v6718 = vmul.f32 %v6446, %v6685
    %v6719 = vmul.f32 %v6447, %v6687
    %v6720 = vpack.c.bf16 %v6705, %v6704
    %v6721 = vpack.c.bf16 %v6707, %v6706
    %v6722 = vpack.c.bf16 %v6709, %v6708
    %v6723 = vpack.c.bf16 %v6711, %v6710
    %v6724 = vpack.c.bf16 %v6713, %v6712
    %v6725 = vpack.c.bf16 %v6715, %v6714
    %v6726 = vpack.c.bf16 %v6717, %v6716
    %v6727 = vpack.c.bf16 %v6719, %v6718
    %6736 = vrot.lane.b32.xlu0 %v6720, 32
    %v6737 = vpop.permute.xlu0 %6736
    %6738 = vrot.lane.b32.xlu0 %v6721, 32
    %v6739 = vpop.permute.xlu0 %6738
    %6740 = vrot.lane.b32.xlu0 %v6722, 32
    %v6741 = vpop.permute.xlu0 %6740
    %6742 = vrot.lane.b32.xlu0 %v6723, 32
    %v6743 = vpop.permute.xlu0 %6742
    %6744 = vrot.lane.b32.xlu0 %v6724, 32
    %v6745 = vpop.permute.xlu0 %6744
    %6746 = vrot.lane.b32.xlu0 %v6725, 32
    %v6747 = vpop.permute.xlu0 %6746
    %6748 = vrot.lane.b32.xlu0 %v6726, 32
    %v6749 = vpop.permute.xlu0 %6748
    %6750 = vrot.lane.b32.xlu0 %v6727, 32
    %v6751 = vpop.permute.xlu0 %6750
    %v6753 = vsel %vm4816, %v6737, 0
    %v6756 = vsel %vm4816, %v6739, 0
    %v6759 = vsel %vm4816, %v6741, 0
    %v6762 = vsel %vm4816, %v6743, 0
    %v6765 = vsel %vm4816, %v6745, 0
    %v6768 = vsel %vm4816, %v6747, 0
    %v6771 = vsel %vm4816, %v6749, 0
    %v6774 = vsel %vm4816, %v6751, 0
    %6776 = vmatprep.subr.bf16.mxu0 0
    %6777 = vmatpush1.bf16.msra.mxu0 %v20
    %6778 = vmatprep.subr.bf16.mxu0 0
    %6779 = vmatpush1.bf16.msra.mxu0 %v21
    %6780 = vmatprep.subr.bf16.mxu0 0
    %6781 = vmatpush1.bf16.msra.mxu0 0
    %6782 = vmatprep.subr.bf16.mxu0 0
    %6783 = vmatpush1.bf16.msra.mxu0 0
    %6784 = vmatprep.subr.bf16.mxu0 0
    %6785 = vmatpush1.bf16.msra.mxu0 0
    %6786 = vmatprep.subr.bf16.mxu0 0
    %6787 = vmatpush1.bf16.msra.mxu0 0
    %6788 = vmatprep.subr.bf16.mxu0 0
    %6789 = vmatpush1.bf16.msra.mxu0 0
    %6790 = vmatprep.subr.bf16.mxu0 0
    %6791 = vmatpush1.bf16.msra.mxu0 0
    %6792 = vmatprep.subr.bf16.mxu0 0
    %6793 = vmatpush1.bf16.msra.mxu0 0
    %6794 = vmatprep.subr.bf16.mxu0 0
    %6795 = vmatpush1.bf16.msra.mxu0 0
    %6796 = vmatprep.subr.bf16.mxu0 0
    %6797 = vmatpush1.bf16.msra.mxu0 0
    %6798 = vmatprep.subr.bf16.mxu0 0
    %6799 = vmatpush1.bf16.msra.mxu0 0
    %6800 = vmatprep.subr.bf16.mxu0 0
    %6801 = vmatpush1.bf16.msra.mxu0 0
    %6802 = vmatprep.subr.bf16.mxu0 0
    %6803 = vmatpush1.bf16.msra.mxu0 0
    %6804 = vmatprep.subr.bf16.mxu0 0
    %6805 = vmatpush1.bf16.msra.mxu0 0
    %6806 = vmatprep.subr.bf16.mxu0 0
    %6807 = vmatpush1.bf16.msra.mxu0 0
    %6808 = vmatprep.mubr.bf16.mxu0 0
    %6809 = vmatmul.mubr.bf16.gmra.mrb[0].mxu0 %v6753
    %v6810 = vpop.f32.mrb[0].mxu0
    %v6811 = vadd.f32 0.0, %v6810
    %v6812 = vpop.f32.mrb[0].mxu0
    %v6813 = vpop.f32.mrb[0].mxu0
    %v6814 = vadd.f32 0.0, %v6813
    %v6815 = vpop.f32.mrb[0].mxu0
    %6816 = vmatprep.mubr.bf16.mxu0 0
    %6817 = vmatmul.mubr.bf16.gmra.mrb[0].mxu0 %v6756
    %v6818 = vpop.f32.mrb[0].mxu0
    %v6819 = vadd.f32 0.0, %v6818
    %v6820 = vpop.f32.mrb[0].mxu0
    %v6821 = vpop.f32.mrb[0].mxu0
    %v6822 = vadd.f32 0.0, %v6821
    %v6823 = vpop.f32.mrb[0].mxu0
    %6824 = vmatprep.mubr.bf16.mxu0 0
    %6825 = vmatmul.mubr.bf16.gmra.mrb[0].mxu0 %v6759
    %v6826 = vpop.f32.mrb[0].mxu0
    %v6827 = vadd.f32 0.0, %v6826
    %v6828 = vpop.f32.mrb[0].mxu0
    %v6829 = vpop.f32.mrb[0].mxu0
    %v6830 = vadd.f32 0.0, %v6829
    %v6831 = vpop.f32.mrb[0].mxu0
    %6832 = vmatprep.mubr.bf16.mxu0 0
    %6833 = vmatmul.mubr.bf16.gmra.mrb[0].mxu0 %v6762
    %v6834 = vpop.f32.mrb[0].mxu0
    %v6835 = vadd.f32 0.0, %v6834
    %v6836 = vpop.f32.mrb[0].mxu0
    %v6837 = vpop.f32.mrb[0].mxu0
    %v6838 = vadd.f32 0.0, %v6837
    %v6839 = vpop.f32.mrb[0].mxu0
    %6840 = vmatprep.mubr.bf16.mxu0 0
    %6841 = vmatmul.mubr.bf16.gmra.mrb[0].mxu0 %v6765
    %v6842 = vpop.f32.mrb[0].mxu0
    %v6843 = vadd.f32 0.0, %v6842
    %v6844 = vpop.f32.mrb[0].mxu0
    %v6845 = vpop.f32.mrb[0].mxu0
    %v6846 = vadd.f32 0.0, %v6845
    %v6847 = vpop.f32.mrb[0].mxu0
    %6848 = vmatprep.mubr.bf16.mxu0 0
    %6849 = vmatmul.mubr.bf16.gmra.mrb[0].mxu0 %v6768
    %v6850 = vpop.f32.mrb[0].mxu0
    %v6851 = vadd.f32 0.0, %v6850
    %v6852 = vpop.f32.mrb[0].mxu0
    %v6853 = vpop.f32.mrb[0].mxu0
    %v6854 = vadd.f32 0.0, %v6853
    %v6855 = vpop.f32.mrb[0].mxu0
    %6856 = vmatprep.mubr.bf16.mxu0 0
    %6857 = vmatmul.mubr.bf16.gmra.mrb[0].mxu0 %v6771
    %v6858 = vpop.f32.mrb[0].mxu0
    %v6859 = vadd.f32 0.0, %v6858
    %v6860 = vpop.f32.mrb[0].mxu0
    %v6861 = vpop.f32.mrb[0].mxu0
    %v6862 = vadd.f32 0.0, %v6861
    %v6863 = vpop.f32.mrb[0].mxu0
    %6864 = vmatprep.mubr.bf16.mxu0 0
    %6865 = vmatmul.mubr.bf16.gmra.mrb[0].mxu0 %v6774
    %v6866 = vpop.f32.mrb[0].mxu0
    %v6867 = vadd.f32 0.0, %v6866
    %v6868 = vpop.f32.mrb[0].mxu0
    %v6869 = vpop.f32.mrb[0].mxu0
    %v6870 = vadd.f32 0.0, %v6869
    %v6871 = vpop.f32.mrb[0].mxu0
    %6872 = vdwg.mxu0
    %v6873 = vadd.f32 %v4555, %v6811
    %v6874 = vadd.f32 %v4558, %v6814
    %v6875 = vadd.f32 %v4563, %v6819
    %v6876 = vadd.f32 %v4566, %v6822
    %v6877 = vadd.f32 %v4571, %v6827
    %v6878 = vadd.f32 %v4574, %v6830
    %v6879 = vadd.f32 %v4579, %v6835
    %v6880 = vadd.f32 %v4582, %v6838
    %v6881 = vadd.f32 %v4587, %v6843
    %v6882 = vadd.f32 %v4590, %v6846
    %v6883 = vadd.f32 %v4595, %v6851
    %v6884 = vadd.f32 %v4598, %v6854
    %v6885 = vadd.f32 %v4603, %v6859
    %v6886 = vadd.f32 %v4606, %v6862
    %v6887 = vadd.f32 %v4611, %v6867
    %v6888 = vadd.f32 %v4614, %v6870
    %v6889 = vtanh.pop %v6873
    %v6890 = vtanh.pop %v6874
    %v6891 = vtanh.pop %v6875
    %v6892 = vtanh.pop %v6876
    %v6893 = vtanh.pop %v6877
    %v6894 = vtanh.pop %v6878
    %v6895 = vtanh.pop %v6879
    %v6896 = vtanh.pop %v6880
    %v6897 = vtanh.pop %v6881
    %v6898 = vtanh.pop %v6882
    %v6899 = vtanh.pop %v6883
    %v6900 = vtanh.pop %v6884
    %v6901 = vtanh.pop %v6885
    %v6902 = vtanh.pop %v6886
    %v6903 = vtanh.pop %v6887
    %v6904 = vtanh.pop %v6888
    %v6905 = vmul.f32 %v6889, %v4814
    %v6906 = vmul.f32 %v6890, %v4814
    %v6907 = vmul.f32 %v6891, %v4814
    %v6908 = vmul.f32 %v6892, %v4814
    %v6909 = vmul.f32 %v6893, %v4814
    %v6910 = vmul.f32 %v6894, %v4814
    %v6911 = vmul.f32 %v6895, %v4814
    %v6912 = vmul.f32 %v6896, %v4814
    %v6913 = vmul.f32 %v6897, %v4814
    %v6914 = vmul.f32 %v6898, %v4814
    %v6915 = vmul.f32 %v6899, %v4814
    %v6916 = vmul.f32 %v6900, %v4814
    %v6917 = vmul.f32 %v6901, %v4814
    %v6918 = vmul.f32 %v6902, %v4814
    %v6919 = vmul.f32 %v6903, %v4814
    %v6920 = vmul.f32 %v6904, %v4814
    %v6921 = vadd.f32 %v6905, %v4815
    %v6922 = vadd.f32 %v6906, %v4815
    %v6923 = vadd.f32 %v6907, %v4815
    %v6924 = vadd.f32 %v6908, %v4815
    %v6925 = vadd.f32 %v6909, %v4815
    %v6926 = vadd.f32 %v6910, %v4815
    %v6927 = vadd.f32 %v6911, %v4815
    %v6928 = vadd.f32 %v6912, %v4815
    %v6929 = vadd.f32 %v6913, %v4815
    %v6930 = vadd.f32 %v6914, %v4815
    %v6931 = vadd.f32 %v6915, %v4815
    %v6932 = vadd.f32 %v6916, %v4815
    %v6933 = vadd.f32 %v6917, %v4815
    %v6934 = vadd.f32 %v6918, %v4815
    %v6935 = vadd.f32 %v6919, %v4815
    %v6936 = vadd.f32 %v6920, %v4815
    %v6937 = vmul.f32 %v6921, %v6608
    %v6938 = vmul.f32 %v6922, %v6609
    %v6939 = vmul.f32 %v6923, %v6610
    %v6940 = vmul.f32 %v6924, %v6611
    %v6941 = vmul.f32 %v6925, %v6612
    %v6942 = vmul.f32 %v6926, %v6613
    %v6943 = vmul.f32 %v6927, %v6614
    %v6944 = vmul.f32 %v6928, %v6615
    %v6945 = vmul.f32 %v6929, %v6616
    %v6946 = vmul.f32 %v6930, %v6617
    %v6947 = vmul.f32 %v6931, %v6618
    %v6948 = vmul.f32 %v6932, %v6619
    %v6949 = vmul.f32 %v6933, %v6620
    %v6950 = vmul.f32 %v6934, %v6621
    %v6951 = vmul.f32 %v6935, %v6622
    %v6952 = vmul.f32 %v6936, %v6623
    %6969 = vrot.lane.b32.xlu0 %v6921, 64
    %v6970 = vpop.permute.xlu0 %6969
    %6971 = vrot.lane.b32.xlu0 %v6922, 64
    %v6972 = vpop.permute.xlu0 %6971
    %6973 = vrot.lane.b32.xlu0 %v6923, 64
    %v6974 = vpop.permute.xlu0 %6973
    %6975 = vrot.lane.b32.xlu0 %v6924, 64
    %v6976 = vpop.permute.xlu0 %6975
    %6977 = vrot.lane.b32.xlu0 %v6925, 64
    %v6978 = vpop.permute.xlu0 %6977
    %6979 = vrot.lane.b32.xlu0 %v6926, 64
    %v6980 = vpop.permute.xlu0 %6979
    %6981 = vrot.lane.b32.xlu0 %v6927, 64
    %v6982 = vpop.permute.xlu0 %6981
    %6983 = vrot.lane.b32.xlu0 %v6928, 64
    %v6984 = vpop.permute.xlu0 %6983
    %6985 = vrot.lane.b32.xlu0 %v6929, 64
    %v6986 = vpop.permute.xlu0 %6985
    %6987 = vrot.lane.b32.xlu0 %v6930, 64
    %v6988 = vpop.permute.xlu0 %6987
    %6989 = vrot.lane.b32.xlu0 %v6931, 64
    %v6990 = vpop.permute.xlu0 %6989
    %6991 = vrot.lane.b32.xlu0 %v6932, 64
    %v6992 = vpop.permute.xlu0 %6991
    %6993 = vrot.lane.b32.xlu0 %v6933, 64
    %v6994 = vpop.permute.xlu0 %6993
    %6995 = vrot.lane.b32.xlu0 %v6934, 64
    %v6996 = vpop.permute.xlu0 %6995
    %6997 = vrot.lane.b32.xlu0 %v6935, 64
    %v6998 = vpop.permute.xlu0 %6997
    %6999 = vrot.lane.b32.xlu0 %v6936, 64
    %v7000 = vpop.permute.xlu0 %6999
    %v7017 = vmul.f32 %v6921, %v6970
    %v7018 = vmul.f32 %v6922, %v6972
    %v7019 = vmul.f32 %v6923, %v6974
    %v7020 = vmul.f32 %v6924, %v6976
    %v7021 = vmul.f32 %v6925, %v6978
    %v7022 = vmul.f32 %v6926, %v6980
    %v7023 = vmul.f32 %v6927, %v6982
    %v7024 = vmul.f32 %v6928, %v6984
    %v7025 = vmul.f32 %v6929, %v6986
    %v7026 = vmul.f32 %v6930, %v6988
    %v7027 = vmul.f32 %v6931, %v6990
    %v7028 = vmul.f32 %v6932, %v6992
    %v7029 = vmul.f32 %v6933, %v6994
    %v7030 = vmul.f32 %v6934, %v6996
    %v7031 = vmul.f32 %v6935, %v6998
    %v7032 = vmul.f32 %v6936, %v7000
    %7049 = vrot.lane.b32.xlu0 %v7017, 32
    %v7050 = vpop.permute.xlu0 %7049
    %7051 = vrot.lane.b32.xlu0 %v7018, 32
    %v7052 = vpop.permute.xlu0 %7051
    %7053 = vrot.lane.b32.xlu0 %v7019, 32
    %v7054 = vpop.permute.xlu0 %7053
    %7055 = vrot.lane.b32.xlu0 %v7020, 32
    %v7056 = vpop.permute.xlu0 %7055
    %7057 = vrot.lane.b32.xlu0 %v7021, 32
    %v7058 = vpop.permute.xlu0 %7057
    %7059 = vrot.lane.b32.xlu0 %v7022, 32
    %v7060 = vpop.permute.xlu0 %7059
    %7061 = vrot.lane.b32.xlu0 %v7023, 32
    %v7062 = vpop.permute.xlu0 %7061
    %7063 = vrot.lane.b32.xlu0 %v7024, 32
    %v7064 = vpop.permute.xlu0 %7063
    %7065 = vrot.lane.b32.xlu0 %v7025, 32
    %v7066 = vpop.permute.xlu0 %7065
    %7067 = vrot.lane.b32.xlu0 %v7026, 32
    %v7068 = vpop.permute.xlu0 %7067
    %7069 = vrot.lane.b32.xlu0 %v7027, 32
    %v7070 = vpop.permute.xlu0 %7069
    %7071 = vrot.lane.b32.xlu0 %v7028, 32
    %v7072 = vpop.permute.xlu0 %7071
    %7073 = vrot.lane.b32.xlu0 %v7029, 32
    %v7074 = vpop.permute.xlu0 %7073
    %7075 = vrot.lane.b32.xlu0 %v7030, 32
    %v7076 = vpop.permute.xlu0 %7075
    %7077 = vrot.lane.b32.xlu0 %v7031, 32
    %v7078 = vpop.permute.xlu0 %7077
    %7079 = vrot.lane.b32.xlu0 %v7032, 32
    %v7080 = vpop.permute.xlu0 %7079
    %v7097 = vadd.f32 %v6937, %v7050
    %v7098 = vadd.f32 %v6938, %v7052
    %v7099 = vadd.f32 %v6939, %v7054
    %v7100 = vadd.f32 %v6940, %v7056
    %v7101 = vadd.f32 %v6941, %v7058
    %v7102 = vadd.f32 %v6942, %v7060
    %v7103 = vadd.f32 %v6943, %v7062
    %v7104 = vadd.f32 %v6944, %v7064
    %v7105 = vadd.f32 %v6945, %v7066
    %v7106 = vadd.f32 %v6946, %v7068
    %v7107 = vadd.f32 %v6947, %v7070
    %v7108 = vadd.f32 %v6948, %v7072
    %v7109 = vadd.f32 %v6949, %v7074
    %v7110 = vadd.f32 %v6950, %v7076
    %v7111 = vadd.f32 %v6951, %v7078
    %v7112 = vadd.f32 %v6952, %v7080
    %v7113 = vtanh.pop %v7097
    %v7114 = vtanh.pop %v7098
    %v7115 = vtanh.pop %v7099
    %v7116 = vtanh.pop %v7100
    %v7117 = vtanh.pop %v7101
    %v7118 = vtanh.pop %v7102
    %v7119 = vtanh.pop %v7103
    %v7120 = vtanh.pop %v7104
    %v7121 = vtanh.pop %v7105
    %v7122 = vtanh.pop %v7106
    %v7123 = vtanh.pop %v7107
    %v7124 = vtanh.pop %v7108
    %v7125 = vtanh.pop %v7109
    %v7126 = vtanh.pop %v7110
    %v7127 = vtanh.pop %v7111
    %v7128 = vtanh.pop %v7112
    %7145 = vrot.lane.b32.xlu0 %v7113, 64
    %v7146 = vpop.permute.xlu0 %7145
    %7147 = vrot.lane.b32.xlu0 %v7114, 64
    %v7148 = vpop.permute.xlu0 %7147
    %7149 = vrot.lane.b32.xlu0 %v7115, 64
    %v7150 = vpop.permute.xlu0 %7149
    %7151 = vrot.lane.b32.xlu0 %v7116, 64
    %v7152 = vpop.permute.xlu0 %7151
    %7153 = vrot.lane.b32.xlu0 %v7117, 64
    %v7154 = vpop.permute.xlu0 %7153
    %7155 = vrot.lane.b32.xlu0 %v7118, 64
    %v7156 = vpop.permute.xlu0 %7155
    %7157 = vrot.lane.b32.xlu0 %v7119, 64
    %v7158 = vpop.permute.xlu0 %7157
    %7159 = vrot.lane.b32.xlu0 %v7120, 64
    %v7160 = vpop.permute.xlu0 %7159
    %7161 = vrot.lane.b32.xlu0 %v7121, 64
    %v7162 = vpop.permute.xlu0 %7161
    %7163 = vrot.lane.b32.xlu0 %v7122, 64
    %v7164 = vpop.permute.xlu0 %7163
    %7165 = vrot.lane.b32.xlu0 %v7123, 64
    %v7166 = vpop.permute.xlu0 %7165
    %7167 = vrot.lane.b32.xlu0 %v7124, 64
    %v7168 = vpop.permute.xlu0 %7167
    %7169 = vrot.lane.b32.xlu0 %v7125, 64
    %v7170 = vpop.permute.xlu0 %7169
    %7171 = vrot.lane.b32.xlu0 %v7126, 64
    %v7172 = vpop.permute.xlu0 %7171
    %7173 = vrot.lane.b32.xlu0 %v7127, 64
    %v7174 = vpop.permute.xlu0 %7173
    %7175 = vrot.lane.b32.xlu0 %v7128, 64
    %v7176 = vpop.permute.xlu0 %7175
    %v7193 = vmul.f32 %v6921, %v7146
    %v7194 = vmul.f32 %v6922, %v7148
    %v7195 = vmul.f32 %v6923, %v7150
    %v7196 = vmul.f32 %v6924, %v7152
    %v7197 = vmul.f32 %v6925, %v7154
    %v7198 = vmul.f32 %v6926, %v7156
    %v7199 = vmul.f32 %v6927, %v7158
    %v7200 = vmul.f32 %v6928, %v7160
    %v7201 = vmul.f32 %v6929, %v7162
    %v7202 = vmul.f32 %v6930, %v7164
    %v7203 = vmul.f32 %v6931, %v7166
    %v7204 = vmul.f32 %v6932, %v7168
    %v7205 = vmul.f32 %v6933, %v7170
    %v7206 = vmul.f32 %v6934, %v7172
    %v7207 = vmul.f32 %v6935, %v7174
    %v7208 = vmul.f32 %v6936, %v7176
    %v7209 = vpack.c.bf16 %v7194, %v7193
    %v7210 = vpack.c.bf16 %v7196, %v7195
    %v7211 = vpack.c.bf16 %v7198, %v7197
    %v7212 = vpack.c.bf16 %v7200, %v7199
    %v7213 = vpack.c.bf16 %v7202, %v7201
    %v7214 = vpack.c.bf16 %v7204, %v7203
    %v7215 = vpack.c.bf16 %v7206, %v7205
    %v7216 = vpack.c.bf16 %v7208, %v7207
    %7225 = vrot.lane.b32.xlu0 %v7209, 32
    %v7226 = vpop.permute.xlu0 %7225
    %7227 = vrot.lane.b32.xlu0 %v7210, 32
    %v7228 = vpop.permute.xlu0 %7227
    %7229 = vrot.lane.b32.xlu0 %v7211, 32
    %v7230 = vpop.permute.xlu0 %7229
    %7231 = vrot.lane.b32.xlu0 %v7212, 32
    %v7232 = vpop.permute.xlu0 %7231
    %7233 = vrot.lane.b32.xlu0 %v7213, 32
    %v7234 = vpop.permute.xlu0 %7233
    %7235 = vrot.lane.b32.xlu0 %v7214, 32
    %v7236 = vpop.permute.xlu0 %7235
    %7237 = vrot.lane.b32.xlu0 %v7215, 32
    %v7238 = vpop.permute.xlu0 %7237
    %7239 = vrot.lane.b32.xlu0 %v7216, 32
    %v7240 = vpop.permute.xlu0 %7239
    %v7242 = vsel %vm4816, %v7226, 0
    %v7245 = vsel %vm4816, %v7228, 0
    %v7248 = vsel %vm4816, %v7230, 0
    %v7251 = vsel %vm4816, %v7232, 0
    %v7254 = vsel %vm4816, %v7234, 0
    %v7257 = vsel %vm4816, %v7236, 0
    %v7260 = vsel %vm4816, %v7238, 0
    %v7263 = vsel %vm4816, %v7240, 0
    %7265 = vmatprep.subr.bf16.mxu0 0
    %7266 = vmatpush1.bf16.msra.mxu0 %v20
    %7267 = vmatprep.subr.bf16.mxu0 0
    %7268 = vmatpush1.bf16.msra.mxu0 %v21
    %7269 = vmatprep.subr.bf16.mxu0 0
    %7270 = vmatpush1.bf16.msra.mxu0 0
    %7271 = vmatprep.subr.bf16.mxu0 0
    %7272 = vmatpush1.bf16.msra.mxu0 0
    %7273 = vmatprep.subr.bf16.mxu0 0
    %7274 = vmatpush1.bf16.msra.mxu0 0
    %7275 = vmatprep.subr.bf16.mxu0 0
    %7276 = vmatpush1.bf16.msra.mxu0 0
    %7277 = vmatprep.subr.bf16.mxu0 0
    %7278 = vmatpush1.bf16.msra.mxu0 0
    %7279 = vmatprep.subr.bf16.mxu0 0
    %7280 = vmatpush1.bf16.msra.mxu0 0
    %7281 = vmatprep.subr.bf16.mxu0 0
    %7282 = vmatpush1.bf16.msra.mxu0 0
    %7283 = vmatprep.subr.bf16.mxu0 0
    %7284 = vmatpush1.bf16.msra.mxu0 0
    %7285 = vmatprep.subr.bf16.mxu0 0
    %7286 = vmatpush1.bf16.msra.mxu0 0
    %7287 = vmatprep.subr.bf16.mxu0 0
    %7288 = vmatpush1.bf16.msra.mxu0 0
    %7289 = vmatprep.subr.bf16.mxu0 0
    %7290 = vmatpush1.bf16.msra.mxu0 0
    %7291 = vmatprep.subr.bf16.mxu0 0
    %7292 = vmatpush1.bf16.msra.mxu0 0
    %7293 = vmatprep.subr.bf16.mxu0 0
    %7294 = vmatpush1.bf16.msra.mxu0 0
    %7295 = vmatprep.subr.bf16.mxu0 0
    %7296 = vmatpush1.bf16.msra.mxu0 0
    %7297 = vmatprep.mubr.bf16.mxu0 0
    %7298 = vmatmul.mubr.bf16.gmra.mrb[0].mxu0 %v7242
    %v7299 = vpop.f32.mrb[0].mxu0
    %v7300 = vadd.f32 0.0, %v7299
    %v7301 = vpop.f32.mrb[0].mxu0
    %v7302 = vpop.f32.mrb[0].mxu0
    %v7303 = vadd.f32 0.0, %v7302
    %v7304 = vpop.f32.mrb[0].mxu0
    %7305 = vmatprep.mubr.bf16.mxu0 0
    %7306 = vmatmul.mubr.bf16.gmra.mrb[0].mxu0 %v7245
    %v7307 = vpop.f32.mrb[0].mxu0
    %v7308 = vadd.f32 0.0, %v7307
    %v7309 = vpop.f32.mrb[0].mxu0
    %v7310 = vpop.f32.mrb[0].mxu0
    %v7311 = vadd.f32 0.0, %v7310
    %v7312 = vpop.f32.mrb[0].mxu0
    %7313 = vmatprep.mubr.bf16.mxu0 0
    %7314 = vmatmul.mubr.bf16.gmra.mrb[0].mxu0 %v7248
    %v7315 = vpop.f32.mrb[0].mxu0
    %v7316 = vadd.f32 0.0, %v7315
    %v7317 = vpop.f32.mrb[0].mxu0
    %v7318 = vpop.f32.mrb[0].mxu0
    %v7319 = vadd.f32 0.0, %v7318
    %v7320 = vpop.f32.mrb[0].mxu0
    %7321 = vmatprep.mubr.bf16.mxu0 0
    %7322 = vmatmul.mubr.bf16.gmra.mrb[0].mxu0 %v7251
    %v7323 = vpop.f32.mrb[0].mxu0
    %v7324 = vadd.f32 0.0, %v7323
    %v7325 = vpop.f32.mrb[0].mxu0
    %v7326 = vpop.f32.mrb[0].mxu0
    %v7327 = vadd.f32 0.0, %v7326
    %v7328 = vpop.f32.mrb[0].mxu0
    %7329 = vmatprep.mubr.bf16.mxu0 0
    %7330 = vmatmul.mubr.bf16.gmra.mrb[0].mxu0 %v7254
    %v7331 = vpop.f32.mrb[0].mxu0
    %v7332 = vadd.f32 0.0, %v7331
    %v7333 = vpop.f32.mrb[0].mxu0
    %v7334 = vpop.f32.mrb[0].mxu0
    %v7335 = vadd.f32 0.0, %v7334
    %v7336 = vpop.f32.mrb[0].mxu0
    %7337 = vmatprep.mubr.bf16.mxu0 0
    %7338 = vmatmul.mubr.bf16.gmra.mrb[0].mxu0 %v7257
    %v7339 = vpop.f32.mrb[0].mxu0
    %v7340 = vadd.f32 0.0, %v7339
    %v7341 = vpop.f32.mrb[0].mxu0
    %v7342 = vpop.f32.mrb[0].mxu0
    %v7343 = vadd.f32 0.0, %v7342
    %v7344 = vpop.f32.mrb[0].mxu0
    %7345 = vmatprep.mubr.bf16.mxu0 0
    %7346 = vmatmul.mubr.bf16.gmra.mrb[0].mxu0 %v7260
    %v7347 = vpop.f32.mrb[0].mxu0
    %v7348 = vadd.f32 0.0, %v7347
    %v7349 = vpop.f32.mrb[0].mxu0
    %v7350 = vpop.f32.mrb[0].mxu0
    %v7351 = vadd.f32 0.0, %v7350
    %v7352 = vpop.f32.mrb[0].mxu0
    %7353 = vmatprep.mubr.bf16.mxu0 0
    %7354 = vmatmul.mubr.bf16.gmra.mrb[0].mxu0 %v7263
    %v7355 = vpop.f32.mrb[0].mxu0
    %v7356 = vadd.f32 0.0, %v7355
    %v7357 = vpop.f32.mrb[0].mxu0
    %v7358 = vpop.f32.mrb[0].mxu0
    %v7359 = vadd.f32 0.0, %v7358
    %v7360 = vpop.f32.mrb[0].mxu0
    %7361 = vdwg.mxu0
    %v7362 = vadd.f32 %v4619, %v7300
    %v7363 = vadd.f32 %v4622, %v7303
    %v7364 = vadd.f32 %v4627, %v7308
    %v7365 = vadd.f32 %v4630, %v7311
    %v7366 = vadd.f32 %v4635, %v7316
    %v7367 = vadd.f32 %v4638, %v7319
    %v7368 = vadd.f32 %v4643, %v7324
    %v7369 = vadd.f32 %v4646, %v7327
    %v7370 = vadd.f32 %v4651, %v7332
    %v7371 = vadd.f32 %v4654, %v7335
    %v7372 = vadd.f32 %v4659, %v7340
    %v7373 = vadd.f32 %v4662, %v7343
    %v7374 = vadd.f32 %v4667, %v7348
    %v7375 = vadd.f32 %v4670, %v7351
    %v7376 = vadd.f32 %v4675, %v7356
    %v7377 = vadd.f32 %v4678, %v7359
    %v7378 = vtanh.pop %v7362
    %v7379 = vtanh.pop %v7363
    %v7380 = vtanh.pop %v7364
    %v7381 = vtanh.pop %v7365
    %v7382 = vtanh.pop %v7366
    %v7383 = vtanh.pop %v7367
    %v7384 = vtanh.pop %v7368
    %v7385 = vtanh.pop %v7369
    %v7386 = vtanh.pop %v7370
    %v7387 = vtanh.pop %v7371
    %v7388 = vtanh.pop %v7372
    %v7389 = vtanh.pop %v7373
    %v7390 = vtanh.pop %v7374
    %v7391 = vtanh.pop %v7375
    %v7392 = vtanh.pop %v7376
    %v7393 = vtanh.pop %v7377
    %v7394 = vmul.f32 %v7378, %v4814
    %v7395 = vmul.f32 %v7379, %v4814
    %v7396 = vmul.f32 %v7380, %v4814
    %v7397 = vmul.f32 %v7381, %v4814
    %v7398 = vmul.f32 %v7382, %v4814
    %v7399 = vmul.f32 %v7383, %v4814
    %v7400 = vmul.f32 %v7384, %v4814
    %v7401 = vmul.f32 %v7385, %v4814
    %v7402 = vmul.f32 %v7386, %v4814
    %v7403 = vmul.f32 %v7387, %v4814
    %v7404 = vmul.f32 %v7388, %v4814
    %v7405 = vmul.f32 %v7389, %v4814
    %v7406 = vmul.f32 %v7390, %v4814
    %v7407 = vmul.f32 %v7391, %v4814
    %v7408 = vmul.f32 %v7392, %v4814
    %v7409 = vmul.f32 %v7393, %v4814
    %v7410 = vadd.f32 %v7394, %v4815
    %v7411 = vadd.f32 %v7395, %v4815
    %v7412 = vadd.f32 %v7396, %v4815
    %v7413 = vadd.f32 %v7397, %v4815
    %v7414 = vadd.f32 %v7398, %v4815
    %v7415 = vadd.f32 %v7399, %v4815
    %v7416 = vadd.f32 %v7400, %v4815
    %v7417 = vadd.f32 %v7401, %v4815
    %v7418 = vadd.f32 %v7402, %v4815
    %v7419 = vadd.f32 %v7403, %v4815
    %v7420 = vadd.f32 %v7404, %v4815
    %v7421 = vadd.f32 %v7405, %v4815
    %v7422 = vadd.f32 %v7406, %v4815
    %v7423 = vadd.f32 %v7407, %v4815
    %v7424 = vadd.f32 %v7408, %v4815
    %v7425 = vadd.f32 %v7409, %v4815
    %v7426 = vmul.f32 %v7410, %v7097
    %v7427 = vmul.f32 %v7411, %v7098
    %v7428 = vmul.f32 %v7412, %v7099
    %v7429 = vmul.f32 %v7413, %v7100
    %v7430 = vmul.f32 %v7414, %v7101
    %v7431 = vmul.f32 %v7415, %v7102
    %v7432 = vmul.f32 %v7416, %v7103
    %v7433 = vmul.f32 %v7417, %v7104
    %v7434 = vmul.f32 %v7418, %v7105
    %v7435 = vmul.f32 %v7419, %v7106
    %v7436 = vmul.f32 %v7420, %v7107
    %v7437 = vmul.f32 %v7421, %v7108
    %v7438 = vmul.f32 %v7422, %v7109
    %v7439 = vmul.f32 %v7423, %v7110
    %v7440 = vmul.f32 %v7424, %v7111
    %v7441 = vmul.f32 %v7425, %v7112
    %7458 = vrot.lane.b32.xlu0 %v7410, 64
    %v7459 = vpop.permute.xlu0 %7458
    %7460 = vrot.lane.b32.xlu0 %v7411, 64
    %v7461 = vpop.permute.xlu0 %7460
    %7462 = vrot.lane.b32.xlu0 %v7412, 64
    %v7463 = vpop.permute.xlu0 %7462
    %7464 = vrot.lane.b32.xlu0 %v7413, 64
    %v7465 = vpop.permute.xlu0 %7464
    %7466 = vrot.lane.b32.xlu0 %v7414, 64
    %v7467 = vpop.permute.xlu0 %7466
    %7468 = vrot.lane.b32.xlu0 %v7415, 64
    %v7469 = vpop.permute.xlu0 %7468
    %7470 = vrot.lane.b32.xlu0 %v7416, 64
    %v7471 = vpop.permute.xlu0 %7470
    %7472 = vrot.lane.b32.xlu0 %v7417, 64
    %v7473 = vpop.permute.xlu0 %7472
    %7474 = vrot.lane.b32.xlu0 %v7418, 64
    %v7475 = vpop.permute.xlu0 %7474
    %7476 = vrot.lane.b32.xlu0 %v7419, 64
    %v7477 = vpop.permute.xlu0 %7476
    %7478 = vrot.lane.b32.xlu0 %v7420, 64
    %v7479 = vpop.permute.xlu0 %7478
    %7480 = vrot.lane.b32.xlu0 %v7421, 64
    %v7481 = vpop.permute.xlu0 %7480
    %7482 = vrot.lane.b32.xlu0 %v7422, 64
    %v7483 = vpop.permute.xlu0 %7482
    %7484 = vrot.lane.b32.xlu0 %v7423, 64
    %v7485 = vpop.permute.xlu0 %7484
    %7486 = vrot.lane.b32.xlu0 %v7424, 64
    %v7487 = vpop.permute.xlu0 %7486
    %7488 = vrot.lane.b32.xlu0 %v7425, 64
    %v7489 = vpop.permute.xlu0 %7488
    %v7506 = vmul.f32 %v7410, %v7459
    %v7507 = vmul.f32 %v7411, %v7461
    %v7508 = vmul.f32 %v7412, %v7463
    %v7509 = vmul.f32 %v7413, %v7465
    %v7510 = vmul.f32 %v7414, %v7467
    %v7511 = vmul.f32 %v7415, %v7469
    %v7512 = vmul.f32 %v7416, %v7471
    %v7513 = vmul.f32 %v7417, %v7473
    %v7514 = vmul.f32 %v7418, %v7475
    %v7515 = vmul.f32 %v7419, %v7477
    %v7516 = vmul.f32 %v7420, %v7479
    %v7517 = vmul.f32 %v7421, %v7481
    %v7518 = vmul.f32 %v7422, %v7483
    %v7519 = vmul.f32 %v7423, %v7485
    %v7520 = vmul.f32 %v7424, %v7487
    %v7521 = vmul.f32 %v7425, %v7489
    %7538 = vrot.lane.b32.xlu0 %v7506, 32
    %v7539 = vpop.permute.xlu0 %7538
    %7540 = vrot.lane.b32.xlu0 %v7507, 32
    %v7541 = vpop.permute.xlu0 %7540
    %7542 = vrot.lane.b32.xlu0 %v7508, 32
    %v7543 = vpop.permute.xlu0 %7542
    %7544 = vrot.lane.b32.xlu0 %v7509, 32
    %v7545 = vpop.permute.xlu0 %7544
    %7546 = vrot.lane.b32.xlu0 %v7510, 32
    %v7547 = vpop.permute.xlu0 %7546
    %7548 = vrot.lane.b32.xlu0 %v7511, 32
    %v7549 = vpop.permute.xlu0 %7548
    %7550 = vrot.lane.b32.xlu0 %v7512, 32
    %v7551 = vpop.permute.xlu0 %7550
    %7552 = vrot.lane.b32.xlu0 %v7513, 32
    %v7553 = vpop.permute.xlu0 %7552
    %7554 = vrot.lane.b32.xlu0 %v7514, 32
    %v7555 = vpop.permute.xlu0 %7554
    %7556 = vrot.lane.b32.xlu0 %v7515, 32
    %v7557 = vpop.permute.xlu0 %7556
    %7558 = vrot.lane.b32.xlu0 %v7516, 32
    %v7559 = vpop.permute.xlu0 %7558
    %7560 = vrot.lane.b32.xlu0 %v7517, 32
    %v7561 = vpop.permute.xlu0 %7560
    %7562 = vrot.lane.b32.xlu0 %v7518, 32
    %v7563 = vpop.permute.xlu0 %7562
    %7564 = vrot.lane.b32.xlu0 %v7519, 32
    %v7565 = vpop.permute.xlu0 %7564
    %7566 = vrot.lane.b32.xlu0 %v7520, 32
    %v7567 = vpop.permute.xlu0 %7566
    %7568 = vrot.lane.b32.xlu0 %v7521, 32
    %v7569 = vpop.permute.xlu0 %7568
    %v7586 = vadd.f32 %v7426, %v7539
    %v7587 = vadd.f32 %v7427, %v7541
    %v7588 = vadd.f32 %v7428, %v7543
    %v7589 = vadd.f32 %v7429, %v7545
    %v7590 = vadd.f32 %v7430, %v7547
    %v7591 = vadd.f32 %v7431, %v7549
    %v7592 = vadd.f32 %v7432, %v7551
    %v7593 = vadd.f32 %v7433, %v7553
    %v7594 = vadd.f32 %v7434, %v7555
    %v7595 = vadd.f32 %v7435, %v7557
    %v7596 = vadd.f32 %v7436, %v7559
    %v7597 = vadd.f32 %v7437, %v7561
    %v7598 = vadd.f32 %v7438, %v7563
    %v7599 = vadd.f32 %v7439, %v7565
    %v7600 = vadd.f32 %v7440, %v7567
    %v7601 = vadd.f32 %v7441, %v7569
    %v7602 = vtanh.pop %v7586
    %v7603 = vtanh.pop %v7587
    %v7604 = vtanh.pop %v7588
    %v7605 = vtanh.pop %v7589
    %v7606 = vtanh.pop %v7590
    %v7607 = vtanh.pop %v7591
    %v7608 = vtanh.pop %v7592
    %v7609 = vtanh.pop %v7593
    %v7610 = vtanh.pop %v7594
    %v7611 = vtanh.pop %v7595
    %v7612 = vtanh.pop %v7596
    %v7613 = vtanh.pop %v7597
    %v7614 = vtanh.pop %v7598
    %v7615 = vtanh.pop %v7599
    %v7616 = vtanh.pop %v7600
    %v7617 = vtanh.pop %v7601
    %7634 = vrot.lane.b32.xlu0 %v7602, 64
    %v7635 = vpop.permute.xlu0 %7634
    %7636 = vrot.lane.b32.xlu0 %v7603, 64
    %v7637 = vpop.permute.xlu0 %7636
    %7638 = vrot.lane.b32.xlu0 %v7604, 64
    %v7639 = vpop.permute.xlu0 %7638
    %7640 = vrot.lane.b32.xlu0 %v7605, 64
    %v7641 = vpop.permute.xlu0 %7640
    %7642 = vrot.lane.b32.xlu0 %v7606, 64
    %v7643 = vpop.permute.xlu0 %7642
    %7644 = vrot.lane.b32.xlu0 %v7607, 64
    %v7645 = vpop.permute.xlu0 %7644
    %7646 = vrot.lane.b32.xlu0 %v7608, 64
    %v7647 = vpop.permute.xlu0 %7646
    %7648 = vrot.lane.b32.xlu0 %v7609, 64
    %v7649 = vpop.permute.xlu0 %7648
    %7650 = vrot.lane.b32.xlu0 %v7610, 64
    %v7651 = vpop.permute.xlu0 %7650
    %7652 = vrot.lane.b32.xlu0 %v7611, 64
    %v7653 = vpop.permute.xlu0 %7652
    %7654 = vrot.lane.b32.xlu0 %v7612, 64
    %v7655 = vpop.permute.xlu0 %7654
    %7656 = vrot.lane.b32.xlu0 %v7613, 64
    %v7657 = vpop.permute.xlu0 %7656
    %7658 = vrot.lane.b32.xlu0 %v7614, 64
    %v7659 = vpop.permute.xlu0 %7658
    %7660 = vrot.lane.b32.xlu0 %v7615, 64
    %v7661 = vpop.permute.xlu0 %7660
    %7662 = vrot.lane.b32.xlu0 %v7616, 64
    %v7663 = vpop.permute.xlu0 %7662
    %7664 = vrot.lane.b32.xlu0 %v7617, 64
    %v7665 = vpop.permute.xlu0 %7664
    %v7682 = vmul.f32 %v7410, %v7635
    %v7683 = vmul.f32 %v7411, %v7637
    %v7684 = vmul.f32 %v7412, %v7639
    %v7685 = vmul.f32 %v7413, %v7641
    %v7686 = vmul.f32 %v7414, %v7643
    %v7687 = vmul.f32 %v7415, %v7645
    %v7688 = vmul.f32 %v7416, %v7647
    %v7689 = vmul.f32 %v7417, %v7649
    %v7690 = vmul.f32 %v7418, %v7651
    %v7691 = vmul.f32 %v7419, %v7653
    %v7692 = vmul.f32 %v7420, %v7655
    %v7693 = vmul.f32 %v7421, %v7657
    %v7694 = vmul.f32 %v7422, %v7659
    %v7695 = vmul.f32 %v7423, %v7661
    %v7696 = vmul.f32 %v7424, %v7663
    %v7697 = vmul.f32 %v7425, %v7665
    %v7698 = vpack.c.bf16 %v7683, %v7682
    %v7699 = vpack.c.bf16 %v7685, %v7684
    %v7700 = vpack.c.bf16 %v7687, %v7686
    %v7701 = vpack.c.bf16 %v7689, %v7688
    %v7702 = vpack.c.bf16 %v7691, %v7690
    %v7703 = vpack.c.bf16 %v7693, %v7692
    %v7704 = vpack.c.bf16 %v7695, %v7694
    %v7705 = vpack.c.bf16 %v7697, %v7696
    %7714 = vrot.lane.b32.xlu0 %v7698, 32
    %v7715 = vpop.permute.xlu0 %7714
    %7716 = vrot.lane.b32.xlu0 %v7699, 32
    %v7717 = vpop.permute.xlu0 %7716
    %7718 = vrot.lane.b32.xlu0 %v7700, 32
    %v7719 = vpop.permute.xlu0 %7718
    %7720 = vrot.lane.b32.xlu0 %v7701, 32
    %v7721 = vpop.permute.xlu0 %7720
    %7722 = vrot.lane.b32.xlu0 %v7702, 32
    %v7723 = vpop.permute.xlu0 %7722
    %7724 = vrot.lane.b32.xlu0 %v7703, 32
    %v7725 = vpop.permute.xlu0 %7724
    %7726 = vrot.lane.b32.xlu0 %v7704, 32
    %v7727 = vpop.permute.xlu0 %7726
    %7728 = vrot.lane.b32.xlu0 %v7705, 32
    %v7729 = vpop.permute.xlu0 %7728
    %v7731 = vsel %vm4816, %v7715, 0
    %v7734 = vsel %vm4816, %v7717, 0
    %v7737 = vsel %vm4816, %v7719, 0
    %v7740 = vsel %vm4816, %v7721, 0
    %v7743 = vsel %vm4816, %v7723, 0
    %v7746 = vsel %vm4816, %v7725, 0
    %v7749 = vsel %vm4816, %v7727, 0
    %v7752 = vsel %vm4816, %v7729, 0
    %7754 = vmatprep.subr.bf16.mxu0 0
    %7755 = vmatpush1.bf16.msra.mxu0 %v20
    %7756 = vmatprep.subr.bf16.mxu0 0
    %7757 = vmatpush1.bf16.msra.mxu0 %v21
    %7758 = vmatprep.subr.bf16.mxu0 0
    %7759 = vmatpush1.bf16.msra.mxu0 0
    %7760 = vmatprep.subr.bf16.mxu0 0
    %7761 = vmatpush1.bf16.msra.mxu0 0
    %7762 = vmatprep.subr.bf16.mxu0 0
    %7763 = vmatpush1.bf16.msra.mxu0 0
    %7764 = vmatprep.subr.bf16.mxu0 0
    %7765 = vmatpush1.bf16.msra.mxu0 0
    %7766 = vmatprep.subr.bf16.mxu0 0
    %7767 = vmatpush1.bf16.msra.mxu0 0
    %7768 = vmatprep.subr.bf16.mxu0 0
    %7769 = vmatpush1.bf16.msra.mxu0 0
    %7770 = vmatprep.subr.bf16.mxu0 0
    %7771 = vmatpush1.bf16.msra.mxu0 0
    %7772 = vmatprep.subr.bf16.mxu0 0
    %7773 = vmatpush1.bf16.msra.mxu0 0
    %7774 = vmatprep.subr.bf16.mxu0 0
    %7775 = vmatpush1.bf16.msra.mxu0 0
    %7776 = vmatprep.subr.bf16.mxu0 0
    %7777 = vmatpush1.bf16.msra.mxu0 0
    %7778 = vmatprep.subr.bf16.mxu0 0
    %7779 = vmatpush1.bf16.msra.mxu0 0
    %7780 = vmatprep.subr.bf16.mxu0 0
    %7781 = vmatpush1.bf16.msra.mxu0 0
    %7782 = vmatprep.subr.bf16.mxu0 0
    %7783 = vmatpush1.bf16.msra.mxu0 0
    %7784 = vmatprep.subr.bf16.mxu0 0
    %7785 = vmatpush1.bf16.msra.mxu0 0
    %7786 = vmatprep.mubr.bf16.mxu0 0
    %7787 = vmatmul.mubr.bf16.gmra.mrb[0].mxu0 %v7731
    %v7788 = vpop.f32.mrb[0].mxu0
    %v7789 = vadd.f32 0.0, %v7788
    %v7790 = vpop.f32.mrb[0].mxu0
    %v7791 = vpop.f32.mrb[0].mxu0
    %v7792 = vadd.f32 0.0, %v7791
    %v7793 = vpop.f32.mrb[0].mxu0
    %7794 = vmatprep.mubr.bf16.mxu0 0
    %7795 = vmatmul.mubr.bf16.gmra.mrb[0].mxu0 %v7734
    %v7796 = vpop.f32.mrb[0].mxu0
    %v7797 = vadd.f32 0.0, %v7796
    %v7798 = vpop.f32.mrb[0].mxu0
    %v7799 = vpop.f32.mrb[0].mxu0
    %v7800 = vadd.f32 0.0, %v7799
    %v7801 = vpop.f32.mrb[0].mxu0
    %7802 = vmatprep.mubr.bf16.mxu0 0
    %7803 = vmatmul.mubr.bf16.gmra.mrb[0].mxu0 %v7737
    %v7804 = vpop.f32.mrb[0].mxu0
    %v7805 = vadd.f32 0.0, %v7804
    %v7806 = vpop.f32.mrb[0].mxu0
    %v7807 = vpop.f32.mrb[0].mxu0
    %v7808 = vadd.f32 0.0, %v7807
    %v7809 = vpop.f32.mrb[0].mxu0
    %7810 = vmatprep.mubr.bf16.mxu0 0
    %7811 = vmatmul.mubr.bf16.gmra.mrb[0].mxu0 %v7740
    %v7812 = vpop.f32.mrb[0].mxu0
    %v7813 = vadd.f32 0.0, %v7812
    %v7814 = vpop.f32.mrb[0].mxu0
    %v7815 = vpop.f32.mrb[0].mxu0
    %v7816 = vadd.f32 0.0, %v7815
    %v7817 = vpop.f32.mrb[0].mxu0
    %7818 = vmatprep.mubr.bf16.mxu0 0
    %7819 = vmatmul.mubr.bf16.gmra.mrb[0].mxu0 %v7743
    %v7820 = vpop.f32.mrb[0].mxu0
    %v7821 = vadd.f32 0.0, %v7820
    %v7822 = vpop.f32.mrb[0].mxu0
    %v7823 = vpop.f32.mrb[0].mxu0
    %v7824 = vadd.f32 0.0, %v7823
    %v7825 = vpop.f32.mrb[0].mxu0
    %7826 = vmatprep.mubr.bf16.mxu0 0
    %7827 = vmatmul.mubr.bf16.gmra.mrb[0].mxu0 %v7746
    %v7828 = vpop.f32.mrb[0].mxu0
    %v7829 = vadd.f32 0.0, %v7828
    %v7830 = vpop.f32.mrb[0].mxu0
    %v7831 = vpop.f32.mrb[0].mxu0
    %v7832 = vadd.f32 0.0, %v7831
    %v7833 = vpop.f32.mrb[0].mxu0
    %7834 = vmatprep.mubr.bf16.mxu0 0
    %7835 = vmatmul.mubr.bf16.gmra.mrb[0].mxu0 %v7749
    %v7836 = vpop.f32.mrb[0].mxu0
    %v7837 = vadd.f32 0.0, %v7836
    %v7838 = vpop.f32.mrb[0].mxu0
    %v7839 = vpop.f32.mrb[0].mxu0
    %v7840 = vadd.f32 0.0, %v7839
    %v7841 = vpop.f32.mrb[0].mxu0
    %7842 = vmatprep.mubr.bf16.mxu0 0
    %7843 = vmatmul.mubr.bf16.gmra.mrb[0].mxu0 %v7752
    %v7844 = vpop.f32.mrb[0].mxu0
    %v7845 = vadd.f32 0.0, %v7844
    %v7846 = vpop.f32.mrb[0].mxu0
    %v7847 = vpop.f32.mrb[0].mxu0
    %v7848 = vadd.f32 0.0, %v7847
    %v7849 = vpop.f32.mrb[0].mxu0
    %7850 = vdwg.mxu0
    %v7851 = vadd.f32 %v4683, %v7789
    %v7852 = vadd.f32 %v4686, %v7792
    %v7853 = vadd.f32 %v4691, %v7797
    %v7854 = vadd.f32 %v4694, %v7800
    %v7855 = vadd.f32 %v4699, %v7805
    %v7856 = vadd.f32 %v4702, %v7808
    %v7857 = vadd.f32 %v4707, %v7813
    %v7858 = vadd.f32 %v4710, %v7816
    %v7859 = vadd.f32 %v4715, %v7821
    %v7860 = vadd.f32 %v4718, %v7824
    %v7861 = vadd.f32 %v4723, %v7829
    %v7862 = vadd.f32 %v4726, %v7832
    %v7863 = vadd.f32 %v4731, %v7837
    %v7864 = vadd.f32 %v4734, %v7840
    %v7865 = vadd.f32 %v4739, %v7845
    %v7866 = vadd.f32 %v4742, %v7848
    %v7867 = vtanh.pop %v7851
    %v7868 = vtanh.pop %v7852
    %v7869 = vtanh.pop %v7853
    %v7870 = vtanh.pop %v7854
    %v7871 = vtanh.pop %v7855
    %v7872 = vtanh.pop %v7856
    %v7873 = vtanh.pop %v7857
    %v7874 = vtanh.pop %v7858
    %v7875 = vtanh.pop %v7859
    %v7876 = vtanh.pop %v7860
    %v7877 = vtanh.pop %v7861
    %v7878 = vtanh.pop %v7862
    %v7879 = vtanh.pop %v7863
    %v7880 = vtanh.pop %v7864
    %v7881 = vtanh.pop %v7865
    %v7882 = vtanh.pop %v7866
    %v7883 = vmul.f32 %v7867, %v4814
    %v7884 = vmul.f32 %v7868, %v4814
    %v7885 = vmul.f32 %v7869, %v4814
    %v7886 = vmul.f32 %v7870, %v4814
    %v7887 = vmul.f32 %v7871, %v4814
    %v7888 = vmul.f32 %v7872, %v4814
    %v7889 = vmul.f32 %v7873, %v4814
    %v7890 = vmul.f32 %v7874, %v4814
    %v7891 = vmul.f32 %v7875, %v4814
    %v7892 = vmul.f32 %v7876, %v4814
    %v7893 = vmul.f32 %v7877, %v4814
    %v7894 = vmul.f32 %v7878, %v4814
    %v7895 = vmul.f32 %v7879, %v4814
    %v7896 = vmul.f32 %v7880, %v4814
    %v7897 = vmul.f32 %v7881, %v4814
    %v7898 = vmul.f32 %v7882, %v4814
    %v7899 = vadd.f32 %v7883, %v4815
    %v7900 = vadd.f32 %v7884, %v4815
    %v7901 = vadd.f32 %v7885, %v4815
    %v7902 = vadd.f32 %v7886, %v4815
    %v7903 = vadd.f32 %v7887, %v4815
    %v7904 = vadd.f32 %v7888, %v4815
    %v7905 = vadd.f32 %v7889, %v4815
    %v7906 = vadd.f32 %v7890, %v4815
    %v7907 = vadd.f32 %v7891, %v4815
    %v7908 = vadd.f32 %v7892, %v4815
    %v7909 = vadd.f32 %v7893, %v4815
    %v7910 = vadd.f32 %v7894, %v4815
    %v7911 = vadd.f32 %v7895, %v4815
    %v7912 = vadd.f32 %v7896, %v4815
    %v7913 = vadd.f32 %v7897, %v4815
    %v7914 = vadd.f32 %v7898, %v4815
    %v7915 = vmul.f32 %v7899, %v7586
    %v7916 = vmul.f32 %v7900, %v7587
    %v7917 = vmul.f32 %v7901, %v7588
    %v7918 = vmul.f32 %v7902, %v7589
    %v7919 = vmul.f32 %v7903, %v7590
    %v7920 = vmul.f32 %v7904, %v7591
    %v7921 = vmul.f32 %v7905, %v7592
    %v7922 = vmul.f32 %v7906, %v7593
    %v7923 = vmul.f32 %v7907, %v7594
    %v7924 = vmul.f32 %v7908, %v7595
    %v7925 = vmul.f32 %v7909, %v7596
    %v7926 = vmul.f32 %v7910, %v7597
    %v7927 = vmul.f32 %v7911, %v7598
    %v7928 = vmul.f32 %v7912, %v7599
    %v7929 = vmul.f32 %v7913, %v7600
    %v7930 = vmul.f32 %v7914, %v7601
    %7947 = vrot.lane.b32.xlu0 %v7899, 64
    %v7948 = vpop.permute.xlu0 %7947
    %7949 = vrot.lane.b32.xlu0 %v7900, 64
    %v7950 = vpop.permute.xlu0 %7949
    %7951 = vrot.lane.b32.xlu0 %v7901, 64
    %v7952 = vpop.permute.xlu0 %7951
    %7953 = vrot.lane.b32.xlu0 %v7902, 64
    %v7954 = vpop.permute.xlu0 %7953
    %7955 = vrot.lane.b32.xlu0 %v7903, 64
    %v7956 = vpop.permute.xlu0 %7955
    %7957 = vrot.lane.b32.xlu0 %v7904, 64
    %v7958 = vpop.permute.xlu0 %7957
    %7959 = vrot.lane.b32.xlu0 %v7905, 64
    %v7960 = vpop.permute.xlu0 %7959
    %7961 = vrot.lane.b32.xlu0 %v7906, 64
    %v7962 = vpop.permute.xlu0 %7961
    %7963 = vrot.lane.b32.xlu0 %v7907, 64
    %v7964 = vpop.permute.xlu0 %7963
    %7965 = vrot.lane.b32.xlu0 %v7908, 64
    %v7966 = vpop.permute.xlu0 %7965
    %7967 = vrot.lane.b32.xlu0 %v7909, 64
    %v7968 = vpop.permute.xlu0 %7967
    %7969 = vrot.lane.b32.xlu0 %v7910, 64
    %v7970 = vpop.permute.xlu0 %7969
    %7971 = vrot.lane.b32.xlu0 %v7911, 64
    %v7972 = vpop.permute.xlu0 %7971
    %7973 = vrot.lane.b32.xlu0 %v7912, 64
    %v7974 = vpop.permute.xlu0 %7973
    %7975 = vrot.lane.b32.xlu0 %v7913, 64
    %v7976 = vpop.permute.xlu0 %7975
    %7977 = vrot.lane.b32.xlu0 %v7914, 64
    %v7978 = vpop.permute.xlu0 %7977
    %v7995 = vmul.f32 %v7899, %v7948
    %v7996 = vmul.f32 %v7900, %v7950
    %v7997 = vmul.f32 %v7901, %v7952
    %v7998 = vmul.f32 %v7902, %v7954
    %v7999 = vmul.f32 %v7903, %v7956
    %v8000 = vmul.f32 %v7904, %v7958
    %v8001 = vmul.f32 %v7905, %v7960
    %v8002 = vmul.f32 %v7906, %v7962
    %v8003 = vmul.f32 %v7907, %v7964
    %v8004 = vmul.f32 %v7908, %v7966
    %v8005 = vmul.f32 %v7909, %v7968
    %v8006 = vmul.f32 %v7910, %v7970
    %v8007 = vmul.f32 %v7911, %v7972
    %v8008 = vmul.f32 %v7912, %v7974
    %v8009 = vmul.f32 %v7913, %v7976
    %v8010 = vmul.f32 %v7914, %v7978
    %8027 = vrot.lane.b32.xlu0 %v7995, 32
    %v8028 = vpop.permute.xlu0 %8027
    %8029 = vrot.lane.b32.xlu0 %v7996, 32
    %v8030 = vpop.permute.xlu0 %8029
    %8031 = vrot.lane.b32.xlu0 %v7997, 32
    %v8032 = vpop.permute.xlu0 %8031
    %8033 = vrot.lane.b32.xlu0 %v7998, 32
    %v8034 = vpop.permute.xlu0 %8033
    %8035 = vrot.lane.b32.xlu0 %v7999, 32
    %v8036 = vpop.permute.xlu0 %8035
    %8037 = vrot.lane.b32.xlu0 %v8000, 32
    %v8038 = vpop.permute.xlu0 %8037
    %8039 = vrot.lane.b32.xlu0 %v8001, 32
    %v8040 = vpop.permute.xlu0 %8039
    %8041 = vrot.lane.b32.xlu0 %v8002, 32
    %v8042 = vpop.permute.xlu0 %8041
    %8043 = vrot.lane.b32.xlu0 %v8003, 32
    %v8044 = vpop.permute.xlu0 %8043
    %8045 = vrot.lane.b32.xlu0 %v8004, 32
    %v8046 = vpop.permute.xlu0 %8045
    %8047 = vrot.lane.b32.xlu0 %v8005, 32
    %v8048 = vpop.permute.xlu0 %8047
    %8049 = vrot.lane.b32.xlu0 %v8006, 32
    %v8050 = vpop.permute.xlu0 %8049
    %8051 = vrot.lane.b32.xlu0 %v8007, 32
    %v8052 = vpop.permute.xlu0 %8051
    %8053 = vrot.lane.b32.xlu0 %v8008, 32
    %v8054 = vpop.permute.xlu0 %8053
    %8055 = vrot.lane.b32.xlu0 %v8009, 32
    %v8056 = vpop.permute.xlu0 %8055
    %8057 = vrot.lane.b32.xlu0 %v8010, 32
    %v8058 = vpop.permute.xlu0 %8057
    %v8075 = vadd.f32 %v7915, %v8028
    %v8076 = vadd.f32 %v7916, %v8030
    %v8077 = vadd.f32 %v7917, %v8032
    %v8078 = vadd.f32 %v7918, %v8034
    %v8079 = vadd.f32 %v7919, %v8036
    %v8080 = vadd.f32 %v7920, %v8038
    %v8081 = vadd.f32 %v7921, %v8040
    %v8082 = vadd.f32 %v7922, %v8042
    %v8083 = vadd.f32 %v7923, %v8044
    %v8084 = vadd.f32 %v7924, %v8046
    %v8085 = vadd.f32 %v7925, %v8048
    %v8086 = vadd.f32 %v7926, %v8050
    %v8087 = vadd.f32 %v7927, %v8052
    %v8088 = vadd.f32 %v7928, %v8054
    %v8089 = vadd.f32 %v7929, %v8056
    %v8090 = vadd.f32 %v7930, %v8058
    %v8091 = vtanh.pop %v8075
    %v8092 = vtanh.pop %v8076
    %v8093 = vtanh.pop %v8077
    %v8094 = vtanh.pop %v8078
    %v8095 = vtanh.pop %v8079
    %v8096 = vtanh.pop %v8080
    %v8097 = vtanh.pop %v8081
    %v8098 = vtanh.pop %v8082
    %v8099 = vtanh.pop %v8083
    %v8100 = vtanh.pop %v8084
    %v8101 = vtanh.pop %v8085
    %v8102 = vtanh.pop %v8086
    %v8103 = vtanh.pop %v8087
    %v8104 = vtanh.pop %v8088
    %v8105 = vtanh.pop %v8089
    %v8106 = vtanh.pop %v8090
    %8123 = vrot.lane.b32.xlu0 %v8091, 64
    %v8124 = vpop.permute.xlu0 %8123
    %8125 = vrot.lane.b32.xlu0 %v8092, 64
    %v8126 = vpop.permute.xlu0 %8125
    %8127 = vrot.lane.b32.xlu0 %v8093, 64
    %v8128 = vpop.permute.xlu0 %8127
    %8129 = vrot.lane.b32.xlu0 %v8094, 64
    %v8130 = vpop.permute.xlu0 %8129
    %8131 = vrot.lane.b32.xlu0 %v8095, 64
    %v8132 = vpop.permute.xlu0 %8131
    %8133 = vrot.lane.b32.xlu0 %v8096, 64
    %v8134 = vpop.permute.xlu0 %8133
    %8135 = vrot.lane.b32.xlu0 %v8097, 64
    %v8136 = vpop.permute.xlu0 %8135
    %8137 = vrot.lane.b32.xlu0 %v8098, 64
    %v8138 = vpop.permute.xlu0 %8137
    %8139 = vrot.lane.b32.xlu0 %v8099, 64
    %v8140 = vpop.permute.xlu0 %8139
    %8141 = vrot.lane.b32.xlu0 %v8100, 64
    %v8142 = vpop.permute.xlu0 %8141
    %8143 = vrot.lane.b32.xlu0 %v8101, 64
    %v8144 = vpop.permute.xlu0 %8143
    %8145 = vrot.lane.b32.xlu0 %v8102, 64
    %v8146 = vpop.permute.xlu0 %8145
    %8147 = vrot.lane.b32.xlu0 %v8103, 64
    %v8148 = vpop.permute.xlu0 %8147
    %8149 = vrot.lane.b32.xlu0 %v8104, 64
    %v8150 = vpop.permute.xlu0 %8149
    %8151 = vrot.lane.b32.xlu0 %v8105, 64
    %v8152 = vpop.permute.xlu0 %8151
    %8153 = vrot.lane.b32.xlu0 %v8106, 64
    %v8154 = vpop.permute.xlu0 %8153
    %v8171 = vmul.f32 %v7899, %v8124
    %v8172 = vmul.f32 %v7900, %v8126
    %v8173 = vmul.f32 %v7901, %v8128
    %v8174 = vmul.f32 %v7902, %v8130
    %v8175 = vmul.f32 %v7903, %v8132
    %v8176 = vmul.f32 %v7904, %v8134
    %v8177 = vmul.f32 %v7905, %v8136
    %v8178 = vmul.f32 %v7906, %v8138
    %v8179 = vmul.f32 %v7907, %v8140
    %v8180 = vmul.f32 %v7908, %v8142
    %v8181 = vmul.f32 %v7909, %v8144
    %v8182 = vmul.f32 %v7910, %v8146
    %v8183 = vmul.f32 %v7911, %v8148
    %v8184 = vmul.f32 %v7912, %v8150
    %v8185 = vmul.f32 %v7913, %v8152
    %v8186 = vmul.f32 %v7914, %v8154
    %v8187 = vpack.c.bf16 %v8172, %v8171
    %v8188 = vpack.c.bf16 %v8174, %v8173
    %v8189 = vpack.c.bf16 %v8176, %v8175
    %v8190 = vpack.c.bf16 %v8178, %v8177
    %v8191 = vpack.c.bf16 %v8180, %v8179
    %v8192 = vpack.c.bf16 %v8182, %v8181
    %v8193 = vpack.c.bf16 %v8184, %v8183
    %v8194 = vpack.c.bf16 %v8186, %v8185
    %8203 = vrot.lane.b32.xlu0 %v8187, 32
    %v8204 = vpop.permute.xlu0 %8203
    %8205 = vrot.lane.b32.xlu0 %v8188, 32
    %v8206 = vpop.permute.xlu0 %8205
    %8207 = vrot.lane.b32.xlu0 %v8189, 32
    %v8208 = vpop.permute.xlu0 %8207
    %8209 = vrot.lane.b32.xlu0 %v8190, 32
    %v8210 = vpop.permute.xlu0 %8209
    %8211 = vrot.lane.b32.xlu0 %v8191, 32
    %v8212 = vpop.permute.xlu0 %8211
    %8213 = vrot.lane.b32.xlu0 %v8192, 32
    %v8214 = vpop.permute.xlu0 %8213
    %8215 = vrot.lane.b32.xlu0 %v8193, 32
    %v8216 = vpop.permute.xlu0 %8215
    %8217 = vrot.lane.b32.xlu0 %v8194, 32
    %v8218 = vpop.permute.xlu0 %8217
    %v8220 = vsel %vm4816, %v8204, 0
    %v8223 = vsel %vm4816, %v8206, 0
    %v8226 = vsel %vm4816, %v8208, 0
    %v8229 = vsel %vm4816, %v8210, 0
    %v8232 = vsel %vm4816, %v8212, 0
    %v8235 = vsel %vm4816, %v8214, 0
    %v8238 = vsel %vm4816, %v8216, 0
    %v8241 = vsel %vm4816, %v8218, 0
    %8243 = vmatprep.subr.bf16.mxu0 0
    %8244 = vmatpush1.bf16.msra.mxu0 %v20
    %8245 = vmatprep.subr.bf16.mxu0 0
    %8246 = vmatpush1.bf16.msra.mxu0 %v21
    %8247 = vmatprep.subr.bf16.mxu0 0
    %8248 = vmatpush1.bf16.msra.mxu0 0
    %8249 = vmatprep.subr.bf16.mxu0 0
    %8250 = vmatpush1.bf16.msra.mxu0 0
    %8251 = vmatprep.subr.bf16.mxu0 0
    %8252 = vmatpush1.bf16.msra.mxu0 0
    %8253 = vmatprep.subr.bf16.mxu0 0
    %8254 = vmatpush1.bf16.msra.mxu0 0
    %8255 = vmatprep.subr.bf16.mxu0 0
    %8256 = vmatpush1.bf16.msra.mxu0 0
    %8257 = vmatprep.subr.bf16.mxu0 0
    %8258 = vmatpush1.bf16.msra.mxu0 0
    %8259 = vmatprep.subr.bf16.mxu0 0
    %8260 = vmatpush1.bf16.msra.mxu0 0
    %8261 = vmatprep.subr.bf16.mxu0 0
    %8262 = vmatpush1.bf16.msra.mxu0 0
    %8263 = vmatprep.subr.bf16.mxu0 0
    %8264 = vmatpush1.bf16.msra.mxu0 0
    %8265 = vmatprep.subr.bf16.mxu0 0
    %8266 = vmatpush1.bf16.msra.mxu0 0
    %8267 = vmatprep.subr.bf16.mxu0 0
    %8268 = vmatpush1.bf16.msra.mxu0 0
    %8269 = vmatprep.subr.bf16.mxu0 0
    %8270 = vmatpush1.bf16.msra.mxu0 0
    %8271 = vmatprep.subr.bf16.mxu0 0
    %8272 = vmatpush1.bf16.msra.mxu0 0
    %8273 = vmatprep.subr.bf16.mxu0 0
    %8274 = vmatpush1.bf16.msra.mxu0 0
    %8275 = vmatprep.mubr.bf16.mxu0 0
    %8276 = vmatmul.mubr.bf16.gmra.mrb[0].mxu0 %v8220
    %v8277 = vpop.f32.mrb[0].mxu0
    %v8278 = vadd.f32 0.0, %v8277
    %v8279 = vpop.f32.mrb[0].mxu0
    %v8280 = vpop.f32.mrb[0].mxu0
    %v8281 = vadd.f32 0.0, %v8280
    %v8282 = vpop.f32.mrb[0].mxu0
    %8283 = vmatprep.mubr.bf16.mxu0 0
    %8284 = vmatmul.mubr.bf16.gmra.mrb[0].mxu0 %v8223
    %v8285 = vpop.f32.mrb[0].mxu0
    %v8286 = vadd.f32 0.0, %v8285
    %v8287 = vpop.f32.mrb[0].mxu0
    %v8288 = vpop.f32.mrb[0].mxu0
    %v8289 = vadd.f32 0.0, %v8288
    %v8290 = vpop.f32.mrb[0].mxu0
    %8291 = vmatprep.mubr.bf16.mxu0 0
    %8292 = vmatmul.mubr.bf16.gmra.mrb[0].mxu0 %v8226
    %v8293 = vpop.f32.mrb[0].mxu0
    %v8294 = vadd.f32 0.0, %v8293
    %v8295 = vpop.f32.mrb[0].mxu0
    %v8296 = vpop.f32.mrb[0].mxu0
    %v8297 = vadd.f32 0.0, %v8296
    %v8298 = vpop.f32.mrb[0].mxu0
    %8299 = vmatprep.mubr.bf16.mxu0 0
    %8300 = vmatmul.mubr.bf16.gmra.mrb[0].mxu0 %v8229
    %v8301 = vpop.f32.mrb[0].mxu0
    %v8302 = vadd.f32 0.0, %v8301
    %v8303 = vpop.f32.mrb[0].mxu0
    %v8304 = vpop.f32.mrb[0].mxu0
    %v8305 = vadd.f32 0.0, %v8304
    %v8306 = vpop.f32.mrb[0].mxu0
    %8307 = vmatprep.mubr.bf16.mxu0 0
    %8308 = vmatmul.mubr.bf16.gmra.mrb[0].mxu0 %v8232
    %v8309 = vpop.f32.mrb[0].mxu0
    %v8310 = vadd.f32 0.0, %v8309
    %v8311 = vpop.f32.mrb[0].mxu0
    %v8312 = vpop.f32.mrb[0].mxu0
    %v8313 = vadd.f32 0.0, %v8312
    %v8314 = vpop.f32.mrb[0].mxu0
    %8315 = vmatprep.mubr.bf16.mxu0 0
    %8316 = vmatmul.mubr.bf16.gmra.mrb[0].mxu0 %v8235
    %v8317 = vpop.f32.mrb[0].mxu0
    %v8318 = vadd.f32 0.0, %v8317
    %v8319 = vpop.f32.mrb[0].mxu0
    %v8320 = vpop.f32.mrb[0].mxu0
    %v8321 = vadd.f32 0.0, %v8320
    %v8322 = vpop.f32.mrb[0].mxu0
    %8323 = vmatprep.mubr.bf16.mxu0 0
    %8324 = vmatmul.mubr.bf16.gmra.mrb[0].mxu0 %v8238
    %v8325 = vpop.f32.mrb[0].mxu0
    %v8326 = vadd.f32 0.0, %v8325
    %v8327 = vpop.f32.mrb[0].mxu0
    %v8328 = vpop.f32.mrb[0].mxu0
    %v8329 = vadd.f32 0.0, %v8328
    %v8330 = vpop.f32.mrb[0].mxu0
    %8331 = vmatprep.mubr.bf16.mxu0 0
    %8332 = vmatmul.mubr.bf16.gmra.mrb[0].mxu0 %v8241
    %v8333 = vpop.f32.mrb[0].mxu0
    %v8334 = vadd.f32 0.0, %v8333
    %v8335 = vpop.f32.mrb[0].mxu0
    %v8336 = vpop.f32.mrb[0].mxu0
    %v8337 = vadd.f32 0.0, %v8336
    %v8338 = vpop.f32.mrb[0].mxu0
    %8339 = vdwg.mxu0
    %v8340 = vadd.f32 %v4747, %v8278
    %v8341 = vadd.f32 %v4750, %v8281
    %v8342 = vadd.f32 %v4755, %v8286
    %v8343 = vadd.f32 %v4758, %v8289
    %v8344 = vadd.f32 %v4763, %v8294
    %v8345 = vadd.f32 %v4766, %v8297
    %v8346 = vadd.f32 %v4771, %v8302
    %v8347 = vadd.f32 %v4774, %v8305
    %v8348 = vadd.f32 %v4779, %v8310
    %v8349 = vadd.f32 %v4782, %v8313
    %v8350 = vadd.f32 %v4787, %v8318
    %v8351 = vadd.f32 %v4790, %v8321
    %v8352 = vadd.f32 %v4795, %v8326
    %v8353 = vadd.f32 %v4798, %v8329
    %v8354 = vadd.f32 %v4803, %v8334
    %v8355 = vadd.f32 %v4806, %v8337
    %v8356 = vtanh.pop %v8340
    %v8357 = vtanh.pop %v8341
    %v8358 = vtanh.pop %v8342
    %v8359 = vtanh.pop %v8343
    %v8360 = vtanh.pop %v8344
    %v8361 = vtanh.pop %v8345
    %v8362 = vtanh.pop %v8346
    %v8363 = vtanh.pop %v8347
    %v8364 = vtanh.pop %v8348
    %v8365 = vtanh.pop %v8349
    %v8366 = vtanh.pop %v8350
    %v8367 = vtanh.pop %v8351
    %v8368 = vtanh.pop %v8352
    %v8369 = vtanh.pop %v8353
    %v8370 = vtanh.pop %v8354
    %v8371 = vtanh.pop %v8355
    %v8372 = vmul.f32 %v8356, %v4814
    %v8373 = vmul.f32 %v8357, %v4814
    %v8374 = vmul.f32 %v8358, %v4814
    %v8375 = vmul.f32 %v8359, %v4814
    %v8376 = vmul.f32 %v8360, %v4814
    %v8377 = vmul.f32 %v8361, %v4814
    %v8378 = vmul.f32 %v8362, %v4814
    %v8379 = vmul.f32 %v8363, %v4814
    %v8380 = vmul.f32 %v8364, %v4814
    %v8381 = vmul.f32 %v8365, %v4814
    %v8382 = vmul.f32 %v8366, %v4814
    %v8383 = vmul.f32 %v8367, %v4814
    %v8384 = vmul.f32 %v8368, %v4814
    %v8385 = vmul.f32 %v8369, %v4814
    %v8386 = vmul.f32 %v8370, %v4814
    %v8387 = vmul.f32 %v8371, %v4814
    %v8388 = vadd.f32 %v8372, %v4815
    %v8389 = vadd.f32 %v8373, %v4815
    %v8390 = vadd.f32 %v8374, %v4815
    %v8391 = vadd.f32 %v8375, %v4815
    %v8392 = vadd.f32 %v8376, %v4815
    %v8393 = vadd.f32 %v8377, %v4815
    %v8394 = vadd.f32 %v8378, %v4815
    %v8395 = vadd.f32 %v8379, %v4815
    %v8396 = vadd.f32 %v8380, %v4815
    %v8397 = vadd.f32 %v8381, %v4815
    %v8398 = vadd.f32 %v8382, %v4815
    %v8399 = vadd.f32 %v8383, %v4815
    %v8400 = vadd.f32 %v8384, %v4815
    %v8401 = vadd.f32 %v8385, %v4815
    %v8402 = vadd.f32 %v8386, %v4815
    %v8403 = vadd.f32 %v8387, %v4815
    %v8404 = vmul.f32 %v8388, %v8075
    %v8405 = vmul.f32 %v8389, %v8076
    %v8406 = vmul.f32 %v8390, %v8077
    %v8407 = vmul.f32 %v8391, %v8078
    %v8408 = vmul.f32 %v8392, %v8079
    %v8409 = vmul.f32 %v8393, %v8080
    %v8410 = vmul.f32 %v8394, %v8081
    %v8411 = vmul.f32 %v8395, %v8082
    %v8412 = vmul.f32 %v8396, %v8083
    %v8413 = vmul.f32 %v8397, %v8084
    %v8414 = vmul.f32 %v8398, %v8085
    %v8415 = vmul.f32 %v8399, %v8086
    %v8416 = vmul.f32 %v8400, %v8087
    %v8417 = vmul.f32 %v8401, %v8088
    %v8418 = vmul.f32 %v8402, %v8089
    %v8419 = vmul.f32 %v8403, %v8090
    %8436 = vrot.lane.b32.xlu0 %v8388, 64
    %v8437 = vpop.permute.xlu0 %8436
    %8438 = vrot.lane.b32.xlu0 %v8389, 64
    %v8439 = vpop.permute.xlu0 %8438
    %8440 = vrot.lane.b32.xlu0 %v8390, 64
    %v8441 = vpop.permute.xlu0 %8440
    %8442 = vrot.lane.b32.xlu0 %v8391, 64
    %v8443 = vpop.permute.xlu0 %8442
    %8444 = vrot.lane.b32.xlu0 %v8392, 64
    %v8445 = vpop.permute.xlu0 %8444
    %8446 = vrot.lane.b32.xlu0 %v8393, 64
    %v8447 = vpop.permute.xlu0 %8446
    %8448 = vrot.lane.b32.xlu0 %v8394, 64
    %v8449 = vpop.permute.xlu0 %8448
    %8450 = vrot.lane.b32.xlu0 %v8395, 64
    %v8451 = vpop.permute.xlu0 %8450
    %8452 = vrot.lane.b32.xlu0 %v8396, 64
    %v8453 = vpop.permute.xlu0 %8452
    %8454 = vrot.lane.b32.xlu0 %v8397, 64
    %v8455 = vpop.permute.xlu0 %8454
    %8456 = vrot.lane.b32.xlu0 %v8398, 64
    %v8457 = vpop.permute.xlu0 %8456
    %8458 = vrot.lane.b32.xlu0 %v8399, 64
    %v8459 = vpop.permute.xlu0 %8458
    %8460 = vrot.lane.b32.xlu0 %v8400, 64
    %v8461 = vpop.permute.xlu0 %8460
    %8462 = vrot.lane.b32.xlu0 %v8401, 64
    %v8463 = vpop.permute.xlu0 %8462
    %8464 = vrot.lane.b32.xlu0 %v8402, 64
    %v8465 = vpop.permute.xlu0 %8464
    %8466 = vrot.lane.b32.xlu0 %v8403, 64
    %v8467 = vpop.permute.xlu0 %8466
    %v8484 = vmul.f32 %v8388, %v8437
    %v8485 = vmul.f32 %v8389, %v8439
    %v8486 = vmul.f32 %v8390, %v8441
    %v8487 = vmul.f32 %v8391, %v8443
    %v8488 = vmul.f32 %v8392, %v8445
    %v8489 = vmul.f32 %v8393, %v8447
    %v8490 = vmul.f32 %v8394, %v8449
    %v8491 = vmul.f32 %v8395, %v8451
    %v8492 = vmul.f32 %v8396, %v8453
    %v8493 = vmul.f32 %v8397, %v8455
    %v8494 = vmul.f32 %v8398, %v8457
    %v8495 = vmul.f32 %v8399, %v8459
    %v8496 = vmul.f32 %v8400, %v8461
    %v8497 = vmul.f32 %v8401, %v8463
    %v8498 = vmul.f32 %v8402, %v8465
    %v8499 = vmul.f32 %v8403, %v8467
    %8516 = vrot.lane.b32.xlu0 %v8484, 32
    %v8517 = vpop.permute.xlu0 %8516
    %8518 = vrot.lane.b32.xlu0 %v8485, 32
    %v8519 = vpop.permute.xlu0 %8518
    %8520 = vrot.lane.b32.xlu0 %v8486, 32
    %v8521 = vpop.permute.xlu0 %8520
    %8522 = vrot.lane.b32.xlu0 %v8487, 32
    %v8523 = vpop.permute.xlu0 %8522
    %8524 = vrot.lane.b32.xlu0 %v8488, 32
    %v8525 = vpop.permute.xlu0 %8524
    %8526 = vrot.lane.b32.xlu0 %v8489, 32
    %v8527 = vpop.permute.xlu0 %8526
    %8528 = vrot.lane.b32.xlu0 %v8490, 32
    %v8529 = vpop.permute.xlu0 %8528
    %8530 = vrot.lane.b32.xlu0 %v8491, 32
    %v8531 = vpop.permute.xlu0 %8530
    %8532 = vrot.lane.b32.xlu0 %v8492, 32
    %v8533 = vpop.permute.xlu0 %8532
    %8534 = vrot.lane.b32.xlu0 %v8493, 32
    %v8535 = vpop.permute.xlu0 %8534
    %8536 = vrot.lane.b32.xlu0 %v8494, 32
    %v8537 = vpop.permute.xlu0 %8536
    %8538 = vrot.lane.b32.xlu0 %v8495, 32
    %v8539 = vpop.permute.xlu0 %8538
    %8540 = vrot.lane.b32.xlu0 %v8496, 32
    %v8541 = vpop.permute.xlu0 %8540
    %8542 = vrot.lane.b32.xlu0 %v8497, 32
    %v8543 = vpop.permute.xlu0 %8542
    %8544 = vrot.lane.b32.xlu0 %v8498, 32
    %v8545 = vpop.permute.xlu0 %8544
    %8546 = vrot.lane.b32.xlu0 %v8499, 32
    %v8547 = vpop.permute.xlu0 %8546
    %v8564 = vadd.f32 %v8404, %v8517
    %v8565 = vadd.f32 %v8405, %v8519
    %v8566 = vadd.f32 %v8406, %v8521
    %v8567 = vadd.f32 %v8407, %v8523
    %v8568 = vadd.f32 %v8408, %v8525
    %v8569 = vadd.f32 %v8409, %v8527
    %v8570 = vadd.f32 %v8410, %v8529
    %v8571 = vadd.f32 %v8411, %v8531
    %v8572 = vadd.f32 %v8412, %v8533
    %v8573 = vadd.f32 %v8413, %v8535
    %v8574 = vadd.f32 %v8414, %v8537
    %v8575 = vadd.f32 %v8415, %v8539
    %v8576 = vadd.f32 %v8416, %v8541
    %v8577 = vadd.f32 %v8417, %v8543
    %v8578 = vadd.f32 %v8418, %v8545
    %v8579 = vadd.f32 %v8419, %v8547
    %v8580 = vtanh.pop %v8564
    %v8581 = vtanh.pop %v8565
    %v8582 = vtanh.pop %v8566
    %v8583 = vtanh.pop %v8567
    %v8584 = vtanh.pop %v8568
    %v8585 = vtanh.pop %v8569
    %v8586 = vtanh.pop %v8570
    %v8587 = vtanh.pop %v8571
    %v8588 = vtanh.pop %v8572
    %v8589 = vtanh.pop %v8573
    %v8590 = vtanh.pop %v8574
    %v8591 = vtanh.pop %v8575
    %v8592 = vtanh.pop %v8576
    %v8593 = vtanh.pop %v8577
    %v8594 = vtanh.pop %v8578
    %v8595 = vtanh.pop %v8579
    %8612 = vrot.lane.b32.xlu0 %v8580, 64
    %v8613 = vpop.permute.xlu0 %8612
    %8614 = vrot.lane.b32.xlu0 %v8581, 64
    %v8615 = vpop.permute.xlu0 %8614
    %8616 = vrot.lane.b32.xlu0 %v8582, 64
    %v8617 = vpop.permute.xlu0 %8616
    %8618 = vrot.lane.b32.xlu0 %v8583, 64
    %v8619 = vpop.permute.xlu0 %8618
    %8620 = vrot.lane.b32.xlu0 %v8584, 64
    %v8621 = vpop.permute.xlu0 %8620
    %8622 = vrot.lane.b32.xlu0 %v8585, 64
    %v8623 = vpop.permute.xlu0 %8622
    %8624 = vrot.lane.b32.xlu0 %v8586, 64
    %v8625 = vpop.permute.xlu0 %8624
    %8626 = vrot.lane.b32.xlu0 %v8587, 64
    %v8627 = vpop.permute.xlu0 %8626
    %8628 = vrot.lane.b32.xlu0 %v8588, 64
    %v8629 = vpop.permute.xlu0 %8628
    %8630 = vrot.lane.b32.xlu0 %v8589, 64
    %v8631 = vpop.permute.xlu0 %8630
    %8632 = vrot.lane.b32.xlu0 %v8590, 64
    %v8633 = vpop.permute.xlu0 %8632
    %8634 = vrot.lane.b32.xlu0 %v8591, 64
    %v8635 = vpop.permute.xlu0 %8634
    %8636 = vrot.lane.b32.xlu0 %v8592, 64
    %v8637 = vpop.permute.xlu0 %8636
    %8638 = vrot.lane.b32.xlu0 %v8593, 64
    %v8639 = vpop.permute.xlu0 %8638
    %8640 = vrot.lane.b32.xlu0 %v8594, 64
    %v8641 = vpop.permute.xlu0 %8640
    %8642 = vrot.lane.b32.xlu0 %v8595, 64
    %v8643 = vpop.permute.xlu0 %8642
    %v8660 = vmul.f32 %v8388, %v8613
    %v8661 = vmul.f32 %v8389, %v8615
    %v8662 = vmul.f32 %v8390, %v8617
    %v8663 = vmul.f32 %v8391, %v8619
    %v8664 = vmul.f32 %v8392, %v8621
    %v8665 = vmul.f32 %v8393, %v8623
    %v8666 = vmul.f32 %v8394, %v8625
    %v8667 = vmul.f32 %v8395, %v8627
    %v8668 = vmul.f32 %v8396, %v8629
    %v8669 = vmul.f32 %v8397, %v8631
    %v8670 = vmul.f32 %v8398, %v8633
    %v8671 = vmul.f32 %v8399, %v8635
    %v8672 = vmul.f32 %v8400, %v8637
    %v8673 = vmul.f32 %v8401, %v8639
    %v8674 = vmul.f32 %v8402, %v8641
    %v8675 = vmul.f32 %v8403, %v8643
    %v8676 = vlaneseq
    %v8677 = vshrl.u32 %v8676, 7
    %v8678 = vsub.s32 0, %v8677
    %v8679 = vrot.slane %v27, %v8678
    %8696 = vrot.lane.b32.xlu0 %v8660, 32
    %v8697 = vpop.permute.xlu0 %8696
    %8698 = vrot.lane.b32.xlu0 %v8661, 32
    %v8699 = vpop.permute.xlu0 %8698
    %8700 = vrot.lane.b32.xlu0 %v8662, 32
    %v8701 = vpop.permute.xlu0 %8700
    %8702 = vrot.lane.b32.xlu0 %v8663, 32
    %v8703 = vpop.permute.xlu0 %8702
    %8704 = vrot.lane.b32.xlu0 %v8664, 32
    %v8705 = vpop.permute.xlu0 %8704
    %8706 = vrot.lane.b32.xlu0 %v8665, 32
    %v8707 = vpop.permute.xlu0 %8706
    %8708 = vrot.lane.b32.xlu0 %v8666, 32
    %v8709 = vpop.permute.xlu0 %8708
    %8710 = vrot.lane.b32.xlu0 %v8667, 32
    %v8711 = vpop.permute.xlu0 %8710
    %8712 = vrot.lane.b32.xlu0 %v8668, 32
    %v8713 = vpop.permute.xlu0 %8712
    %8714 = vrot.lane.b32.xlu0 %v8669, 32
    %v8715 = vpop.permute.xlu0 %8714
    %8716 = vrot.lane.b32.xlu0 %v8670, 32
    %v8717 = vpop.permute.xlu0 %8716
    %8718 = vrot.lane.b32.xlu0 %v8671, 32
    %v8719 = vpop.permute.xlu0 %8718
    %8720 = vrot.lane.b32.xlu0 %v8672, 32
    %v8721 = vpop.permute.xlu0 %8720
    %8722 = vrot.lane.b32.xlu0 %v8673, 32
    %v8723 = vpop.permute.xlu0 %8722
    %8724 = vrot.lane.b32.xlu0 %v8674, 32
    %v8725 = vpop.permute.xlu0 %8724
    %8726 = vrot.lane.b32.xlu0 %v8675, 32
    %v8727 = vpop.permute.xlu0 %8726
    %v8728 = vsel %vm4816, %v8697, 0
    %v8730 = vsel %vm4816, %v8699, 0
    %v8732 = vsel %vm4816, %v8701, 0
    %v8734 = vsel %vm4816, %v8703, 0
    %v8736 = vsel %vm4816, %v8705, 0
    %v8738 = vsel %vm4816, %v8707, 0
    %v8740 = vsel %vm4816, %v8709, 0
    %v8742 = vsel %vm4816, %v8711, 0
    %v8744 = vsel %vm4816, %v8713, 0
    %v8746 = vsel %vm4816, %v8715, 0
    %v8748 = vsel %vm4816, %v8717, 0
    %v8750 = vsel %vm4816, %v8719, 0
    %v8752 = vsel %vm4816, %v8721, 0
    %v8754 = vsel %vm4816, %v8723, 0
    %v8756 = vsel %vm4816, %v8725, 0
    %v8758 = vsel %vm4816, %v8727, 0
    %8760 = vmatprep.subr.mxu0 0.0
    %8761 = vmatpush1.msra.mxu0 %v23
    %8762 = vmatprep.subr.mxu0 0.0
    %8763 = vmatpush1.msra.mxu0 %v24
    %8764 = vmatprep.subr.mxu0 0.0
    %8765 = vmatpush1.msra.mxu0 %v25
    %8766 = vmatprep.subr.mxu0 0.0
    %8767 = vmatpush1.msra.mxu0 %v26
    %8768 = vmatprep.subr.mxu0 0.0
    %8769 = vmatpush1.msra.mxu0 0.0
    %8770 = vmatprep.subr.mxu0 0.0
    %8771 = vmatpush1.msra.mxu0 0.0
    %8772 = vmatprep.subr.mxu0 0.0
    %8773 = vmatpush1.msra.mxu0 0.0
    %8774 = vmatprep.subr.mxu0 0.0
    %8775 = vmatpush1.msra.mxu0 0.0
    %8776 = vmatprep.subr.mxu0 0.0
    %8777 = vmatpush1.msra.mxu0 0.0
    %8778 = vmatprep.subr.mxu0 0.0
    %8779 = vmatpush1.msra.mxu0 0.0
    %8780 = vmatprep.subr.mxu0 0.0
    %8781 = vmatpush1.msra.mxu0 0.0
    %8782 = vmatprep.subr.mxu0 0.0
    %8783 = vmatpush1.msra.mxu0 0.0
    %8784 = vmatprep.subr.mxu0 0.0
    %8785 = vmatpush1.msra.mxu0 0.0
    %8786 = vmatprep.subr.mxu0 0.0
    %8787 = vmatpush1.msra.mxu0 0.0
    %8788 = vmatprep.subr.mxu0 0.0
    %8789 = vmatpush1.msra.mxu0 0.0
    %8790 = vmatprep.subr.mxu0 0.0
    %8791 = vmatpush1.msra.mxu0 0.0
    %8792 = vmatprep.subr.mxu0 0.0
    %8793 = vmatpush1.msra.mxu0 0.0
    %8794 = vmatprep.subr.mxu0 0.0
    %8795 = vmatpush1.msra.mxu0 0.0
    %8796 = vmatprep.subr.mxu0 0.0
    %8797 = vmatpush1.msra.mxu0 0.0
    %8798 = vmatprep.subr.mxu0 0.0
    %8799 = vmatpush1.msra.mxu0 0.0
    %8800 = vmatprep.subr.mxu0 0.0
    %8801 = vmatpush1.msra.mxu0 0.0
    %8802 = vmatprep.subr.mxu0 0.0
    %8803 = vmatpush1.msra.mxu0 0.0
    %8804 = vmatprep.subr.mxu0 0.0
    %8805 = vmatpush1.msra.mxu0 0.0
    %8806 = vmatprep.subr.mxu0 0.0
    %8807 = vmatpush1.msra.mxu0 0.0
    %8808 = vmatprep.subr.mxu0 0.0
    %8809 = vmatpush1.msra.mxu0 0.0
    %8810 = vmatprep.subr.mxu0 0.0
    %8811 = vmatpush1.msra.mxu0 0.0
    %8812 = vmatprep.subr.mxu0 0.0
    %8813 = vmatpush1.msra.mxu0 0.0
    %8814 = vmatprep.subr.mxu0 0.0
    %8815 = vmatpush1.msra.mxu0 0.0
    %8816 = vmatprep.subr.mxu0 0.0
    %8817 = vmatpush1.msra.mxu0 0.0
    %8818 = vmatprep.subr.mxu0 0.0
    %8819 = vmatpush1.msra.mxu0 0.0
    %8820 = vmatprep.subr.mxu0 0.0
    %8821 = vmatpush1.msra.mxu0 0.0
    %8822 = vmatprep.subr.mxu0 0.0
    %8823 = vmatpush1.msra.mxu0 0.0
    %8824 = vmatprep.mubr.f32.mxu0 0.0
    %8825 = vmatmul.mubr.f32.gmra.mrb[0].mxu0 %v8728
    %v8826 = vpop.f32.mrb[0].mxu0
    %v8827 = vadd.f32 %v8679, %v8826
    %v8828 = vpop.f32.mrb[0].mxu0
    %8829 = vmatprep.mubr.f32.mxu0 0.0
    %8830 = vmatmul.mubr.f32.gmra.mrb[0].mxu0 %v8730
    %v8831 = vpop.f32.mrb[0].mxu0
    %v8832 = vadd.f32 %v8679, %v8831
    %v8833 = vpop.f32.mrb[0].mxu0
    %8834 = vmatprep.mubr.f32.mxu0 0.0
    %8835 = vmatmul.mubr.f32.gmra.mrb[0].mxu0 %v8732
    %v8836 = vpop.f32.mrb[0].mxu0
    %v8837 = vadd.f32 %v8679, %v8836
    %v8838 = vpop.f32.mrb[0].mxu0
    %8839 = vmatprep.mubr.f32.mxu0 0.0
    %8840 = vmatmul.mubr.f32.gmra.mrb[0].mxu0 %v8734
    %v8841 = vpop.f32.mrb[0].mxu0
    %v8842 = vadd.f32 %v8679, %v8841
    %v8843 = vpop.f32.mrb[0].mxu0
    %8844 = vmatprep.mubr.f32.mxu0 0.0
    %8845 = vmatmul.mubr.f32.gmra.mrb[0].mxu0 %v8736
    %v8846 = vpop.f32.mrb[0].mxu0
    %v8847 = vadd.f32 %v8679, %v8846
    %v8848 = vpop.f32.mrb[0].mxu0
    %8849 = vmatprep.mubr.f32.mxu0 0.0
    %8850 = vmatmul.mubr.f32.gmra.mrb[0].mxu0 %v8738
    %v8851 = vpop.f32.mrb[0].mxu0
    %v8852 = vadd.f32 %v8679, %v8851
    %v8853 = vpop.f32.mrb[0].mxu0
    %8854 = vmatprep.mubr.f32.mxu0 0.0
    %8855 = vmatmul.mubr.f32.gmra.mrb[0].mxu0 %v8740
    %v8856 = vpop.f32.mrb[0].mxu0
    %v8857 = vadd.f32 %v8679, %v8856
    %v8858 = vpop.f32.mrb[0].mxu0
    %8859 = vmatprep.mubr.f32.mxu0 0.0
    %8860 = vmatmul.mubr.f32.gmra.mrb[0].mxu0 %v8742
    %v8861 = vpop.f32.mrb[0].mxu0
    %v8862 = vadd.f32 %v8679, %v8861
    %v8863 = vpop.f32.mrb[0].mxu0
    %8864 = vmatprep.mubr.f32.mxu0 0.0
    %8865 = vmatmul.mubr.f32.gmra.mrb[0].mxu0 %v8744
    %v8866 = vpop.f32.mrb[0].mxu0
    %v8867 = vadd.f32 %v8679, %v8866
    %v8868 = vpop.f32.mrb[0].mxu0
    %8869 = vmatprep.mubr.f32.mxu0 0.0
    %8870 = vmatmul.mubr.f32.gmra.mrb[0].mxu0 %v8746
    %v8871 = vpop.f32.mrb[0].mxu0
    %v8872 = vadd.f32 %v8679, %v8871
    %v8873 = vpop.f32.mrb[0].mxu0
    %8874 = vmatprep.mubr.f32.mxu0 0.0
    %8875 = vmatmul.mubr.f32.gmra.mrb[0].mxu0 %v8748
    %v8876 = vpop.f32.mrb[0].mxu0
    %v8877 = vadd.f32 %v8679, %v8876
    %v8878 = vpop.f32.mrb[0].mxu0
    %8879 = vmatprep.mubr.f32.mxu0 0.0
    %8880 = vmatmul.mubr.f32.gmra.mrb[0].mxu0 %v8750
    %v8881 = vpop.f32.mrb[0].mxu0
    %v8882 = vadd.f32 %v8679, %v8881
    %v8883 = vpop.f32.mrb[0].mxu0
    %8884 = vmatprep.mubr.f32.mxu0 0.0
    %8885 = vmatmul.mubr.f32.gmra.mrb[0].mxu0 %v8752
    %v8886 = vpop.f32.mrb[0].mxu0
    %v8887 = vadd.f32 %v8679, %v8886
    %v8888 = vpop.f32.mrb[0].mxu0
    %8889 = vmatprep.mubr.f32.mxu0 0.0
    %8890 = vmatmul.mubr.f32.gmra.mrb[0].mxu0 %v8754
    %v8891 = vpop.f32.mrb[0].mxu0
    %v8892 = vadd.f32 %v8679, %v8891
    %v8893 = vpop.f32.mrb[0].mxu0
    %8894 = vmatprep.mubr.f32.mxu0 0.0
    %8895 = vmatmul.mubr.f32.gmra.mrb[0].mxu0 %v8756
    %v8896 = vpop.f32.mrb[0].mxu0
    %v8897 = vadd.f32 %v8679, %v8896
    %v8898 = vpop.f32.mrb[0].mxu0
    %8899 = vmatprep.mubr.f32.mxu0 0.0
    %8900 = vmatmul.mubr.f32.gmra.mrb[0].mxu0 %v8758
    %v8901 = vpop.f32.mrb[0].mxu0
    %v8902 = vadd.f32 %v8679, %v8901
    %v8903 = vpop.f32.mrb[0].mxu0
    %8904 = vdwg.mxu0
    %8905 = vst [vmem:[#allocation2] sm:$0xff] %v8827
    %8906 = vst [vmem:[#allocation2 + $0x8] sm:$0xff] %v8832
    %8907 = vst [vmem:[#allocation2 + $0x10] sm:$0xff] %v8837
    %8908 = vst [vmem:[#allocation2 + $0x18] sm:$0xff] %v8842
    %8909 = vst [vmem:[#allocation2 + $0x20] sm:$0xff] %v8847
    %8910 = vst [vmem:[#allocation2 + $0x28] sm:$0xff] %v8852
    %8911 = vst [vmem:[#allocation2 + $0x30] sm:$0xff] %v8857
    %8912 = vst [vmem:[#allocation2 + $0x38] sm:$0xff] %v8862
    %8913 = vst [vmem:[#allocation2 + $0x40] sm:$0xff] %v8867
    %8914 = vst [vmem:[#allocation2 + $0x48] sm:$0xff] %v8872
    %8915 = vst [vmem:[#allocation2 + $0x50] sm:$0xff] %v8877
    %8916 = vst [vmem:[#allocation2 + $0x58] sm:$0xff] %v8882
    %8917 = vst [vmem:[#allocation2 + $0x60] sm:$0xff] %v8887
    %8918 = vst [vmem:[#allocation2 + $0x68] sm:$0xff] %v8892
    %8919 = vst [vmem:[#allocation2 + $0x70] sm:$0xff] %v8897
    %8920 = vst [vmem:[#allocation2 + $0x78] sm:$0xff] %v8902
    // Predicated region
    $region10: #{tpu_custom_call.1} parent=1 // pred_check
      _
    $region11: #{tpu_custom_call.1} parent=1 // pred_check_branch
      %8922 = sbr.rel (0) target = $region13
    $region12: #{tpu_custom_call.1} parent=1 // pred_region
      %s8924 = ssub.s32 2048, 2048
      %8925 = vsyncadd [#allocation3], %s8924
      %s8926 = sshll.u32 [#allocation2], 4
      %s8927 = int_to_ptr.vmem [resolvable:$true] %s8926
      %8932 = dma.vmem_to_hbm [thread:$0]  %s8927, 2048, %s2, [#allocation3], 128, 128, 8
    $region13: #{tpu_custom_call.1} parent=1 // pred_fallthru
      _
    // Predicated region
    $region14: #{tpu_custom_call.1} parent=1 // pred_check
      _
    $region15: #{tpu_custom_call.1} parent=1 // pred_check_branch
      %8934 = sbr.rel (0) target = $region17
    $region16: #{tpu_custom_call.1} parent=1 // pred_region
      %8935 = dma.done [#allocation3], 2048
    $region17: #{tpu_custom_call.1} parent=1 // pred_fallthru
      _
    %8936 = vsyncpa [#allocation3], 1

</llo_original>
